<compile_context>
chip_gen: v7x
topology: tpu7x:2x2x1
jax: 0.10.0
libtpu: 0.0.40
codegen_flags: <defaults>
</compile_context>

<pallas_src>
import functools
import math

import jax
import jax.numpy as jnp
from jax.experimental import pallas as pl
from jax.experimental.pallas import tpu as pltpu


# Operand dtype for the big conv matmul. Kept f32 to stay numerically close to the f32
# torch reference; flip to jnp.bfloat16 on v6e/v7x for the fast MXU path (accumulation
# stays f32 via preferred_element_type either way; demod/epilogue math stays f32).
MXU_OPERAND_DTYPE = jnp.float32


# ----------------------------------------------------------------------------
# Pallas kernels
# ----------------------------------------------------------------------------
def _styles_kernel(w_ref, w1_ref, b1_ref, a1_ref, w2_ref, b2_ref, a2_ref,
                   sw_ref, sb_ref, o_ref):
    """All NH style heads at once.

    w_ref : (B, D)        latent
    w1/w2 : (NH, D, D)    stacked EqualizedLinear weights (pre-scaled by 1/sqrt(D))
    b1/b2 : (NH, D)       biases,  a1/a2: (NH, D) PReLU slopes
    sw    : (NH, Cmax, D) final EqualizedLinear weights (zero-padded to Cmax rows)
    sb    : (NH, Cmax)
    o_ref : (NH, B, Cmax) styles
    """
    NH = w1_ref.shape[0]
    B, D = w_ref.shape

    w = w_ref[...]
    norm = jnp.sqrt(jnp.sum(w * w, axis=1, keepdims=True))
    z = w / jnp.maximum(norm, 1e-12)                              # F.normalize(dim=1)
    zb = jnp.broadcast_to(z[None, :, :], (NH, B, D))

    h = jnp.einsum("hbd,hed->hbe", zb, w1_ref[...],
                   preferred_element_type=jnp.float32) + b1_ref[...][:, None, :]
    h = jnp.where(h >= 0.0, h, a1_ref[...][:, None, :] * h)        # PReLU

    h = jnp.einsum("hbd,hed->hbe", h, w2_ref[...],
                   preferred_element_type=jnp.float32) + b2_ref[...][:, None, :]
    h = jnp.where(h >= 0.0, h, a2_ref[...][:, None, :] * h)        # PReLU

    s = jnp.einsum("hbd,hcd->hbc", h, sw_ref[...],
                   preferred_element_type=jnp.float32) + sb_ref[...][:, None, :]
    o_ref[...] = s.astype(o_ref.dtype)


def compute_styles(sp, w):
    NH, _, D = sp["w1"].shape
    Cmax = sp["sw"].shape[1]
    B = w.shape[0]
    return pl.pallas_call(
        _styles_kernel,
        out_shape=jax.ShapeDtypeStruct((NH, B, Cmax), w.dtype),
        in_specs=[pl.BlockSpec(memory_space=pltpu.MemorySpace.VMEM)] * 9,
        out_specs=pl.BlockSpec(memory_space=pltpu.MemorySpace.VMEM),
    )(w, sp["w1"], sp["b1"], sp["a1"], sp["w2"], sp["b2"], sp["a2"], sp["sw"], sp["sb"])


def _modconv_kernel(*refs, eps, act):
    """Modulated conv as one matmul + fused demod/noise/bias/activation epilogue.

    patch_ref: (M, Ckk)   style-modulated im2col patches, M = B*H*W
    w_ref    : (Ckk, Cout) equalized base weight, flattened (kh,kw,cin) x cout
    srow_ref : (M, Cin)    style per output row (row's batch element)
    w2_ref   : (Cin, Cout) sum over k*k taps of w^2 (for the demod factor)
    noise_ref: (M, 1)      per-pixel noise, already multiplied by scale_noise
    bias_ref : (1, Cout)
    alpha_ref: (1, Cout)   PReLU slopes (only passed when act == 'prelu')
    o_ref    : (M, Cout)
    """
    if act == "prelu":
        patch_ref, w_ref, srow_ref, w2_ref, noise_ref, bias_ref, alpha_ref, o_ref = refs
    else:
        patch_ref, w_ref, srow_ref, w2_ref, noise_ref, bias_ref, o_ref = refs
        alpha_ref = None

    # One big MXU matmul over all batch elements / pixels.
    y = jnp.dot(patch_ref[...].astype(MXU_OPERAND_DTYPE),
                w_ref[...].astype(MXU_OPERAND_DTYPE),
                preferred_element_type=jnp.float32)                 # (M, Cout)

    # Demodulation: sigma_inv[b,cout] = rsqrt(sum_cin s^2 * sum_kk w^2 + eps), per row.
    s = srow_ref[...]
    sig = jax.lax.rsqrt(
        jnp.dot(s * s, w2_ref[...], preferred_element_type=jnp.float32) + eps)
    y = y * sig

    y = y + noise_ref[...]            # (M, 1) broadcast over channels
    y = y + bias_ref[...]             # (1, Cout) broadcast over rows
    if act == "prelu":
        y = jnp.where(y >= 0.0, y, alpha_ref[...] * y)
    elif act == "sigmoid":
        y = jax.nn.sigmoid(y)
    o_ref[...] = y.astype(o_ref.dtype)


def modulated_conv_matmul(patches, wflat, s_rows, w2sum, noise, bias, alpha, *, eps, act):
    M, _ = patches.shape
    Cout = wflat.shape[1]
    args = [patches, wflat, s_rows, w2sum, noise, bias.reshape(1, Cout)]
    if act == "prelu":
        args.append(alpha.reshape(1, Cout))
    return pl.pallas_call(
        functools.partial(_modconv_kernel, eps=eps, act=act),
        out_shape=jax.ShapeDtypeStruct((M, Cout), patches.dtype),
        in_specs=[pl.BlockSpec(memory_space=pltpu.MemorySpace.VMEM)] * len(args),
        out_specs=pl.BlockSpec(memory_space=pltpu.MemorySpace.VMEM),
    )(*args)


# ----------------------------------------------------------------------------
# Plain-JAX glue (im2col / pooling / layout)
# ----------------------------------------------------------------------------
def im2col_replicate_nhwc(x, k):
    """Replicate-padded im2col: (B,H,W,C) -> (B, H*W, k*k*C), tap order (kh, kw, c)."""
    B, H, W, C = x.shape
    p = (k - 1) // 2
    rows = jnp.clip(jnp.arange(H)[:, None] + jnp.arange(k)[None, :] - p, 0, H - 1)
    cols = jnp.clip(jnp.arange(W)[:, None] + jnp.arange(k)[None, :] - p, 0, W - 1)
    xg = x[:, rows]                       # (B, H, kh, W, C)
    xg = xg[:, :, :, cols]                # (B, H, kh, W, kw, C)
    patches = jnp.transpose(xg, (0, 1, 3, 2, 4, 5)).reshape(B, H * W, k * k * C)
    return patches


def style_conv_forward(conv, s_full, x_nhwc, noise_key):
    """StyleConv forward: modulate input by style -> one matmul conv -> demod/noise/bias/act."""
    B, H, W, Cin = x_nhwc.shape
    k, cout = conv["k"], conv["cout"]
    HW = H * W

    s = s_full[:, :Cin]                                    # (B, Cin)
    x_mod = x_nhwc * s[:, None, None, :]                   # StyleGAN2 input-scaling modulation
    if k == 1:
        patches = x_mod.reshape(B * HW, Cin)               # no gather for 1x1 convs
    else:
        patches = im2col_replicate_nhwc(x_mod, k).reshape(B * HW, k * k * Cin)
    s_rows = jnp.broadcast_to(s[:, None, :], (B, HW, Cin)).reshape(B * HW, Cin)

    # TODO(synk): torch.randn noise cannot be bit-matched; deterministic jax.random noise used.
    noise = conv["scale_noise"][0] * jax.random.normal(noise_key, (B * HW, 1), x_nhwc.dtype)

    y = modulated_conv_matmul(patches, conv["wflat"], s_rows, conv["w2sum"], noise,
                              conv["bias"], conv["alpha"], eps=1e-8, act=conv["act"])
    return y.reshape(B, H, W, cout)


def se_style_block_forward(branch, x_nhwc, styles, keys):
    convs, base = branch["convs"], branch["head_base"]
    y = x_nhwc
    for i in range(3):                                     # StyleBlock: 3x (StyleConv + PReLU)
        y = style_conv_forward(convs[i], styles[base + i], y, keys[base + i])
    se = jnp.mean(y, axis=(1, 2), keepdims=True)           # SEBlock global avg pool
    for i in range(3, 5):                                  # SEBlock: conv+PReLU, conv+Sigmoid
        se = style_conv_forward(convs[i], styles[base + i], se, keys[base + i])
    return y * se


def resnet_init_forward(params, x_residual, x_transient, w, key):
    # NCHW -> NHWC once at the module boundary; channels-last through the whole chain.
    xr = jnp.transpose(x_residual, (0, 2, 3, 1))
    xt = jnp.transpose(x_transient, (0, 2, 3, 1))

    styles = compute_styles(params["style"], w)            # one Pallas call, all 20 heads
    keys = jax.random.split(key, styles.shape[0])

    br = params["branches"]
    r_r = se_style_block_forward(br["residual"], xr, styles, keys)
    r_t = se_style_block_forward(br["residual_across"], xr, styles, keys)
    t_t = se_style_block_forward(br["transient"], xt, styles, keys)
    t_r = se_style_block_forward(br["transient_across"], xt, styles, keys)

    out_r = jnp.transpose(r_r + t_r, (0, 3, 1, 2))
    out_t = jnp.transpose(r_t + t_t, (0, 3, 1, 2))
    return out_r, out_t


# ----------------------------------------------------------------------------
# Deterministic parameter init (mirrors module __init__; equalized scale pre-applied)
# ----------------------------------------------------------------------------
def _init_style_conv(key, d_latent, cin, cout, k):
    ks = jax.random.split(key, 7)
    c_lin = 1.0 / math.sqrt(d_latent)
    head = dict(
        w1=jax.random.normal(ks[0], (d_latent, d_latent), jnp.float32) * c_lin,
        b1=jnp.zeros((d_latent,), jnp.float32),
        a1=jnp.full((d_latent,), 0.25, jnp.float32),
        w2=jax.random.normal(ks[1], (d_latent, d_latent), jnp.float32) * c_lin,
        b2=jnp.zeros((d_latent,), jnp.float32),
        a2=jnp.full((d_latent,), 0.25, jnp.float32),
        sw=jax.random.normal(ks[2], (cin, d_latent), jnp.float32) * c_lin,
        # torch: bias = Parameter(normal(out) * bias_scale) with bias_scale=1.0
        sb=jax.random.normal(ks[3], (cin,), jnp.float32) * 1.0,
    )
    c_conv = 1.0 / math.sqrt(cin * k * k)
    w = jax.random.normal(ks[4], (cout, cin, k, k), jnp.float32) * c_conv
    conv = dict(
        k=k, cin=cin, cout=cout,
        wflat=jnp.transpose(w, (2, 3, 1, 0)).reshape(k * k * cin, cout),   # (kh,kw,cin)xcout
        w2sum=jnp.transpose(jnp.sum(w * w, axis=(2, 3)), (1, 0)),          # (cin, cout)
        scale_noise=jax.random.normal(ks[5], (1,), jnp.float32),
        bias=jax.random.normal(ks[6], (cout,), jnp.float32),
    )
    return head, conv


def _init_se_style_block(key, d_latent, last, cin, cout, dd, k):
    ks = jax.random.split(key, 5)
    specs = [
        (last, cin, 1, "prelu"),          # StyleBlock.conv1 + activation1
        (cin, cin, k, "prelu"),           # StyleBlock.conv2 + activation2
        (cin, cout + dd, k, "prelu"),     # StyleBlock.conv3 + activation3
        (cout + dd, cin, 1, "prelu"),     # SEBlock.conv1 + activation1
        (cin, cout + dd, 1, "sigmoid"),   # SEBlock.conv2 + sigmoid
    ]
    heads, convs = [], []
    for kk, (ci, co, ksz, act) in zip(ks, specs):
        h, c = _init_style_conv(kk, d_latent, ci, co, ksz)
        c["act"] = act
        c["alpha"] = jnp.full((co,), 0.25, jnp.float32) if act == "prelu" else None
        heads.append(h)
        convs.append(c)
    return heads, convs


def init_resnet_init(key, d_latent, last, cin, cout, dd, k):
    ks = jax.random.split(key, 4)
    branch_cfg = [("residual", dd), ("transient", 0),
                  ("residual_across", 0), ("transient_across", dd)]
    all_heads, branches = [], {}
    for kb, (name, dd_b) in zip(ks, branch_cfg):
        heads, convs = _init_se_style_block(kb, d_latent, last, cin, cout, dd_b, k)
        branches[name] = dict(convs=convs, head_base=len(all_heads))
        all_heads.extend(heads)

    cmax = max(h["sw"].shape[0] for h in all_heads)

    def pad0(a, n):
        return jnp.pad(a, [(0, n - a.shape[0])] + [(0, 0)] * (a.ndim - 1))

    style = dict(
        w1=jnp.stack([h["w1"] for h in all_heads]),
        b1=jnp.stack([h["b1"] for h in all_heads]),
        a1=jnp.stack([h["a1"] for h in all_heads]),
        w2=jnp.stack([h["w2"] for h in all_heads]),
        b2=jnp.stack([h["b2"] for h in all_heads]),
        a2=jnp.stack([h["a2"] for h in all_heads]),
        sw=jnp.stack([pad0(h["sw"], cmax) for h in all_heads]),
        sb=jnp.stack([pad0(h["sb"], cmax) for h in all_heads]),
    )
    return dict(style=style, branches=branches)


# ----------------------------------------------------------------------------
if __name__ == "__main__":
    d_latent, last_planes, in_planes, out_planes, dense_depth, kernel_size = 16, 8, 8, 8, 8, 3
    B, H, W = 2, 8, 8

    root = jax.random.PRNGKey(0)
    kp, kx1, kx2, kw, kn = jax.random.split(root, 5)

    params = init_resnet_init(kp, d_latent, last_planes, in_planes,
                              out_planes, dense_depth, kernel_size)

    x_residual = jax.random.normal(kx1, (B, last_planes, H, W), jnp.float32)
    x_transient = jax.random.normal(kx2, (B, last_planes, H, W), jnp.float32)
    w = jax.random.normal(kw, (B, d_latent), jnp.float32)

    forward = jax.jit(lambda xr, xt, ww, key: resnet_init_forward(params, xr, xt, ww, key))
    out_r, out_t = forward(x_residual, x_transient, w, kn)
    jax.block_until_ready((out_r, out_t))

    assert out_r.shape == (B, out_planes + dense_depth, H, W)
    assert out_t.shape == (B, out_planes, H, W)
    assert bool(jnp.all(jnp.isfinite(out_r))) and bool(jnp.all(jnp.isfinite(out_t)))
    print("KERNEL_OK")
</pallas_src>

<mosaic_0001>
module attributes {stable_mosaic.version = 11 : i64} {
  func.func @_styles_kernel(%arg0: memref<2x16xf32, #tpu.memory_space<vmem>>, %arg1: memref<20x16x16xf32, #tpu.memory_space<vmem>>, %arg2: memref<20x16xf32, #tpu.memory_space<vmem>>, %arg3: memref<20x16xf32, #tpu.memory_space<vmem>>, %arg4: memref<20x16x16xf32, #tpu.memory_space<vmem>>, %arg5: memref<20x16xf32, #tpu.memory_space<vmem>>, %arg6: memref<20x16xf32, #tpu.memory_space<vmem>>, %arg7: memref<20x16x16xf32, #tpu.memory_space<vmem>>, %arg8: memref<20x16xf32, #tpu.memory_space<vmem>>, %arg9: memref<20x2x16xf32, #tpu.memory_space<vmem>>) attributes {dimension_semantics = [], scalar_prefetch = 0 : i64, scratch_operands = 0 : i64, tpu.core_type = #tpu.core_type<tc>} {
    %c0 = arith.constant 0 : index
    %c0_0 = arith.constant 0 : index
    %0 = vector.load %arg0[%c0, %c0_0] : memref<2x16xf32, #tpu.memory_space<vmem>>, vector<2x16xf32>
    %1 = arith.mulf %0, %0 : vector<2x16xf32>
    %cst = arith.constant dense<0.000000e+00> : vector<2xf32>
    %2 = vector.multi_reduction <add>, %1, %cst [1] : vector<2x16xf32> to vector<2xf32>
    %3 = vector.shape_cast %2 : vector<2xf32> to vector<2x1xf32>
    %4 = math.sqrt %3 : vector<2x1xf32>
    %cst_1 = arith.constant 9.99999996E-13 : f32
    %5 = vector.broadcast %cst_1 : f32 to vector<2x1xf32>
    %6 = arith.maximumf %4, %5 : vector<2x1xf32>
    %7 = vector.broadcast %6 : vector<2x1xf32> to vector<2x16xf32>
    %8 = arith.divf %0, %7 : vector<2x16xf32>
    %9 = vector.shape_cast %8 : vector<2x16xf32> to vector<1x2x16xf32>
    %10 = vector.shape_cast %9 : vector<1x2x16xf32> to vector<1x2x16xf32>
    %11 = vector.broadcast %10 : vector<1x2x16xf32> to vector<20x2x16xf32>
    %c0_2 = arith.constant 0 : index
    %c0_3 = arith.constant 0 : index
    %c0_4 = arith.constant 0 : index
    %12 = vector.load %arg1[%c0_2, %c0_3, %c0_4] : memref<20x16x16xf32, #tpu.memory_space<vmem>>, vector<20x16x16xf32>
    "tpu.trace_start"() <{level = 10 : i32, message = "hbd,hed->hbe"}> : () -> ()
    %cst_5 = arith.constant dense<0.000000e+00> : vector<20x2x16xf32>
    %13 = tpu.matmul %11, %12, %cst_5 {dimension_numbers = #tpu.dot_dimension_numbers<[2], [2], [1], [1], [0, 0, 0, 1, 1, 1], [0], [0]>} : vector<20x2x16xf32>, vector<20x16x16xf32>, vector<20x2x16xf32> -> vector<20x2x16xf32>
    "tpu.trace_stop"() : () -> ()
    %c0_6 = arith.constant 0 : index
    %c0_7 = arith.constant 0 : index
    %14 = vector.load %arg2[%c0_6, %c0_7] : memref<20x16xf32, #tpu.memory_space<vmem>>, vector<20x16xf32>
    %15 = vector.shape_cast %14 : vector<20x16xf32> to vector<20x1x16xf32>
    %16 = vector.broadcast %15 : vector<20x1x16xf32> to vector<20x2x16xf32>
    %17 = arith.addf %13, %16 : vector<20x2x16xf32>
    %cst_8 = arith.constant 0.000000e+00 : f32
    %18 = vector.broadcast %cst_8 : f32 to vector<20x2x16xf32>
    %19 = arith.cmpf oge, %17, %18 : vector<20x2x16xf32>
    %c0_9 = arith.constant 0 : index
    %c0_10 = arith.constant 0 : index
    %20 = vector.load %arg3[%c0_9, %c0_10] : memref<20x16xf32, #tpu.memory_space<vmem>>, vector<20x16xf32>
    %21 = vector.shape_cast %20 : vector<20x16xf32> to vector<20x1x16xf32>
    %22 = vector.broadcast %21 : vector<20x1x16xf32> to vector<20x2x16xf32>
    %23 = arith.mulf %22, %17 : vector<20x2x16xf32>
    %24 = arith.select %19, %17, %23 : vector<20x2x16xi1>, vector<20x2x16xf32>
    %c0_11 = arith.constant 0 : index
    %c0_12 = arith.constant 0 : index
    %c0_13 = arith.constant 0 : index
    %25 = vector.load %arg4[%c0_11, %c0_12, %c0_13] : memref<20x16x16xf32, #tpu.memory_space<vmem>>, vector<20x16x16xf32>
    "tpu.trace_start"() <{level = 10 : i32, message = "hbd,hed->hbe"}> : () -> ()
    %cst_14 = arith.constant dense<0.000000e+00> : vector<20x2x16xf32>
    %26 = tpu.matmul %24, %25, %cst_14 {dimension_numbers = #tpu.dot_dimension_numbers<[2], [2], [1], [1], [0, 0, 0, 1, 1, 1], [0], [0]>} : vector<20x2x16xf32>, vector<20x16x16xf32>, vector<20x2x16xf32> -> vector<20x2x16xf32>
    "tpu.trace_stop"() : () -> ()
    %c0_15 = arith.constant 0 : index
    %c0_16 = arith.constant 0 : index
    %27 = vector.load %arg5[%c0_15, %c0_16] : memref<20x16xf32, #tpu.memory_space<vmem>>, vector<20x16xf32>
    %28 = vector.shape_cast %27 : vector<20x16xf32> to vector<20x1x16xf32>
    %29 = vector.broadcast %28 : vector<20x1x16xf32> to vector<20x2x16xf32>
    %30 = arith.addf %26, %29 : vector<20x2x16xf32>
    %cst_17 = arith.constant 0.000000e+00 : f32
    %31 = vector.broadcast %cst_17 : f32 to vector<20x2x16xf32>
    %32 = arith.cmpf oge, %30, %31 : vector<20x2x16xf32>
    %c0_18 = arith.constant 0 : index
    %c0_19 = arith.constant 0 : index
    %33 = vector.load %arg6[%c0_18, %c0_19] : memref<20x16xf32, #tpu.memory_space<vmem>>, vector<20x16xf32>
    %34 = vector.shape_cast %33 : vector<20x16xf32> to vector<20x1x16xf32>
    %35 = vector.broadcast %34 : vector<20x1x16xf32> to vector<20x2x16xf32>
    %36 = arith.mulf %35, %30 : vector<20x2x16xf32>
    %37 = arith.select %32, %30, %36 : vector<20x2x16xi1>, vector<20x2x16xf32>
    %c0_20 = arith.constant 0 : index
    %c0_21 = arith.constant 0 : index
    %c0_22 = arith.constant 0 : index
    %38 = vector.load %arg7[%c0_20, %c0_21, %c0_22] : memref<20x16x16xf32, #tpu.memory_space<vmem>>, vector<20x16x16xf32>
    "tpu.trace_start"() <{level = 10 : i32, message = "hbd,hcd->hbc"}> : () -> ()
    %cst_23 = arith.constant dense<0.000000e+00> : vector<20x2x16xf32>
    %39 = tpu.matmul %37, %38, %cst_23 {dimension_numbers = #tpu.dot_dimension_numbers<[2], [2], [1], [1], [0, 0, 0, 1, 1, 1], [0], [0]>} : vector<20x2x16xf32>, vector<20x16x16xf32>, vector<20x2x16xf32> -> vector<20x2x16xf32>
    "tpu.trace_stop"() : () -> ()
    %c0_24 = arith.constant 0 : index
    %c0_25 = arith.constant 0 : index
    %40 = vector.load %arg8[%c0_24, %c0_25] : memref<20x16xf32, #tpu.memory_space<vmem>>, vector<20x16xf32>
    %41 = vector.shape_cast %40 : vector<20x16xf32> to vector<20x1x16xf32>
    %42 = vector.broadcast %41 : vector<20x1x16xf32> to vector<20x2x16xf32>
    %43 = arith.addf %39, %42 : vector<20x2x16xf32>
    %c0_26 = arith.constant 0 : index
    %c0_27 = arith.constant 0 : index
    %c0_28 = arith.constant 0 : index
    %44 = vector.load %arg9[%c0_26, %c0_27, %c0_28] : memref<20x2x16xf32, #tpu.memory_space<vmem>>, vector<20x2x16xf32>
    tpu.vector_store %arg9[%c0_26, %c0_27, %c0_28], %43 {strides = array<i32>} : memref<20x2x16xf32, #tpu.memory_space<vmem>>, vector<20x2x16xf32>,
    return
  }
}

module attributes {stable_mosaic.version = 11 : i64} {
  func.func @_modconv_kernel(%arg0: memref<128x8xf32, #tpu.memory_space<vmem>>, %arg1: memref<8x8xf32, #tpu.memory_space<vmem>>, %arg2: memref<128x8xf32, #tpu.memory_space<vmem>>, %arg3: memref<8x8xf32, #tpu.memory_space<vmem>>, %arg4: memref<128x1xf32, #tpu.memory_space<vmem>>, %arg5: memref<1x8xf32, #tpu.memory_space<vmem>>, %arg6: memref<1x8xf32, #tpu.memory_space<vmem>>, %arg7: memref<128x8xf32, #tpu.memory_space<vmem>>) attributes {dimension_semantics = [], scalar_prefetch = 0 : i64, scratch_operands = 0 : i64, tpu.core_type = #tpu.core_type<tc>} {
    %c0 = arith.constant 0 : index
    %c0_0 = arith.constant 0 : index
    %0 = vector.load %arg0[%c0, %c0_0] : memref<128x8xf32, #tpu.memory_space<vmem>>, vector<128x8xf32>
    %c0_1 = arith.constant 0 : index
    %c0_2 = arith.constant 0 : index
    %1 = vector.load %arg1[%c0_1, %c0_2] : memref<8x8xf32, #tpu.memory_space<vmem>>, vector<8x8xf32>
    %cst = arith.constant dense<0.000000e+00> : vector<128x8xf32>
    %2 = tpu.matmul %0, %1, %cst {dimension_numbers = #tpu.dot_dimension_numbers<[1], [0], [0], [1], [0, 0, 1, 1], [], []>} : vector<128x8xf32>, vector<8x8xf32>, vector<128x8xf32> -> vector<128x8xf32>
    %c0_3 = arith.constant 0 : index
    %c0_4 = arith.constant 0 : index
    %3 = vector.load %arg2[%c0_3, %c0_4] : memref<128x8xf32, #tpu.memory_space<vmem>>, vector<128x8xf32>
    %4 = arith.mulf %3, %3 : vector<128x8xf32>
    %c0_5 = arith.constant 0 : index
    %c0_6 = arith.constant 0 : index
    %5 = vector.load %arg3[%c0_5, %c0_6] : memref<8x8xf32, #tpu.memory_space<vmem>>, vector<8x8xf32>
    %cst_7 = arith.constant dense<0.000000e+00> : vector<128x8xf32>
    %6 = tpu.matmul %4, %5, %cst_7 {dimension_numbers = #tpu.dot_dimension_numbers<[1], [0], [0], [1], [0, 0, 1, 1], [], []>} : vector<128x8xf32>, vector<8x8xf32>, vector<128x8xf32> -> vector<128x8xf32>
    %cst_8 = arith.constant 9.99999993E-9 : f32
    %7 = vector.broadcast %cst_8 : f32 to vector<128x8xf32>
    %8 = arith.addf %6, %7 : vector<128x8xf32>
    %9 = math.rsqrt %8 : vector<128x8xf32>
    %10 = arith.mulf %2, %9 : vector<128x8xf32>
    %c0_9 = arith.constant 0 : index
    %c0_10 = arith.constant 0 : index
    %11 = vector.load %arg4[%c0_9, %c0_10] : memref<128x1xf32, #tpu.memory_space<vmem>>, vector<128x1xf32>
    %12 = vector.broadcast %11 : vector<128x1xf32> to vector<128x8xf32>
    %13 = arith.addf %10, %12 : vector<128x8xf32>
    %c0_11 = arith.constant 0 : index
    %c0_12 = arith.constant 0 : index
    %14 = vector.load %arg5[%c0_11, %c0_12] : memref<1x8xf32, #tpu.memory_space<vmem>>, vector<1x8xf32>
    %15 = vector.broadcast %14 : vector<1x8xf32> to vector<128x8xf32>
    %16 = arith.addf %13, %15 : vector<128x8xf32>
    %cst_13 = arith.constant 0.000000e+00 : f32
    %17 = vector.broadcast %cst_13 : f32 to vector<128x8xf32>
    %18 = arith.cmpf oge, %16, %17 : vector<128x8xf32>
    %c0_14 = arith.constant 0 : index
    %c0_15 = arith.constant 0 : index
    %19 = vector.load %arg6[%c0_14, %c0_15] : memref<1x8xf32, #tpu.memory_space<vmem>>, vector<1x8xf32>
    %20 = vector.broadcast %19 : vector<1x8xf32> to vector<128x8xf32>
    %21 = arith.mulf %20, %16 : vector<128x8xf32>
    %22 = arith.select %18, %16, %21 : vector<128x8xi1>, vector<128x8xf32>
    %c0_16 = arith.constant 0 : index
    %c0_17 = arith.constant 0 : index
    %23 = vector.load %arg7[%c0_16, %c0_17] : memref<128x8xf32, #tpu.memory_space<vmem>>, vector<128x8xf32>
    tpu.vector_store %arg7[%c0_16, %c0_17], %22 {strides = array<i32>} : memref<128x8xf32, #tpu.memory_space<vmem>>, vector<128x8xf32>,
    return
  }
}

module attributes {stable_mosaic.version = 11 : i64} {
  func.func @_modconv_kernel(%arg0: memref<128x72xf32, #tpu.memory_space<vmem>>, %arg1: memref<72x8xf32, #tpu.memory_space<vmem>>, %arg2: memref<128x8xf32, #tpu.memory_space<vmem>>, %arg3: memref<8x8xf32, #tpu.memory_space<vmem>>, %arg4: memref<128x1xf32, #tpu.memory_space<vmem>>, %arg5: memref<1x8xf32, #tpu.memory_space<vmem>>, %arg6: memref<1x8xf32, #tpu.memory_space<vmem>>, %arg7: memref<128x8xf32, #tpu.memory_space<vmem>>) attributes {dimension_semantics = [], scalar_prefetch = 0 : i64, scratch_operands = 0 : i64, tpu.core_type = #tpu.core_type<tc>} {
    %c0 = arith.constant 0 : index
    %c0_0 = arith.constant 0 : index
    %0 = vector.load %arg0[%c0, %c0_0] : memref<128x72xf32, #tpu.memory_space<vmem>>, vector<128x72xf32>
    %c0_1 = arith.constant 0 : index
    %c0_2 = arith.constant 0 : index
    %1 = vector.load %arg1[%c0_1, %c0_2] : memref<72x8xf32, #tpu.memory_space<vmem>>, vector<72x8xf32>
    %cst = arith.constant dense<0.000000e+00> : vector<128x8xf32>
    %2 = tpu.matmul %0, %1, %cst {dimension_numbers = #tpu.dot_dimension_numbers<[1], [0], [0], [1], [0, 0, 1, 1], [], []>} : vector<128x72xf32>, vector<72x8xf32>, vector<128x8xf32> -> vector<128x8xf32>
    %c0_3 = arith.constant 0 : index
    %c0_4 = arith.constant 0 : index
    %3 = vector.load %arg2[%c0_3, %c0_4] : memref<128x8xf32, #tpu.memory_space<vmem>>, vector<128x8xf32>
    %4 = arith.mulf %3, %3 : vector<128x8xf32>
    %c0_5 = arith.constant 0 : index
    %c0_6 = arith.constant 0 : index
    %5 = vector.load %arg3[%c0_5, %c0_6] : memref<8x8xf32, #tpu.memory_space<vmem>>, vector<8x8xf32>
    %cst_7 = arith.constant dense<0.000000e+00> : vector<128x8xf32>
    %6 = tpu.matmul %4, %5, %cst_7 {dimension_numbers = #tpu.dot_dimension_numbers<[1], [0], [0], [1], [0, 0, 1, 1], [], []>} : vector<128x8xf32>, vector<8x8xf32>, vector<128x8xf32> -> vector<128x8xf32>
    %cst_8 = arith.constant 9.99999993E-9 : f32
    %7 = vector.broadcast %cst_8 : f32 to vector<128x8xf32>
    %8 = arith.addf %6, %7 : vector<128x8xf32>
    %9 = math.rsqrt %8 : vector<128x8xf32>
    %10 = arith.mulf %2, %9 : vector<128x8xf32>
    %c0_9 = arith.constant 0 : index
    %c0_10 = arith.constant 0 : index
    %11 = vector.load %arg4[%c0_9, %c0_10] : memref<128x1xf32, #tpu.memory_space<vmem>>, vector<128x1xf32>
    %12 = vector.broadcast %11 : vector<128x1xf32> to vector<128x8xf32>
    %13 = arith.addf %10, %12 : vector<128x8xf32>
    %c0_11 = arith.constant 0 : index
    %c0_12 = arith.constant 0 : index
    %14 = vector.load %arg5[%c0_11, %c0_12] : memref<1x8xf32, #tpu.memory_space<vmem>>, vector<1x8xf32>
    %15 = vector.broadcast %14 : vector<1x8xf32> to vector<128x8xf32>
    %16 = arith.addf %13, %15 : vector<128x8xf32>
    %cst_13 = arith.constant 0.000000e+00 : f32
    %17 = vector.broadcast %cst_13 : f32 to vector<128x8xf32>
    %18 = arith.cmpf oge, %16, %17 : vector<128x8xf32>
    %c0_14 = arith.constant 0 : index
    %c0_15 = arith.constant 0 : index
    %19 = vector.load %arg6[%c0_14, %c0_15] : memref<1x8xf32, #tpu.memory_space<vmem>>, vector<1x8xf32>
    %20 = vector.broadcast %19 : vector<1x8xf32> to vector<128x8xf32>
    %21 = arith.mulf %20, %16 : vector<128x8xf32>
    %22 = arith.select %18, %16, %21 : vector<128x8xi1>, vector<128x8xf32>
    %c0_16 = arith.constant 0 : index
    %c0_17 = arith.constant 0 : index
    %23 = vector.load %arg7[%c0_16, %c0_17] : memref<128x8xf32, #tpu.memory_space<vmem>>, vector<128x8xf32>
    tpu.vector_store %arg7[%c0_16, %c0_17], %22 {strides = array<i32>} : memref<128x8xf32, #tpu.memory_space<vmem>>, vector<128x8xf32>,
    return
  }
}

module attributes {stable_mosaic.version = 11 : i64} {
  func.func @_modconv_kernel(%arg0: memref<2x8xf32, #tpu.memory_space<vmem>>, %arg1: memref<8x8xf32, #tpu.memory_space<vmem>>, %arg2: memref<2x8xf32, #tpu.memory_space<vmem>>, %arg3: memref<8x8xf32, #tpu.memory_space<vmem>>, %arg4: memref<2x1xf32, #tpu.memory_space<vmem>>, %arg5: memref<1x8xf32, #tpu.memory_space<vmem>>, %arg6: memref<1x8xf32, #tpu.memory_space<vmem>>, %arg7: memref<2x8xf32, #tpu.memory_space<vmem>>) attributes {dimension_semantics = [], scalar_prefetch = 0 : i64, scratch_operands = 0 : i64, tpu.core_type = #tpu.core_type<tc>} {
    %c0 = arith.constant 0 : index
    %c0_0 = arith.constant 0 : index
    %0 = vector.load %arg0[%c0, %c0_0] : memref<2x8xf32, #tpu.memory_space<vmem>>, vector<2x8xf32>
    %c0_1 = arith.constant 0 : index
    %c0_2 = arith.constant 0 : index
    %1 = vector.load %arg1[%c0_1, %c0_2] : memref<8x8xf32, #tpu.memory_space<vmem>>, vector<8x8xf32>
    %cst = arith.constant dense<0.000000e+00> : vector<2x8xf32>
    %2 = tpu.matmul %0, %1, %cst {dimension_numbers = #tpu.dot_dimension_numbers<[1], [0], [0], [1], [0, 0, 1, 1], [], []>} : vector<2x8xf32>, vector<8x8xf32>, vector<2x8xf32> -> vector<2x8xf32>
    %c0_3 = arith.constant 0 : index
    %c0_4 = arith.constant 0 : index
    %3 = vector.load %arg2[%c0_3, %c0_4] : memref<2x8xf32, #tpu.memory_space<vmem>>, vector<2x8xf32>
    %4 = arith.mulf %3, %3 : vector<2x8xf32>
    %c0_5 = arith.constant 0 : index
    %c0_6 = arith.constant 0 : index
    %5 = vector.load %arg3[%c0_5, %c0_6] : memref<8x8xf32, #tpu.memory_space<vmem>>, vector<8x8xf32>
    %cst_7 = arith.constant dense<0.000000e+00> : vector<2x8xf32>
    %6 = tpu.matmul %4, %5, %cst_7 {dimension_numbers = #tpu.dot_dimension_numbers<[1], [0], [0], [1], [0, 0, 1, 1], [], []>} : vector<2x8xf32>, vector<8x8xf32>, vector<2x8xf32> -> vector<2x8xf32>
    %cst_8 = arith.constant 9.99999993E-9 : f32
    %7 = vector.broadcast %cst_8 : f32 to vector<2x8xf32>
    %8 = arith.addf %6, %7 : vector<2x8xf32>
    %9 = math.rsqrt %8 : vector<2x8xf32>
    %10 = arith.mulf %2, %9 : vector<2x8xf32>
    %c0_9 = arith.constant 0 : index
    %c0_10 = arith.constant 0 : index
    %11 = vector.load %arg4[%c0_9, %c0_10] : memref<2x1xf32, #tpu.memory_space<vmem>>, vector<2x1xf32>
    %12 = vector.broadcast %11 : vector<2x1xf32> to vector<2x8xf32>
    %13 = arith.addf %10, %12 : vector<2x8xf32>
    %c0_11 = arith.constant 0 : index
    %c0_12 = arith.constant 0 : index
    %14 = vector.load %arg5[%c0_11, %c0_12] : memref<1x8xf32, #tpu.memory_space<vmem>>, vector<1x8xf32>
    %15 = vector.broadcast %14 : vector<1x8xf32> to vector<2x8xf32>
    %16 = arith.addf %13, %15 : vector<2x8xf32>
    %cst_13 = arith.constant 0.000000e+00 : f32
    %17 = vector.broadcast %cst_13 : f32 to vector<2x8xf32>
    %18 = arith.cmpf oge, %16, %17 : vector<2x8xf32>
    %c0_14 = arith.constant 0 : index
    %c0_15 = arith.constant 0 : index
    %19 = vector.load %arg6[%c0_14, %c0_15] : memref<1x8xf32, #tpu.memory_space<vmem>>, vector<1x8xf32>
    %20 = vector.broadcast %19 : vector<1x8xf32> to vector<2x8xf32>
    %21 = arith.mulf %20, %16 : vector<2x8xf32>
    %22 = arith.select %18, %16, %21 : vector<2x8xi1>, vector<2x8xf32>
    %c0_16 = arith.constant 0 : index
    %c0_17 = arith.constant 0 : index
    %23 = vector.load %arg7[%c0_16, %c0_17] : memref<2x8xf32, #tpu.memory_space<vmem>>, vector<2x8xf32>
    tpu.vector_store %arg7[%c0_16, %c0_17], %22 {strides = array<i32>} : memref<2x8xf32, #tpu.memory_space<vmem>>, vector<2x8xf32>,
    return
  }
}

module attributes {stable_mosaic.version = 11 : i64} {
  func.func @_modconv_kernel(%arg0: memref<2x8xf32, #tpu.memory_space<vmem>>, %arg1: memref<8x8xf32, #tpu.memory_space<vmem>>, %arg2: memref<2x8xf32, #tpu.memory_space<vmem>>, %arg3: memref<8x8xf32, #tpu.memory_space<vmem>>, %arg4: memref<2x1xf32, #tpu.memory_space<vmem>>, %arg5: memref<1x8xf32, #tpu.memory_space<vmem>>, %arg6: memref<2x8xf32, #tpu.memory_space<vmem>>) attributes {dimension_semantics = [], scalar_prefetch = 0 : i64, scratch_operands = 0 : i64, tpu.core_type = #tpu.core_type<tc>} {
    %c0 = arith.constant 0 : index
    %c0_0 = arith.constant 0 : index
    %0 = vector.load %arg0[%c0, %c0_0] : memref<2x8xf32, #tpu.memory_space<vmem>>, vector<2x8xf32>
    %c0_1 = arith.constant 0 : index
    %c0_2 = arith.constant 0 : index
    %1 = vector.load %arg1[%c0_1, %c0_2] : memref<8x8xf32, #tpu.memory_space<vmem>>, vector<8x8xf32>
    %cst = arith.constant dense<0.000000e+00> : vector<2x8xf32>
    %2 = tpu.matmul %0, %1, %cst {dimension_numbers = #tpu.dot_dimension_numbers<[1], [0], [0], [1], [0, 0, 1, 1], [], []>} : vector<2x8xf32>, vector<8x8xf32>, vector<2x8xf32> -> vector<2x8xf32>
    %c0_3 = arith.constant 0 : index
    %c0_4 = arith.constant 0 : index
    %3 = vector.load %arg2[%c0_3, %c0_4] : memref<2x8xf32, #tpu.memory_space<vmem>>, vector<2x8xf32>
    %4 = arith.mulf %3, %3 : vector<2x8xf32>
    %c0_5 = arith.constant 0 : index
    %c0_6 = arith.constant 0 : index
    %5 = vector.load %arg3[%c0_5, %c0_6] : memref<8x8xf32, #tpu.memory_space<vmem>>, vector<8x8xf32>
    %cst_7 = arith.constant dense<0.000000e+00> : vector<2x8xf32>
    %6 = tpu.matmul %4, %5, %cst_7 {dimension_numbers = #tpu.dot_dimension_numbers<[1], [0], [0], [1], [0, 0, 1, 1], [], []>} : vector<2x8xf32>, vector<8x8xf32>, vector<2x8xf32> -> vector<2x8xf32>
    %cst_8 = arith.constant 9.99999993E-9 : f32
    %7 = vector.broadcast %cst_8 : f32 to vector<2x8xf32>
    %8 = arith.addf %6, %7 : vector<2x8xf32>
    %9 = math.rsqrt %8 : vector<2x8xf32>
    %10 = arith.mulf %2, %9 : vector<2x8xf32>
    %c0_9 = arith.constant 0 : index
    %c0_10 = arith.constant 0 : index
    %11 = vector.load %arg4[%c0_9, %c0_10] : memref<2x1xf32, #tpu.memory_space<vmem>>, vector<2x1xf32>
    %12 = vector.broadcast %11 : vector<2x1xf32> to vector<2x8xf32>
    %13 = arith.addf %10, %12 : vector<2x8xf32>
    %c0_11 = arith.constant 0 : index
    %c0_12 = arith.constant 0 : index
    %14 = vector.load %arg5[%c0_11, %c0_12] : memref<1x8xf32, #tpu.memory_space<vmem>>, vector<1x8xf32>
    %15 = vector.broadcast %14 : vector<1x8xf32> to vector<2x8xf32>
    %16 = arith.addf %13, %15 : vector<2x8xf32>
    %17 = arith.negf %16 : vector<2x8xf32>
    %18 = math.exp %17 : vector<2x8xf32>
    %cst_13 = arith.constant 1.000000e+00 : f32
    %19 = vector.broadcast %cst_13 : f32 to vector<2x8xf32>
    %20 = arith.addf %19, %18 : vector<2x8xf32>
    %21 = arith.divf %19, %20 : vector<2x8xf32>
    %c0_14 = arith.constant 0 : index
    %c0_15 = arith.constant 0 : index
    %22 = vector.load %arg6[%c0_14, %c0_15] : memref<2x8xf32, #tpu.memory_space<vmem>>, vector<2x8xf32>
    tpu.vector_store %arg6[%c0_14, %c0_15], %21 {strides = array<i32>} : memref<2x8xf32, #tpu.memory_space<vmem>>, vector<2x8xf32>,
    return
  }
}

module attributes {stable_mosaic.version = 11 : i64} {
  func.func @_modconv_kernel(%arg0: memref<128x72xf32, #tpu.memory_space<vmem>>, %arg1: memref<72x16xf32, #tpu.memory_space<vmem>>, %arg2: memref<128x8xf32, #tpu.memory_space<vmem>>, %arg3: memref<8x16xf32, #tpu.memory_space<vmem>>, %arg4: memref<128x1xf32, #tpu.memory_space<vmem>>, %arg5: memref<1x16xf32, #tpu.memory_space<vmem>>, %arg6: memref<1x16xf32, #tpu.memory_space<vmem>>, %arg7: memref<128x16xf32, #tpu.memory_space<vmem>>) attributes {dimension_semantics = [], scalar_prefetch = 0 : i64, scratch_operands = 0 : i64, tpu.core_type = #tpu.core_type<tc>} {
    %c0 = arith.constant 0 : index
    %c0_0 = arith.constant 0 : index
    %0 = vector.load %arg0[%c0, %c0_0] : memref<128x72xf32, #tpu.memory_space<vmem>>, vector<128x72xf32>
    %c0_1 = arith.constant 0 : index
    %c0_2 = arith.constant 0 : index
    %1 = vector.load %arg1[%c0_1, %c0_2] : memref<72x16xf32, #tpu.memory_space<vmem>>, vector<72x16xf32>
    %cst = arith.constant dense<0.000000e+00> : vector<128x16xf32>
    %2 = tpu.matmul %0, %1, %cst {dimension_numbers = #tpu.dot_dimension_numbers<[1], [0], [0], [1], [0, 0, 1, 1], [], []>} : vector<128x72xf32>, vector<72x16xf32>, vector<128x16xf32> -> vector<128x16xf32>
    %c0_3 = arith.constant 0 : index
    %c0_4 = arith.constant 0 : index
    %3 = vector.load %arg2[%c0_3, %c0_4] : memref<128x8xf32, #tpu.memory_space<vmem>>, vector<128x8xf32>
    %4 = arith.mulf %3, %3 : vector<128x8xf32>
    %c0_5 = arith.constant 0 : index
    %c0_6 = arith.constant 0 : index
    %5 = vector.load %arg3[%c0_5, %c0_6] : memref<8x16xf32, #tpu.memory_space<vmem>>, vector<8x16xf32>
    %cst_7 = arith.constant dense<0.000000e+00> : vector<128x16xf32>
    %6 = tpu.matmul %4, %5, %cst_7 {dimension_numbers = #tpu.dot_dimension_numbers<[1], [0], [0], [1], [0, 0, 1, 1], [], []>} : vector<128x8xf32>, vector<8x16xf32>, vector<128x16xf32> -> vector<128x16xf32>
    %cst_8 = arith.constant 9.99999993E-9 : f32
    %7 = vector.broadcast %cst_8 : f32 to vector<128x16xf32>
    %8 = arith.addf %6, %7 : vector<128x16xf32>
    %9 = math.rsqrt %8 : vector<128x16xf32>
    %10 = arith.mulf %2, %9 : vector<128x16xf32>
    %c0_9 = arith.constant 0 : index
    %c0_10 = arith.constant 0 : index
    %11 = vector.load %arg4[%c0_9, %c0_10] : memref<128x1xf32, #tpu.memory_space<vmem>>, vector<128x1xf32>
    %12 = vector.broadcast %11 : vector<128x1xf32> to vector<128x16xf32>
    %13 = arith.addf %10, %12 : vector<128x16xf32>
    %c0_11 = arith.constant 0 : index
    %c0_12 = arith.constant 0 : index
    %14 = vector.load %arg5[%c0_11, %c0_12] : memref<1x16xf32, #tpu.memory_space<vmem>>, vector<1x16xf32>
    %15 = vector.broadcast %14 : vector<1x16xf32> to vector<128x16xf32>
    %16 = arith.addf %13, %15 : vector<128x16xf32>
    %cst_13 = arith.constant 0.000000e+00 : f32
    %17 = vector.broadcast %cst_13 : f32 to vector<128x16xf32>
    %18 = arith.cmpf oge, %16, %17 : vector<128x16xf32>
    %c0_14 = arith.constant 0 : index
    %c0_15 = arith.constant 0 : index
    %19 = vector.load %arg6[%c0_14, %c0_15] : memref<1x16xf32, #tpu.memory_space<vmem>>, vector<1x16xf32>
    %20 = vector.broadcast %19 : vector<1x16xf32> to vector<128x16xf32>
    %21 = arith.mulf %20, %16 : vector<128x16xf32>
    %22 = arith.select %18, %16, %21 : vector<128x16xi1>, vector<128x16xf32>
    %c0_16 = arith.constant 0 : index
    %c0_17 = arith.constant 0 : index
    %23 = vector.load %arg7[%c0_16, %c0_17] : memref<128x16xf32, #tpu.memory_space<vmem>>, vector<128x16xf32>
    tpu.vector_store %arg7[%c0_16, %c0_17], %22 {strides = array<i32>} : memref<128x16xf32, #tpu.memory_space<vmem>>, vector<128x16xf32>,
    return
  }
}

module attributes {stable_mosaic.version = 11 : i64} {
  func.func @_modconv_kernel(%arg0: memref<2x8xf32, #tpu.memory_space<vmem>>, %arg1: memref<8x16xf32, #tpu.memory_space<vmem>>, %arg2: memref<2x8xf32, #tpu.memory_space<vmem>>, %arg3: memref<8x16xf32, #tpu.memory_space<vmem>>, %arg4: memref<2x1xf32, #tpu.memory_space<vmem>>, %arg5: memref<1x16xf32, #tpu.memory_space<vmem>>, %arg6: memref<2x16xf32, #tpu.memory_space<vmem>>) attributes {dimension_semantics = [], scalar_prefetch = 0 : i64, scratch_operands = 0 : i64, tpu.core_type = #tpu.core_type<tc>} {
    %c0 = arith.constant 0 : index
    %c0_0 = arith.constant 0 : index
    %0 = vector.load %arg0[%c0, %c0_0] : memref<2x8xf32, #tpu.memory_space<vmem>>, vector<2x8xf32>
    %c0_1 = arith.constant 0 : index
    %c0_2 = arith.constant 0 : index
    %1 = vector.load %arg1[%c0_1, %c0_2] : memref<8x16xf32, #tpu.memory_space<vmem>>, vector<8x16xf32>
    %cst = arith.constant dense<0.000000e+00> : vector<2x16xf32>
    %2 = tpu.matmul %0, %1, %cst {dimension_numbers = #tpu.dot_dimension_numbers<[1], [0], [0], [1], [0, 0, 1, 1], [], []>} : vector<2x8xf32>, vector<8x16xf32>, vector<2x16xf32> -> vector<2x16xf32>
    %c0_3 = arith.constant 0 : index
    %c0_4 = arith.constant 0 : index
    %3 = vector.load %arg2[%c0_3, %c0_4] : memref<2x8xf32, #tpu.memory_space<vmem>>, vector<2x8xf32>
    %4 = arith.mulf %3, %3 : vector<2x8xf32>
    %c0_5 = arith.constant 0 : index
    %c0_6 = arith.constant 0 : index
    %5 = vector.load %arg3[%c0_5, %c0_6] : memref<8x16xf32, #tpu.memory_space<vmem>>, vector<8x16xf32>
    %cst_7 = arith.constant dense<0.000000e+00> : vector<2x16xf32>
    %6 = tpu.matmul %4, %5, %cst_7 {dimension_numbers = #tpu.dot_dimension_numbers<[1], [0], [0], [1], [0, 0, 1, 1], [], []>} : vector<2x8xf32>, vector<8x16xf32>, vector<2x16xf32> -> vector<2x16xf32>
    %cst_8 = arith.constant 9.99999993E-9 : f32
    %7 = vector.broadcast %cst_8 : f32 to vector<2x16xf32>
    %8 = arith.addf %6, %7 : vector<2x16xf32>
    %9 = math.rsqrt %8 : vector<2x16xf32>
    %10 = arith.mulf %2, %9 : vector<2x16xf32>
    %c0_9 = arith.constant 0 : index
    %c0_10 = arith.constant 0 : index
    %11 = vector.load %arg4[%c0_9, %c0_10] : memref<2x1xf32, #tpu.memory_space<vmem>>, vector<2x1xf32>
    %12 = vector.broadcast %11 : vector<2x1xf32> to vector<2x16xf32>
    %13 = arith.addf %10, %12 : vector<2x16xf32>
    %c0_11 = arith.constant 0 : index
    %c0_12 = arith.constant 0 : index
    %14 = vector.load %arg5[%c0_11, %c0_12] : memref<1x16xf32, #tpu.memory_space<vmem>>, vector<1x16xf32>
    %15 = vector.broadcast %14 : vector<1x16xf32> to vector<2x16xf32>
    %16 = arith.addf %13, %15 : vector<2x16xf32>
    %17 = arith.negf %16 : vector<2x16xf32>
    %18 = math.exp %17 : vector<2x16xf32>
    %cst_13 = arith.constant 1.000000e+00 : f32
    %19 = vector.broadcast %cst_13 : f32 to vector<2x16xf32>
    %20 = arith.addf %19, %18 : vector<2x16xf32>
    %21 = arith.divf %19, %20 : vector<2x16xf32>
    %c0_14 = arith.constant 0 : index
    %c0_15 = arith.constant 0 : index
    %22 = vector.load %arg6[%c0_14, %c0_15] : memref<2x16xf32, #tpu.memory_space<vmem>>, vector<2x16xf32>
    tpu.vector_store %arg6[%c0_14, %c0_15], %21 {strides = array<i32>} : memref<2x16xf32, #tpu.memory_space<vmem>>, vector<2x16xf32>,
    return
  }
}

module attributes {stable_mosaic.version = 11 : i64} {
  func.func @_modconv_kernel(%arg0: memref<2x16xf32, #tpu.memory_space<vmem>>, %arg1: memref<16x8xf32, #tpu.memory_space<vmem>>, %arg2: memref<2x16xf32, #tpu.memory_space<vmem>>, %arg3: memref<16x8xf32, #tpu.memory_space<vmem>>, %arg4: memref<2x1xf32, #tpu.memory_space<vmem>>, %arg5: memref<1x8xf32, #tpu.memory_space<vmem>>, %arg6: memref<1x8xf32, #tpu.memory_space<vmem>>, %arg7: memref<2x8xf32, #tpu.memory_space<vmem>>) attributes {dimension_semantics = [], scalar_prefetch = 0 : i64, scratch_operands = 0 : i64, tpu.core_type = #tpu.core_type<tc>} {
    %c0 = arith.constant 0 : index
    %c0_0 = arith.constant 0 : index
    %0 = vector.load %arg0[%c0, %c0_0] : memref<2x16xf32, #tpu.memory_space<vmem>>, vector<2x16xf32>
    %c0_1 = arith.constant 0 : index
    %c0_2 = arith.constant 0 : index
    %1 = vector.load %arg1[%c0_1, %c0_2] : memref<16x8xf32, #tpu.memory_space<vmem>>, vector<16x8xf32>
    %cst = arith.constant dense<0.000000e+00> : vector<2x8xf32>
    %2 = tpu.matmul %0, %1, %cst {dimension_numbers = #tpu.dot_dimension_numbers<[1], [0], [0], [1], [0, 0, 1, 1], [], []>} : vector<2x16xf32>, vector<16x8xf32>, vector<2x8xf32> -> vector<2x8xf32>
    %c0_3 = arith.constant 0 : index
    %c0_4 = arith.constant 0 : index
    %3 = vector.load %arg2[%c0_3, %c0_4] : memref<2x16xf32, #tpu.memory_space<vmem>>, vector<2x16xf32>
    %4 = arith.mulf %3, %3 : vector<2x16xf32>
    %c0_5 = arith.constant 0 : index
    %c0_6 = arith.constant 0 : index
    %5 = vector.load %arg3[%c0_5, %c0_6] : memref<16x8xf32, #tpu.memory_space<vmem>>, vector<16x8xf32>
    %cst_7 = arith.constant dense<0.000000e+00> : vector<2x8xf32>
    %6 = tpu.matmul %4, %5, %cst_7 {dimension_numbers = #tpu.dot_dimension_numbers<[1], [0], [0], [1], [0, 0, 1, 1], [], []>} : vector<2x16xf32>, vector<16x8xf32>, vector<2x8xf32> -> vector<2x8xf32>
    %cst_8 = arith.constant 9.99999993E-9 : f32
    %7 = vector.broadcast %cst_8 : f32 to vector<2x8xf32>
    %8 = arith.addf %6, %7 : vector<2x8xf32>
    %9 = math.rsqrt %8 : vector<2x8xf32>
    %10 = arith.mulf %2, %9 : vector<2x8xf32>
    %c0_9 = arith.constant 0 : index
    %c0_10 = arith.constant 0 : index
    %11 = vector.load %arg4[%c0_9, %c0_10] : memref<2x1xf32, #tpu.memory_space<vmem>>, vector<2x1xf32>
    %12 = vector.broadcast %11 : vector<2x1xf32> to vector<2x8xf32>
    %13 = arith.addf %10, %12 : vector<2x8xf32>
    %c0_11 = arith.constant 0 : index
    %c0_12 = arith.constant 0 : index
    %14 = vector.load %arg5[%c0_11, %c0_12] : memref<1x8xf32, #tpu.memory_space<vmem>>, vector<1x8xf32>
    %15 = vector.broadcast %14 : vector<1x8xf32> to vector<2x8xf32>
    %16 = arith.addf %13, %15 : vector<2x8xf32>
    %cst_13 = arith.constant 0.000000e+00 : f32
    %17 = vector.broadcast %cst_13 : f32 to vector<2x8xf32>
    %18 = arith.cmpf oge, %16, %17 : vector<2x8xf32>
    %c0_14 = arith.constant 0 : index
    %c0_15 = arith.constant 0 : index
    %19 = vector.load %arg6[%c0_14, %c0_15] : memref<1x8xf32, #tpu.memory_space<vmem>>, vector<1x8xf32>
    %20 = vector.broadcast %19 : vector<1x8xf32> to vector<2x8xf32>
    %21 = arith.mulf %20, %16 : vector<2x8xf32>
    %22 = arith.select %18, %16, %21 : vector<2x8xi1>, vector<2x8xf32>
    %c0_16 = arith.constant 0 : index
    %c0_17 = arith.constant 0 : index
    %23 = vector.load %arg7[%c0_16, %c0_17] : memref<2x8xf32, #tpu.memory_space<vmem>>, vector<2x8xf32>
    tpu.vector_store %arg7[%c0_16, %c0_17], %22 {strides = array<i32>} : memref<2x8xf32, #tpu.memory_space<vmem>>, vector<2x8xf32>,
    return
  }
}

</mosaic_0001>

<llo_original>
// kernel: _lambda_.32
$region0: #{_lambda_.32}
  #allocation0 [shape = 'u32[]', space=smem, size = 0x4, offset = 0x4, fixed_abs, tag = 'smem constant byte address 0x4 - core index']
  #allocation1 [shape = 'u32[144,128]{1,0:T(1,128)}', space=vmem, size = 0x12000, scoped, tag = 'internal scratch']
  %s0 = inlined_call_operand.vmem [shape: f32[128,8], index: 0, kind: input, shape index: {}]
  %s1 = inlined_call_operand.vmem [shape: f32[8,8], index: 1, kind: input, shape index: {}]
  %s2 = inlined_call_operand.vmem [shape: f32[128,8], index: 2, kind: input, shape index: {}]
  %s3 = inlined_call_operand.vmem [shape: f32[8,8], index: 3, kind: input, shape index: {}]
  %s4 = inlined_call_operand.vmem [shape: f32[128,1], index: 4, kind: input, shape index: {}]
  %s5 = inlined_call_operand.vmem [shape: f32[1,8], index: 5, kind: input, shape index: {}]
  %s6 = inlined_call_operand.vmem [shape: f32[1,8], index: 6, kind: input, shape index: {}]
  %s7 = inlined_call_operand.vmem [shape: f32[128,8], index: 7, kind: output, shape index: {}]
  %s8 = sld [smem:[#allocation0]]
  $region38: #{_lambda_.32} parent=0
    _
  %s10 = ssub.s32 1, %s8
  %s11 = scalar_select 0, %s10, %s8
  // Predicated region
  $region2: #{_lambda_.32} parent=0 // pred_check
    _
  $region3: #{_lambda_.32} parent=0 // pred_check_branch
    %13 = sbr.rel (0) target = $region5
  $region4: #{_lambda_.32} parent=0 // pred_region
    _
  $region5: #{_lambda_.32} parent=0 // pred_fallthru
    _
  // Predicated region
  $region6: #{_lambda_.32} parent=0 // pred_check
    _
  $region7: #{_lambda_.32} parent=0 // pred_check_branch
    %15 = sbr.rel (0) target = $region9
  $region8: #{_lambda_.32} parent=0 // pred_region
    _
  $region9: #{_lambda_.32} parent=0 // pred_fallthru
    _
  // Predicated region
  $region10: #{_lambda_.32} parent=0 // pred_check
    _
  $region11: #{_lambda_.32} parent=0 // pred_check_branch
    %17 = sbr.rel (0) target = $region13
  $region12: #{_lambda_.32} parent=0 // pred_region
    _
  $region13: #{_lambda_.32} parent=0 // pred_fallthru
    _
  // Predicated region
  $region14: #{_lambda_.32} parent=0 // pred_check
    _
  $region15: #{_lambda_.32} parent=0 // pred_check_branch
    %19 = sbr.rel (0) target = $region17
  $region16: #{_lambda_.32} parent=0 // pred_region
    _
  $region17: #{_lambda_.32} parent=0 // pred_fallthru
    _
  // Predicated region
  $region18: #{_lambda_.32} parent=0 // pred_check
    _
  $region19: #{_lambda_.32} parent=0 // pred_check_branch
    %21 = sbr.rel (0) target = $region21
  $region20: #{_lambda_.32} parent=0 // pred_region
    _
  $region21: #{_lambda_.32} parent=0 // pred_fallthru
    _
  // Predicated region
  $region22: #{_lambda_.32} parent=0 // pred_check
    _
  $region23: #{_lambda_.32} parent=0 // pred_check_branch
    %23 = sbr.rel (0) target = $region25
  $region24: #{_lambda_.32} parent=0 // pred_region
    _
  $region25: #{_lambda_.32} parent=0 // pred_fallthru
    _
  // Predicated region
  $region26: #{_lambda_.32} parent=0 // pred_check
    _
  $region27: #{_lambda_.32} parent=0 // pred_check_branch
    %25 = sbr.rel (0) target = $region29
  $region28: #{_lambda_.32} parent=0 // pred_region
    _
  $region29: #{_lambda_.32} parent=0 // pred_fallthru
    _
  %v26 = vld [vmem:[%s0] sm:$0xff]
  %v27 = vld [vmem:[%s0 + $0x8] sm:$0xff]
  %v28 = vld [vmem:[%s0 + $0x10] sm:$0xff]
  %v29 = vld [vmem:[%s0 + $0x18] sm:$0xff]
  %v30 = vld [vmem:[%s0 + $0x20] sm:$0xff]
  %v31 = vld [vmem:[%s0 + $0x28] sm:$0xff]
  %v32 = vld [vmem:[%s0 + $0x30] sm:$0xff]
  %v33 = vld [vmem:[%s0 + $0x38] sm:$0xff]
  %v34 = vld [vmem:[%s0 + $0x40] sm:$0xff]
  %v35 = vld [vmem:[%s0 + $0x48] sm:$0xff]
  %v36 = vld [vmem:[%s0 + $0x50] sm:$0xff]
  %v37 = vld [vmem:[%s0 + $0x58] sm:$0xff]
  %v38 = vld [vmem:[%s0 + $0x60] sm:$0xff]
  %v39 = vld [vmem:[%s0 + $0x68] sm:$0xff]
  %v40 = vld [vmem:[%s0 + $0x70] sm:$0xff]
  %v41 = vld [vmem:[%s0 + $0x78] sm:$0xff]
  %v42 = vld [vmem:[%s1] sm:$0xff]
  %vm43 = vcmask 64512
  %v45 = vsel %vm43, %v26, 0
  %v48 = vsel %vm43, %v27, 0
  %v51 = vsel %vm43, %v28, 0
  %v54 = vsel %vm43, %v29, 0
  %v57 = vsel %vm43, %v30, 0
  %v60 = vsel %vm43, %v31, 0
  %v63 = vsel %vm43, %v32, 0
  %v66 = vsel %vm43, %v33, 0
  %v69 = vsel %vm43, %v34, 0
  %v72 = vsel %vm43, %v35, 0
  %v75 = vsel %vm43, %v36, 0
  %v78 = vsel %vm43, %v37, 0
  %v81 = vsel %vm43, %v38, 0
  %v84 = vsel %vm43, %v39, 0
  %v87 = vsel %vm43, %v40, 0
  %v90 = vsel %vm43, %v41, 0
  %92 = vmatprep.subr.mxu0 0.0
  %93 = vmatpush1.msra.mxu0 %v42
  %94 = vmatprep.subr.mxu0 0.0
  %95 = vmatpush1.msra.mxu0 0.0
  %96 = vmatprep.subr.mxu0 0.0
  %97 = vmatpush1.msra.mxu0 0.0
  %98 = vmatprep.subr.mxu0 0.0
  %99 = vmatpush1.msra.mxu0 0.0
  %100 = vmatprep.subr.mxu0 0.0
  %101 = vmatpush1.msra.mxu0 0.0
  %102 = vmatprep.subr.mxu0 0.0
  %103 = vmatpush1.msra.mxu0 0.0
  %104 = vmatprep.subr.mxu0 0.0
  %105 = vmatpush1.msra.mxu0 0.0
  %106 = vmatprep.subr.mxu0 0.0
  %107 = vmatpush1.msra.mxu0 0.0
  %108 = vmatprep.subr.mxu0 0.0
  %109 = vmatpush1.msra.mxu0 0.0
  %110 = vmatprep.subr.mxu0 0.0
  %111 = vmatpush1.msra.mxu0 0.0
  %112 = vmatprep.subr.mxu0 0.0
  %113 = vmatpush1.msra.mxu0 0.0
  %114 = vmatprep.subr.mxu0 0.0
  %115 = vmatpush1.msra.mxu0 0.0
  %116 = vmatprep.subr.mxu0 0.0
  %117 = vmatpush1.msra.mxu0 0.0
  %118 = vmatprep.subr.mxu0 0.0
  %119 = vmatpush1.msra.mxu0 0.0
  %120 = vmatprep.subr.mxu0 0.0
  %121 = vmatpush1.msra.mxu0 0.0
  %122 = vmatprep.subr.mxu0 0.0
  %123 = vmatpush1.msra.mxu0 0.0
  %124 = vmatprep.subr.mxu0 0.0
  %125 = vmatpush1.msra.mxu0 0.0
  %126 = vmatprep.subr.mxu0 0.0
  %127 = vmatpush1.msra.mxu0 0.0
  %128 = vmatprep.subr.mxu0 0.0
  %129 = vmatpush1.msra.mxu0 0.0
  %130 = vmatprep.subr.mxu0 0.0
  %131 = vmatpush1.msra.mxu0 0.0
  %132 = vmatprep.subr.mxu0 0.0
  %133 = vmatpush1.msra.mxu0 0.0
  %134 = vmatprep.subr.mxu0 0.0
  %135 = vmatpush1.msra.mxu0 0.0
  %136 = vmatprep.subr.mxu0 0.0
  %137 = vmatpush1.msra.mxu0 0.0
  %138 = vmatprep.subr.mxu0 0.0
  %139 = vmatpush1.msra.mxu0 0.0
  %140 = vmatprep.subr.mxu0 0.0
  %141 = vmatpush1.msra.mxu0 0.0
  %142 = vmatprep.subr.mxu0 0.0
  %143 = vmatpush1.msra.mxu0 0.0
  %144 = vmatprep.subr.mxu0 0.0
  %145 = vmatpush1.msra.mxu0 0.0
  %146 = vmatprep.subr.mxu0 0.0
  %147 = vmatpush1.msra.mxu0 0.0
  %148 = vmatprep.subr.mxu0 0.0
  %149 = vmatpush1.msra.mxu0 0.0
  %150 = vmatprep.subr.mxu0 0.0
  %151 = vmatpush1.msra.mxu0 0.0
  %152 = vmatprep.subr.mxu0 0.0
  %153 = vmatpush1.msra.mxu0 0.0
  %154 = vmatprep.subr.mxu0 0.0
  %155 = vmatpush1.msra.mxu0 0.0
  %156 = vmatprep.mubr.f32.mxu0 0.0
  %157 = vmatmul.mubr.f32.gmra.mrb[0].mxu0 %v45
  %v158 = vpop.f32.mrb[0].mxu0
  %v159 = vadd.f32 0.0, %v158
  %v160 = vpop.f32.mrb[0].mxu0
  %161 = vmatprep.mubr.f32.mxu0 0.0
  %162 = vmatmul.mubr.f32.gmra.mrb[0].mxu0 %v48
  %v163 = vpop.f32.mrb[0].mxu0
  %v164 = vadd.f32 0.0, %v163
  %v165 = vpop.f32.mrb[0].mxu0
  %166 = vmatprep.mubr.f32.mxu0 0.0
  %167 = vmatmul.mubr.f32.gmra.mrb[0].mxu0 %v51
  %v168 = vpop.f32.mrb[0].mxu0
  %v169 = vadd.f32 0.0, %v168
  %v170 = vpop.f32.mrb[0].mxu0
  %171 = vmatprep.mubr.f32.mxu0 0.0
  %172 = vmatmul.mubr.f32.gmra.mrb[0].mxu0 %v54
  %v173 = vpop.f32.mrb[0].mxu0
  %v174 = vadd.f32 0.0, %v173
  %v175 = vpop.f32.mrb[0].mxu0
  %176 = vmatprep.mubr.f32.mxu0 0.0
  %177 = vmatmul.mubr.f32.gmra.mrb[0].mxu0 %v57
  %v178 = vpop.f32.mrb[0].mxu0
  %v179 = vadd.f32 0.0, %v178
  %v180 = vpop.f32.mrb[0].mxu0
  %181 = vmatprep.mubr.f32.mxu0 0.0
  %182 = vmatmul.mubr.f32.gmra.mrb[0].mxu0 %v60
  %v183 = vpop.f32.mrb[0].mxu0
  %v184 = vadd.f32 0.0, %v183
  %v185 = vpop.f32.mrb[0].mxu0
  %186 = vmatprep.mubr.f32.mxu0 0.0
  %187 = vmatmul.mubr.f32.gmra.mrb[0].mxu0 %v63
  %v188 = vpop.f32.mrb[0].mxu0
  %v189 = vadd.f32 0.0, %v188
  %v190 = vpop.f32.mrb[0].mxu0
  %191 = vmatprep.mubr.f32.mxu0 0.0
  %192 = vmatmul.mubr.f32.gmra.mrb[0].mxu0 %v66
  %v193 = vpop.f32.mrb[0].mxu0
  %v194 = vadd.f32 0.0, %v193
  %v195 = vpop.f32.mrb[0].mxu0
  %196 = vmatprep.mubr.f32.mxu0 0.0
  %197 = vmatmul.mubr.f32.gmra.mrb[0].mxu0 %v69
  %v198 = vpop.f32.mrb[0].mxu0
  %v199 = vadd.f32 0.0, %v198
  %v200 = vpop.f32.mrb[0].mxu0
  %201 = vmatprep.mubr.f32.mxu0 0.0
  %202 = vmatmul.mubr.f32.gmra.mrb[0].mxu0 %v72
  %v203 = vpop.f32.mrb[0].mxu0
  %v204 = vadd.f32 0.0, %v203
  %v205 = vpop.f32.mrb[0].mxu0
  %206 = vmatprep.mubr.f32.mxu0 0.0
  %207 = vmatmul.mubr.f32.gmra.mrb[0].mxu0 %v75
  %v208 = vpop.f32.mrb[0].mxu0
  %v209 = vadd.f32 0.0, %v208
  %v210 = vpop.f32.mrb[0].mxu0
  %211 = vmatprep.mubr.f32.mxu0 0.0
  %212 = vmatmul.mubr.f32.gmra.mrb[0].mxu0 %v78
  %v213 = vpop.f32.mrb[0].mxu0
  %v214 = vadd.f32 0.0, %v213
  %v215 = vpop.f32.mrb[0].mxu0
  %216 = vmatprep.mubr.f32.mxu0 0.0
  %217 = vmatmul.mubr.f32.gmra.mrb[0].mxu0 %v81
  %v218 = vpop.f32.mrb[0].mxu0
  %v219 = vadd.f32 0.0, %v218
  %v220 = vpop.f32.mrb[0].mxu0
  %221 = vmatprep.mubr.f32.mxu0 0.0
  %222 = vmatmul.mubr.f32.gmra.mrb[0].mxu0 %v84
  %v223 = vpop.f32.mrb[0].mxu0
  %v224 = vadd.f32 0.0, %v223
  %v225 = vpop.f32.mrb[0].mxu0
  %226 = vmatprep.mubr.f32.mxu0 0.0
  %227 = vmatmul.mubr.f32.gmra.mrb[0].mxu0 %v87
  %v228 = vpop.f32.mrb[0].mxu0
  %v229 = vadd.f32 0.0, %v228
  %v230 = vpop.f32.mrb[0].mxu0
  %231 = vmatprep.mubr.f32.mxu0 0.0
  %232 = vmatmul.mubr.f32.gmra.mrb[0].mxu0 %v90
  %v233 = vpop.f32.mrb[0].mxu0
  %v234 = vadd.f32 0.0, %v233
  %v235 = vpop.f32.mrb[0].mxu0
  %236 = vdwg.mxu0
  %v237 = vld [vmem:[%s2] sm:$0xff]
  %v238 = vld [vmem:[%s2 + $0x8] sm:$0xff]
  %v239 = vld [vmem:[%s2 + $0x10] sm:$0xff]
  %v240 = vld [vmem:[%s2 + $0x18] sm:$0xff]
  %v241 = vld [vmem:[%s2 + $0x20] sm:$0xff]
  %v242 = vld [vmem:[%s2 + $0x28] sm:$0xff]
  %v243 = vld [vmem:[%s2 + $0x30] sm:$0xff]
  %v244 = vld [vmem:[%s2 + $0x38] sm:$0xff]
  %v245 = vld [vmem:[%s2 + $0x40] sm:$0xff]
  %v246 = vld [vmem:[%s2 + $0x48] sm:$0xff]
  %v247 = vld [vmem:[%s2 + $0x50] sm:$0xff]
  %v248 = vld [vmem:[%s2 + $0x58] sm:$0xff]
  %v249 = vld [vmem:[%s2 + $0x60] sm:$0xff]
  %v250 = vld [vmem:[%s2 + $0x68] sm:$0xff]
  %v251 = vld [vmem:[%s2 + $0x70] sm:$0xff]
  %v252 = vld [vmem:[%s2 + $0x78] sm:$0xff]
  %v253 = vmul.f32 %v237, %v237
  %v254 = vmul.f32 %v238, %v238
  %v255 = vmul.f32 %v239, %v239
  %v256 = vmul.f32 %v240, %v240
  %v257 = vmul.f32 %v241, %v241
  %v258 = vmul.f32 %v242, %v242
  %v259 = vmul.f32 %v243, %v243
  %v260 = vmul.f32 %v244, %v244
  %v261 = vmul.f32 %v245, %v245
  %v262 = vmul.f32 %v246, %v246
  %v263 = vmul.f32 %v247, %v247
  %v264 = vmul.f32 %v248, %v248
  %v265 = vmul.f32 %v249, %v249
  %v266 = vmul.f32 %v250, %v250
  %v267 = vmul.f32 %v251, %v251
  %v268 = vmul.f32 %v252, %v252
  %v269 = vld [vmem:[%s3] sm:$0xff]
  %v271 = vsel %vm43, %v253, 0
  %v274 = vsel %vm43, %v254, 0
  %v277 = vsel %vm43, %v255, 0
  %v280 = vsel %vm43, %v256, 0
  %v283 = vsel %vm43, %v257, 0
  %v286 = vsel %vm43, %v258, 0
  %v289 = vsel %vm43, %v259, 0
  %v292 = vsel %vm43, %v260, 0
  %v295 = vsel %vm43, %v261, 0
  %v298 = vsel %vm43, %v262, 0
  %v301 = vsel %vm43, %v263, 0
  %v304 = vsel %vm43, %v264, 0
  %v307 = vsel %vm43, %v265, 0
  %v310 = vsel %vm43, %v266, 0
  %v313 = vsel %vm43, %v267, 0
  %v316 = vsel %vm43, %v268, 0
  %318 = vmatprep.subr.mxu0 0.0
  %319 = vmatpush1.msra.mxu0 %v269
  %320 = vmatprep.subr.mxu0 0.0
  %321 = vmatpush1.msra.mxu0 0.0
  %322 = vmatprep.subr.mxu0 0.0
  %323 = vmatpush1.msra.mxu0 0.0
  %324 = vmatprep.subr.mxu0 0.0
  %325 = vmatpush1.msra.mxu0 0.0
  %326 = vmatprep.subr.mxu0 0.0
  %327 = vmatpush1.msra.mxu0 0.0
  %328 = vmatprep.subr.mxu0 0.0
  %329 = vmatpush1.msra.mxu0 0.0
  %330 = vmatprep.subr.mxu0 0.0
  %331 = vmatpush1.msra.mxu0 0.0
  %332 = vmatprep.subr.mxu0 0.0
  %333 = vmatpush1.msra.mxu0 0.0
  %334 = vmatprep.subr.mxu0 0.0
  %335 = vmatpush1.msra.mxu0 0.0
  %336 = vmatprep.subr.mxu0 0.0
  %337 = vmatpush1.msra.mxu0 0.0
  %338 = vmatprep.subr.mxu0 0.0
  %339 = vmatpush1.msra.mxu0 0.0
  %340 = vmatprep.subr.mxu0 0.0
  %341 = vmatpush1.msra.mxu0 0.0
  %342 = vmatprep.subr.mxu0 0.0
  %343 = vmatpush1.msra.mxu0 0.0
  %344 = vmatprep.subr.mxu0 0.0
  %345 = vmatpush1.msra.mxu0 0.0
  %346 = vmatprep.subr.mxu0 0.0
  %347 = vmatpush1.msra.mxu0 0.0
  %348 = vmatprep.subr.mxu0 0.0
  %349 = vmatpush1.msra.mxu0 0.0
  %350 = vmatprep.subr.mxu0 0.0
  %351 = vmatpush1.msra.mxu0 0.0
  %352 = vmatprep.subr.mxu0 0.0
  %353 = vmatpush1.msra.mxu0 0.0
  %354 = vmatprep.subr.mxu0 0.0
  %355 = vmatpush1.msra.mxu0 0.0
  %356 = vmatprep.subr.mxu0 0.0
  %357 = vmatpush1.msra.mxu0 0.0
  %358 = vmatprep.subr.mxu0 0.0
  %359 = vmatpush1.msra.mxu0 0.0
  %360 = vmatprep.subr.mxu0 0.0
  %361 = vmatpush1.msra.mxu0 0.0
  %362 = vmatprep.subr.mxu0 0.0
  %363 = vmatpush1.msra.mxu0 0.0
  %364 = vmatprep.subr.mxu0 0.0
  %365 = vmatpush1.msra.mxu0 0.0
  %366 = vmatprep.subr.mxu0 0.0
  %367 = vmatpush1.msra.mxu0 0.0
  %368 = vmatprep.subr.mxu0 0.0
  %369 = vmatpush1.msra.mxu0 0.0
  %370 = vmatprep.subr.mxu0 0.0
  %371 = vmatpush1.msra.mxu0 0.0
  %372 = vmatprep.subr.mxu0 0.0
  %373 = vmatpush1.msra.mxu0 0.0
  %374 = vmatprep.subr.mxu0 0.0
  %375 = vmatpush1.msra.mxu0 0.0
  %376 = vmatprep.subr.mxu0 0.0
  %377 = vmatpush1.msra.mxu0 0.0
  %378 = vmatprep.subr.mxu0 0.0
  %379 = vmatpush1.msra.mxu0 0.0
  %380 = vmatprep.subr.mxu0 0.0
  %381 = vmatpush1.msra.mxu0 0.0
  %382 = vmatprep.mubr.f32.mxu0 0.0
  %383 = vmatmul.mubr.f32.gmra.mrb[0].mxu0 %v271
  %v384 = vpop.f32.mrb[0].mxu0
  %v385 = vadd.f32 1e-08, %v384
  %v386 = vpop.f32.mrb[0].mxu0
  %387 = vmatprep.mubr.f32.mxu0 0.0
  %388 = vmatmul.mubr.f32.gmra.mrb[0].mxu0 %v274
  %v389 = vpop.f32.mrb[0].mxu0
  %v390 = vadd.f32 1e-08, %v389
  %v391 = vpop.f32.mrb[0].mxu0
  %392 = vmatprep.mubr.f32.mxu0 0.0
  %393 = vmatmul.mubr.f32.gmra.mrb[0].mxu0 %v277
  %v394 = vpop.f32.mrb[0].mxu0
  %v395 = vadd.f32 1e-08, %v394
  %v396 = vpop.f32.mrb[0].mxu0
  %397 = vmatprep.mubr.f32.mxu0 0.0
  %398 = vmatmul.mubr.f32.gmra.mrb[0].mxu0 %v280
  %v399 = vpop.f32.mrb[0].mxu0
  %v400 = vadd.f32 1e-08, %v399
  %v401 = vpop.f32.mrb[0].mxu0
  %402 = vmatprep.mubr.f32.mxu0 0.0
  %403 = vmatmul.mubr.f32.gmra.mrb[0].mxu0 %v283
  %v404 = vpop.f32.mrb[0].mxu0
  %v405 = vadd.f32 1e-08, %v404
  %v406 = vpop.f32.mrb[0].mxu0
  %407 = vmatprep.mubr.f32.mxu0 0.0
  %408 = vmatmul.mubr.f32.gmra.mrb[0].mxu0 %v286
  %v409 = vpop.f32.mrb[0].mxu0
  %v410 = vadd.f32 1e-08, %v409
  %v411 = vpop.f32.mrb[0].mxu0
  %412 = vmatprep.mubr.f32.mxu0 0.0
  %413 = vmatmul.mubr.f32.gmra.mrb[0].mxu0 %v289
  %v414 = vpop.f32.mrb[0].mxu0
  %v415 = vadd.f32 1e-08, %v414
  %v416 = vpop.f32.mrb[0].mxu0
  %417 = vmatprep.mubr.f32.mxu0 0.0
  %418 = vmatmul.mubr.f32.gmra.mrb[0].mxu0 %v292
  %v419 = vpop.f32.mrb[0].mxu0
  %v420 = vadd.f32 1e-08, %v419
  %v421 = vpop.f32.mrb[0].mxu0
  %422 = vmatprep.mubr.f32.mxu0 0.0
  %423 = vmatmul.mubr.f32.gmra.mrb[0].mxu0 %v295
  %v424 = vpop.f32.mrb[0].mxu0
  %v425 = vadd.f32 1e-08, %v424
  %v426 = vpop.f32.mrb[0].mxu0
  %427 = vmatprep.mubr.f32.mxu0 0.0
  %428 = vmatmul.mubr.f32.gmra.mrb[0].mxu0 %v298
  %v429 = vpop.f32.mrb[0].mxu0
  %v430 = vadd.f32 1e-08, %v429
  %v431 = vpop.f32.mrb[0].mxu0
  %432 = vmatprep.mubr.f32.mxu0 0.0
  %433 = vmatmul.mubr.f32.gmra.mrb[0].mxu0 %v301
  %v434 = vpop.f32.mrb[0].mxu0
  %v435 = vadd.f32 1e-08, %v434
  %v436 = vpop.f32.mrb[0].mxu0
  %437 = vmatprep.mubr.f32.mxu0 0.0
  %438 = vmatmul.mubr.f32.gmra.mrb[0].mxu0 %v304
  %v439 = vpop.f32.mrb[0].mxu0
  %v440 = vadd.f32 1e-08, %v439
  %v441 = vpop.f32.mrb[0].mxu0
  %442 = vmatprep.mubr.f32.mxu0 0.0
  %443 = vmatmul.mubr.f32.gmra.mrb[0].mxu0 %v307
  %v444 = vpop.f32.mrb[0].mxu0
  %v445 = vadd.f32 1e-08, %v444
  %v446 = vpop.f32.mrb[0].mxu0
  %447 = vmatprep.mubr.f32.mxu0 0.0
  %448 = vmatmul.mubr.f32.gmra.mrb[0].mxu0 %v310
  %v449 = vpop.f32.mrb[0].mxu0
  %v450 = vadd.f32 1e-08, %v449
  %v451 = vpop.f32.mrb[0].mxu0
  %452 = vmatprep.mubr.f32.mxu0 0.0
  %453 = vmatmul.mubr.f32.gmra.mrb[0].mxu0 %v313
  %v454 = vpop.f32.mrb[0].mxu0
  %v455 = vadd.f32 1e-08, %v454
  %v456 = vpop.f32.mrb[0].mxu0
  %457 = vmatprep.mubr.f32.mxu0 0.0
  %458 = vmatmul.mubr.f32.gmra.mrb[0].mxu0 %v316
  %v459 = vpop.f32.mrb[0].mxu0
  %v460 = vadd.f32 1e-08, %v459
  %v461 = vpop.f32.mrb[0].mxu0
  %462 = vdwg.mxu0
  %v463 = vrsqrt.pop %v385
  %v464 = vrsqrt.pop %v390
  %v465 = vrsqrt.pop %v395
  %v466 = vrsqrt.pop %v400
  %v467 = vrsqrt.pop %v405
  %v468 = vrsqrt.pop %v410
  %v469 = vrsqrt.pop %v415
  %v470 = vrsqrt.pop %v420
  %v471 = vrsqrt.pop %v425
  %v472 = vrsqrt.pop %v430
  %v473 = vrsqrt.pop %v435
  %v474 = vrsqrt.pop %v440
  %v475 = vrsqrt.pop %v445
  %v476 = vrsqrt.pop %v450
  %v477 = vrsqrt.pop %v455
  %v478 = vrsqrt.pop %v460
  %v479 = vmul.f32 %v159, %v463
  %v480 = vmul.f32 %v164, %v464
  %v481 = vmul.f32 %v169, %v465
  %v482 = vmul.f32 %v174, %v466
  %v483 = vmul.f32 %v179, %v467
  %v484 = vmul.f32 %v184, %v468
  %v485 = vmul.f32 %v189, %v469
  %v486 = vmul.f32 %v194, %v470
  %v487 = vmul.f32 %v199, %v471
  %v488 = vmul.f32 %v204, %v472
  %v489 = vmul.f32 %v209, %v473
  %v490 = vmul.f32 %v214, %v474
  %v491 = vmul.f32 %v219, %v475
  %v492 = vmul.f32 %v224, %v476
  %v493 = vmul.f32 %v229, %v477
  %v494 = vmul.f32 %v234, %v478
  %v495 = vld [vmem:[%s4] sm:$0xff]
  %v496 = vld [vmem:[%s4 + $0x8] sm:$0xff]
  %v497 = vld [vmem:[%s4 + $0x10] sm:$0xff]
  %v498 = vld [vmem:[%s4 + $0x18] sm:$0xff]
  %v499 = vld [vmem:[%s4 + $0x20] sm:$0xff]
  %v500 = vld [vmem:[%s4 + $0x28] sm:$0xff]
  %v501 = vld [vmem:[%s4 + $0x30] sm:$0xff]
  %v502 = vld [vmem:[%s4 + $0x38] sm:$0xff]
  %v503 = vld [vmem:[%s4 + $0x40] sm:$0xff]
  %v504 = vld [vmem:[%s4 + $0x48] sm:$0xff]
  %v505 = vld [vmem:[%s4 + $0x50] sm:$0xff]
  %v506 = vld [vmem:[%s4 + $0x58] sm:$0xff]
  %v507 = vld [vmem:[%s4 + $0x60] sm:$0xff]
  %v508 = vld [vmem:[%s4 + $0x68] sm:$0xff]
  %v509 = vld [vmem:[%s4 + $0x70] sm:$0xff]
  %v510 = vld [vmem:[%s4 + $0x78] sm:$0xff]
  %512 = vset.pattern.permute.xlu0 0
  %513 = vperm.xlu0 %512, %v495
  %v514 = vpop.permute.xlu0 %513
  %517 = vset.pattern.permute.xlu0 0
  %518 = vperm.xlu0 %517, %v496
  %v519 = vpop.permute.xlu0 %518
  %522 = vset.pattern.permute.xlu0 0
  %523 = vperm.xlu0 %522, %v497
  %v524 = vpop.permute.xlu0 %523
  %527 = vset.pattern.permute.xlu0 0
  %528 = vperm.xlu0 %527, %v498
  %v529 = vpop.permute.xlu0 %528
  %532 = vset.pattern.permute.xlu0 0
  %533 = vperm.xlu0 %532, %v499
  %v534 = vpop.permute.xlu0 %533
  %537 = vset.pattern.permute.xlu0 0
  %538 = vperm.xlu0 %537, %v500
  %v539 = vpop.permute.xlu0 %538
  %542 = vset.pattern.permute.xlu0 0
  %543 = vperm.xlu0 %542, %v501
  %v544 = vpop.permute.xlu0 %543
  %547 = vset.pattern.permute.xlu0 0
  %548 = vperm.xlu0 %547, %v502
  %v549 = vpop.permute.xlu0 %548
  %552 = vset.pattern.permute.xlu0 0
  %553 = vperm.xlu0 %552, %v503
  %v554 = vpop.permute.xlu0 %553
  %557 = vset.pattern.permute.xlu0 0
  %558 = vperm.xlu0 %557, %v504
  %v559 = vpop.permute.xlu0 %558
  %562 = vset.pattern.permute.xlu0 0
  %563 = vperm.xlu0 %562, %v505
  %v564 = vpop.permute.xlu0 %563
  %567 = vset.pattern.permute.xlu0 0
  %568 = vperm.xlu0 %567, %v506
  %v569 = vpop.permute.xlu0 %568
  %572 = vset.pattern.permute.xlu0 0
  %573 = vperm.xlu0 %572, %v507
  %v574 = vpop.permute.xlu0 %573
  %577 = vset.pattern.permute.xlu0 0
  %578 = vperm.xlu0 %577, %v508
  %v579 = vpop.permute.xlu0 %578
  %582 = vset.pattern.permute.xlu0 0
  %583 = vperm.xlu0 %582, %v509
  %v584 = vpop.permute.xlu0 %583
  %587 = vset.pattern.permute.xlu0 0
  %588 = vperm.xlu0 %587, %v510
  %v589 = vpop.permute.xlu0 %588
  %v591 = vadd.f32 %v479, %v514
  %v592 = vadd.f32 %v480, %v519
  %v593 = vadd.f32 %v481, %v524
  %v594 = vadd.f32 %v482, %v529
  %v595 = vadd.f32 %v483, %v534
  %v596 = vadd.f32 %v484, %v539
  %v597 = vadd.f32 %v485, %v544
  %v598 = vadd.f32 %v486, %v549
  %v599 = vadd.f32 %v487, %v554
  %v600 = vadd.f32 %v488, %v559
  %v601 = vadd.f32 %v489, %v564
  %v602 = vadd.f32 %v490, %v569
  %v603 = vadd.f32 %v491, %v574
  %v604 = vadd.f32 %v492, %v579
  %v605 = vadd.f32 %v493, %v584
  %v606 = vadd.f32 %v494, %v589
  %v607 = vld [vmem:[%s5] sm:$0x1]
  %v609 = vlaneseq
  %v610 = vshrl.u32 %v609, 7
  %v611 = vsub.s32 0, %v610
  %v612 = vrot.slane %v607, %v611
  %v614 = vadd.f32 %v591, %v612
  %v615 = vadd.f32 %v592, %v612
  %v616 = vadd.f32 %v593, %v612
  %v617 = vadd.f32 %v594, %v612
  %v618 = vadd.f32 %v595, %v612
  %v619 = vadd.f32 %v596, %v612
  %v620 = vadd.f32 %v597, %v612
  %v621 = vadd.f32 %v598, %v612
  %v622 = vadd.f32 %v599, %v612
  %v623 = vadd.f32 %v600, %v612
  %v624 = vadd.f32 %v601, %v612
  %v625 = vadd.f32 %v602, %v612
  %v626 = vadd.f32 %v603, %v612
  %v627 = vadd.f32 %v604, %v612
  %v628 = vadd.f32 %v605, %v612
  %v629 = vadd.f32 %v606, %v612
  %vm630 = vcmp.ge.f32.partialorder %v614, 0.0
  %vm631 = vcmp.ge.f32.partialorder %v615, 0.0
  %vm632 = vcmp.ge.f32.partialorder %v616, 0.0
  %vm633 = vcmp.ge.f32.partialorder %v617, 0.0
  %vm634 = vcmp.ge.f32.partialorder %v618, 0.0
  %vm635 = vcmp.ge.f32.partialorder %v619, 0.0
  %vm636 = vcmp.ge.f32.partialorder %v620, 0.0
  %vm637 = vcmp.ge.f32.partialorder %v621, 0.0
  %vm638 = vcmp.ge.f32.partialorder %v622, 0.0
  %vm639 = vcmp.ge.f32.partialorder %v623, 0.0
  %vm640 = vcmp.ge.f32.partialorder %v624, 0.0
  %vm641 = vcmp.ge.f32.partialorder %v625, 0.0
  %vm642 = vcmp.ge.f32.partialorder %v626, 0.0
  %vm643 = vcmp.ge.f32.partialorder %v627, 0.0
  %vm644 = vcmp.ge.f32.partialorder %v628, 0.0
  %vm645 = vcmp.ge.f32.partialorder %v629, 0.0
  %v646 = vld [vmem:[%s6] sm:$0x1]
  %v648 = vlaneseq
  %v649 = vshrl.u32 %v648, 7
  %v650 = vsub.s32 0, %v649
  %v651 = vrot.slane %v646, %v650
  %v653 = vmul.f32 %v651, %v614
  %v654 = vmul.f32 %v651, %v615
  %v655 = vmul.f32 %v651, %v616
  %v656 = vmul.f32 %v651, %v617
  %v657 = vmul.f32 %v651, %v618
  %v658 = vmul.f32 %v651, %v619
  %v659 = vmul.f32 %v651, %v620
  %v660 = vmul.f32 %v651, %v621
  %v661 = vmul.f32 %v651, %v622
  %v662 = vmul.f32 %v651, %v623
  %v663 = vmul.f32 %v651, %v624
  %v664 = vmul.f32 %v651, %v625
  %v665 = vmul.f32 %v651, %v626
  %v666 = vmul.f32 %v651, %v627
  %v667 = vmul.f32 %v651, %v628
  %v668 = vmul.f32 %v651, %v629
  %v669 = vsel %vm630, %v614, %v653
  %v670 = vsel %vm631, %v615, %v654
  %v671 = vsel %vm632, %v616, %v655
  %v672 = vsel %vm633, %v617, %v656
  %v673 = vsel %vm634, %v618, %v657
  %v674 = vsel %vm635, %v619, %v658
  %v675 = vsel %vm636, %v620, %v659
  %v676 = vsel %vm637, %v621, %v660
  %v677 = vsel %vm638, %v622, %v661
  %v678 = vsel %vm639, %v623, %v662
  %v679 = vsel %vm640, %v624, %v663
  %v680 = vsel %vm641, %v625, %v664
  %v681 = vsel %vm642, %v626, %v665
  %v682 = vsel %vm643, %v627, %v666
  %v683 = vsel %vm644, %v628, %v667
  %v684 = vsel %vm645, %v629, %v668
  %685 = vst.msk [vmem:[%s7] sm:$0xff] %vm43, %v669
  %686 = vst.msk [vmem:[%s7 + $0x8] sm:$0xff] %vm43, %v670
  %687 = vst.msk [vmem:[%s7 + $0x10] sm:$0xff] %vm43, %v671
  %688 = vst.msk [vmem:[%s7 + $0x18] sm:$0xff] %vm43, %v672
  %689 = vst.msk [vmem:[%s7 + $0x20] sm:$0xff] %vm43, %v673
  %690 = vst.msk [vmem:[%s7 + $0x28] sm:$0xff] %vm43, %v674
  %691 = vst.msk [vmem:[%s7 + $0x30] sm:$0xff] %vm43, %v675
  %692 = vst.msk [vmem:[%s7 + $0x38] sm:$0xff] %vm43, %v676
  %693 = vst.msk [vmem:[%s7 + $0x40] sm:$0xff] %vm43, %v677
  %694 = vst.msk [vmem:[%s7 + $0x48] sm:$0xff] %vm43, %v678
  %695 = vst.msk [vmem:[%s7 + $0x50] sm:$0xff] %vm43, %v679
  %696 = vst.msk [vmem:[%s7 + $0x58] sm:$0xff] %vm43, %v680
  %697 = vst.msk [vmem:[%s7 + $0x60] sm:$0xff] %vm43, %v681
  %698 = vst.msk [vmem:[%s7 + $0x68] sm:$0xff] %vm43, %v682
  %699 = vst.msk [vmem:[%s7 + $0x70] sm:$0xff] %vm43, %v683
  %700 = vst.msk [vmem:[%s7 + $0x78] sm:$0xff] %vm43, %v684
  // Predicated region
  $region30: #{_lambda_.32} parent=0 // pred_check
    _
  $region31: #{_lambda_.32} parent=0 // pred_check_branch
    %702 = sbr.rel (0) target = $region33
  $region32: #{_lambda_.32} parent=0 // pred_region
    _
  $region33: #{_lambda_.32} parent=0 // pred_fallthru
    _
  // Predicated region
  $region34: #{_lambda_.32} parent=0 // pred_check
    _
  $region35: #{_lambda_.32} parent=0 // pred_check_branch
    %704 = sbr.rel (0) target = $region37
  $region36: #{_lambda_.32} parent=0 // pred_region
    _
  $region37: #{_lambda_.32} parent=0 // pred_fallthru
    _

// kernel: _lambda_.33
$region0: #{_lambda_.33}
  #allocation0 [shape = 'u32[]', space=smem, size = 0x4, offset = 0x4, fixed_abs, tag = 'smem constant byte address 0x4 - core index']
  #allocation1 [shape = 'u32[144,128]{1,0:T(1,128)}', space=vmem, size = 0x12000, scoped, tag = 'internal scratch']
  %s0 = inlined_call_operand.vmem [shape: f32[128,72], index: 0, kind: input, shape index: {}]
  %s1 = inlined_call_operand.vmem [shape: f32[72,8], index: 1, kind: input, shape index: {}]
  %s2 = inlined_call_operand.vmem [shape: f32[128,8], index: 2, kind: input, shape index: {}]
  %s3 = inlined_call_operand.vmem [shape: f32[8,8], index: 3, kind: input, shape index: {}]
  %s4 = inlined_call_operand.vmem [shape: f32[128,1], index: 4, kind: input, shape index: {}]
  %s5 = inlined_call_operand.vmem [shape: f32[1,8], index: 5, kind: input, shape index: {}]
  %s6 = inlined_call_operand.vmem [shape: f32[1,8], index: 6, kind: input, shape index: {}]
  %s7 = inlined_call_operand.vmem [shape: f32[128,8], index: 7, kind: output, shape index: {}]
  %s8 = sld [smem:[#allocation0]]
  $region38: #{_lambda_.33} parent=0
    _
  %s10 = ssub.s32 1, %s8
  %s11 = scalar_select 0, %s10, %s8
  // Predicated region
  $region2: #{_lambda_.33} parent=0 // pred_check
    _
  $region3: #{_lambda_.33} parent=0 // pred_check_branch
    %13 = sbr.rel (0) target = $region5
  $region4: #{_lambda_.33} parent=0 // pred_region
    _
  $region5: #{_lambda_.33} parent=0 // pred_fallthru
    _
  // Predicated region
  $region6: #{_lambda_.33} parent=0 // pred_check
    _
  $region7: #{_lambda_.33} parent=0 // pred_check_branch
    %15 = sbr.rel (0) target = $region9
  $region8: #{_lambda_.33} parent=0 // pred_region
    _
  $region9: #{_lambda_.33} parent=0 // pred_fallthru
    _
  // Predicated region
  $region10: #{_lambda_.33} parent=0 // pred_check
    _
  $region11: #{_lambda_.33} parent=0 // pred_check_branch
    %17 = sbr.rel (0) target = $region13
  $region12: #{_lambda_.33} parent=0 // pred_region
    _
  $region13: #{_lambda_.33} parent=0 // pred_fallthru
    _
  // Predicated region
  $region14: #{_lambda_.33} parent=0 // pred_check
    _
  $region15: #{_lambda_.33} parent=0 // pred_check_branch
    %19 = sbr.rel (0) target = $region17
  $region16: #{_lambda_.33} parent=0 // pred_region
    _
  $region17: #{_lambda_.33} parent=0 // pred_fallthru
    _
  // Predicated region
  $region18: #{_lambda_.33} parent=0 // pred_check
    _
  $region19: #{_lambda_.33} parent=0 // pred_check_branch
    %21 = sbr.rel (0) target = $region21
  $region20: #{_lambda_.33} parent=0 // pred_region
    _
  $region21: #{_lambda_.33} parent=0 // pred_fallthru
    _
  // Predicated region
  $region22: #{_lambda_.33} parent=0 // pred_check
    _
  $region23: #{_lambda_.33} parent=0 // pred_check_branch
    %23 = sbr.rel (0) target = $region25
  $region24: #{_lambda_.33} parent=0 // pred_region
    _
  $region25: #{_lambda_.33} parent=0 // pred_fallthru
    _
  // Predicated region
  $region26: #{_lambda_.33} parent=0 // pred_check
    _
  $region27: #{_lambda_.33} parent=0 // pred_check_branch
    %25 = sbr.rel (0) target = $region29
  $region28: #{_lambda_.33} parent=0 // pred_region
    _
  $region29: #{_lambda_.33} parent=0 // pred_fallthru
    _
  %v26 = vld [vmem:[%s0] sm:$0xff]
  %v27 = vld [vmem:[%s0 + $0x8] sm:$0xff]
  %v28 = vld [vmem:[%s0 + $0x10] sm:$0xff]
  %v29 = vld [vmem:[%s0 + $0x18] sm:$0xff]
  %v30 = vld [vmem:[%s0 + $0x20] sm:$0xff]
  %v31 = vld [vmem:[%s0 + $0x28] sm:$0xff]
  %v32 = vld [vmem:[%s0 + $0x30] sm:$0xff]
  %v33 = vld [vmem:[%s0 + $0x38] sm:$0xff]
  %v34 = vld [vmem:[%s0 + $0x40] sm:$0xff]
  %v35 = vld [vmem:[%s0 + $0x48] sm:$0xff]
  %v36 = vld [vmem:[%s0 + $0x50] sm:$0xff]
  %v37 = vld [vmem:[%s0 + $0x58] sm:$0xff]
  %v38 = vld [vmem:[%s0 + $0x60] sm:$0xff]
  %v39 = vld [vmem:[%s0 + $0x68] sm:$0xff]
  %v40 = vld [vmem:[%s0 + $0x70] sm:$0xff]
  %v41 = vld [vmem:[%s0 + $0x78] sm:$0xff]
  %v42 = vld [vmem:[%s1] sm:$0xff]
  %v43 = vld [vmem:[%s1 + $0x8] sm:$0xff]
  %v44 = vld [vmem:[%s1 + $0x10] sm:$0xff]
  %v45 = vld [vmem:[%s1 + $0x18] sm:$0xff]
  %v46 = vld [vmem:[%s1 + $0x20] sm:$0xff]
  %v47 = vld [vmem:[%s1 + $0x28] sm:$0xff]
  %v48 = vld [vmem:[%s1 + $0x30] sm:$0xff]
  %v49 = vld [vmem:[%s1 + $0x38] sm:$0xff]
  %v50 = vld [vmem:[%s1 + $0x40] sm:$0xff]
  %vm51 = vcmask 588800
  %v53 = vsel %vm51, %v26, 0
  %v56 = vsel %vm51, %v27, 0
  %v59 = vsel %vm51, %v28, 0
  %v62 = vsel %vm51, %v29, 0
  %v65 = vsel %vm51, %v30, 0
  %v68 = vsel %vm51, %v31, 0
  %v71 = vsel %vm51, %v32, 0
  %v74 = vsel %vm51, %v33, 0
  %v77 = vsel %vm51, %v34, 0
  %v80 = vsel %vm51, %v35, 0
  %v83 = vsel %vm51, %v36, 0
  %v86 = vsel %vm51, %v37, 0
  %v89 = vsel %vm51, %v38, 0
  %v92 = vsel %vm51, %v39, 0
  %v95 = vsel %vm51, %v40, 0
  %v98 = vsel %vm51, %v41, 0
  %100 = vmatprep.subr.mxu0 0.0
  %101 = vmatpush1.msra.mxu0 %v42
  %102 = vmatprep.subr.mxu0 0.0
  %103 = vmatpush1.msra.mxu0 %v43
  %104 = vmatprep.subr.mxu0 0.0
  %105 = vmatpush1.msra.mxu0 %v44
  %106 = vmatprep.subr.mxu0 0.0
  %107 = vmatpush1.msra.mxu0 %v45
  %108 = vmatprep.subr.mxu0 0.0
  %109 = vmatpush1.msra.mxu0 %v46
  %110 = vmatprep.subr.mxu0 0.0
  %111 = vmatpush1.msra.mxu0 %v47
  %112 = vmatprep.subr.mxu0 0.0
  %113 = vmatpush1.msra.mxu0 %v48
  %114 = vmatprep.subr.mxu0 0.0
  %115 = vmatpush1.msra.mxu0 %v49
  %116 = vmatprep.subr.mxu0 0.0
  %117 = vmatpush1.msra.mxu0 %v50
  %118 = vmatprep.subr.mxu0 0.0
  %119 = vmatpush1.msra.mxu0 0.0
  %120 = vmatprep.subr.mxu0 0.0
  %121 = vmatpush1.msra.mxu0 0.0
  %122 = vmatprep.subr.mxu0 0.0
  %123 = vmatpush1.msra.mxu0 0.0
  %124 = vmatprep.subr.mxu0 0.0
  %125 = vmatpush1.msra.mxu0 0.0
  %126 = vmatprep.subr.mxu0 0.0
  %127 = vmatpush1.msra.mxu0 0.0
  %128 = vmatprep.subr.mxu0 0.0
  %129 = vmatpush1.msra.mxu0 0.0
  %130 = vmatprep.subr.mxu0 0.0
  %131 = vmatpush1.msra.mxu0 0.0
  %132 = vmatprep.subr.mxu0 0.0
  %133 = vmatpush1.msra.mxu0 0.0
  %134 = vmatprep.subr.mxu0 0.0
  %135 = vmatpush1.msra.mxu0 0.0
  %136 = vmatprep.subr.mxu0 0.0
  %137 = vmatpush1.msra.mxu0 0.0
  %138 = vmatprep.subr.mxu0 0.0
  %139 = vmatpush1.msra.mxu0 0.0
  %140 = vmatprep.subr.mxu0 0.0
  %141 = vmatpush1.msra.mxu0 0.0
  %142 = vmatprep.subr.mxu0 0.0
  %143 = vmatpush1.msra.mxu0 0.0
  %144 = vmatprep.subr.mxu0 0.0
  %145 = vmatpush1.msra.mxu0 0.0
  %146 = vmatprep.subr.mxu0 0.0
  %147 = vmatpush1.msra.mxu0 0.0
  %148 = vmatprep.subr.mxu0 0.0
  %149 = vmatpush1.msra.mxu0 0.0
  %150 = vmatprep.subr.mxu0 0.0
  %151 = vmatpush1.msra.mxu0 0.0
  %152 = vmatprep.subr.mxu0 0.0
  %153 = vmatpush1.msra.mxu0 0.0
  %154 = vmatprep.subr.mxu0 0.0
  %155 = vmatpush1.msra.mxu0 0.0
  %156 = vmatprep.subr.mxu0 0.0
  %157 = vmatpush1.msra.mxu0 0.0
  %158 = vmatprep.subr.mxu0 0.0
  %159 = vmatpush1.msra.mxu0 0.0
  %160 = vmatprep.subr.mxu0 0.0
  %161 = vmatpush1.msra.mxu0 0.0
  %162 = vmatprep.subr.mxu0 0.0
  %163 = vmatpush1.msra.mxu0 0.0
  %164 = vmatprep.mubr.f32.mxu0 0.0
  %165 = vmatmul.mubr.f32.gmra.mrb[0].mxu0 %v53
  %v166 = vpop.f32.mrb[0].mxu0
  %v167 = vadd.f32 0.0, %v166
  %v168 = vpop.f32.mrb[0].mxu0
  %169 = vmatprep.mubr.f32.mxu0 0.0
  %170 = vmatmul.mubr.f32.gmra.mrb[0].mxu0 %v56
  %v171 = vpop.f32.mrb[0].mxu0
  %v172 = vadd.f32 0.0, %v171
  %v173 = vpop.f32.mrb[0].mxu0
  %174 = vmatprep.mubr.f32.mxu0 0.0
  %175 = vmatmul.mubr.f32.gmra.mrb[0].mxu0 %v59
  %v176 = vpop.f32.mrb[0].mxu0
  %v177 = vadd.f32 0.0, %v176
  %v178 = vpop.f32.mrb[0].mxu0
  %179 = vmatprep.mubr.f32.mxu0 0.0
  %180 = vmatmul.mubr.f32.gmra.mrb[0].mxu0 %v62
  %v181 = vpop.f32.mrb[0].mxu0
  %v182 = vadd.f32 0.0, %v181
  %v183 = vpop.f32.mrb[0].mxu0
  %184 = vmatprep.mubr.f32.mxu0 0.0
  %185 = vmatmul.mubr.f32.gmra.mrb[0].mxu0 %v65
  %v186 = vpop.f32.mrb[0].mxu0
  %v187 = vadd.f32 0.0, %v186
  %v188 = vpop.f32.mrb[0].mxu0
  %189 = vmatprep.mubr.f32.mxu0 0.0
  %190 = vmatmul.mubr.f32.gmra.mrb[0].mxu0 %v68
  %v191 = vpop.f32.mrb[0].mxu0
  %v192 = vadd.f32 0.0, %v191
  %v193 = vpop.f32.mrb[0].mxu0
  %194 = vmatprep.mubr.f32.mxu0 0.0
  %195 = vmatmul.mubr.f32.gmra.mrb[0].mxu0 %v71
  %v196 = vpop.f32.mrb[0].mxu0
  %v197 = vadd.f32 0.0, %v196
  %v198 = vpop.f32.mrb[0].mxu0
  %199 = vmatprep.mubr.f32.mxu0 0.0
  %200 = vmatmul.mubr.f32.gmra.mrb[0].mxu0 %v74
  %v201 = vpop.f32.mrb[0].mxu0
  %v202 = vadd.f32 0.0, %v201
  %v203 = vpop.f32.mrb[0].mxu0
  %204 = vmatprep.mubr.f32.mxu0 0.0
  %205 = vmatmul.mubr.f32.gmra.mrb[0].mxu0 %v77
  %v206 = vpop.f32.mrb[0].mxu0
  %v207 = vadd.f32 0.0, %v206
  %v208 = vpop.f32.mrb[0].mxu0
  %209 = vmatprep.mubr.f32.mxu0 0.0
  %210 = vmatmul.mubr.f32.gmra.mrb[0].mxu0 %v80
  %v211 = vpop.f32.mrb[0].mxu0
  %v212 = vadd.f32 0.0, %v211
  %v213 = vpop.f32.mrb[0].mxu0
  %214 = vmatprep.mubr.f32.mxu0 0.0
  %215 = vmatmul.mubr.f32.gmra.mrb[0].mxu0 %v83
  %v216 = vpop.f32.mrb[0].mxu0
  %v217 = vadd.f32 0.0, %v216
  %v218 = vpop.f32.mrb[0].mxu0
  %219 = vmatprep.mubr.f32.mxu0 0.0
  %220 = vmatmul.mubr.f32.gmra.mrb[0].mxu0 %v86
  %v221 = vpop.f32.mrb[0].mxu0
  %v222 = vadd.f32 0.0, %v221
  %v223 = vpop.f32.mrb[0].mxu0
  %224 = vmatprep.mubr.f32.mxu0 0.0
  %225 = vmatmul.mubr.f32.gmra.mrb[0].mxu0 %v89
  %v226 = vpop.f32.mrb[0].mxu0
  %v227 = vadd.f32 0.0, %v226
  %v228 = vpop.f32.mrb[0].mxu0
  %229 = vmatprep.mubr.f32.mxu0 0.0
  %230 = vmatmul.mubr.f32.gmra.mrb[0].mxu0 %v92
  %v231 = vpop.f32.mrb[0].mxu0
  %v232 = vadd.f32 0.0, %v231
  %v233 = vpop.f32.mrb[0].mxu0
  %234 = vmatprep.mubr.f32.mxu0 0.0
  %235 = vmatmul.mubr.f32.gmra.mrb[0].mxu0 %v95
  %v236 = vpop.f32.mrb[0].mxu0
  %v237 = vadd.f32 0.0, %v236
  %v238 = vpop.f32.mrb[0].mxu0
  %239 = vmatprep.mubr.f32.mxu0 0.0
  %240 = vmatmul.mubr.f32.gmra.mrb[0].mxu0 %v98
  %v241 = vpop.f32.mrb[0].mxu0
  %v242 = vadd.f32 0.0, %v241
  %v243 = vpop.f32.mrb[0].mxu0
  %244 = vdwg.mxu0
  %v245 = vld [vmem:[%s2] sm:$0xff]
  %v246 = vld [vmem:[%s2 + $0x8] sm:$0xff]
  %v247 = vld [vmem:[%s2 + $0x10] sm:$0xff]
  %v248 = vld [vmem:[%s2 + $0x18] sm:$0xff]
  %v249 = vld [vmem:[%s2 + $0x20] sm:$0xff]
  %v250 = vld [vmem:[%s2 + $0x28] sm:$0xff]
  %v251 = vld [vmem:[%s2 + $0x30] sm:$0xff]
  %v252 = vld [vmem:[%s2 + $0x38] sm:$0xff]
  %v253 = vld [vmem:[%s2 + $0x40] sm:$0xff]
  %v254 = vld [vmem:[%s2 + $0x48] sm:$0xff]
  %v255 = vld [vmem:[%s2 + $0x50] sm:$0xff]
  %v256 = vld [vmem:[%s2 + $0x58] sm:$0xff]
  %v257 = vld [vmem:[%s2 + $0x60] sm:$0xff]
  %v258 = vld [vmem:[%s2 + $0x68] sm:$0xff]
  %v259 = vld [vmem:[%s2 + $0x70] sm:$0xff]
  %v260 = vld [vmem:[%s2 + $0x78] sm:$0xff]
  %v261 = vmul.f32 %v245, %v245
  %v262 = vmul.f32 %v246, %v246
  %v263 = vmul.f32 %v247, %v247
  %v264 = vmul.f32 %v248, %v248
  %v265 = vmul.f32 %v249, %v249
  %v266 = vmul.f32 %v250, %v250
  %v267 = vmul.f32 %v251, %v251
  %v268 = vmul.f32 %v252, %v252
  %v269 = vmul.f32 %v253, %v253
  %v270 = vmul.f32 %v254, %v254
  %v271 = vmul.f32 %v255, %v255
  %v272 = vmul.f32 %v256, %v256
  %v273 = vmul.f32 %v257, %v257
  %v274 = vmul.f32 %v258, %v258
  %v275 = vmul.f32 %v259, %v259
  %v276 = vmul.f32 %v260, %v260
  %v277 = vld [vmem:[%s3] sm:$0xff]
  %vm278 = vcmask 64512
  %v280 = vsel %vm278, %v261, 0
  %v283 = vsel %vm278, %v262, 0
  %v286 = vsel %vm278, %v263, 0
  %v289 = vsel %vm278, %v264, 0
  %v292 = vsel %vm278, %v265, 0
  %v295 = vsel %vm278, %v266, 0
  %v298 = vsel %vm278, %v267, 0
  %v301 = vsel %vm278, %v268, 0
  %v304 = vsel %vm278, %v269, 0
  %v307 = vsel %vm278, %v270, 0
  %v310 = vsel %vm278, %v271, 0
  %v313 = vsel %vm278, %v272, 0
  %v316 = vsel %vm278, %v273, 0
  %v319 = vsel %vm278, %v274, 0
  %v322 = vsel %vm278, %v275, 0
  %v325 = vsel %vm278, %v276, 0
  %327 = vmatprep.subr.mxu0 0.0
  %328 = vmatpush1.msra.mxu0 %v277
  %329 = vmatprep.subr.mxu0 0.0
  %330 = vmatpush1.msra.mxu0 0.0
  %331 = vmatprep.subr.mxu0 0.0
  %332 = vmatpush1.msra.mxu0 0.0
  %333 = vmatprep.subr.mxu0 0.0
  %334 = vmatpush1.msra.mxu0 0.0
  %335 = vmatprep.subr.mxu0 0.0
  %336 = vmatpush1.msra.mxu0 0.0
  %337 = vmatprep.subr.mxu0 0.0
  %338 = vmatpush1.msra.mxu0 0.0
  %339 = vmatprep.subr.mxu0 0.0
  %340 = vmatpush1.msra.mxu0 0.0
  %341 = vmatprep.subr.mxu0 0.0
  %342 = vmatpush1.msra.mxu0 0.0
  %343 = vmatprep.subr.mxu0 0.0
  %344 = vmatpush1.msra.mxu0 0.0
  %345 = vmatprep.subr.mxu0 0.0
  %346 = vmatpush1.msra.mxu0 0.0
  %347 = vmatprep.subr.mxu0 0.0
  %348 = vmatpush1.msra.mxu0 0.0
  %349 = vmatprep.subr.mxu0 0.0
  %350 = vmatpush1.msra.mxu0 0.0
  %351 = vmatprep.subr.mxu0 0.0
  %352 = vmatpush1.msra.mxu0 0.0
  %353 = vmatprep.subr.mxu0 0.0
  %354 = vmatpush1.msra.mxu0 0.0
  %355 = vmatprep.subr.mxu0 0.0
  %356 = vmatpush1.msra.mxu0 0.0
  %357 = vmatprep.subr.mxu0 0.0
  %358 = vmatpush1.msra.mxu0 0.0
  %359 = vmatprep.subr.mxu0 0.0
  %360 = vmatpush1.msra.mxu0 0.0
  %361 = vmatprep.subr.mxu0 0.0
  %362 = vmatpush1.msra.mxu0 0.0
  %363 = vmatprep.subr.mxu0 0.0
  %364 = vmatpush1.msra.mxu0 0.0
  %365 = vmatprep.subr.mxu0 0.0
  %366 = vmatpush1.msra.mxu0 0.0
  %367 = vmatprep.subr.mxu0 0.0
  %368 = vmatpush1.msra.mxu0 0.0
  %369 = vmatprep.subr.mxu0 0.0
  %370 = vmatpush1.msra.mxu0 0.0
  %371 = vmatprep.subr.mxu0 0.0
  %372 = vmatpush1.msra.mxu0 0.0
  %373 = vmatprep.subr.mxu0 0.0
  %374 = vmatpush1.msra.mxu0 0.0
  %375 = vmatprep.subr.mxu0 0.0
  %376 = vmatpush1.msra.mxu0 0.0
  %377 = vmatprep.subr.mxu0 0.0
  %378 = vmatpush1.msra.mxu0 0.0
  %379 = vmatprep.subr.mxu0 0.0
  %380 = vmatpush1.msra.mxu0 0.0
  %381 = vmatprep.subr.mxu0 0.0
  %382 = vmatpush1.msra.mxu0 0.0
  %383 = vmatprep.subr.mxu0 0.0
  %384 = vmatpush1.msra.mxu0 0.0
  %385 = vmatprep.subr.mxu0 0.0
  %386 = vmatpush1.msra.mxu0 0.0
  %387 = vmatprep.subr.mxu0 0.0
  %388 = vmatpush1.msra.mxu0 0.0
  %389 = vmatprep.subr.mxu0 0.0
  %390 = vmatpush1.msra.mxu0 0.0
  %391 = vmatprep.mubr.f32.mxu0 0.0
  %392 = vmatmul.mubr.f32.gmra.mrb[0].mxu0 %v280
  %v393 = vpop.f32.mrb[0].mxu0
  %v394 = vadd.f32 1e-08, %v393
  %v395 = vpop.f32.mrb[0].mxu0
  %396 = vmatprep.mubr.f32.mxu0 0.0
  %397 = vmatmul.mubr.f32.gmra.mrb[0].mxu0 %v283
  %v398 = vpop.f32.mrb[0].mxu0
  %v399 = vadd.f32 1e-08, %v398
  %v400 = vpop.f32.mrb[0].mxu0
  %401 = vmatprep.mubr.f32.mxu0 0.0
  %402 = vmatmul.mubr.f32.gmra.mrb[0].mxu0 %v286
  %v403 = vpop.f32.mrb[0].mxu0
  %v404 = vadd.f32 1e-08, %v403
  %v405 = vpop.f32.mrb[0].mxu0
  %406 = vmatprep.mubr.f32.mxu0 0.0
  %407 = vmatmul.mubr.f32.gmra.mrb[0].mxu0 %v289
  %v408 = vpop.f32.mrb[0].mxu0
  %v409 = vadd.f32 1e-08, %v408
  %v410 = vpop.f32.mrb[0].mxu0
  %411 = vmatprep.mubr.f32.mxu0 0.0
  %412 = vmatmul.mubr.f32.gmra.mrb[0].mxu0 %v292
  %v413 = vpop.f32.mrb[0].mxu0
  %v414 = vadd.f32 1e-08, %v413
  %v415 = vpop.f32.mrb[0].mxu0
  %416 = vmatprep.mubr.f32.mxu0 0.0
  %417 = vmatmul.mubr.f32.gmra.mrb[0].mxu0 %v295
  %v418 = vpop.f32.mrb[0].mxu0
  %v419 = vadd.f32 1e-08, %v418
  %v420 = vpop.f32.mrb[0].mxu0
  %421 = vmatprep.mubr.f32.mxu0 0.0
  %422 = vmatmul.mubr.f32.gmra.mrb[0].mxu0 %v298
  %v423 = vpop.f32.mrb[0].mxu0
  %v424 = vadd.f32 1e-08, %v423
  %v425 = vpop.f32.mrb[0].mxu0
  %426 = vmatprep.mubr.f32.mxu0 0.0
  %427 = vmatmul.mubr.f32.gmra.mrb[0].mxu0 %v301
  %v428 = vpop.f32.mrb[0].mxu0
  %v429 = vadd.f32 1e-08, %v428
  %v430 = vpop.f32.mrb[0].mxu0
  %431 = vmatprep.mubr.f32.mxu0 0.0
  %432 = vmatmul.mubr.f32.gmra.mrb[0].mxu0 %v304
  %v433 = vpop.f32.mrb[0].mxu0
  %v434 = vadd.f32 1e-08, %v433
  %v435 = vpop.f32.mrb[0].mxu0
  %436 = vmatprep.mubr.f32.mxu0 0.0
  %437 = vmatmul.mubr.f32.gmra.mrb[0].mxu0 %v307
  %v438 = vpop.f32.mrb[0].mxu0
  %v439 = vadd.f32 1e-08, %v438
  %v440 = vpop.f32.mrb[0].mxu0
  %441 = vmatprep.mubr.f32.mxu0 0.0
  %442 = vmatmul.mubr.f32.gmra.mrb[0].mxu0 %v310
  %v443 = vpop.f32.mrb[0].mxu0
  %v444 = vadd.f32 1e-08, %v443
  %v445 = vpop.f32.mrb[0].mxu0
  %446 = vmatprep.mubr.f32.mxu0 0.0
  %447 = vmatmul.mubr.f32.gmra.mrb[0].mxu0 %v313
  %v448 = vpop.f32.mrb[0].mxu0
  %v449 = vadd.f32 1e-08, %v448
  %v450 = vpop.f32.mrb[0].mxu0
  %451 = vmatprep.mubr.f32.mxu0 0.0
  %452 = vmatmul.mubr.f32.gmra.mrb[0].mxu0 %v316
  %v453 = vpop.f32.mrb[0].mxu0
  %v454 = vadd.f32 1e-08, %v453
  %v455 = vpop.f32.mrb[0].mxu0
  %456 = vmatprep.mubr.f32.mxu0 0.0
  %457 = vmatmul.mubr.f32.gmra.mrb[0].mxu0 %v319
  %v458 = vpop.f32.mrb[0].mxu0
  %v459 = vadd.f32 1e-08, %v458
  %v460 = vpop.f32.mrb[0].mxu0
  %461 = vmatprep.mubr.f32.mxu0 0.0
  %462 = vmatmul.mubr.f32.gmra.mrb[0].mxu0 %v322
  %v463 = vpop.f32.mrb[0].mxu0
  %v464 = vadd.f32 1e-08, %v463
  %v465 = vpop.f32.mrb[0].mxu0
  %466 = vmatprep.mubr.f32.mxu0 0.0
  %467 = vmatmul.mubr.f32.gmra.mrb[0].mxu0 %v325
  %v468 = vpop.f32.mrb[0].mxu0
  %v469 = vadd.f32 1e-08, %v468
  %v470 = vpop.f32.mrb[0].mxu0
  %471 = vdwg.mxu0
  %v472 = vrsqrt.pop %v394
  %v473 = vrsqrt.pop %v399
  %v474 = vrsqrt.pop %v404
  %v475 = vrsqrt.pop %v409
  %v476 = vrsqrt.pop %v414
  %v477 = vrsqrt.pop %v419
  %v478 = vrsqrt.pop %v424
  %v479 = vrsqrt.pop %v429
  %v480 = vrsqrt.pop %v434
  %v481 = vrsqrt.pop %v439
  %v482 = vrsqrt.pop %v444
  %v483 = vrsqrt.pop %v449
  %v484 = vrsqrt.pop %v454
  %v485 = vrsqrt.pop %v459
  %v486 = vrsqrt.pop %v464
  %v487 = vrsqrt.pop %v469
  %v488 = vmul.f32 %v167, %v472
  %v489 = vmul.f32 %v172, %v473
  %v490 = vmul.f32 %v177, %v474
  %v491 = vmul.f32 %v182, %v475
  %v492 = vmul.f32 %v187, %v476
  %v493 = vmul.f32 %v192, %v477
  %v494 = vmul.f32 %v197, %v478
  %v495 = vmul.f32 %v202, %v479
  %v496 = vmul.f32 %v207, %v480
  %v497 = vmul.f32 %v212, %v481
  %v498 = vmul.f32 %v217, %v482
  %v499 = vmul.f32 %v222, %v483
  %v500 = vmul.f32 %v227, %v484
  %v501 = vmul.f32 %v232, %v485
  %v502 = vmul.f32 %v237, %v486
  %v503 = vmul.f32 %v242, %v487
  %v504 = vld [vmem:[%s4] sm:$0xff]
  %v505 = vld [vmem:[%s4 + $0x8] sm:$0xff]
  %v506 = vld [vmem:[%s4 + $0x10] sm:$0xff]
  %v507 = vld [vmem:[%s4 + $0x18] sm:$0xff]
  %v508 = vld [vmem:[%s4 + $0x20] sm:$0xff]
  %v509 = vld [vmem:[%s4 + $0x28] sm:$0xff]
  %v510 = vld [vmem:[%s4 + $0x30] sm:$0xff]
  %v511 = vld [vmem:[%s4 + $0x38] sm:$0xff]
  %v512 = vld [vmem:[%s4 + $0x40] sm:$0xff]
  %v513 = vld [vmem:[%s4 + $0x48] sm:$0xff]
  %v514 = vld [vmem:[%s4 + $0x50] sm:$0xff]
  %v515 = vld [vmem:[%s4 + $0x58] sm:$0xff]
  %v516 = vld [vmem:[%s4 + $0x60] sm:$0xff]
  %v517 = vld [vmem:[%s4 + $0x68] sm:$0xff]
  %v518 = vld [vmem:[%s4 + $0x70] sm:$0xff]
  %v519 = vld [vmem:[%s4 + $0x78] sm:$0xff]
  %521 = vset.pattern.permute.xlu0 0
  %522 = vperm.xlu0 %521, %v504
  %v523 = vpop.permute.xlu0 %522
  %526 = vset.pattern.permute.xlu0 0
  %527 = vperm.xlu0 %526, %v505
  %v528 = vpop.permute.xlu0 %527
  %531 = vset.pattern.permute.xlu0 0
  %532 = vperm.xlu0 %531, %v506
  %v533 = vpop.permute.xlu0 %532
  %536 = vset.pattern.permute.xlu0 0
  %537 = vperm.xlu0 %536, %v507
  %v538 = vpop.permute.xlu0 %537
  %541 = vset.pattern.permute.xlu0 0
  %542 = vperm.xlu0 %541, %v508
  %v543 = vpop.permute.xlu0 %542
  %546 = vset.pattern.permute.xlu0 0
  %547 = vperm.xlu0 %546, %v509
  %v548 = vpop.permute.xlu0 %547
  %551 = vset.pattern.permute.xlu0 0
  %552 = vperm.xlu0 %551, %v510
  %v553 = vpop.permute.xlu0 %552
  %556 = vset.pattern.permute.xlu0 0
  %557 = vperm.xlu0 %556, %v511
  %v558 = vpop.permute.xlu0 %557
  %561 = vset.pattern.permute.xlu0 0
  %562 = vperm.xlu0 %561, %v512
  %v563 = vpop.permute.xlu0 %562
  %566 = vset.pattern.permute.xlu0 0
  %567 = vperm.xlu0 %566, %v513
  %v568 = vpop.permute.xlu0 %567
  %571 = vset.pattern.permute.xlu0 0
  %572 = vperm.xlu0 %571, %v514
  %v573 = vpop.permute.xlu0 %572
  %576 = vset.pattern.permute.xlu0 0
  %577 = vperm.xlu0 %576, %v515
  %v578 = vpop.permute.xlu0 %577
  %581 = vset.pattern.permute.xlu0 0
  %582 = vperm.xlu0 %581, %v516
  %v583 = vpop.permute.xlu0 %582
  %586 = vset.pattern.permute.xlu0 0
  %587 = vperm.xlu0 %586, %v517
  %v588 = vpop.permute.xlu0 %587
  %591 = vset.pattern.permute.xlu0 0
  %592 = vperm.xlu0 %591, %v518
  %v593 = vpop.permute.xlu0 %592
  %596 = vset.pattern.permute.xlu0 0
  %597 = vperm.xlu0 %596, %v519
  %v598 = vpop.permute.xlu0 %597
  %v600 = vadd.f32 %v488, %v523
  %v601 = vadd.f32 %v489, %v528
  %v602 = vadd.f32 %v490, %v533
  %v603 = vadd.f32 %v491, %v538
  %v604 = vadd.f32 %v492, %v543
  %v605 = vadd.f32 %v493, %v548
  %v606 = vadd.f32 %v494, %v553
  %v607 = vadd.f32 %v495, %v558
  %v608 = vadd.f32 %v496, %v563
  %v609 = vadd.f32 %v497, %v568
  %v610 = vadd.f32 %v498, %v573
  %v611 = vadd.f32 %v499, %v578
  %v612 = vadd.f32 %v500, %v583
  %v613 = vadd.f32 %v501, %v588
  %v614 = vadd.f32 %v502, %v593
  %v615 = vadd.f32 %v503, %v598
  %v616 = vld [vmem:[%s5] sm:$0x1]
  %v618 = vlaneseq
  %v619 = vshrl.u32 %v618, 7
  %v620 = vsub.s32 0, %v619
  %v621 = vrot.slane %v616, %v620
  %v623 = vadd.f32 %v600, %v621
  %v624 = vadd.f32 %v601, %v621
  %v625 = vadd.f32 %v602, %v621
  %v626 = vadd.f32 %v603, %v621
  %v627 = vadd.f32 %v604, %v621
  %v628 = vadd.f32 %v605, %v621
  %v629 = vadd.f32 %v606, %v621
  %v630 = vadd.f32 %v607, %v621
  %v631 = vadd.f32 %v608, %v621
  %v632 = vadd.f32 %v609, %v621
  %v633 = vadd.f32 %v610, %v621
  %v634 = vadd.f32 %v611, %v621
  %v635 = vadd.f32 %v612, %v621
  %v636 = vadd.f32 %v613, %v621
  %v637 = vadd.f32 %v614, %v621
  %v638 = vadd.f32 %v615, %v621
  %vm639 = vcmp.ge.f32.partialorder %v623, 0.0
  %vm640 = vcmp.ge.f32.partialorder %v624, 0.0
  %vm641 = vcmp.ge.f32.partialorder %v625, 0.0
  %vm642 = vcmp.ge.f32.partialorder %v626, 0.0
  %vm643 = vcmp.ge.f32.partialorder %v627, 0.0
  %vm644 = vcmp.ge.f32.partialorder %v628, 0.0
  %vm645 = vcmp.ge.f32.partialorder %v629, 0.0
  %vm646 = vcmp.ge.f32.partialorder %v630, 0.0
  %vm647 = vcmp.ge.f32.partialorder %v631, 0.0
  %vm648 = vcmp.ge.f32.partialorder %v632, 0.0
  %vm649 = vcmp.ge.f32.partialorder %v633, 0.0
  %vm650 = vcmp.ge.f32.partialorder %v634, 0.0
  %vm651 = vcmp.ge.f32.partialorder %v635, 0.0
  %vm652 = vcmp.ge.f32.partialorder %v636, 0.0
  %vm653 = vcmp.ge.f32.partialorder %v637, 0.0
  %vm654 = vcmp.ge.f32.partialorder %v638, 0.0
  %v655 = vld [vmem:[%s6] sm:$0x1]
  %v657 = vlaneseq
  %v658 = vshrl.u32 %v657, 7
  %v659 = vsub.s32 0, %v658
  %v660 = vrot.slane %v655, %v659
  %v662 = vmul.f32 %v660, %v623
  %v663 = vmul.f32 %v660, %v624
  %v664 = vmul.f32 %v660, %v625
  %v665 = vmul.f32 %v660, %v626
  %v666 = vmul.f32 %v660, %v627
  %v667 = vmul.f32 %v660, %v628
  %v668 = vmul.f32 %v660, %v629
  %v669 = vmul.f32 %v660, %v630
  %v670 = vmul.f32 %v660, %v631
  %v671 = vmul.f32 %v660, %v632
  %v672 = vmul.f32 %v660, %v633
  %v673 = vmul.f32 %v660, %v634
  %v674 = vmul.f32 %v660, %v635
  %v675 = vmul.f32 %v660, %v636
  %v676 = vmul.f32 %v660, %v637
  %v677 = vmul.f32 %v660, %v638
  %v678 = vsel %vm639, %v623, %v662
  %v679 = vsel %vm640, %v624, %v663
  %v680 = vsel %vm641, %v625, %v664
  %v681 = vsel %vm642, %v626, %v665
  %v682 = vsel %vm643, %v627, %v666
  %v683 = vsel %vm644, %v628, %v667
  %v684 = vsel %vm645, %v629, %v668
  %v685 = vsel %vm646, %v630, %v669
  %v686 = vsel %vm647, %v631, %v670
  %v687 = vsel %vm648, %v632, %v671
  %v688 = vsel %vm649, %v633, %v672
  %v689 = vsel %vm650, %v634, %v673
  %v690 = vsel %vm651, %v635, %v674
  %v691 = vsel %vm652, %v636, %v675
  %v692 = vsel %vm653, %v637, %v676
  %v693 = vsel %vm654, %v638, %v677
  %694 = vst.msk [vmem:[%s7] sm:$0xff] %vm278, %v678
  %695 = vst.msk [vmem:[%s7 + $0x8] sm:$0xff] %vm278, %v679
  %696 = vst.msk [vmem:[%s7 + $0x10] sm:$0xff] %vm278, %v680
  %697 = vst.msk [vmem:[%s7 + $0x18] sm:$0xff] %vm278, %v681
  %698 = vst.msk [vmem:[%s7 + $0x20] sm:$0xff] %vm278, %v682
  %699 = vst.msk [vmem:[%s7 + $0x28] sm:$0xff] %vm278, %v683
  %700 = vst.msk [vmem:[%s7 + $0x30] sm:$0xff] %vm278, %v684
  %701 = vst.msk [vmem:[%s7 + $0x38] sm:$0xff] %vm278, %v685
  %702 = vst.msk [vmem:[%s7 + $0x40] sm:$0xff] %vm278, %v686
  %703 = vst.msk [vmem:[%s7 + $0x48] sm:$0xff] %vm278, %v687
  %704 = vst.msk [vmem:[%s7 + $0x50] sm:$0xff] %vm278, %v688
  %705 = vst.msk [vmem:[%s7 + $0x58] sm:$0xff] %vm278, %v689
  %706 = vst.msk [vmem:[%s7 + $0x60] sm:$0xff] %vm278, %v690
  %707 = vst.msk [vmem:[%s7 + $0x68] sm:$0xff] %vm278, %v691
  %708 = vst.msk [vmem:[%s7 + $0x70] sm:$0xff] %vm278, %v692
  %709 = vst.msk [vmem:[%s7 + $0x78] sm:$0xff] %vm278, %v693
  // Predicated region
  $region30: #{_lambda_.33} parent=0 // pred_check
    _
  $region31: #{_lambda_.33} parent=0 // pred_check_branch
    %711 = sbr.rel (0) target = $region33
  $region32: #{_lambda_.33} parent=0 // pred_region
    _
  $region33: #{_lambda_.33} parent=0 // pred_fallthru
    _
  // Predicated region
  $region34: #{_lambda_.33} parent=0 // pred_check
    _
  $region35: #{_lambda_.33} parent=0 // pred_check_branch
    %713 = sbr.rel (0) target = $region37
  $region36: #{_lambda_.33} parent=0 // pred_region
    _
  $region37: #{_lambda_.33} parent=0 // pred_fallthru
    _

// kernel: _lambda_.21
$region0: #{_lambda_.21}
  #allocation0 [shape = 'u32[]', space=smem, size = 0x4, offset = 0x4, fixed_abs, tag = 'smem constant byte address 0x4 - core index']
  #allocation1 [shape = 'u32[144,128]{1,0:T(1,128)}', space=vmem, size = 0x12000, scoped, tag = 'internal scratch']
  %s0 = inlined_call_operand.vmem [shape: f32[2,16], index: 0, kind: input, shape index: {}]
  %s1 = inlined_call_operand.vmem [shape: f32[20,16,16], index: 1, kind: input, shape index: {}]
  %s2 = inlined_call_operand.vmem [shape: f32[20,16], index: 2, kind: input, shape index: {}, may-alias: {2,5}]
  %s3 = inlined_call_operand.vmem [shape: f32[20,16], index: 3, kind: input, shape index: {}, may-alias: {3,6}]
  %s4 = inlined_call_operand.hbm [shape: f32[20,16,16], index: 4, kind: input, shape index: {}]
  %s5 = inlined_call_operand.vmem [shape: f32[20,16], index: 5, kind: input, shape index: {}, may-alias: {2,5}]
  %s6 = inlined_call_operand.vmem [shape: f32[20,16], index: 6, kind: input, shape index: {}, may-alias: {3,6}]
  %s7 = inlined_call_operand.hbm [shape: f32[20,16,16], index: 7, kind: input, shape index: {}]
  %s8 = inlined_call_operand.vmem [shape: f32[20,16], index: 8, kind: input, shape index: {}]
  %s9 = inlined_call_operand.vmem [shape: f32[20,2,16], index: 9, kind: output, shape index: {}]
  %s10 = sld [smem:[#allocation0]]
  $region54: #{_lambda_.21} parent=0
    _
  %s12 = ssub.s32 1, %s10
  %s13 = scalar_select 0, %s12, %s10
  $region1: #{_lambda_.21} parent=0
    #allocation2 [shape = 'u8[163840]{0}', space=vmem, size = 0x28000, scoped, tag = 'input window, operand 4, single buffered']
    #allocation3 [shape = 's32[1]{0}', space=sflag, size = 0x4, scoped, tag = 'scoped memory for _lambda_.21']
    #allocation4 [shape = 'u8[163840]{0}', space=vmem, size = 0x28000, scoped, tag = 'input window, operand 7, single buffered']
    #allocation5 [shape = 's32[1]{0}', space=sflag, size = 0x4, scoped, tag = 'scoped memory for _lambda_.21']
    %14 = vsyncpa [#allocation3], 0
    %15 = vsyncpa [#allocation5], 0
    // Predicated region
    $region2: #{_lambda_.21} parent=1 // pred_check
      _
    $region3: #{_lambda_.21} parent=1 // pred_check_branch
      %17 = sbr.rel (0) target = $region5
    $region4: #{_lambda_.21} parent=1 // pred_region
      _
    $region5: #{_lambda_.21} parent=1 // pred_fallthru
      _
    // Predicated region
    $region6: #{_lambda_.21} parent=1 // pred_check
      _
    $region7: #{_lambda_.21} parent=1 // pred_check_branch
      %19 = sbr.rel (0) target = $region9
    $region8: #{_lambda_.21} parent=1 // pred_region
      _
    $region9: #{_lambda_.21} parent=1 // pred_fallthru
      _
    // Predicated region
    $region10: #{_lambda_.21} parent=1 // pred_check
      _
    $region11: #{_lambda_.21} parent=1 // pred_check_branch
      %21 = sbr.rel (0) target = $region13
    $region12: #{_lambda_.21} parent=1 // pred_region
      _
    $region13: #{_lambda_.21} parent=1 // pred_fallthru
      _
    // Predicated region
    $region14: #{_lambda_.21} parent=1 // pred_check
      _
    $region15: #{_lambda_.21} parent=1 // pred_check_branch
      %23 = sbr.rel (0) target = $region17
    $region16: #{_lambda_.21} parent=1 // pred_region
      _
    $region17: #{_lambda_.21} parent=1 // pred_fallthru
      _
    // Predicated region
    $region18: #{_lambda_.21} parent=1 // pred_check
      _
    $region19: #{_lambda_.21} parent=1 // pred_check_branch
      %25 = sbr.rel (0) target = $region21
    $region20: #{_lambda_.21} parent=1 // pred_region
      %s27 = ssub.s32 5120, 5120
      %28 = vsyncadd [#allocation3], %s27
      %s29 = sshll.u32 [#allocation2], 4
      %s30 = int_to_ptr.vmem [resolvable:$true] %s29
      %35 = dma.hbm_to_vmem [thread:$0]  %s4, 5120, %s30, [#allocation3], 128, 128, 8
    $region21: #{_lambda_.21} parent=1 // pred_fallthru
      _
    // Predicated region
    $region22: #{_lambda_.21} parent=1 // pred_check
      _
    $region23: #{_lambda_.21} parent=1 // pred_check_branch
      %37 = sbr.rel (0) target = $region25
    $region24: #{_lambda_.21} parent=1 // pred_region
      _
    $region25: #{_lambda_.21} parent=1 // pred_fallthru
      _
    // Predicated region
    $region26: #{_lambda_.21} parent=1 // pred_check
      _
    $region27: #{_lambda_.21} parent=1 // pred_check_branch
      %39 = sbr.rel (0) target = $region29
    $region28: #{_lambda_.21} parent=1 // pred_region
      _
    $region29: #{_lambda_.21} parent=1 // pred_fallthru
      _
    // Predicated region
    $region30: #{_lambda_.21} parent=1 // pred_check
      _
    $region31: #{_lambda_.21} parent=1 // pred_check_branch
      %41 = sbr.rel (0) target = $region33
    $region32: #{_lambda_.21} parent=1 // pred_region
      %s43 = ssub.s32 5120, 5120
      %44 = vsyncadd [#allocation5], %s43
      %s45 = sshll.u32 [#allocation4], 4
      %s46 = int_to_ptr.vmem [resolvable:$true] %s45
      %51 = dma.hbm_to_vmem [thread:$0]  %s7, 5120, %s46, [#allocation5], 128, 128, 8
    $region33: #{_lambda_.21} parent=1 // pred_fallthru
      _
    // Predicated region
    $region34: #{_lambda_.21} parent=1 // pred_check
      _
    $region35: #{_lambda_.21} parent=1 // pred_check_branch
      %53 = sbr.rel (0) target = $region37
    $region36: #{_lambda_.21} parent=1 // pred_region
      _
    $region37: #{_lambda_.21} parent=1 // pred_fallthru
      _
    // Predicated region
    $region38: #{_lambda_.21} parent=1 // pred_check
      _
    $region39: #{_lambda_.21} parent=1 // pred_check_branch
      %55 = sbr.rel (0) target = $region41
    $region40: #{_lambda_.21} parent=1 // pred_region
      %56 = dma.done [#allocation3], 5120
    $region41: #{_lambda_.21} parent=1 // pred_fallthru
      _
    // Predicated region
    $region42: #{_lambda_.21} parent=1 // pred_check
      _
    $region43: #{_lambda_.21} parent=1 // pred_check_branch
      %58 = sbr.rel (0) target = $region45
    $region44: #{_lambda_.21} parent=1 // pred_region
      %59 = dma.done [#allocation5], 5120
    $region45: #{_lambda_.21} parent=1 // pred_fallthru
      _
    %v60 = vld [vmem:[%s0] sm:$0x3]
    %v61 = vmul.f32 %v60, %v60
    %vm62 = vcmask 123904
    %v63 = vsel %vm62, %v61, 0.0
    %64 = vadd.xlane.f32.xlu0 %v63
    %v65 = vpop.xlane.xlu0 %64
    %v66 = vrsqrt.pop %v65
    %v67 = vmul.f32 %v65, %v66
    %vm68 = vcmp.eq.f32.partialorder %v65, inf
    %v69 = vsel %vm68, %v65, %v67
    %vm70 = vcmp.eq.f32.partialorder %v65, 0.0
    %v71 = vand.u32 %v65, 2147483648
    %v72 = vsel %vm70, %v71, %v69
    %v73 = vmax.f32 %v72, 1e-12
    %v74 = vrcp.pop %v73
    %v75 = vmul.f32 %v60, %v74
    %v76 = vld [vmem:[%s1] sm:$0xff]
    %v77 = vld [vmem:[%s1 + $0x8] sm:$0xff]
    %v78 = vld [vmem:[%s1 + $0x10] sm:$0xff]
    %v79 = vld [vmem:[%s1 + $0x18] sm:$0xff]
    %v80 = vld [vmem:[%s1 + $0x20] sm:$0xff]
    %v81 = vld [vmem:[%s1 + $0x28] sm:$0xff]
    %v82 = vld [vmem:[%s1 + $0x30] sm:$0xff]
    %v83 = vld [vmem:[%s1 + $0x38] sm:$0xff]
    %v84 = vld [vmem:[%s1 + $0x40] sm:$0xff]
    %v85 = vld [vmem:[%s1 + $0x48] sm:$0xff]
    %v86 = vld [vmem:[%s1 + $0x50] sm:$0xff]
    %v87 = vld [vmem:[%s1 + $0x58] sm:$0xff]
    %v88 = vld [vmem:[%s1 + $0x60] sm:$0xff]
    %v89 = vld [vmem:[%s1 + $0x68] sm:$0xff]
    %v90 = vld [vmem:[%s1 + $0x70] sm:$0xff]
    %v91 = vld [vmem:[%s1 + $0x78] sm:$0xff]
    %v92 = vld [vmem:[%s1 + $0x80] sm:$0xff]
    %v93 = vld [vmem:[%s1 + $0x88] sm:$0xff]
    %v94 = vld [vmem:[%s1 + $0x90] sm:$0xff]
    %v95 = vld [vmem:[%s1 + $0x98] sm:$0xff]
    %v96 = vld [vmem:[%s1 + $0xa0] sm:$0xff]
    %v97 = vld [vmem:[%s1 + $0xa8] sm:$0xff]
    %v98 = vld [vmem:[%s1 + $0xb0] sm:$0xff]
    %v99 = vld [vmem:[%s1 + $0xb8] sm:$0xff]
    %v100 = vld [vmem:[%s1 + $0xc0] sm:$0xff]
    %v101 = vld [vmem:[%s1 + $0xc8] sm:$0xff]
    %v102 = vld [vmem:[%s1 + $0xd0] sm:$0xff]
    %v103 = vld [vmem:[%s1 + $0xd8] sm:$0xff]
    %v104 = vld [vmem:[%s1 + $0xe0] sm:$0xff]
    %v105 = vld [vmem:[%s1 + $0xe8] sm:$0xff]
    %v106 = vld [vmem:[%s1 + $0xf0] sm:$0xff]
    %v107 = vld [vmem:[%s1 + $0xf8] sm:$0xff]
    %v108 = vld [vmem:[%s1 + $0x100] sm:$0xff]
    %v109 = vld [vmem:[%s1 + $0x108] sm:$0xff]
    %v110 = vld [vmem:[%s1 + $0x110] sm:$0xff]
    %v111 = vld [vmem:[%s1 + $0x118] sm:$0xff]
    %v112 = vld [vmem:[%s1 + $0x120] sm:$0xff]
    %v113 = vld [vmem:[%s1 + $0x128] sm:$0xff]
    %v114 = vld [vmem:[%s1 + $0x130] sm:$0xff]
    %v115 = vld [vmem:[%s1 + $0x138] sm:$0xff]
    %v116 = vld [vmem:[%s2] sm:$0xff]
    %v117 = vld [vmem:[%s2 + $0x8] sm:$0xff]
    %v118 = vld [vmem:[%s2 + $0x10] sm:$0xf]
    %v122 = vcombine.high %v116, %v116
    %v124 = vunpack.c.l.s4 1966171168
    %v125 = vunpack.c.0.s8 %v124
    %v126 = vlaneseq
    %v127 = vshrl.u32 %v126, 7
    %v128 = vsub.s32 %v125, %v127
    %v129 = vrot.slane %v116, %v128
    %v131 = vunpack.c.l.s4 1966171168
    %v132 = vunpack.c.0.s8 %v131
    %v133 = vlaneseq
    %v134 = vshrl.u32 %v133, 7
    %v135 = vsub.s32 %v132, %v134
    %v136 = vrot.slane %v122, %v135
    %v137 = vcombine.high %v129, %v129
    %v138 = vcombine.high %v136, %v136
    %v140 = vunpack.c.l.s4 1966171168
    %v141 = vunpack.c.0.s8 %v140
    %v142 = vlaneseq
    %v143 = vshrl.u32 %v142, 7
    %v144 = vsub.s32 %v141, %v143
    %v145 = vrot.slane %v129, %v144
    %v147 = vunpack.c.l.s4 1966171168
    %v148 = vunpack.c.0.s8 %v147
    %v149 = vlaneseq
    %v150 = vshrl.u32 %v149, 7
    %v151 = vsub.s32 %v148, %v150
    %v152 = vrot.slane %v136, %v151
    %v154 = vunpack.c.l.s4 1966171168
    %v155 = vunpack.c.0.s8 %v154
    %v156 = vlaneseq
    %v157 = vshrl.u32 %v156, 7
    %v158 = vsub.s32 %v155, %v157
    %v159 = vrot.slane %v137, %v158
    %v161 = vunpack.c.l.s4 1966171168
    %v162 = vunpack.c.0.s8 %v161
    %v163 = vlaneseq
    %v164 = vshrl.u32 %v163, 7
    %v165 = vsub.s32 %v162, %v164
    %v166 = vrot.slane %v138, %v165
    %v167 = vcombine.high %v145, %v145
    %v168 = vcombine.high %v152, %v152
    %v169 = vcombine.high %v159, %v159
    %v170 = vcombine.high %v166, %v166
    %v171 = vcombine.high %v117, %v117
    %v173 = vunpack.c.l.s4 1966171168
    %v174 = vunpack.c.0.s8 %v173
    %v175 = vlaneseq
    %v176 = vshrl.u32 %v175, 7
    %v177 = vsub.s32 %v174, %v176
    %v178 = vrot.slane %v117, %v177
    %v180 = vunpack.c.l.s4 1966171168
    %v181 = vunpack.c.0.s8 %v180
    %v182 = vlaneseq
    %v183 = vshrl.u32 %v182, 7
    %v184 = vsub.s32 %v181, %v183
    %v185 = vrot.slane %v171, %v184
    %v186 = vcombine.high %v178, %v178
    %v187 = vcombine.high %v185, %v185
    %v189 = vunpack.c.l.s4 1966171168
    %v190 = vunpack.c.0.s8 %v189
    %v191 = vlaneseq
    %v192 = vshrl.u32 %v191, 7
    %v193 = vsub.s32 %v190, %v192
    %v194 = vrot.slane %v178, %v193
    %v196 = vunpack.c.l.s4 1966171168
    %v197 = vunpack.c.0.s8 %v196
    %v198 = vlaneseq
    %v199 = vshrl.u32 %v198, 7
    %v200 = vsub.s32 %v197, %v199
    %v201 = vrot.slane %v185, %v200
    %v203 = vunpack.c.l.s4 1966171168
    %v204 = vunpack.c.0.s8 %v203
    %v205 = vlaneseq
    %v206 = vshrl.u32 %v205, 7
    %v207 = vsub.s32 %v204, %v206
    %v208 = vrot.slane %v186, %v207
    %v210 = vunpack.c.l.s4 1966171168
    %v211 = vunpack.c.0.s8 %v210
    %v212 = vlaneseq
    %v213 = vshrl.u32 %v212, 7
    %v214 = vsub.s32 %v211, %v213
    %v215 = vrot.slane %v187, %v214
    %v216 = vcombine.high %v194, %v194
    %v217 = vcombine.high %v201, %v201
    %v218 = vcombine.high %v208, %v208
    %v219 = vcombine.high %v215, %v215
    %v221 = vunpack.c.l.s4 1966171168
    %v222 = vunpack.c.0.s8 %v221
    %v223 = vlaneseq
    %v224 = vshrl.u32 %v223, 7
    %v225 = vsub.s32 %v222, %v224
    %v226 = vrot.slane %v118, %v225
    %v227 = vcombine.high %v226, %v226
    %v229 = vunpack.c.l.s4 1966171168
    %v230 = vunpack.c.0.s8 %v229
    %v231 = vlaneseq
    %v232 = vshrl.u32 %v231, 7
    %v233 = vsub.s32 %v230, %v232
    %v234 = vrot.slane %v226, %v233
    %v236 = vunpack.c.l.s4 1966171168
    %v237 = vunpack.c.0.s8 %v236
    %v238 = vlaneseq
    %v239 = vshrl.u32 %v238, 7
    %v240 = vsub.s32 %v237, %v239
    %v241 = vrot.slane %v227, %v240
    %v242 = vcombine.high %v234, %v234
    %v243 = vcombine.high %v241, %v241
    %v244 = vlaneseq
    %v245 = vshrl.u32 %v244, 7
    %v246 = vsub.s32 0, %v245
    %v247 = vrot.slane %v145, %v246
    %v248 = vlaneseq
    %v249 = vshrl.u32 %v248, 7
    %v250 = vsub.s32 0, %v249
    %v251 = vrot.slane %v159, %v250
    %v252 = vlaneseq
    %v253 = vshrl.u32 %v252, 7
    %v254 = vsub.s32 0, %v253
    %v255 = vrot.slane %v167, %v254
    %v256 = vlaneseq
    %v257 = vshrl.u32 %v256, 7
    %v258 = vsub.s32 0, %v257
    %v259 = vrot.slane %v169, %v258
    %v260 = vlaneseq
    %v261 = vshrl.u32 %v260, 7
    %v262 = vsub.s32 0, %v261
    %v263 = vrot.slane %v152, %v262
    %v264 = vlaneseq
    %v265 = vshrl.u32 %v264, 7
    %v266 = vsub.s32 0, %v265
    %v267 = vrot.slane %v166, %v266
    %v268 = vlaneseq
    %v269 = vshrl.u32 %v268, 7
    %v270 = vsub.s32 0, %v269
    %v271 = vrot.slane %v168, %v270
    %v272 = vlaneseq
    %v273 = vshrl.u32 %v272, 7
    %v274 = vsub.s32 0, %v273
    %v275 = vrot.slane %v170, %v274
    %v276 = vlaneseq
    %v277 = vshrl.u32 %v276, 7
    %v278 = vsub.s32 0, %v277
    %v279 = vrot.slane %v194, %v278
    %v280 = vlaneseq
    %v281 = vshrl.u32 %v280, 7
    %v282 = vsub.s32 0, %v281
    %v283 = vrot.slane %v208, %v282
    %v284 = vlaneseq
    %v285 = vshrl.u32 %v284, 7
    %v286 = vsub.s32 0, %v285
    %v287 = vrot.slane %v216, %v286
    %v288 = vlaneseq
    %v289 = vshrl.u32 %v288, 7
    %v290 = vsub.s32 0, %v289
    %v291 = vrot.slane %v218, %v290
    %v292 = vlaneseq
    %v293 = vshrl.u32 %v292, 7
    %v294 = vsub.s32 0, %v293
    %v295 = vrot.slane %v201, %v294
    %v296 = vlaneseq
    %v297 = vshrl.u32 %v296, 7
    %v298 = vsub.s32 0, %v297
    %v299 = vrot.slane %v215, %v298
    %v300 = vlaneseq
    %v301 = vshrl.u32 %v300, 7
    %v302 = vsub.s32 0, %v301
    %v303 = vrot.slane %v217, %v302
    %v304 = vlaneseq
    %v305 = vshrl.u32 %v304, 7
    %v306 = vsub.s32 0, %v305
    %v307 = vrot.slane %v219, %v306
    %v308 = vlaneseq
    %v309 = vshrl.u32 %v308, 7
    %v310 = vsub.s32 0, %v309
    %v311 = vrot.slane %v234, %v310
    %v312 = vlaneseq
    %v313 = vshrl.u32 %v312, 7
    %v314 = vsub.s32 0, %v313
    %v315 = vrot.slane %v241, %v314
    %v316 = vlaneseq
    %v317 = vshrl.u32 %v316, 7
    %v318 = vsub.s32 0, %v317
    %v319 = vrot.slane %v242, %v318
    %v320 = vlaneseq
    %v321 = vshrl.u32 %v320, 7
    %v322 = vsub.s32 0, %v321
    %v323 = vrot.slane %v243, %v322
    %vm344 = vcmask 130048
    %v346 = vsel %vm344, %v75, 0
    %v349 = vsel %vm344, %v76, 0
    %v352 = vsel %vm344, %v77, 0
    %354 = vmatprep.subr.mxu0 0.0
    %355 = vmatpush1.xpose.msra.mxu0 %v349
    %356 = vmatprep.subr.mxu0 0.0
    %357 = vmatpush1.xpose.msra.mxu0 %v352
    %358 = vmatprep.subr.mxu0 0.0
    %359 = vmatpush1.xpose.msra.mxu0 0.0
    %360 = vmatprep.subr.mxu0 0.0
    %361 = vmatpush1.xpose.msra.mxu0 0.0
    %362 = vmatprep.subr.mxu0 0.0
    %363 = vmatpush1.xpose.msra.mxu0 0.0
    %364 = vmatprep.subr.mxu0 0.0
    %365 = vmatpush1.xpose.msra.mxu0 0.0
    %366 = vmatprep.subr.mxu0 0.0
    %367 = vmatpush1.xpose.msra.mxu0 0.0
    %368 = vmatprep.subr.mxu0 0.0
    %369 = vmatpush1.xpose.msra.mxu0 0.0
    %370 = vmatprep.subr.mxu0 0.0
    %371 = vmatpush1.xpose.msra.mxu0 0.0
    %372 = vmatprep.subr.mxu0 0.0
    %373 = vmatpush1.xpose.msra.mxu0 0.0
    %374 = vmatprep.subr.mxu0 0.0
    %375 = vmatpush1.xpose.msra.mxu0 0.0
    %376 = vmatprep.subr.mxu0 0.0
    %377 = vmatpush1.xpose.msra.mxu0 0.0
    %378 = vmatprep.subr.mxu0 0.0
    %379 = vmatpush1.xpose.msra.mxu0 0.0
    %380 = vmatprep.subr.mxu0 0.0
    %381 = vmatpush1.xpose.msra.mxu0 0.0
    %382 = vmatprep.subr.mxu0 0.0
    %383 = vmatpush1.xpose.msra.mxu0 0.0
    %384 = vmatprep.subr.mxu0 0.0
    %385 = vmatpush1.xpose.msra.mxu0 0.0
    %386 = vmatprep.subr.mxu0 0.0
    %387 = vmatpush1.xpose.msra.mxu0 0.0
    %388 = vmatprep.subr.mxu0 0.0
    %389 = vmatpush1.xpose.msra.mxu0 0.0
    %390 = vmatprep.subr.mxu0 0.0
    %391 = vmatpush1.xpose.msra.mxu0 0.0
    %392 = vmatprep.subr.mxu0 0.0
    %393 = vmatpush1.xpose.msra.mxu0 0.0
    %394 = vmatprep.subr.mxu0 0.0
    %395 = vmatpush1.xpose.msra.mxu0 0.0
    %396 = vmatprep.subr.mxu0 0.0
    %397 = vmatpush1.xpose.msra.mxu0 0.0
    %398 = vmatprep.subr.mxu0 0.0
    %399 = vmatpush1.xpose.msra.mxu0 0.0
    %400 = vmatprep.subr.mxu0 0.0
    %401 = vmatpush1.xpose.msra.mxu0 0.0
    %402 = vmatprep.subr.mxu0 0.0
    %403 = vmatpush1.xpose.msra.mxu0 0.0
    %404 = vmatprep.subr.mxu0 0.0
    %405 = vmatpush1.xpose.msra.mxu0 0.0
    %406 = vmatprep.subr.mxu0 0.0
    %407 = vmatpush1.xpose.msra.mxu0 0.0
    %408 = vmatprep.subr.mxu0 0.0
    %409 = vmatpush1.xpose.msra.mxu0 0.0
    %410 = vmatprep.subr.mxu0 0.0
    %411 = vmatpush1.xpose.msra.mxu0 0.0
    %412 = vmatprep.subr.mxu0 0.0
    %413 = vmatpush1.xpose.msra.mxu0 0.0
    %414 = vmatprep.subr.mxu0 0.0
    %415 = vmatpush1.xpose.msra.mxu0 0.0
    %416 = vmatprep.subr.mxu0 0.0
    %417 = vmatpush1.xpose.msra.mxu0 0.0
    %418 = vmatprep.mubr.f32.mxu0 0.0
    %419 = vmatmul.mubr.f32.gmra.mrb[0].mxu0 %v346
    %v420 = vpop.f32.mrb[0].mxu0
    %v421 = vadd.f32 %v247, %v420
    %v422 = vpop.f32.mrb[0].mxu0
    %423 = vdwg.mxu0
    %v425 = vsel %vm344, %v78, 0
    %v428 = vsel %vm344, %v79, 0
    %430 = vmatprep.subr.mxu0 0.0
    %431 = vmatpush1.xpose.msra.mxu0 %v425
    %432 = vmatprep.subr.mxu0 0.0
    %433 = vmatpush1.xpose.msra.mxu0 %v428
    %434 = vmatprep.subr.mxu0 0.0
    %435 = vmatpush1.xpose.msra.mxu0 0.0
    %436 = vmatprep.subr.mxu0 0.0
    %437 = vmatpush1.xpose.msra.mxu0 0.0
    %438 = vmatprep.subr.mxu0 0.0
    %439 = vmatpush1.xpose.msra.mxu0 0.0
    %440 = vmatprep.subr.mxu0 0.0
    %441 = vmatpush1.xpose.msra.mxu0 0.0
    %442 = vmatprep.subr.mxu0 0.0
    %443 = vmatpush1.xpose.msra.mxu0 0.0
    %444 = vmatprep.subr.mxu0 0.0
    %445 = vmatpush1.xpose.msra.mxu0 0.0
    %446 = vmatprep.subr.mxu0 0.0
    %447 = vmatpush1.xpose.msra.mxu0 0.0
    %448 = vmatprep.subr.mxu0 0.0
    %449 = vmatpush1.xpose.msra.mxu0 0.0
    %450 = vmatprep.subr.mxu0 0.0
    %451 = vmatpush1.xpose.msra.mxu0 0.0
    %452 = vmatprep.subr.mxu0 0.0
    %453 = vmatpush1.xpose.msra.mxu0 0.0
    %454 = vmatprep.subr.mxu0 0.0
    %455 = vmatpush1.xpose.msra.mxu0 0.0
    %456 = vmatprep.subr.mxu0 0.0
    %457 = vmatpush1.xpose.msra.mxu0 0.0
    %458 = vmatprep.subr.mxu0 0.0
    %459 = vmatpush1.xpose.msra.mxu0 0.0
    %460 = vmatprep.subr.mxu0 0.0
    %461 = vmatpush1.xpose.msra.mxu0 0.0
    %462 = vmatprep.subr.mxu0 0.0
    %463 = vmatpush1.xpose.msra.mxu0 0.0
    %464 = vmatprep.subr.mxu0 0.0
    %465 = vmatpush1.xpose.msra.mxu0 0.0
    %466 = vmatprep.subr.mxu0 0.0
    %467 = vmatpush1.xpose.msra.mxu0 0.0
    %468 = vmatprep.subr.mxu0 0.0
    %469 = vmatpush1.xpose.msra.mxu0 0.0
    %470 = vmatprep.subr.mxu0 0.0
    %471 = vmatpush1.xpose.msra.mxu0 0.0
    %472 = vmatprep.subr.mxu0 0.0
    %473 = vmatpush1.xpose.msra.mxu0 0.0
    %474 = vmatprep.subr.mxu0 0.0
    %475 = vmatpush1.xpose.msra.mxu0 0.0
    %476 = vmatprep.subr.mxu0 0.0
    %477 = vmatpush1.xpose.msra.mxu0 0.0
    %478 = vmatprep.subr.mxu0 0.0
    %479 = vmatpush1.xpose.msra.mxu0 0.0
    %480 = vmatprep.subr.mxu0 0.0
    %481 = vmatpush1.xpose.msra.mxu0 0.0
    %482 = vmatprep.subr.mxu0 0.0
    %483 = vmatpush1.xpose.msra.mxu0 0.0
    %484 = vmatprep.subr.mxu0 0.0
    %485 = vmatpush1.xpose.msra.mxu0 0.0
    %486 = vmatprep.subr.mxu0 0.0
    %487 = vmatpush1.xpose.msra.mxu0 0.0
    %488 = vmatprep.subr.mxu0 0.0
    %489 = vmatpush1.xpose.msra.mxu0 0.0
    %490 = vmatprep.subr.mxu0 0.0
    %491 = vmatpush1.xpose.msra.mxu0 0.0
    %492 = vmatprep.subr.mxu0 0.0
    %493 = vmatpush1.xpose.msra.mxu0 0.0
    %494 = vmatprep.mubr.f32.mxu0 0.0
    %495 = vmatmul.mubr.f32.gmra.mrb[0].mxu0 %v346
    %v496 = vpop.f32.mrb[0].mxu0
    %v497 = vadd.f32 %v251, %v496
    %v498 = vpop.f32.mrb[0].mxu0
    %499 = vdwg.mxu0
    %v501 = vsel %vm344, %v80, 0
    %v504 = vsel %vm344, %v81, 0
    %506 = vmatprep.subr.mxu0 0.0
    %507 = vmatpush1.xpose.msra.mxu0 %v501
    %508 = vmatprep.subr.mxu0 0.0
    %509 = vmatpush1.xpose.msra.mxu0 %v504
    %510 = vmatprep.subr.mxu0 0.0
    %511 = vmatpush1.xpose.msra.mxu0 0.0
    %512 = vmatprep.subr.mxu0 0.0
    %513 = vmatpush1.xpose.msra.mxu0 0.0
    %514 = vmatprep.subr.mxu0 0.0
    %515 = vmatpush1.xpose.msra.mxu0 0.0
    %516 = vmatprep.subr.mxu0 0.0
    %517 = vmatpush1.xpose.msra.mxu0 0.0
    %518 = vmatprep.subr.mxu0 0.0
    %519 = vmatpush1.xpose.msra.mxu0 0.0
    %520 = vmatprep.subr.mxu0 0.0
    %521 = vmatpush1.xpose.msra.mxu0 0.0
    %522 = vmatprep.subr.mxu0 0.0
    %523 = vmatpush1.xpose.msra.mxu0 0.0
    %524 = vmatprep.subr.mxu0 0.0
    %525 = vmatpush1.xpose.msra.mxu0 0.0
    %526 = vmatprep.subr.mxu0 0.0
    %527 = vmatpush1.xpose.msra.mxu0 0.0
    %528 = vmatprep.subr.mxu0 0.0
    %529 = vmatpush1.xpose.msra.mxu0 0.0
    %530 = vmatprep.subr.mxu0 0.0
    %531 = vmatpush1.xpose.msra.mxu0 0.0
    %532 = vmatprep.subr.mxu0 0.0
    %533 = vmatpush1.xpose.msra.mxu0 0.0
    %534 = vmatprep.subr.mxu0 0.0
    %535 = vmatpush1.xpose.msra.mxu0 0.0
    %536 = vmatprep.subr.mxu0 0.0
    %537 = vmatpush1.xpose.msra.mxu0 0.0
    %538 = vmatprep.subr.mxu0 0.0
    %539 = vmatpush1.xpose.msra.mxu0 0.0
    %540 = vmatprep.subr.mxu0 0.0
    %541 = vmatpush1.xpose.msra.mxu0 0.0
    %542 = vmatprep.subr.mxu0 0.0
    %543 = vmatpush1.xpose.msra.mxu0 0.0
    %544 = vmatprep.subr.mxu0 0.0
    %545 = vmatpush1.xpose.msra.mxu0 0.0
    %546 = vmatprep.subr.mxu0 0.0
    %547 = vmatpush1.xpose.msra.mxu0 0.0
    %548 = vmatprep.subr.mxu0 0.0
    %549 = vmatpush1.xpose.msra.mxu0 0.0
    %550 = vmatprep.subr.mxu0 0.0
    %551 = vmatpush1.xpose.msra.mxu0 0.0
    %552 = vmatprep.subr.mxu0 0.0
    %553 = vmatpush1.xpose.msra.mxu0 0.0
    %554 = vmatprep.subr.mxu0 0.0
    %555 = vmatpush1.xpose.msra.mxu0 0.0
    %556 = vmatprep.subr.mxu0 0.0
    %557 = vmatpush1.xpose.msra.mxu0 0.0
    %558 = vmatprep.subr.mxu0 0.0
    %559 = vmatpush1.xpose.msra.mxu0 0.0
    %560 = vmatprep.subr.mxu0 0.0
    %561 = vmatpush1.xpose.msra.mxu0 0.0
    %562 = vmatprep.subr.mxu0 0.0
    %563 = vmatpush1.xpose.msra.mxu0 0.0
    %564 = vmatprep.subr.mxu0 0.0
    %565 = vmatpush1.xpose.msra.mxu0 0.0
    %566 = vmatprep.subr.mxu0 0.0
    %567 = vmatpush1.xpose.msra.mxu0 0.0
    %568 = vmatprep.subr.mxu0 0.0
    %569 = vmatpush1.xpose.msra.mxu0 0.0
    %570 = vmatprep.mubr.f32.mxu0 0.0
    %571 = vmatmul.mubr.f32.gmra.mrb[0].mxu0 %v346
    %v572 = vpop.f32.mrb[0].mxu0
    %v573 = vadd.f32 %v255, %v572
    %v574 = vpop.f32.mrb[0].mxu0
    %575 = vdwg.mxu0
    %v577 = vsel %vm344, %v82, 0
    %v580 = vsel %vm344, %v83, 0
    %582 = vmatprep.subr.mxu0 0.0
    %583 = vmatpush1.xpose.msra.mxu0 %v577
    %584 = vmatprep.subr.mxu0 0.0
    %585 = vmatpush1.xpose.msra.mxu0 %v580
    %586 = vmatprep.subr.mxu0 0.0
    %587 = vmatpush1.xpose.msra.mxu0 0.0
    %588 = vmatprep.subr.mxu0 0.0
    %589 = vmatpush1.xpose.msra.mxu0 0.0
    %590 = vmatprep.subr.mxu0 0.0
    %591 = vmatpush1.xpose.msra.mxu0 0.0
    %592 = vmatprep.subr.mxu0 0.0
    %593 = vmatpush1.xpose.msra.mxu0 0.0
    %594 = vmatprep.subr.mxu0 0.0
    %595 = vmatpush1.xpose.msra.mxu0 0.0
    %596 = vmatprep.subr.mxu0 0.0
    %597 = vmatpush1.xpose.msra.mxu0 0.0
    %598 = vmatprep.subr.mxu0 0.0
    %599 = vmatpush1.xpose.msra.mxu0 0.0
    %600 = vmatprep.subr.mxu0 0.0
    %601 = vmatpush1.xpose.msra.mxu0 0.0
    %602 = vmatprep.subr.mxu0 0.0
    %603 = vmatpush1.xpose.msra.mxu0 0.0
    %604 = vmatprep.subr.mxu0 0.0
    %605 = vmatpush1.xpose.msra.mxu0 0.0
    %606 = vmatprep.subr.mxu0 0.0
    %607 = vmatpush1.xpose.msra.mxu0 0.0
    %608 = vmatprep.subr.mxu0 0.0
    %609 = vmatpush1.xpose.msra.mxu0 0.0
    %610 = vmatprep.subr.mxu0 0.0
    %611 = vmatpush1.xpose.msra.mxu0 0.0
    %612 = vmatprep.subr.mxu0 0.0
    %613 = vmatpush1.xpose.msra.mxu0 0.0
    %614 = vmatprep.subr.mxu0 0.0
    %615 = vmatpush1.xpose.msra.mxu0 0.0
    %616 = vmatprep.subr.mxu0 0.0
    %617 = vmatpush1.xpose.msra.mxu0 0.0
    %618 = vmatprep.subr.mxu0 0.0
    %619 = vmatpush1.xpose.msra.mxu0 0.0
    %620 = vmatprep.subr.mxu0 0.0
    %621 = vmatpush1.xpose.msra.mxu0 0.0
    %622 = vmatprep.subr.mxu0 0.0
    %623 = vmatpush1.xpose.msra.mxu0 0.0
    %624 = vmatprep.subr.mxu0 0.0
    %625 = vmatpush1.xpose.msra.mxu0 0.0
    %626 = vmatprep.subr.mxu0 0.0
    %627 = vmatpush1.xpose.msra.mxu0 0.0
    %628 = vmatprep.subr.mxu0 0.0
    %629 = vmatpush1.xpose.msra.mxu0 0.0
    %630 = vmatprep.subr.mxu0 0.0
    %631 = vmatpush1.xpose.msra.mxu0 0.0
    %632 = vmatprep.subr.mxu0 0.0
    %633 = vmatpush1.xpose.msra.mxu0 0.0
    %634 = vmatprep.subr.mxu0 0.0
    %635 = vmatpush1.xpose.msra.mxu0 0.0
    %636 = vmatprep.subr.mxu0 0.0
    %637 = vmatpush1.xpose.msra.mxu0 0.0
    %638 = vmatprep.subr.mxu0 0.0
    %639 = vmatpush1.xpose.msra.mxu0 0.0
    %640 = vmatprep.subr.mxu0 0.0
    %641 = vmatpush1.xpose.msra.mxu0 0.0
    %642 = vmatprep.subr.mxu0 0.0
    %643 = vmatpush1.xpose.msra.mxu0 0.0
    %644 = vmatprep.subr.mxu0 0.0
    %645 = vmatpush1.xpose.msra.mxu0 0.0
    %646 = vmatprep.mubr.f32.mxu0 0.0
    %647 = vmatmul.mubr.f32.gmra.mrb[0].mxu0 %v346
    %v648 = vpop.f32.mrb[0].mxu0
    %v649 = vadd.f32 %v259, %v648
    %v650 = vpop.f32.mrb[0].mxu0
    %651 = vdwg.mxu0
    %v653 = vsel %vm344, %v84, 0
    %v656 = vsel %vm344, %v85, 0
    %658 = vmatprep.subr.mxu0 0.0
    %659 = vmatpush1.xpose.msra.mxu0 %v653
    %660 = vmatprep.subr.mxu0 0.0
    %661 = vmatpush1.xpose.msra.mxu0 %v656
    %662 = vmatprep.subr.mxu0 0.0
    %663 = vmatpush1.xpose.msra.mxu0 0.0
    %664 = vmatprep.subr.mxu0 0.0
    %665 = vmatpush1.xpose.msra.mxu0 0.0
    %666 = vmatprep.subr.mxu0 0.0
    %667 = vmatpush1.xpose.msra.mxu0 0.0
    %668 = vmatprep.subr.mxu0 0.0
    %669 = vmatpush1.xpose.msra.mxu0 0.0
    %670 = vmatprep.subr.mxu0 0.0
    %671 = vmatpush1.xpose.msra.mxu0 0.0
    %672 = vmatprep.subr.mxu0 0.0
    %673 = vmatpush1.xpose.msra.mxu0 0.0
    %674 = vmatprep.subr.mxu0 0.0
    %675 = vmatpush1.xpose.msra.mxu0 0.0
    %676 = vmatprep.subr.mxu0 0.0
    %677 = vmatpush1.xpose.msra.mxu0 0.0
    %678 = vmatprep.subr.mxu0 0.0
    %679 = vmatpush1.xpose.msra.mxu0 0.0
    %680 = vmatprep.subr.mxu0 0.0
    %681 = vmatpush1.xpose.msra.mxu0 0.0
    %682 = vmatprep.subr.mxu0 0.0
    %683 = vmatpush1.xpose.msra.mxu0 0.0
    %684 = vmatprep.subr.mxu0 0.0
    %685 = vmatpush1.xpose.msra.mxu0 0.0
    %686 = vmatprep.subr.mxu0 0.0
    %687 = vmatpush1.xpose.msra.mxu0 0.0
    %688 = vmatprep.subr.mxu0 0.0
    %689 = vmatpush1.xpose.msra.mxu0 0.0
    %690 = vmatprep.subr.mxu0 0.0
    %691 = vmatpush1.xpose.msra.mxu0 0.0
    %692 = vmatprep.subr.mxu0 0.0
    %693 = vmatpush1.xpose.msra.mxu0 0.0
    %694 = vmatprep.subr.mxu0 0.0
    %695 = vmatpush1.xpose.msra.mxu0 0.0
    %696 = vmatprep.subr.mxu0 0.0
    %697 = vmatpush1.xpose.msra.mxu0 0.0
    %698 = vmatprep.subr.mxu0 0.0
    %699 = vmatpush1.xpose.msra.mxu0 0.0
    %700 = vmatprep.subr.mxu0 0.0
    %701 = vmatpush1.xpose.msra.mxu0 0.0
    %702 = vmatprep.subr.mxu0 0.0
    %703 = vmatpush1.xpose.msra.mxu0 0.0
    %704 = vmatprep.subr.mxu0 0.0
    %705 = vmatpush1.xpose.msra.mxu0 0.0
    %706 = vmatprep.subr.mxu0 0.0
    %707 = vmatpush1.xpose.msra.mxu0 0.0
    %708 = vmatprep.subr.mxu0 0.0
    %709 = vmatpush1.xpose.msra.mxu0 0.0
    %710 = vmatprep.subr.mxu0 0.0
    %711 = vmatpush1.xpose.msra.mxu0 0.0
    %712 = vmatprep.subr.mxu0 0.0
    %713 = vmatpush1.xpose.msra.mxu0 0.0
    %714 = vmatprep.subr.mxu0 0.0
    %715 = vmatpush1.xpose.msra.mxu0 0.0
    %716 = vmatprep.subr.mxu0 0.0
    %717 = vmatpush1.xpose.msra.mxu0 0.0
    %718 = vmatprep.subr.mxu0 0.0
    %719 = vmatpush1.xpose.msra.mxu0 0.0
    %720 = vmatprep.subr.mxu0 0.0
    %721 = vmatpush1.xpose.msra.mxu0 0.0
    %722 = vmatprep.mubr.f32.mxu0 0.0
    %723 = vmatmul.mubr.f32.gmra.mrb[0].mxu0 %v346
    %v724 = vpop.f32.mrb[0].mxu0
    %v725 = vadd.f32 %v263, %v724
    %v726 = vpop.f32.mrb[0].mxu0
    %727 = vdwg.mxu0
    %v729 = vsel %vm344, %v86, 0
    %v732 = vsel %vm344, %v87, 0
    %734 = vmatprep.subr.mxu0 0.0
    %735 = vmatpush1.xpose.msra.mxu0 %v729
    %736 = vmatprep.subr.mxu0 0.0
    %737 = vmatpush1.xpose.msra.mxu0 %v732
    %738 = vmatprep.subr.mxu0 0.0
    %739 = vmatpush1.xpose.msra.mxu0 0.0
    %740 = vmatprep.subr.mxu0 0.0
    %741 = vmatpush1.xpose.msra.mxu0 0.0
    %742 = vmatprep.subr.mxu0 0.0
    %743 = vmatpush1.xpose.msra.mxu0 0.0
    %744 = vmatprep.subr.mxu0 0.0
    %745 = vmatpush1.xpose.msra.mxu0 0.0
    %746 = vmatprep.subr.mxu0 0.0
    %747 = vmatpush1.xpose.msra.mxu0 0.0
    %748 = vmatprep.subr.mxu0 0.0
    %749 = vmatpush1.xpose.msra.mxu0 0.0
    %750 = vmatprep.subr.mxu0 0.0
    %751 = vmatpush1.xpose.msra.mxu0 0.0
    %752 = vmatprep.subr.mxu0 0.0
    %753 = vmatpush1.xpose.msra.mxu0 0.0
    %754 = vmatprep.subr.mxu0 0.0
    %755 = vmatpush1.xpose.msra.mxu0 0.0
    %756 = vmatprep.subr.mxu0 0.0
    %757 = vmatpush1.xpose.msra.mxu0 0.0
    %758 = vmatprep.subr.mxu0 0.0
    %759 = vmatpush1.xpose.msra.mxu0 0.0
    %760 = vmatprep.subr.mxu0 0.0
    %761 = vmatpush1.xpose.msra.mxu0 0.0
    %762 = vmatprep.subr.mxu0 0.0
    %763 = vmatpush1.xpose.msra.mxu0 0.0
    %764 = vmatprep.subr.mxu0 0.0
    %765 = vmatpush1.xpose.msra.mxu0 0.0
    %766 = vmatprep.subr.mxu0 0.0
    %767 = vmatpush1.xpose.msra.mxu0 0.0
    %768 = vmatprep.subr.mxu0 0.0
    %769 = vmatpush1.xpose.msra.mxu0 0.0
    %770 = vmatprep.subr.mxu0 0.0
    %771 = vmatpush1.xpose.msra.mxu0 0.0
    %772 = vmatprep.subr.mxu0 0.0
    %773 = vmatpush1.xpose.msra.mxu0 0.0
    %774 = vmatprep.subr.mxu0 0.0
    %775 = vmatpush1.xpose.msra.mxu0 0.0
    %776 = vmatprep.subr.mxu0 0.0
    %777 = vmatpush1.xpose.msra.mxu0 0.0
    %778 = vmatprep.subr.mxu0 0.0
    %779 = vmatpush1.xpose.msra.mxu0 0.0
    %780 = vmatprep.subr.mxu0 0.0
    %781 = vmatpush1.xpose.msra.mxu0 0.0
    %782 = vmatprep.subr.mxu0 0.0
    %783 = vmatpush1.xpose.msra.mxu0 0.0
    %784 = vmatprep.subr.mxu0 0.0
    %785 = vmatpush1.xpose.msra.mxu0 0.0
    %786 = vmatprep.subr.mxu0 0.0
    %787 = vmatpush1.xpose.msra.mxu0 0.0
    %788 = vmatprep.subr.mxu0 0.0
    %789 = vmatpush1.xpose.msra.mxu0 0.0
    %790 = vmatprep.subr.mxu0 0.0
    %791 = vmatpush1.xpose.msra.mxu0 0.0
    %792 = vmatprep.subr.mxu0 0.0
    %793 = vmatpush1.xpose.msra.mxu0 0.0
    %794 = vmatprep.subr.mxu0 0.0
    %795 = vmatpush1.xpose.msra.mxu0 0.0
    %796 = vmatprep.subr.mxu0 0.0
    %797 = vmatpush1.xpose.msra.mxu0 0.0
    %798 = vmatprep.mubr.f32.mxu0 0.0
    %799 = vmatmul.mubr.f32.gmra.mrb[0].mxu0 %v346
    %v800 = vpop.f32.mrb[0].mxu0
    %v801 = vadd.f32 %v267, %v800
    %v802 = vpop.f32.mrb[0].mxu0
    %803 = vdwg.mxu0
    %v805 = vsel %vm344, %v88, 0
    %v808 = vsel %vm344, %v89, 0
    %810 = vmatprep.subr.mxu0 0.0
    %811 = vmatpush1.xpose.msra.mxu0 %v805
    %812 = vmatprep.subr.mxu0 0.0
    %813 = vmatpush1.xpose.msra.mxu0 %v808
    %814 = vmatprep.subr.mxu0 0.0
    %815 = vmatpush1.xpose.msra.mxu0 0.0
    %816 = vmatprep.subr.mxu0 0.0
    %817 = vmatpush1.xpose.msra.mxu0 0.0
    %818 = vmatprep.subr.mxu0 0.0
    %819 = vmatpush1.xpose.msra.mxu0 0.0
    %820 = vmatprep.subr.mxu0 0.0
    %821 = vmatpush1.xpose.msra.mxu0 0.0
    %822 = vmatprep.subr.mxu0 0.0
    %823 = vmatpush1.xpose.msra.mxu0 0.0
    %824 = vmatprep.subr.mxu0 0.0
    %825 = vmatpush1.xpose.msra.mxu0 0.0
    %826 = vmatprep.subr.mxu0 0.0
    %827 = vmatpush1.xpose.msra.mxu0 0.0
    %828 = vmatprep.subr.mxu0 0.0
    %829 = vmatpush1.xpose.msra.mxu0 0.0
    %830 = vmatprep.subr.mxu0 0.0
    %831 = vmatpush1.xpose.msra.mxu0 0.0
    %832 = vmatprep.subr.mxu0 0.0
    %833 = vmatpush1.xpose.msra.mxu0 0.0
    %834 = vmatprep.subr.mxu0 0.0
    %835 = vmatpush1.xpose.msra.mxu0 0.0
    %836 = vmatprep.subr.mxu0 0.0
    %837 = vmatpush1.xpose.msra.mxu0 0.0
    %838 = vmatprep.subr.mxu0 0.0
    %839 = vmatpush1.xpose.msra.mxu0 0.0
    %840 = vmatprep.subr.mxu0 0.0
    %841 = vmatpush1.xpose.msra.mxu0 0.0
    %842 = vmatprep.subr.mxu0 0.0
    %843 = vmatpush1.xpose.msra.mxu0 0.0
    %844 = vmatprep.subr.mxu0 0.0
    %845 = vmatpush1.xpose.msra.mxu0 0.0
    %846 = vmatprep.subr.mxu0 0.0
    %847 = vmatpush1.xpose.msra.mxu0 0.0
    %848 = vmatprep.subr.mxu0 0.0
    %849 = vmatpush1.xpose.msra.mxu0 0.0
    %850 = vmatprep.subr.mxu0 0.0
    %851 = vmatpush1.xpose.msra.mxu0 0.0
    %852 = vmatprep.subr.mxu0 0.0
    %853 = vmatpush1.xpose.msra.mxu0 0.0
    %854 = vmatprep.subr.mxu0 0.0
    %855 = vmatpush1.xpose.msra.mxu0 0.0
    %856 = vmatprep.subr.mxu0 0.0
    %857 = vmatpush1.xpose.msra.mxu0 0.0
    %858 = vmatprep.subr.mxu0 0.0
    %859 = vmatpush1.xpose.msra.mxu0 0.0
    %860 = vmatprep.subr.mxu0 0.0
    %861 = vmatpush1.xpose.msra.mxu0 0.0
    %862 = vmatprep.subr.mxu0 0.0
    %863 = vmatpush1.xpose.msra.mxu0 0.0
    %864 = vmatprep.subr.mxu0 0.0
    %865 = vmatpush1.xpose.msra.mxu0 0.0
    %866 = vmatprep.subr.mxu0 0.0
    %867 = vmatpush1.xpose.msra.mxu0 0.0
    %868 = vmatprep.subr.mxu0 0.0
    %869 = vmatpush1.xpose.msra.mxu0 0.0
    %870 = vmatprep.subr.mxu0 0.0
    %871 = vmatpush1.xpose.msra.mxu0 0.0
    %872 = vmatprep.subr.mxu0 0.0
    %873 = vmatpush1.xpose.msra.mxu0 0.0
    %874 = vmatprep.mubr.f32.mxu0 0.0
    %875 = vmatmul.mubr.f32.gmra.mrb[0].mxu0 %v346
    %v876 = vpop.f32.mrb[0].mxu0
    %v877 = vadd.f32 %v271, %v876
    %v878 = vpop.f32.mrb[0].mxu0
    %879 = vdwg.mxu0
    %v881 = vsel %vm344, %v90, 0
    %v884 = vsel %vm344, %v91, 0
    %886 = vmatprep.subr.mxu0 0.0
    %887 = vmatpush1.xpose.msra.mxu0 %v881
    %888 = vmatprep.subr.mxu0 0.0
    %889 = vmatpush1.xpose.msra.mxu0 %v884
    %890 = vmatprep.subr.mxu0 0.0
    %891 = vmatpush1.xpose.msra.mxu0 0.0
    %892 = vmatprep.subr.mxu0 0.0
    %893 = vmatpush1.xpose.msra.mxu0 0.0
    %894 = vmatprep.subr.mxu0 0.0
    %895 = vmatpush1.xpose.msra.mxu0 0.0
    %896 = vmatprep.subr.mxu0 0.0
    %897 = vmatpush1.xpose.msra.mxu0 0.0
    %898 = vmatprep.subr.mxu0 0.0
    %899 = vmatpush1.xpose.msra.mxu0 0.0
    %900 = vmatprep.subr.mxu0 0.0
    %901 = vmatpush1.xpose.msra.mxu0 0.0
    %902 = vmatprep.subr.mxu0 0.0
    %903 = vmatpush1.xpose.msra.mxu0 0.0
    %904 = vmatprep.subr.mxu0 0.0
    %905 = vmatpush1.xpose.msra.mxu0 0.0
    %906 = vmatprep.subr.mxu0 0.0
    %907 = vmatpush1.xpose.msra.mxu0 0.0
    %908 = vmatprep.subr.mxu0 0.0
    %909 = vmatpush1.xpose.msra.mxu0 0.0
    %910 = vmatprep.subr.mxu0 0.0
    %911 = vmatpush1.xpose.msra.mxu0 0.0
    %912 = vmatprep.subr.mxu0 0.0
    %913 = vmatpush1.xpose.msra.mxu0 0.0
    %914 = vmatprep.subr.mxu0 0.0
    %915 = vmatpush1.xpose.msra.mxu0 0.0
    %916 = vmatprep.subr.mxu0 0.0
    %917 = vmatpush1.xpose.msra.mxu0 0.0
    %918 = vmatprep.subr.mxu0 0.0
    %919 = vmatpush1.xpose.msra.mxu0 0.0
    %920 = vmatprep.subr.mxu0 0.0
    %921 = vmatpush1.xpose.msra.mxu0 0.0
    %922 = vmatprep.subr.mxu0 0.0
    %923 = vmatpush1.xpose.msra.mxu0 0.0
    %924 = vmatprep.subr.mxu0 0.0
    %925 = vmatpush1.xpose.msra.mxu0 0.0
    %926 = vmatprep.subr.mxu0 0.0
    %927 = vmatpush1.xpose.msra.mxu0 0.0
    %928 = vmatprep.subr.mxu0 0.0
    %929 = vmatpush1.xpose.msra.mxu0 0.0
    %930 = vmatprep.subr.mxu0 0.0
    %931 = vmatpush1.xpose.msra.mxu0 0.0
    %932 = vmatprep.subr.mxu0 0.0
    %933 = vmatpush1.xpose.msra.mxu0 0.0
    %934 = vmatprep.subr.mxu0 0.0
    %935 = vmatpush1.xpose.msra.mxu0 0.0
    %936 = vmatprep.subr.mxu0 0.0
    %937 = vmatpush1.xpose.msra.mxu0 0.0
    %938 = vmatprep.subr.mxu0 0.0
    %939 = vmatpush1.xpose.msra.mxu0 0.0
    %940 = vmatprep.subr.mxu0 0.0
    %941 = vmatpush1.xpose.msra.mxu0 0.0
    %942 = vmatprep.subr.mxu0 0.0
    %943 = vmatpush1.xpose.msra.mxu0 0.0
    %944 = vmatprep.subr.mxu0 0.0
    %945 = vmatpush1.xpose.msra.mxu0 0.0
    %946 = vmatprep.subr.mxu0 0.0
    %947 = vmatpush1.xpose.msra.mxu0 0.0
    %948 = vmatprep.subr.mxu0 0.0
    %949 = vmatpush1.xpose.msra.mxu0 0.0
    %950 = vmatprep.mubr.f32.mxu0 0.0
    %951 = vmatmul.mubr.f32.gmra.mrb[0].mxu0 %v346
    %v952 = vpop.f32.mrb[0].mxu0
    %v953 = vadd.f32 %v275, %v952
    %v954 = vpop.f32.mrb[0].mxu0
    %955 = vdwg.mxu0
    %v957 = vsel %vm344, %v92, 0
    %v960 = vsel %vm344, %v93, 0
    %962 = vmatprep.subr.mxu0 0.0
    %963 = vmatpush1.xpose.msra.mxu0 %v957
    %964 = vmatprep.subr.mxu0 0.0
    %965 = vmatpush1.xpose.msra.mxu0 %v960
    %966 = vmatprep.subr.mxu0 0.0
    %967 = vmatpush1.xpose.msra.mxu0 0.0
    %968 = vmatprep.subr.mxu0 0.0
    %969 = vmatpush1.xpose.msra.mxu0 0.0
    %970 = vmatprep.subr.mxu0 0.0
    %971 = vmatpush1.xpose.msra.mxu0 0.0
    %972 = vmatprep.subr.mxu0 0.0
    %973 = vmatpush1.xpose.msra.mxu0 0.0
    %974 = vmatprep.subr.mxu0 0.0
    %975 = vmatpush1.xpose.msra.mxu0 0.0
    %976 = vmatprep.subr.mxu0 0.0
    %977 = vmatpush1.xpose.msra.mxu0 0.0
    %978 = vmatprep.subr.mxu0 0.0
    %979 = vmatpush1.xpose.msra.mxu0 0.0
    %980 = vmatprep.subr.mxu0 0.0
    %981 = vmatpush1.xpose.msra.mxu0 0.0
    %982 = vmatprep.subr.mxu0 0.0
    %983 = vmatpush1.xpose.msra.mxu0 0.0
    %984 = vmatprep.subr.mxu0 0.0
    %985 = vmatpush1.xpose.msra.mxu0 0.0
    %986 = vmatprep.subr.mxu0 0.0
    %987 = vmatpush1.xpose.msra.mxu0 0.0
    %988 = vmatprep.subr.mxu0 0.0
    %989 = vmatpush1.xpose.msra.mxu0 0.0
    %990 = vmatprep.subr.mxu0 0.0
    %991 = vmatpush1.xpose.msra.mxu0 0.0
    %992 = vmatprep.subr.mxu0 0.0
    %993 = vmatpush1.xpose.msra.mxu0 0.0
    %994 = vmatprep.subr.mxu0 0.0
    %995 = vmatpush1.xpose.msra.mxu0 0.0
    %996 = vmatprep.subr.mxu0 0.0
    %997 = vmatpush1.xpose.msra.mxu0 0.0
    %998 = vmatprep.subr.mxu0 0.0
    %999 = vmatpush1.xpose.msra.mxu0 0.0
    %1000 = vmatprep.subr.mxu0 0.0
    %1001 = vmatpush1.xpose.msra.mxu0 0.0
    %1002 = vmatprep.subr.mxu0 0.0
    %1003 = vmatpush1.xpose.msra.mxu0 0.0
    %1004 = vmatprep.subr.mxu0 0.0
    %1005 = vmatpush1.xpose.msra.mxu0 0.0
    %1006 = vmatprep.subr.mxu0 0.0
    %1007 = vmatpush1.xpose.msra.mxu0 0.0
    %1008 = vmatprep.subr.mxu0 0.0
    %1009 = vmatpush1.xpose.msra.mxu0 0.0
    %1010 = vmatprep.subr.mxu0 0.0
    %1011 = vmatpush1.xpose.msra.mxu0 0.0
    %1012 = vmatprep.subr.mxu0 0.0
    %1013 = vmatpush1.xpose.msra.mxu0 0.0
    %1014 = vmatprep.subr.mxu0 0.0
    %1015 = vmatpush1.xpose.msra.mxu0 0.0
    %1016 = vmatprep.subr.mxu0 0.0
    %1017 = vmatpush1.xpose.msra.mxu0 0.0
    %1018 = vmatprep.subr.mxu0 0.0
    %1019 = vmatpush1.xpose.msra.mxu0 0.0
    %1020 = vmatprep.subr.mxu0 0.0
    %1021 = vmatpush1.xpose.msra.mxu0 0.0
    %1022 = vmatprep.subr.mxu0 0.0
    %1023 = vmatpush1.xpose.msra.mxu0 0.0
    %1024 = vmatprep.subr.mxu0 0.0
    %1025 = vmatpush1.xpose.msra.mxu0 0.0
    %1026 = vmatprep.mubr.f32.mxu0 0.0
    %1027 = vmatmul.mubr.f32.gmra.mrb[0].mxu0 %v346
    %v1028 = vpop.f32.mrb[0].mxu0
    %v1029 = vadd.f32 %v279, %v1028
    %v1030 = vpop.f32.mrb[0].mxu0
    %1031 = vdwg.mxu0
    %v1033 = vsel %vm344, %v94, 0
    %v1036 = vsel %vm344, %v95, 0
    %1038 = vmatprep.subr.mxu0 0.0
    %1039 = vmatpush1.xpose.msra.mxu0 %v1033
    %1040 = vmatprep.subr.mxu0 0.0
    %1041 = vmatpush1.xpose.msra.mxu0 %v1036
    %1042 = vmatprep.subr.mxu0 0.0
    %1043 = vmatpush1.xpose.msra.mxu0 0.0
    %1044 = vmatprep.subr.mxu0 0.0
    %1045 = vmatpush1.xpose.msra.mxu0 0.0
    %1046 = vmatprep.subr.mxu0 0.0
    %1047 = vmatpush1.xpose.msra.mxu0 0.0
    %1048 = vmatprep.subr.mxu0 0.0
    %1049 = vmatpush1.xpose.msra.mxu0 0.0
    %1050 = vmatprep.subr.mxu0 0.0
    %1051 = vmatpush1.xpose.msra.mxu0 0.0
    %1052 = vmatprep.subr.mxu0 0.0
    %1053 = vmatpush1.xpose.msra.mxu0 0.0
    %1054 = vmatprep.subr.mxu0 0.0
    %1055 = vmatpush1.xpose.msra.mxu0 0.0
    %1056 = vmatprep.subr.mxu0 0.0
    %1057 = vmatpush1.xpose.msra.mxu0 0.0
    %1058 = vmatprep.subr.mxu0 0.0
    %1059 = vmatpush1.xpose.msra.mxu0 0.0
    %1060 = vmatprep.subr.mxu0 0.0
    %1061 = vmatpush1.xpose.msra.mxu0 0.0
    %1062 = vmatprep.subr.mxu0 0.0
    %1063 = vmatpush1.xpose.msra.mxu0 0.0
    %1064 = vmatprep.subr.mxu0 0.0
    %1065 = vmatpush1.xpose.msra.mxu0 0.0
    %1066 = vmatprep.subr.mxu0 0.0
    %1067 = vmatpush1.xpose.msra.mxu0 0.0
    %1068 = vmatprep.subr.mxu0 0.0
    %1069 = vmatpush1.xpose.msra.mxu0 0.0
    %1070 = vmatprep.subr.mxu0 0.0
    %1071 = vmatpush1.xpose.msra.mxu0 0.0
    %1072 = vmatprep.subr.mxu0 0.0
    %1073 = vmatpush1.xpose.msra.mxu0 0.0
    %1074 = vmatprep.subr.mxu0 0.0
    %1075 = vmatpush1.xpose.msra.mxu0 0.0
    %1076 = vmatprep.subr.mxu0 0.0
    %1077 = vmatpush1.xpose.msra.mxu0 0.0
    %1078 = vmatprep.subr.mxu0 0.0
    %1079 = vmatpush1.xpose.msra.mxu0 0.0
    %1080 = vmatprep.subr.mxu0 0.0
    %1081 = vmatpush1.xpose.msra.mxu0 0.0
    %1082 = vmatprep.subr.mxu0 0.0
    %1083 = vmatpush1.xpose.msra.mxu0 0.0
    %1084 = vmatprep.subr.mxu0 0.0
    %1085 = vmatpush1.xpose.msra.mxu0 0.0
    %1086 = vmatprep.subr.mxu0 0.0
    %1087 = vmatpush1.xpose.msra.mxu0 0.0
    %1088 = vmatprep.subr.mxu0 0.0
    %1089 = vmatpush1.xpose.msra.mxu0 0.0
    %1090 = vmatprep.subr.mxu0 0.0
    %1091 = vmatpush1.xpose.msra.mxu0 0.0
    %1092 = vmatprep.subr.mxu0 0.0
    %1093 = vmatpush1.xpose.msra.mxu0 0.0
    %1094 = vmatprep.subr.mxu0 0.0
    %1095 = vmatpush1.xpose.msra.mxu0 0.0
    %1096 = vmatprep.subr.mxu0 0.0
    %1097 = vmatpush1.xpose.msra.mxu0 0.0
    %1098 = vmatprep.subr.mxu0 0.0
    %1099 = vmatpush1.xpose.msra.mxu0 0.0
    %1100 = vmatprep.subr.mxu0 0.0
    %1101 = vmatpush1.xpose.msra.mxu0 0.0
    %1102 = vmatprep.mubr.f32.mxu0 0.0
    %1103 = vmatmul.mubr.f32.gmra.mrb[0].mxu0 %v346
    %v1104 = vpop.f32.mrb[0].mxu0
    %v1105 = vadd.f32 %v283, %v1104
    %v1106 = vpop.f32.mrb[0].mxu0
    %1107 = vdwg.mxu0
    %v1109 = vsel %vm344, %v96, 0
    %v1112 = vsel %vm344, %v97, 0
    %1114 = vmatprep.subr.mxu0 0.0
    %1115 = vmatpush1.xpose.msra.mxu0 %v1109
    %1116 = vmatprep.subr.mxu0 0.0
    %1117 = vmatpush1.xpose.msra.mxu0 %v1112
    %1118 = vmatprep.subr.mxu0 0.0
    %1119 = vmatpush1.xpose.msra.mxu0 0.0
    %1120 = vmatprep.subr.mxu0 0.0
    %1121 = vmatpush1.xpose.msra.mxu0 0.0
    %1122 = vmatprep.subr.mxu0 0.0
    %1123 = vmatpush1.xpose.msra.mxu0 0.0
    %1124 = vmatprep.subr.mxu0 0.0
    %1125 = vmatpush1.xpose.msra.mxu0 0.0
    %1126 = vmatprep.subr.mxu0 0.0
    %1127 = vmatpush1.xpose.msra.mxu0 0.0
    %1128 = vmatprep.subr.mxu0 0.0
    %1129 = vmatpush1.xpose.msra.mxu0 0.0
    %1130 = vmatprep.subr.mxu0 0.0
    %1131 = vmatpush1.xpose.msra.mxu0 0.0
    %1132 = vmatprep.subr.mxu0 0.0
    %1133 = vmatpush1.xpose.msra.mxu0 0.0
    %1134 = vmatprep.subr.mxu0 0.0
    %1135 = vmatpush1.xpose.msra.mxu0 0.0
    %1136 = vmatprep.subr.mxu0 0.0
    %1137 = vmatpush1.xpose.msra.mxu0 0.0
    %1138 = vmatprep.subr.mxu0 0.0
    %1139 = vmatpush1.xpose.msra.mxu0 0.0
    %1140 = vmatprep.subr.mxu0 0.0
    %1141 = vmatpush1.xpose.msra.mxu0 0.0
    %1142 = vmatprep.subr.mxu0 0.0
    %1143 = vmatpush1.xpose.msra.mxu0 0.0
    %1144 = vmatprep.subr.mxu0 0.0
    %1145 = vmatpush1.xpose.msra.mxu0 0.0
    %1146 = vmatprep.subr.mxu0 0.0
    %1147 = vmatpush1.xpose.msra.mxu0 0.0
    %1148 = vmatprep.subr.mxu0 0.0
    %1149 = vmatpush1.xpose.msra.mxu0 0.0
    %1150 = vmatprep.subr.mxu0 0.0
    %1151 = vmatpush1.xpose.msra.mxu0 0.0
    %1152 = vmatprep.subr.mxu0 0.0
    %1153 = vmatpush1.xpose.msra.mxu0 0.0
    %1154 = vmatprep.subr.mxu0 0.0
    %1155 = vmatpush1.xpose.msra.mxu0 0.0
    %1156 = vmatprep.subr.mxu0 0.0
    %1157 = vmatpush1.xpose.msra.mxu0 0.0
    %1158 = vmatprep.subr.mxu0 0.0
    %1159 = vmatpush1.xpose.msra.mxu0 0.0
    %1160 = vmatprep.subr.mxu0 0.0
    %1161 = vmatpush1.xpose.msra.mxu0 0.0
    %1162 = vmatprep.subr.mxu0 0.0
    %1163 = vmatpush1.xpose.msra.mxu0 0.0
    %1164 = vmatprep.subr.mxu0 0.0
    %1165 = vmatpush1.xpose.msra.mxu0 0.0
    %1166 = vmatprep.subr.mxu0 0.0
    %1167 = vmatpush1.xpose.msra.mxu0 0.0
    %1168 = vmatprep.subr.mxu0 0.0
    %1169 = vmatpush1.xpose.msra.mxu0 0.0
    %1170 = vmatprep.subr.mxu0 0.0
    %1171 = vmatpush1.xpose.msra.mxu0 0.0
    %1172 = vmatprep.subr.mxu0 0.0
    %1173 = vmatpush1.xpose.msra.mxu0 0.0
    %1174 = vmatprep.subr.mxu0 0.0
    %1175 = vmatpush1.xpose.msra.mxu0 0.0
    %1176 = vmatprep.subr.mxu0 0.0
    %1177 = vmatpush1.xpose.msra.mxu0 0.0
    %1178 = vmatprep.mubr.f32.mxu0 0.0
    %1179 = vmatmul.mubr.f32.gmra.mrb[0].mxu0 %v346
    %v1180 = vpop.f32.mrb[0].mxu0
    %v1181 = vadd.f32 %v287, %v1180
    %v1182 = vpop.f32.mrb[0].mxu0
    %1183 = vdwg.mxu0
    %v1185 = vsel %vm344, %v98, 0
    %v1188 = vsel %vm344, %v99, 0
    %1190 = vmatprep.subr.mxu0 0.0
    %1191 = vmatpush1.xpose.msra.mxu0 %v1185
    %1192 = vmatprep.subr.mxu0 0.0
    %1193 = vmatpush1.xpose.msra.mxu0 %v1188
    %1194 = vmatprep.subr.mxu0 0.0
    %1195 = vmatpush1.xpose.msra.mxu0 0.0
    %1196 = vmatprep.subr.mxu0 0.0
    %1197 = vmatpush1.xpose.msra.mxu0 0.0
    %1198 = vmatprep.subr.mxu0 0.0
    %1199 = vmatpush1.xpose.msra.mxu0 0.0
    %1200 = vmatprep.subr.mxu0 0.0
    %1201 = vmatpush1.xpose.msra.mxu0 0.0
    %1202 = vmatprep.subr.mxu0 0.0
    %1203 = vmatpush1.xpose.msra.mxu0 0.0
    %1204 = vmatprep.subr.mxu0 0.0
    %1205 = vmatpush1.xpose.msra.mxu0 0.0
    %1206 = vmatprep.subr.mxu0 0.0
    %1207 = vmatpush1.xpose.msra.mxu0 0.0
    %1208 = vmatprep.subr.mxu0 0.0
    %1209 = vmatpush1.xpose.msra.mxu0 0.0
    %1210 = vmatprep.subr.mxu0 0.0
    %1211 = vmatpush1.xpose.msra.mxu0 0.0
    %1212 = vmatprep.subr.mxu0 0.0
    %1213 = vmatpush1.xpose.msra.mxu0 0.0
    %1214 = vmatprep.subr.mxu0 0.0
    %1215 = vmatpush1.xpose.msra.mxu0 0.0
    %1216 = vmatprep.subr.mxu0 0.0
    %1217 = vmatpush1.xpose.msra.mxu0 0.0
    %1218 = vmatprep.subr.mxu0 0.0
    %1219 = vmatpush1.xpose.msra.mxu0 0.0
    %1220 = vmatprep.subr.mxu0 0.0
    %1221 = vmatpush1.xpose.msra.mxu0 0.0
    %1222 = vmatprep.subr.mxu0 0.0
    %1223 = vmatpush1.xpose.msra.mxu0 0.0
    %1224 = vmatprep.subr.mxu0 0.0
    %1225 = vmatpush1.xpose.msra.mxu0 0.0
    %1226 = vmatprep.subr.mxu0 0.0
    %1227 = vmatpush1.xpose.msra.mxu0 0.0
    %1228 = vmatprep.subr.mxu0 0.0
    %1229 = vmatpush1.xpose.msra.mxu0 0.0
    %1230 = vmatprep.subr.mxu0 0.0
    %1231 = vmatpush1.xpose.msra.mxu0 0.0
    %1232 = vmatprep.subr.mxu0 0.0
    %1233 = vmatpush1.xpose.msra.mxu0 0.0
    %1234 = vmatprep.subr.mxu0 0.0
    %1235 = vmatpush1.xpose.msra.mxu0 0.0
    %1236 = vmatprep.subr.mxu0 0.0
    %1237 = vmatpush1.xpose.msra.mxu0 0.0
    %1238 = vmatprep.subr.mxu0 0.0
    %1239 = vmatpush1.xpose.msra.mxu0 0.0
    %1240 = vmatprep.subr.mxu0 0.0
    %1241 = vmatpush1.xpose.msra.mxu0 0.0
    %1242 = vmatprep.subr.mxu0 0.0
    %1243 = vmatpush1.xpose.msra.mxu0 0.0
    %1244 = vmatprep.subr.mxu0 0.0
    %1245 = vmatpush1.xpose.msra.mxu0 0.0
    %1246 = vmatprep.subr.mxu0 0.0
    %1247 = vmatpush1.xpose.msra.mxu0 0.0
    %1248 = vmatprep.subr.mxu0 0.0
    %1249 = vmatpush1.xpose.msra.mxu0 0.0
    %1250 = vmatprep.subr.mxu0 0.0
    %1251 = vmatpush1.xpose.msra.mxu0 0.0
    %1252 = vmatprep.subr.mxu0 0.0
    %1253 = vmatpush1.xpose.msra.mxu0 0.0
    %1254 = vmatprep.mubr.f32.mxu0 0.0
    %1255 = vmatmul.mubr.f32.gmra.mrb[0].mxu0 %v346
    %v1256 = vpop.f32.mrb[0].mxu0
    %v1257 = vadd.f32 %v291, %v1256
    %v1258 = vpop.f32.mrb[0].mxu0
    %1259 = vdwg.mxu0
    %v1261 = vsel %vm344, %v100, 0
    %v1264 = vsel %vm344, %v101, 0
    %1266 = vmatprep.subr.mxu0 0.0
    %1267 = vmatpush1.xpose.msra.mxu0 %v1261
    %1268 = vmatprep.subr.mxu0 0.0
    %1269 = vmatpush1.xpose.msra.mxu0 %v1264
    %1270 = vmatprep.subr.mxu0 0.0
    %1271 = vmatpush1.xpose.msra.mxu0 0.0
    %1272 = vmatprep.subr.mxu0 0.0
    %1273 = vmatpush1.xpose.msra.mxu0 0.0
    %1274 = vmatprep.subr.mxu0 0.0
    %1275 = vmatpush1.xpose.msra.mxu0 0.0
    %1276 = vmatprep.subr.mxu0 0.0
    %1277 = vmatpush1.xpose.msra.mxu0 0.0
    %1278 = vmatprep.subr.mxu0 0.0
    %1279 = vmatpush1.xpose.msra.mxu0 0.0
    %1280 = vmatprep.subr.mxu0 0.0
    %1281 = vmatpush1.xpose.msra.mxu0 0.0
    %1282 = vmatprep.subr.mxu0 0.0
    %1283 = vmatpush1.xpose.msra.mxu0 0.0
    %1284 = vmatprep.subr.mxu0 0.0
    %1285 = vmatpush1.xpose.msra.mxu0 0.0
    %1286 = vmatprep.subr.mxu0 0.0
    %1287 = vmatpush1.xpose.msra.mxu0 0.0
    %1288 = vmatprep.subr.mxu0 0.0
    %1289 = vmatpush1.xpose.msra.mxu0 0.0
    %1290 = vmatprep.subr.mxu0 0.0
    %1291 = vmatpush1.xpose.msra.mxu0 0.0
    %1292 = vmatprep.subr.mxu0 0.0
    %1293 = vmatpush1.xpose.msra.mxu0 0.0
    %1294 = vmatprep.subr.mxu0 0.0
    %1295 = vmatpush1.xpose.msra.mxu0 0.0
    %1296 = vmatprep.subr.mxu0 0.0
    %1297 = vmatpush1.xpose.msra.mxu0 0.0
    %1298 = vmatprep.subr.mxu0 0.0
    %1299 = vmatpush1.xpose.msra.mxu0 0.0
    %1300 = vmatprep.subr.mxu0 0.0
    %1301 = vmatpush1.xpose.msra.mxu0 0.0
    %1302 = vmatprep.subr.mxu0 0.0
    %1303 = vmatpush1.xpose.msra.mxu0 0.0
    %1304 = vmatprep.subr.mxu0 0.0
    %1305 = vmatpush1.xpose.msra.mxu0 0.0
    %1306 = vmatprep.subr.mxu0 0.0
    %1307 = vmatpush1.xpose.msra.mxu0 0.0
    %1308 = vmatprep.subr.mxu0 0.0
    %1309 = vmatpush1.xpose.msra.mxu0 0.0
    %1310 = vmatprep.subr.mxu0 0.0
    %1311 = vmatpush1.xpose.msra.mxu0 0.0
    %1312 = vmatprep.subr.mxu0 0.0
    %1313 = vmatpush1.xpose.msra.mxu0 0.0
    %1314 = vmatprep.subr.mxu0 0.0
    %1315 = vmatpush1.xpose.msra.mxu0 0.0
    %1316 = vmatprep.subr.mxu0 0.0
    %1317 = vmatpush1.xpose.msra.mxu0 0.0
    %1318 = vmatprep.subr.mxu0 0.0
    %1319 = vmatpush1.xpose.msra.mxu0 0.0
    %1320 = vmatprep.subr.mxu0 0.0
    %1321 = vmatpush1.xpose.msra.mxu0 0.0
    %1322 = vmatprep.subr.mxu0 0.0
    %1323 = vmatpush1.xpose.msra.mxu0 0.0
    %1324 = vmatprep.subr.mxu0 0.0
    %1325 = vmatpush1.xpose.msra.mxu0 0.0
    %1326 = vmatprep.subr.mxu0 0.0
    %1327 = vmatpush1.xpose.msra.mxu0 0.0
    %1328 = vmatprep.subr.mxu0 0.0
    %1329 = vmatpush1.xpose.msra.mxu0 0.0
    %1330 = vmatprep.mubr.f32.mxu0 0.0
    %1331 = vmatmul.mubr.f32.gmra.mrb[0].mxu0 %v346
    %v1332 = vpop.f32.mrb[0].mxu0
    %v1333 = vadd.f32 %v295, %v1332
    %v1334 = vpop.f32.mrb[0].mxu0
    %1335 = vdwg.mxu0
    %v1337 = vsel %vm344, %v102, 0
    %v1340 = vsel %vm344, %v103, 0
    %1342 = vmatprep.subr.mxu0 0.0
    %1343 = vmatpush1.xpose.msra.mxu0 %v1337
    %1344 = vmatprep.subr.mxu0 0.0
    %1345 = vmatpush1.xpose.msra.mxu0 %v1340
    %1346 = vmatprep.subr.mxu0 0.0
    %1347 = vmatpush1.xpose.msra.mxu0 0.0
    %1348 = vmatprep.subr.mxu0 0.0
    %1349 = vmatpush1.xpose.msra.mxu0 0.0
    %1350 = vmatprep.subr.mxu0 0.0
    %1351 = vmatpush1.xpose.msra.mxu0 0.0
    %1352 = vmatprep.subr.mxu0 0.0
    %1353 = vmatpush1.xpose.msra.mxu0 0.0
    %1354 = vmatprep.subr.mxu0 0.0
    %1355 = vmatpush1.xpose.msra.mxu0 0.0
    %1356 = vmatprep.subr.mxu0 0.0
    %1357 = vmatpush1.xpose.msra.mxu0 0.0
    %1358 = vmatprep.subr.mxu0 0.0
    %1359 = vmatpush1.xpose.msra.mxu0 0.0
    %1360 = vmatprep.subr.mxu0 0.0
    %1361 = vmatpush1.xpose.msra.mxu0 0.0
    %1362 = vmatprep.subr.mxu0 0.0
    %1363 = vmatpush1.xpose.msra.mxu0 0.0
    %1364 = vmatprep.subr.mxu0 0.0
    %1365 = vmatpush1.xpose.msra.mxu0 0.0
    %1366 = vmatprep.subr.mxu0 0.0
    %1367 = vmatpush1.xpose.msra.mxu0 0.0
    %1368 = vmatprep.subr.mxu0 0.0
    %1369 = vmatpush1.xpose.msra.mxu0 0.0
    %1370 = vmatprep.subr.mxu0 0.0
    %1371 = vmatpush1.xpose.msra.mxu0 0.0
    %1372 = vmatprep.subr.mxu0 0.0
    %1373 = vmatpush1.xpose.msra.mxu0 0.0
    %1374 = vmatprep.subr.mxu0 0.0
    %1375 = vmatpush1.xpose.msra.mxu0 0.0
    %1376 = vmatprep.subr.mxu0 0.0
    %1377 = vmatpush1.xpose.msra.mxu0 0.0
    %1378 = vmatprep.subr.mxu0 0.0
    %1379 = vmatpush1.xpose.msra.mxu0 0.0
    %1380 = vmatprep.subr.mxu0 0.0
    %1381 = vmatpush1.xpose.msra.mxu0 0.0
    %1382 = vmatprep.subr.mxu0 0.0
    %1383 = vmatpush1.xpose.msra.mxu0 0.0
    %1384 = vmatprep.subr.mxu0 0.0
    %1385 = vmatpush1.xpose.msra.mxu0 0.0
    %1386 = vmatprep.subr.mxu0 0.0
    %1387 = vmatpush1.xpose.msra.mxu0 0.0
    %1388 = vmatprep.subr.mxu0 0.0
    %1389 = vmatpush1.xpose.msra.mxu0 0.0
    %1390 = vmatprep.subr.mxu0 0.0
    %1391 = vmatpush1.xpose.msra.mxu0 0.0
    %1392 = vmatprep.subr.mxu0 0.0
    %1393 = vmatpush1.xpose.msra.mxu0 0.0
    %1394 = vmatprep.subr.mxu0 0.0
    %1395 = vmatpush1.xpose.msra.mxu0 0.0
    %1396 = vmatprep.subr.mxu0 0.0
    %1397 = vmatpush1.xpose.msra.mxu0 0.0
    %1398 = vmatprep.subr.mxu0 0.0
    %1399 = vmatpush1.xpose.msra.mxu0 0.0
    %1400 = vmatprep.subr.mxu0 0.0
    %1401 = vmatpush1.xpose.msra.mxu0 0.0
    %1402 = vmatprep.subr.mxu0 0.0
    %1403 = vmatpush1.xpose.msra.mxu0 0.0
    %1404 = vmatprep.subr.mxu0 0.0
    %1405 = vmatpush1.xpose.msra.mxu0 0.0
    %1406 = vmatprep.mubr.f32.mxu0 0.0
    %1407 = vmatmul.mubr.f32.gmra.mrb[0].mxu0 %v346
    %v1408 = vpop.f32.mrb[0].mxu0
    %v1409 = vadd.f32 %v299, %v1408
    %v1410 = vpop.f32.mrb[0].mxu0
    %1411 = vdwg.mxu0
    %v1413 = vsel %vm344, %v104, 0
    %v1416 = vsel %vm344, %v105, 0
    %1418 = vmatprep.subr.mxu0 0.0
    %1419 = vmatpush1.xpose.msra.mxu0 %v1413
    %1420 = vmatprep.subr.mxu0 0.0
    %1421 = vmatpush1.xpose.msra.mxu0 %v1416
    %1422 = vmatprep.subr.mxu0 0.0
    %1423 = vmatpush1.xpose.msra.mxu0 0.0
    %1424 = vmatprep.subr.mxu0 0.0
    %1425 = vmatpush1.xpose.msra.mxu0 0.0
    %1426 = vmatprep.subr.mxu0 0.0
    %1427 = vmatpush1.xpose.msra.mxu0 0.0
    %1428 = vmatprep.subr.mxu0 0.0
    %1429 = vmatpush1.xpose.msra.mxu0 0.0
    %1430 = vmatprep.subr.mxu0 0.0
    %1431 = vmatpush1.xpose.msra.mxu0 0.0
    %1432 = vmatprep.subr.mxu0 0.0
    %1433 = vmatpush1.xpose.msra.mxu0 0.0
    %1434 = vmatprep.subr.mxu0 0.0
    %1435 = vmatpush1.xpose.msra.mxu0 0.0
    %1436 = vmatprep.subr.mxu0 0.0
    %1437 = vmatpush1.xpose.msra.mxu0 0.0
    %1438 = vmatprep.subr.mxu0 0.0
    %1439 = vmatpush1.xpose.msra.mxu0 0.0
    %1440 = vmatprep.subr.mxu0 0.0
    %1441 = vmatpush1.xpose.msra.mxu0 0.0
    %1442 = vmatprep.subr.mxu0 0.0
    %1443 = vmatpush1.xpose.msra.mxu0 0.0
    %1444 = vmatprep.subr.mxu0 0.0
    %1445 = vmatpush1.xpose.msra.mxu0 0.0
    %1446 = vmatprep.subr.mxu0 0.0
    %1447 = vmatpush1.xpose.msra.mxu0 0.0
    %1448 = vmatprep.subr.mxu0 0.0
    %1449 = vmatpush1.xpose.msra.mxu0 0.0
    %1450 = vmatprep.subr.mxu0 0.0
    %1451 = vmatpush1.xpose.msra.mxu0 0.0
    %1452 = vmatprep.subr.mxu0 0.0
    %1453 = vmatpush1.xpose.msra.mxu0 0.0
    %1454 = vmatprep.subr.mxu0 0.0
    %1455 = vmatpush1.xpose.msra.mxu0 0.0
    %1456 = vmatprep.subr.mxu0 0.0
    %1457 = vmatpush1.xpose.msra.mxu0 0.0
    %1458 = vmatprep.subr.mxu0 0.0
    %1459 = vmatpush1.xpose.msra.mxu0 0.0
    %1460 = vmatprep.subr.mxu0 0.0
    %1461 = vmatpush1.xpose.msra.mxu0 0.0
    %1462 = vmatprep.subr.mxu0 0.0
    %1463 = vmatpush1.xpose.msra.mxu0 0.0
    %1464 = vmatprep.subr.mxu0 0.0
    %1465 = vmatpush1.xpose.msra.mxu0 0.0
    %1466 = vmatprep.subr.mxu0 0.0
    %1467 = vmatpush1.xpose.msra.mxu0 0.0
    %1468 = vmatprep.subr.mxu0 0.0
    %1469 = vmatpush1.xpose.msra.mxu0 0.0
    %1470 = vmatprep.subr.mxu0 0.0
    %1471 = vmatpush1.xpose.msra.mxu0 0.0
    %1472 = vmatprep.subr.mxu0 0.0
    %1473 = vmatpush1.xpose.msra.mxu0 0.0
    %1474 = vmatprep.subr.mxu0 0.0
    %1475 = vmatpush1.xpose.msra.mxu0 0.0
    %1476 = vmatprep.subr.mxu0 0.0
    %1477 = vmatpush1.xpose.msra.mxu0 0.0
    %1478 = vmatprep.subr.mxu0 0.0
    %1479 = vmatpush1.xpose.msra.mxu0 0.0
    %1480 = vmatprep.subr.mxu0 0.0
    %1481 = vmatpush1.xpose.msra.mxu0 0.0
    %1482 = vmatprep.mubr.f32.mxu0 0.0
    %1483 = vmatmul.mubr.f32.gmra.mrb[0].mxu0 %v346
    %v1484 = vpop.f32.mrb[0].mxu0
    %v1485 = vadd.f32 %v303, %v1484
    %v1486 = vpop.f32.mrb[0].mxu0
    %1487 = vdwg.mxu0
    %v1489 = vsel %vm344, %v106, 0
    %v1492 = vsel %vm344, %v107, 0
    %1494 = vmatprep.subr.mxu0 0.0
    %1495 = vmatpush1.xpose.msra.mxu0 %v1489
    %1496 = vmatprep.subr.mxu0 0.0
    %1497 = vmatpush1.xpose.msra.mxu0 %v1492
    %1498 = vmatprep.subr.mxu0 0.0
    %1499 = vmatpush1.xpose.msra.mxu0 0.0
    %1500 = vmatprep.subr.mxu0 0.0
    %1501 = vmatpush1.xpose.msra.mxu0 0.0
    %1502 = vmatprep.subr.mxu0 0.0
    %1503 = vmatpush1.xpose.msra.mxu0 0.0
    %1504 = vmatprep.subr.mxu0 0.0
    %1505 = vmatpush1.xpose.msra.mxu0 0.0
    %1506 = vmatprep.subr.mxu0 0.0
    %1507 = vmatpush1.xpose.msra.mxu0 0.0
    %1508 = vmatprep.subr.mxu0 0.0
    %1509 = vmatpush1.xpose.msra.mxu0 0.0
    %1510 = vmatprep.subr.mxu0 0.0
    %1511 = vmatpush1.xpose.msra.mxu0 0.0
    %1512 = vmatprep.subr.mxu0 0.0
    %1513 = vmatpush1.xpose.msra.mxu0 0.0
    %1514 = vmatprep.subr.mxu0 0.0
    %1515 = vmatpush1.xpose.msra.mxu0 0.0
    %1516 = vmatprep.subr.mxu0 0.0
    %1517 = vmatpush1.xpose.msra.mxu0 0.0
    %1518 = vmatprep.subr.mxu0 0.0
    %1519 = vmatpush1.xpose.msra.mxu0 0.0
    %1520 = vmatprep.subr.mxu0 0.0
    %1521 = vmatpush1.xpose.msra.mxu0 0.0
    %1522 = vmatprep.subr.mxu0 0.0
    %1523 = vmatpush1.xpose.msra.mxu0 0.0
    %1524 = vmatprep.subr.mxu0 0.0
    %1525 = vmatpush1.xpose.msra.mxu0 0.0
    %1526 = vmatprep.subr.mxu0 0.0
    %1527 = vmatpush1.xpose.msra.mxu0 0.0
    %1528 = vmatprep.subr.mxu0 0.0
    %1529 = vmatpush1.xpose.msra.mxu0 0.0
    %1530 = vmatprep.subr.mxu0 0.0
    %1531 = vmatpush1.xpose.msra.mxu0 0.0
    %1532 = vmatprep.subr.mxu0 0.0
    %1533 = vmatpush1.xpose.msra.mxu0 0.0
    %1534 = vmatprep.subr.mxu0 0.0
    %1535 = vmatpush1.xpose.msra.mxu0 0.0
    %1536 = vmatprep.subr.mxu0 0.0
    %1537 = vmatpush1.xpose.msra.mxu0 0.0
    %1538 = vmatprep.subr.mxu0 0.0
    %1539 = vmatpush1.xpose.msra.mxu0 0.0
    %1540 = vmatprep.subr.mxu0 0.0
    %1541 = vmatpush1.xpose.msra.mxu0 0.0
    %1542 = vmatprep.subr.mxu0 0.0
    %1543 = vmatpush1.xpose.msra.mxu0 0.0
    %1544 = vmatprep.subr.mxu0 0.0
    %1545 = vmatpush1.xpose.msra.mxu0 0.0
    %1546 = vmatprep.subr.mxu0 0.0
    %1547 = vmatpush1.xpose.msra.mxu0 0.0
    %1548 = vmatprep.subr.mxu0 0.0
    %1549 = vmatpush1.xpose.msra.mxu0 0.0
    %1550 = vmatprep.subr.mxu0 0.0
    %1551 = vmatpush1.xpose.msra.mxu0 0.0
    %1552 = vmatprep.subr.mxu0 0.0
    %1553 = vmatpush1.xpose.msra.mxu0 0.0
    %1554 = vmatprep.subr.mxu0 0.0
    %1555 = vmatpush1.xpose.msra.mxu0 0.0
    %1556 = vmatprep.subr.mxu0 0.0
    %1557 = vmatpush1.xpose.msra.mxu0 0.0
    %1558 = vmatprep.mubr.f32.mxu0 0.0
    %1559 = vmatmul.mubr.f32.gmra.mrb[0].mxu0 %v346
    %v1560 = vpop.f32.mrb[0].mxu0
    %v1561 = vadd.f32 %v307, %v1560
    %v1562 = vpop.f32.mrb[0].mxu0
    %1563 = vdwg.mxu0
    %v1565 = vsel %vm344, %v108, 0
    %v1568 = vsel %vm344, %v109, 0
    %1570 = vmatprep.subr.mxu0 0.0
    %1571 = vmatpush1.xpose.msra.mxu0 %v1565
    %1572 = vmatprep.subr.mxu0 0.0
    %1573 = vmatpush1.xpose.msra.mxu0 %v1568
    %1574 = vmatprep.subr.mxu0 0.0
    %1575 = vmatpush1.xpose.msra.mxu0 0.0
    %1576 = vmatprep.subr.mxu0 0.0
    %1577 = vmatpush1.xpose.msra.mxu0 0.0
    %1578 = vmatprep.subr.mxu0 0.0
    %1579 = vmatpush1.xpose.msra.mxu0 0.0
    %1580 = vmatprep.subr.mxu0 0.0
    %1581 = vmatpush1.xpose.msra.mxu0 0.0
    %1582 = vmatprep.subr.mxu0 0.0
    %1583 = vmatpush1.xpose.msra.mxu0 0.0
    %1584 = vmatprep.subr.mxu0 0.0
    %1585 = vmatpush1.xpose.msra.mxu0 0.0
    %1586 = vmatprep.subr.mxu0 0.0
    %1587 = vmatpush1.xpose.msra.mxu0 0.0
    %1588 = vmatprep.subr.mxu0 0.0
    %1589 = vmatpush1.xpose.msra.mxu0 0.0
    %1590 = vmatprep.subr.mxu0 0.0
    %1591 = vmatpush1.xpose.msra.mxu0 0.0
    %1592 = vmatprep.subr.mxu0 0.0
    %1593 = vmatpush1.xpose.msra.mxu0 0.0
    %1594 = vmatprep.subr.mxu0 0.0
    %1595 = vmatpush1.xpose.msra.mxu0 0.0
    %1596 = vmatprep.subr.mxu0 0.0
    %1597 = vmatpush1.xpose.msra.mxu0 0.0
    %1598 = vmatprep.subr.mxu0 0.0
    %1599 = vmatpush1.xpose.msra.mxu0 0.0
    %1600 = vmatprep.subr.mxu0 0.0
    %1601 = vmatpush1.xpose.msra.mxu0 0.0
    %1602 = vmatprep.subr.mxu0 0.0
    %1603 = vmatpush1.xpose.msra.mxu0 0.0
    %1604 = vmatprep.subr.mxu0 0.0
    %1605 = vmatpush1.xpose.msra.mxu0 0.0
    %1606 = vmatprep.subr.mxu0 0.0
    %1607 = vmatpush1.xpose.msra.mxu0 0.0
    %1608 = vmatprep.subr.mxu0 0.0
    %1609 = vmatpush1.xpose.msra.mxu0 0.0
    %1610 = vmatprep.subr.mxu0 0.0
    %1611 = vmatpush1.xpose.msra.mxu0 0.0
    %1612 = vmatprep.subr.mxu0 0.0
    %1613 = vmatpush1.xpose.msra.mxu0 0.0
    %1614 = vmatprep.subr.mxu0 0.0
    %1615 = vmatpush1.xpose.msra.mxu0 0.0
    %1616 = vmatprep.subr.mxu0 0.0
    %1617 = vmatpush1.xpose.msra.mxu0 0.0
    %1618 = vmatprep.subr.mxu0 0.0
    %1619 = vmatpush1.xpose.msra.mxu0 0.0
    %1620 = vmatprep.subr.mxu0 0.0
    %1621 = vmatpush1.xpose.msra.mxu0 0.0
    %1622 = vmatprep.subr.mxu0 0.0
    %1623 = vmatpush1.xpose.msra.mxu0 0.0
    %1624 = vmatprep.subr.mxu0 0.0
    %1625 = vmatpush1.xpose.msra.mxu0 0.0
    %1626 = vmatprep.subr.mxu0 0.0
    %1627 = vmatpush1.xpose.msra.mxu0 0.0
    %1628 = vmatprep.subr.mxu0 0.0
    %1629 = vmatpush1.xpose.msra.mxu0 0.0
    %1630 = vmatprep.subr.mxu0 0.0
    %1631 = vmatpush1.xpose.msra.mxu0 0.0
    %1632 = vmatprep.subr.mxu0 0.0
    %1633 = vmatpush1.xpose.msra.mxu0 0.0
    %1634 = vmatprep.mubr.f32.mxu0 0.0
    %1635 = vmatmul.mubr.f32.gmra.mrb[0].mxu0 %v346
    %v1636 = vpop.f32.mrb[0].mxu0
    %v1637 = vadd.f32 %v311, %v1636
    %v1638 = vpop.f32.mrb[0].mxu0
    %1639 = vdwg.mxu0
    %v1641 = vsel %vm344, %v110, 0
    %v1644 = vsel %vm344, %v111, 0
    %1646 = vmatprep.subr.mxu0 0.0
    %1647 = vmatpush1.xpose.msra.mxu0 %v1641
    %1648 = vmatprep.subr.mxu0 0.0
    %1649 = vmatpush1.xpose.msra.mxu0 %v1644
    %1650 = vmatprep.subr.mxu0 0.0
    %1651 = vmatpush1.xpose.msra.mxu0 0.0
    %1652 = vmatprep.subr.mxu0 0.0
    %1653 = vmatpush1.xpose.msra.mxu0 0.0
    %1654 = vmatprep.subr.mxu0 0.0
    %1655 = vmatpush1.xpose.msra.mxu0 0.0
    %1656 = vmatprep.subr.mxu0 0.0
    %1657 = vmatpush1.xpose.msra.mxu0 0.0
    %1658 = vmatprep.subr.mxu0 0.0
    %1659 = vmatpush1.xpose.msra.mxu0 0.0
    %1660 = vmatprep.subr.mxu0 0.0
    %1661 = vmatpush1.xpose.msra.mxu0 0.0
    %1662 = vmatprep.subr.mxu0 0.0
    %1663 = vmatpush1.xpose.msra.mxu0 0.0
    %1664 = vmatprep.subr.mxu0 0.0
    %1665 = vmatpush1.xpose.msra.mxu0 0.0
    %1666 = vmatprep.subr.mxu0 0.0
    %1667 = vmatpush1.xpose.msra.mxu0 0.0
    %1668 = vmatprep.subr.mxu0 0.0
    %1669 = vmatpush1.xpose.msra.mxu0 0.0
    %1670 = vmatprep.subr.mxu0 0.0
    %1671 = vmatpush1.xpose.msra.mxu0 0.0
    %1672 = vmatprep.subr.mxu0 0.0
    %1673 = vmatpush1.xpose.msra.mxu0 0.0
    %1674 = vmatprep.subr.mxu0 0.0
    %1675 = vmatpush1.xpose.msra.mxu0 0.0
    %1676 = vmatprep.subr.mxu0 0.0
    %1677 = vmatpush1.xpose.msra.mxu0 0.0
    %1678 = vmatprep.subr.mxu0 0.0
    %1679 = vmatpush1.xpose.msra.mxu0 0.0
    %1680 = vmatprep.subr.mxu0 0.0
    %1681 = vmatpush1.xpose.msra.mxu0 0.0
    %1682 = vmatprep.subr.mxu0 0.0
    %1683 = vmatpush1.xpose.msra.mxu0 0.0
    %1684 = vmatprep.subr.mxu0 0.0
    %1685 = vmatpush1.xpose.msra.mxu0 0.0
    %1686 = vmatprep.subr.mxu0 0.0
    %1687 = vmatpush1.xpose.msra.mxu0 0.0
    %1688 = vmatprep.subr.mxu0 0.0
    %1689 = vmatpush1.xpose.msra.mxu0 0.0
    %1690 = vmatprep.subr.mxu0 0.0
    %1691 = vmatpush1.xpose.msra.mxu0 0.0
    %1692 = vmatprep.subr.mxu0 0.0
    %1693 = vmatpush1.xpose.msra.mxu0 0.0
    %1694 = vmatprep.subr.mxu0 0.0
    %1695 = vmatpush1.xpose.msra.mxu0 0.0
    %1696 = vmatprep.subr.mxu0 0.0
    %1697 = vmatpush1.xpose.msra.mxu0 0.0
    %1698 = vmatprep.subr.mxu0 0.0
    %1699 = vmatpush1.xpose.msra.mxu0 0.0
    %1700 = vmatprep.subr.mxu0 0.0
    %1701 = vmatpush1.xpose.msra.mxu0 0.0
    %1702 = vmatprep.subr.mxu0 0.0
    %1703 = vmatpush1.xpose.msra.mxu0 0.0
    %1704 = vmatprep.subr.mxu0 0.0
    %1705 = vmatpush1.xpose.msra.mxu0 0.0
    %1706 = vmatprep.subr.mxu0 0.0
    %1707 = vmatpush1.xpose.msra.mxu0 0.0
    %1708 = vmatprep.subr.mxu0 0.0
    %1709 = vmatpush1.xpose.msra.mxu0 0.0
    %1710 = vmatprep.mubr.f32.mxu0 0.0
    %1711 = vmatmul.mubr.f32.gmra.mrb[0].mxu0 %v346
    %v1712 = vpop.f32.mrb[0].mxu0
    %v1713 = vadd.f32 %v315, %v1712
    %v1714 = vpop.f32.mrb[0].mxu0
    %1715 = vdwg.mxu0
    %v1717 = vsel %vm344, %v112, 0
    %v1720 = vsel %vm344, %v113, 0
    %1722 = vmatprep.subr.mxu0 0.0
    %1723 = vmatpush1.xpose.msra.mxu0 %v1717
    %1724 = vmatprep.subr.mxu0 0.0
    %1725 = vmatpush1.xpose.msra.mxu0 %v1720
    %1726 = vmatprep.subr.mxu0 0.0
    %1727 = vmatpush1.xpose.msra.mxu0 0.0
    %1728 = vmatprep.subr.mxu0 0.0
    %1729 = vmatpush1.xpose.msra.mxu0 0.0
    %1730 = vmatprep.subr.mxu0 0.0
    %1731 = vmatpush1.xpose.msra.mxu0 0.0
    %1732 = vmatprep.subr.mxu0 0.0
    %1733 = vmatpush1.xpose.msra.mxu0 0.0
    %1734 = vmatprep.subr.mxu0 0.0
    %1735 = vmatpush1.xpose.msra.mxu0 0.0
    %1736 = vmatprep.subr.mxu0 0.0
    %1737 = vmatpush1.xpose.msra.mxu0 0.0
    %1738 = vmatprep.subr.mxu0 0.0
    %1739 = vmatpush1.xpose.msra.mxu0 0.0
    %1740 = vmatprep.subr.mxu0 0.0
    %1741 = vmatpush1.xpose.msra.mxu0 0.0
    %1742 = vmatprep.subr.mxu0 0.0
    %1743 = vmatpush1.xpose.msra.mxu0 0.0
    %1744 = vmatprep.subr.mxu0 0.0
    %1745 = vmatpush1.xpose.msra.mxu0 0.0
    %1746 = vmatprep.subr.mxu0 0.0
    %1747 = vmatpush1.xpose.msra.mxu0 0.0
    %1748 = vmatprep.subr.mxu0 0.0
    %1749 = vmatpush1.xpose.msra.mxu0 0.0
    %1750 = vmatprep.subr.mxu0 0.0
    %1751 = vmatpush1.xpose.msra.mxu0 0.0
    %1752 = vmatprep.subr.mxu0 0.0
    %1753 = vmatpush1.xpose.msra.mxu0 0.0
    %1754 = vmatprep.subr.mxu0 0.0
    %1755 = vmatpush1.xpose.msra.mxu0 0.0
    %1756 = vmatprep.subr.mxu0 0.0
    %1757 = vmatpush1.xpose.msra.mxu0 0.0
    %1758 = vmatprep.subr.mxu0 0.0
    %1759 = vmatpush1.xpose.msra.mxu0 0.0
    %1760 = vmatprep.subr.mxu0 0.0
    %1761 = vmatpush1.xpose.msra.mxu0 0.0
    %1762 = vmatprep.subr.mxu0 0.0
    %1763 = vmatpush1.xpose.msra.mxu0 0.0
    %1764 = vmatprep.subr.mxu0 0.0
    %1765 = vmatpush1.xpose.msra.mxu0 0.0
    %1766 = vmatprep.subr.mxu0 0.0
    %1767 = vmatpush1.xpose.msra.mxu0 0.0
    %1768 = vmatprep.subr.mxu0 0.0
    %1769 = vmatpush1.xpose.msra.mxu0 0.0
    %1770 = vmatprep.subr.mxu0 0.0
    %1771 = vmatpush1.xpose.msra.mxu0 0.0
    %1772 = vmatprep.subr.mxu0 0.0
    %1773 = vmatpush1.xpose.msra.mxu0 0.0
    %1774 = vmatprep.subr.mxu0 0.0
    %1775 = vmatpush1.xpose.msra.mxu0 0.0
    %1776 = vmatprep.subr.mxu0 0.0
    %1777 = vmatpush1.xpose.msra.mxu0 0.0
    %1778 = vmatprep.subr.mxu0 0.0
    %1779 = vmatpush1.xpose.msra.mxu0 0.0
    %1780 = vmatprep.subr.mxu0 0.0
    %1781 = vmatpush1.xpose.msra.mxu0 0.0
    %1782 = vmatprep.subr.mxu0 0.0
    %1783 = vmatpush1.xpose.msra.mxu0 0.0
    %1784 = vmatprep.subr.mxu0 0.0
    %1785 = vmatpush1.xpose.msra.mxu0 0.0
    %1786 = vmatprep.mubr.f32.mxu0 0.0
    %1787 = vmatmul.mubr.f32.gmra.mrb[0].mxu0 %v346
    %v1788 = vpop.f32.mrb[0].mxu0
    %v1789 = vadd.f32 %v319, %v1788
    %v1790 = vpop.f32.mrb[0].mxu0
    %1791 = vdwg.mxu0
    %v1793 = vsel %vm344, %v114, 0
    %v1796 = vsel %vm344, %v115, 0
    %1798 = vmatprep.subr.mxu0 0.0
    %1799 = vmatpush1.xpose.msra.mxu0 %v1793
    %1800 = vmatprep.subr.mxu0 0.0
    %1801 = vmatpush1.xpose.msra.mxu0 %v1796
    %1802 = vmatprep.subr.mxu0 0.0
    %1803 = vmatpush1.xpose.msra.mxu0 0.0
    %1804 = vmatprep.subr.mxu0 0.0
    %1805 = vmatpush1.xpose.msra.mxu0 0.0
    %1806 = vmatprep.subr.mxu0 0.0
    %1807 = vmatpush1.xpose.msra.mxu0 0.0
    %1808 = vmatprep.subr.mxu0 0.0
    %1809 = vmatpush1.xpose.msra.mxu0 0.0
    %1810 = vmatprep.subr.mxu0 0.0
    %1811 = vmatpush1.xpose.msra.mxu0 0.0
    %1812 = vmatprep.subr.mxu0 0.0
    %1813 = vmatpush1.xpose.msra.mxu0 0.0
    %1814 = vmatprep.subr.mxu0 0.0
    %1815 = vmatpush1.xpose.msra.mxu0 0.0
    %1816 = vmatprep.subr.mxu0 0.0
    %1817 = vmatpush1.xpose.msra.mxu0 0.0
    %1818 = vmatprep.subr.mxu0 0.0
    %1819 = vmatpush1.xpose.msra.mxu0 0.0
    %1820 = vmatprep.subr.mxu0 0.0
    %1821 = vmatpush1.xpose.msra.mxu0 0.0
    %1822 = vmatprep.subr.mxu0 0.0
    %1823 = vmatpush1.xpose.msra.mxu0 0.0
    %1824 = vmatprep.subr.mxu0 0.0
    %1825 = vmatpush1.xpose.msra.mxu0 0.0
    %1826 = vmatprep.subr.mxu0 0.0
    %1827 = vmatpush1.xpose.msra.mxu0 0.0
    %1828 = vmatprep.subr.mxu0 0.0
    %1829 = vmatpush1.xpose.msra.mxu0 0.0
    %1830 = vmatprep.subr.mxu0 0.0
    %1831 = vmatpush1.xpose.msra.mxu0 0.0
    %1832 = vmatprep.subr.mxu0 0.0
    %1833 = vmatpush1.xpose.msra.mxu0 0.0
    %1834 = vmatprep.subr.mxu0 0.0
    %1835 = vmatpush1.xpose.msra.mxu0 0.0
    %1836 = vmatprep.subr.mxu0 0.0
    %1837 = vmatpush1.xpose.msra.mxu0 0.0
    %1838 = vmatprep.subr.mxu0 0.0
    %1839 = vmatpush1.xpose.msra.mxu0 0.0
    %1840 = vmatprep.subr.mxu0 0.0
    %1841 = vmatpush1.xpose.msra.mxu0 0.0
    %1842 = vmatprep.subr.mxu0 0.0
    %1843 = vmatpush1.xpose.msra.mxu0 0.0
    %1844 = vmatprep.subr.mxu0 0.0
    %1845 = vmatpush1.xpose.msra.mxu0 0.0
    %1846 = vmatprep.subr.mxu0 0.0
    %1847 = vmatpush1.xpose.msra.mxu0 0.0
    %1848 = vmatprep.subr.mxu0 0.0
    %1849 = vmatpush1.xpose.msra.mxu0 0.0
    %1850 = vmatprep.subr.mxu0 0.0
    %1851 = vmatpush1.xpose.msra.mxu0 0.0
    %1852 = vmatprep.subr.mxu0 0.0
    %1853 = vmatpush1.xpose.msra.mxu0 0.0
    %1854 = vmatprep.subr.mxu0 0.0
    %1855 = vmatpush1.xpose.msra.mxu0 0.0
    %1856 = vmatprep.subr.mxu0 0.0
    %1857 = vmatpush1.xpose.msra.mxu0 0.0
    %1858 = vmatprep.subr.mxu0 0.0
    %1859 = vmatpush1.xpose.msra.mxu0 0.0
    %1860 = vmatprep.subr.mxu0 0.0
    %1861 = vmatpush1.xpose.msra.mxu0 0.0
    %1862 = vmatprep.mubr.f32.mxu0 0.0
    %1863 = vmatmul.mubr.f32.gmra.mrb[0].mxu0 %v346
    %v1864 = vpop.f32.mrb[0].mxu0
    %v1865 = vadd.f32 %v323, %v1864
    %v1866 = vpop.f32.mrb[0].mxu0
    %1867 = vdwg.mxu0
    %vm1868 = vcmp.ge.f32.partialorder %v421, 0.0
    %vm1869 = vcmp.ge.f32.partialorder %v497, 0.0
    %vm1870 = vcmp.ge.f32.partialorder %v573, 0.0
    %vm1871 = vcmp.ge.f32.partialorder %v649, 0.0
    %vm1872 = vcmp.ge.f32.partialorder %v725, 0.0
    %vm1873 = vcmp.ge.f32.partialorder %v801, 0.0
    %vm1874 = vcmp.ge.f32.partialorder %v877, 0.0
    %vm1875 = vcmp.ge.f32.partialorder %v953, 0.0
    %vm1876 = vcmp.ge.f32.partialorder %v1029, 0.0
    %vm1877 = vcmp.ge.f32.partialorder %v1105, 0.0
    %vm1878 = vcmp.ge.f32.partialorder %v1181, 0.0
    %vm1879 = vcmp.ge.f32.partialorder %v1257, 0.0
    %vm1880 = vcmp.ge.f32.partialorder %v1333, 0.0
    %vm1881 = vcmp.ge.f32.partialorder %v1409, 0.0
    %vm1882 = vcmp.ge.f32.partialorder %v1485, 0.0
    %vm1883 = vcmp.ge.f32.partialorder %v1561, 0.0
    %vm1884 = vcmp.ge.f32.partialorder %v1637, 0.0
    %vm1885 = vcmp.ge.f32.partialorder %v1713, 0.0
    %vm1886 = vcmp.ge.f32.partialorder %v1789, 0.0
    %vm1887 = vcmp.ge.f32.partialorder %v1865, 0.0
    %v1888 = vld [vmem:[%s3] sm:$0xff]
    %v1889 = vld [vmem:[%s3 + $0x8] sm:$0xff]
    %v1890 = vld [vmem:[%s3 + $0x10] sm:$0xf]
    %v1894 = vcombine.high %v1888, %v1888
    %v1896 = vunpack.c.l.s4 1966171168
    %v1897 = vunpack.c.0.s8 %v1896
    %v1898 = vlaneseq
    %v1899 = vshrl.u32 %v1898, 7
    %v1900 = vsub.s32 %v1897, %v1899
    %v1901 = vrot.slane %v1888, %v1900
    %v1903 = vunpack.c.l.s4 1966171168
    %v1904 = vunpack.c.0.s8 %v1903
    %v1905 = vlaneseq
    %v1906 = vshrl.u32 %v1905, 7
    %v1907 = vsub.s32 %v1904, %v1906
    %v1908 = vrot.slane %v1894, %v1907
    %v1909 = vcombine.high %v1901, %v1901
    %v1910 = vcombine.high %v1908, %v1908
    %v1912 = vunpack.c.l.s4 1966171168
    %v1913 = vunpack.c.0.s8 %v1912
    %v1914 = vlaneseq
    %v1915 = vshrl.u32 %v1914, 7
    %v1916 = vsub.s32 %v1913, %v1915
    %v1917 = vrot.slane %v1901, %v1916
    %v1919 = vunpack.c.l.s4 1966171168
    %v1920 = vunpack.c.0.s8 %v1919
    %v1921 = vlaneseq
    %v1922 = vshrl.u32 %v1921, 7
    %v1923 = vsub.s32 %v1920, %v1922
    %v1924 = vrot.slane %v1908, %v1923
    %v1926 = vunpack.c.l.s4 1966171168
    %v1927 = vunpack.c.0.s8 %v1926
    %v1928 = vlaneseq
    %v1929 = vshrl.u32 %v1928, 7
    %v1930 = vsub.s32 %v1927, %v1929
    %v1931 = vrot.slane %v1909, %v1930
    %v1933 = vunpack.c.l.s4 1966171168
    %v1934 = vunpack.c.0.s8 %v1933
    %v1935 = vlaneseq
    %v1936 = vshrl.u32 %v1935, 7
    %v1937 = vsub.s32 %v1934, %v1936
    %v1938 = vrot.slane %v1910, %v1937
    %v1939 = vcombine.high %v1917, %v1917
    %v1940 = vcombine.high %v1924, %v1924
    %v1941 = vcombine.high %v1931, %v1931
    %v1942 = vcombine.high %v1938, %v1938
    %v1943 = vcombine.high %v1889, %v1889
    %v1945 = vunpack.c.l.s4 1966171168
    %v1946 = vunpack.c.0.s8 %v1945
    %v1947 = vlaneseq
    %v1948 = vshrl.u32 %v1947, 7
    %v1949 = vsub.s32 %v1946, %v1948
    %v1950 = vrot.slane %v1889, %v1949
    %v1952 = vunpack.c.l.s4 1966171168
    %v1953 = vunpack.c.0.s8 %v1952
    %v1954 = vlaneseq
    %v1955 = vshrl.u32 %v1954, 7
    %v1956 = vsub.s32 %v1953, %v1955
    %v1957 = vrot.slane %v1943, %v1956
    %v1958 = vcombine.high %v1950, %v1950
    %v1959 = vcombine.high %v1957, %v1957
    %v1961 = vunpack.c.l.s4 1966171168
    %v1962 = vunpack.c.0.s8 %v1961
    %v1963 = vlaneseq
    %v1964 = vshrl.u32 %v1963, 7
    %v1965 = vsub.s32 %v1962, %v1964
    %v1966 = vrot.slane %v1950, %v1965
    %v1968 = vunpack.c.l.s4 1966171168
    %v1969 = vunpack.c.0.s8 %v1968
    %v1970 = vlaneseq
    %v1971 = vshrl.u32 %v1970, 7
    %v1972 = vsub.s32 %v1969, %v1971
    %v1973 = vrot.slane %v1957, %v1972
    %v1975 = vunpack.c.l.s4 1966171168
    %v1976 = vunpack.c.0.s8 %v1975
    %v1977 = vlaneseq
    %v1978 = vshrl.u32 %v1977, 7
    %v1979 = vsub.s32 %v1976, %v1978
    %v1980 = vrot.slane %v1958, %v1979
    %v1982 = vunpack.c.l.s4 1966171168
    %v1983 = vunpack.c.0.s8 %v1982
    %v1984 = vlaneseq
    %v1985 = vshrl.u32 %v1984, 7
    %v1986 = vsub.s32 %v1983, %v1985
    %v1987 = vrot.slane %v1959, %v1986
    %v1988 = vcombine.high %v1966, %v1966
    %v1989 = vcombine.high %v1973, %v1973
    %v1990 = vcombine.high %v1980, %v1980
    %v1991 = vcombine.high %v1987, %v1987
    %v1993 = vunpack.c.l.s4 1966171168
    %v1994 = vunpack.c.0.s8 %v1993
    %v1995 = vlaneseq
    %v1996 = vshrl.u32 %v1995, 7
    %v1997 = vsub.s32 %v1994, %v1996
    %v1998 = vrot.slane %v1890, %v1997
    %v1999 = vcombine.high %v1998, %v1998
    %v2001 = vunpack.c.l.s4 1966171168
    %v2002 = vunpack.c.0.s8 %v2001
    %v2003 = vlaneseq
    %v2004 = vshrl.u32 %v2003, 7
    %v2005 = vsub.s32 %v2002, %v2004
    %v2006 = vrot.slane %v1998, %v2005
    %v2008 = vunpack.c.l.s4 1966171168
    %v2009 = vunpack.c.0.s8 %v2008
    %v2010 = vlaneseq
    %v2011 = vshrl.u32 %v2010, 7
    %v2012 = vsub.s32 %v2009, %v2011
    %v2013 = vrot.slane %v1999, %v2012
    %v2014 = vcombine.high %v2006, %v2006
    %v2015 = vcombine.high %v2013, %v2013
    %v2016 = vlaneseq
    %v2017 = vshrl.u32 %v2016, 7
    %v2018 = vsub.s32 0, %v2017
    %v2019 = vrot.slane %v1917, %v2018
    %v2020 = vlaneseq
    %v2021 = vshrl.u32 %v2020, 7
    %v2022 = vsub.s32 0, %v2021
    %v2023 = vrot.slane %v1931, %v2022
    %v2024 = vlaneseq
    %v2025 = vshrl.u32 %v2024, 7
    %v2026 = vsub.s32 0, %v2025
    %v2027 = vrot.slane %v1939, %v2026
    %v2028 = vlaneseq
    %v2029 = vshrl.u32 %v2028, 7
    %v2030 = vsub.s32 0, %v2029
    %v2031 = vrot.slane %v1941, %v2030
    %v2032 = vlaneseq
    %v2033 = vshrl.u32 %v2032, 7
    %v2034 = vsub.s32 0, %v2033
    %v2035 = vrot.slane %v1924, %v2034
    %v2036 = vlaneseq
    %v2037 = vshrl.u32 %v2036, 7
    %v2038 = vsub.s32 0, %v2037
    %v2039 = vrot.slane %v1938, %v2038
    %v2040 = vlaneseq
    %v2041 = vshrl.u32 %v2040, 7
    %v2042 = vsub.s32 0, %v2041
    %v2043 = vrot.slane %v1940, %v2042
    %v2044 = vlaneseq
    %v2045 = vshrl.u32 %v2044, 7
    %v2046 = vsub.s32 0, %v2045
    %v2047 = vrot.slane %v1942, %v2046
    %v2048 = vlaneseq
    %v2049 = vshrl.u32 %v2048, 7
    %v2050 = vsub.s32 0, %v2049
    %v2051 = vrot.slane %v1966, %v2050
    %v2052 = vlaneseq
    %v2053 = vshrl.u32 %v2052, 7
    %v2054 = vsub.s32 0, %v2053
    %v2055 = vrot.slane %v1980, %v2054
    %v2056 = vlaneseq
    %v2057 = vshrl.u32 %v2056, 7
    %v2058 = vsub.s32 0, %v2057
    %v2059 = vrot.slane %v1988, %v2058
    %v2060 = vlaneseq
    %v2061 = vshrl.u32 %v2060, 7
    %v2062 = vsub.s32 0, %v2061
    %v2063 = vrot.slane %v1990, %v2062
    %v2064 = vlaneseq
    %v2065 = vshrl.u32 %v2064, 7
    %v2066 = vsub.s32 0, %v2065
    %v2067 = vrot.slane %v1973, %v2066
    %v2068 = vlaneseq
    %v2069 = vshrl.u32 %v2068, 7
    %v2070 = vsub.s32 0, %v2069
    %v2071 = vrot.slane %v1987, %v2070
    %v2072 = vlaneseq
    %v2073 = vshrl.u32 %v2072, 7
    %v2074 = vsub.s32 0, %v2073
    %v2075 = vrot.slane %v1989, %v2074
    %v2076 = vlaneseq
    %v2077 = vshrl.u32 %v2076, 7
    %v2078 = vsub.s32 0, %v2077
    %v2079 = vrot.slane %v1991, %v2078
    %v2080 = vlaneseq
    %v2081 = vshrl.u32 %v2080, 7
    %v2082 = vsub.s32 0, %v2081
    %v2083 = vrot.slane %v2006, %v2082
    %v2084 = vlaneseq
    %v2085 = vshrl.u32 %v2084, 7
    %v2086 = vsub.s32 0, %v2085
    %v2087 = vrot.slane %v2013, %v2086
    %v2088 = vlaneseq
    %v2089 = vshrl.u32 %v2088, 7
    %v2090 = vsub.s32 0, %v2089
    %v2091 = vrot.slane %v2014, %v2090
    %v2092 = vlaneseq
    %v2093 = vshrl.u32 %v2092, 7
    %v2094 = vsub.s32 0, %v2093
    %v2095 = vrot.slane %v2015, %v2094
    %v2116 = vmul.f32 %v2019, %v421
    %v2117 = vmul.f32 %v2023, %v497
    %v2118 = vmul.f32 %v2027, %v573
    %v2119 = vmul.f32 %v2031, %v649
    %v2120 = vmul.f32 %v2035, %v725
    %v2121 = vmul.f32 %v2039, %v801
    %v2122 = vmul.f32 %v2043, %v877
    %v2123 = vmul.f32 %v2047, %v953
    %v2124 = vmul.f32 %v2051, %v1029
    %v2125 = vmul.f32 %v2055, %v1105
    %v2126 = vmul.f32 %v2059, %v1181
    %v2127 = vmul.f32 %v2063, %v1257
    %v2128 = vmul.f32 %v2067, %v1333
    %v2129 = vmul.f32 %v2071, %v1409
    %v2130 = vmul.f32 %v2075, %v1485
    %v2131 = vmul.f32 %v2079, %v1561
    %v2132 = vmul.f32 %v2083, %v1637
    %v2133 = vmul.f32 %v2087, %v1713
    %v2134 = vmul.f32 %v2091, %v1789
    %v2135 = vmul.f32 %v2095, %v1865
    %v2136 = vsel %vm1868, %v421, %v2116
    %v2137 = vsel %vm1869, %v497, %v2117
    %v2138 = vsel %vm1870, %v573, %v2118
    %v2139 = vsel %vm1871, %v649, %v2119
    %v2140 = vsel %vm1872, %v725, %v2120
    %v2141 = vsel %vm1873, %v801, %v2121
    %v2142 = vsel %vm1874, %v877, %v2122
    %v2143 = vsel %vm1875, %v953, %v2123
    %v2144 = vsel %vm1876, %v1029, %v2124
    %v2145 = vsel %vm1877, %v1105, %v2125
    %v2146 = vsel %vm1878, %v1181, %v2126
    %v2147 = vsel %vm1879, %v1257, %v2127
    %v2148 = vsel %vm1880, %v1333, %v2128
    %v2149 = vsel %vm1881, %v1409, %v2129
    %v2150 = vsel %vm1882, %v1485, %v2130
    %v2151 = vsel %vm1883, %v1561, %v2131
    %v2152 = vsel %vm1884, %v1637, %v2132
    %v2153 = vsel %vm1885, %v1713, %v2133
    %v2154 = vsel %vm1886, %v1789, %v2134
    %v2155 = vsel %vm1887, %v1865, %v2135
    %v2156 = vld [vmem:[#allocation2] sm:$0xff]
    %v2157 = vld [vmem:[#allocation2 + $0x8] sm:$0xff]
    %v2158 = vld [vmem:[#allocation2 + $0x10] sm:$0xff]
    %v2159 = vld [vmem:[#allocation2 + $0x18] sm:$0xff]
    %v2160 = vld [vmem:[#allocation2 + $0x20] sm:$0xff]
    %v2161 = vld [vmem:[#allocation2 + $0x28] sm:$0xff]
    %v2162 = vld [vmem:[#allocation2 + $0x30] sm:$0xff]
    %v2163 = vld [vmem:[#allocation2 + $0x38] sm:$0xff]
    %v2164 = vld [vmem:[#allocation2 + $0x40] sm:$0xff]
    %v2165 = vld [vmem:[#allocation2 + $0x48] sm:$0xff]
    %v2166 = vld [vmem:[#allocation2 + $0x50] sm:$0xff]
    %v2167 = vld [vmem:[#allocation2 + $0x58] sm:$0xff]
    %v2168 = vld [vmem:[#allocation2 + $0x60] sm:$0xff]
    %v2169 = vld [vmem:[#allocation2 + $0x68] sm:$0xff]
    %v2170 = vld [vmem:[#allocation2 + $0x70] sm:$0xff]
    %v2171 = vld [vmem:[#allocation2 + $0x78] sm:$0xff]
    %v2172 = vld [vmem:[#allocation2 + $0x80] sm:$0xff]
    %v2173 = vld [vmem:[#allocation2 + $0x88] sm:$0xff]
    %v2174 = vld [vmem:[#allocation2 + $0x90] sm:$0xff]
    %v2175 = vld [vmem:[#allocation2 + $0x98] sm:$0xff]
    %v2176 = vld [vmem:[#allocation2 + $0xa0] sm:$0xff]
    %v2177 = vld [vmem:[#allocation2 + $0xa8] sm:$0xff]
    %v2178 = vld [vmem:[#allocation2 + $0xb0] sm:$0xff]
    %v2179 = vld [vmem:[#allocation2 + $0xb8] sm:$0xff]
    %v2180 = vld [vmem:[#allocation2 + $0xc0] sm:$0xff]
    %v2181 = vld [vmem:[#allocation2 + $0xc8] sm:$0xff]
    %v2182 = vld [vmem:[#allocation2 + $0xd0] sm:$0xff]
    %v2183 = vld [vmem:[#allocation2 + $0xd8] sm:$0xff]
    %v2184 = vld [vmem:[#allocation2 + $0xe0] sm:$0xff]
    %v2185 = vld [vmem:[#allocation2 + $0xe8] sm:$0xff]
    %v2186 = vld [vmem:[#allocation2 + $0xf0] sm:$0xff]
    %v2187 = vld [vmem:[#allocation2 + $0xf8] sm:$0xff]
    %v2188 = vld [vmem:[#allocation2 + $0x100] sm:$0xff]
    %v2189 = vld [vmem:[#allocation2 + $0x108] sm:$0xff]
    %v2190 = vld [vmem:[#allocation2 + $0x110] sm:$0xff]
    %v2191 = vld [vmem:[#allocation2 + $0x118] sm:$0xff]
    %v2192 = vld [vmem:[#allocation2 + $0x120] sm:$0xff]
    %v2193 = vld [vmem:[#allocation2 + $0x128] sm:$0xff]
    %v2194 = vld [vmem:[#allocation2 + $0x130] sm:$0xff]
    %v2195 = vld [vmem:[#allocation2 + $0x138] sm:$0xff]
    %v2196 = vld [vmem:[%s5] sm:$0xff]
    %v2197 = vld [vmem:[%s5 + $0x8] sm:$0xff]
    %v2198 = vld [vmem:[%s5 + $0x10] sm:$0xf]
    %v2202 = vcombine.high %v2196, %v2196
    %v2204 = vunpack.c.l.s4 1966171168
    %v2205 = vunpack.c.0.s8 %v2204
    %v2206 = vlaneseq
    %v2207 = vshrl.u32 %v2206, 7
    %v2208 = vsub.s32 %v2205, %v2207
    %v2209 = vrot.slane %v2196, %v2208
    %v2211 = vunpack.c.l.s4 1966171168
    %v2212 = vunpack.c.0.s8 %v2211
    %v2213 = vlaneseq
    %v2214 = vshrl.u32 %v2213, 7
    %v2215 = vsub.s32 %v2212, %v2214
    %v2216 = vrot.slane %v2202, %v2215
    %v2217 = vcombine.high %v2209, %v2209
    %v2218 = vcombine.high %v2216, %v2216
    %v2220 = vunpack.c.l.s4 1966171168
    %v2221 = vunpack.c.0.s8 %v2220
    %v2222 = vlaneseq
    %v2223 = vshrl.u32 %v2222, 7
    %v2224 = vsub.s32 %v2221, %v2223
    %v2225 = vrot.slane %v2209, %v2224
    %v2227 = vunpack.c.l.s4 1966171168
    %v2228 = vunpack.c.0.s8 %v2227
    %v2229 = vlaneseq
    %v2230 = vshrl.u32 %v2229, 7
    %v2231 = vsub.s32 %v2228, %v2230
    %v2232 = vrot.slane %v2216, %v2231
    %v2234 = vunpack.c.l.s4 1966171168
    %v2235 = vunpack.c.0.s8 %v2234
    %v2236 = vlaneseq
    %v2237 = vshrl.u32 %v2236, 7
    %v2238 = vsub.s32 %v2235, %v2237
    %v2239 = vrot.slane %v2217, %v2238
    %v2241 = vunpack.c.l.s4 1966171168
    %v2242 = vunpack.c.0.s8 %v2241
    %v2243 = vlaneseq
    %v2244 = vshrl.u32 %v2243, 7
    %v2245 = vsub.s32 %v2242, %v2244
    %v2246 = vrot.slane %v2218, %v2245
    %v2247 = vcombine.high %v2225, %v2225
    %v2248 = vcombine.high %v2232, %v2232
    %v2249 = vcombine.high %v2239, %v2239
    %v2250 = vcombine.high %v2246, %v2246
    %v2251 = vcombine.high %v2197, %v2197
    %v2253 = vunpack.c.l.s4 1966171168
    %v2254 = vunpack.c.0.s8 %v2253
    %v2255 = vlaneseq
    %v2256 = vshrl.u32 %v2255, 7
    %v2257 = vsub.s32 %v2254, %v2256
    %v2258 = vrot.slane %v2197, %v2257
    %v2260 = vunpack.c.l.s4 1966171168
    %v2261 = vunpack.c.0.s8 %v2260
    %v2262 = vlaneseq
    %v2263 = vshrl.u32 %v2262, 7
    %v2264 = vsub.s32 %v2261, %v2263
    %v2265 = vrot.slane %v2251, %v2264
    %v2266 = vcombine.high %v2258, %v2258
    %v2267 = vcombine.high %v2265, %v2265
    %v2269 = vunpack.c.l.s4 1966171168
    %v2270 = vunpack.c.0.s8 %v2269
    %v2271 = vlaneseq
    %v2272 = vshrl.u32 %v2271, 7
    %v2273 = vsub.s32 %v2270, %v2272
    %v2274 = vrot.slane %v2258, %v2273
    %v2276 = vunpack.c.l.s4 1966171168
    %v2277 = vunpack.c.0.s8 %v2276
    %v2278 = vlaneseq
    %v2279 = vshrl.u32 %v2278, 7
    %v2280 = vsub.s32 %v2277, %v2279
    %v2281 = vrot.slane %v2265, %v2280
    %v2283 = vunpack.c.l.s4 1966171168
    %v2284 = vunpack.c.0.s8 %v2283
    %v2285 = vlaneseq
    %v2286 = vshrl.u32 %v2285, 7
    %v2287 = vsub.s32 %v2284, %v2286
    %v2288 = vrot.slane %v2266, %v2287
    %v2290 = vunpack.c.l.s4 1966171168
    %v2291 = vunpack.c.0.s8 %v2290
    %v2292 = vlaneseq
    %v2293 = vshrl.u32 %v2292, 7
    %v2294 = vsub.s32 %v2291, %v2293
    %v2295 = vrot.slane %v2267, %v2294
    %v2296 = vcombine.high %v2274, %v2274
    %v2297 = vcombine.high %v2281, %v2281
    %v2298 = vcombine.high %v2288, %v2288
    %v2299 = vcombine.high %v2295, %v2295
    %v2301 = vunpack.c.l.s4 1966171168
    %v2302 = vunpack.c.0.s8 %v2301
    %v2303 = vlaneseq
    %v2304 = vshrl.u32 %v2303, 7
    %v2305 = vsub.s32 %v2302, %v2304
    %v2306 = vrot.slane %v2198, %v2305
    %v2307 = vcombine.high %v2306, %v2306
    %v2309 = vunpack.c.l.s4 1966171168
    %v2310 = vunpack.c.0.s8 %v2309
    %v2311 = vlaneseq
    %v2312 = vshrl.u32 %v2311, 7
    %v2313 = vsub.s32 %v2310, %v2312
    %v2314 = vrot.slane %v2306, %v2313
    %v2316 = vunpack.c.l.s4 1966171168
    %v2317 = vunpack.c.0.s8 %v2316
    %v2318 = vlaneseq
    %v2319 = vshrl.u32 %v2318, 7
    %v2320 = vsub.s32 %v2317, %v2319
    %v2321 = vrot.slane %v2307, %v2320
    %v2322 = vcombine.high %v2314, %v2314
    %v2323 = vcombine.high %v2321, %v2321
    %v2324 = vlaneseq
    %v2325 = vshrl.u32 %v2324, 7
    %v2326 = vsub.s32 0, %v2325
    %v2327 = vrot.slane %v2225, %v2326
    %v2328 = vlaneseq
    %v2329 = vshrl.u32 %v2328, 7
    %v2330 = vsub.s32 0, %v2329
    %v2331 = vrot.slane %v2239, %v2330
    %v2332 = vlaneseq
    %v2333 = vshrl.u32 %v2332, 7
    %v2334 = vsub.s32 0, %v2333
    %v2335 = vrot.slane %v2247, %v2334
    %v2336 = vlaneseq
    %v2337 = vshrl.u32 %v2336, 7
    %v2338 = vsub.s32 0, %v2337
    %v2339 = vrot.slane %v2249, %v2338
    %v2340 = vlaneseq
    %v2341 = vshrl.u32 %v2340, 7
    %v2342 = vsub.s32 0, %v2341
    %v2343 = vrot.slane %v2232, %v2342
    %v2344 = vlaneseq
    %v2345 = vshrl.u32 %v2344, 7
    %v2346 = vsub.s32 0, %v2345
    %v2347 = vrot.slane %v2246, %v2346
    %v2348 = vlaneseq
    %v2349 = vshrl.u32 %v2348, 7
    %v2350 = vsub.s32 0, %v2349
    %v2351 = vrot.slane %v2248, %v2350
    %v2352 = vlaneseq
    %v2353 = vshrl.u32 %v2352, 7
    %v2354 = vsub.s32 0, %v2353
    %v2355 = vrot.slane %v2250, %v2354
    %v2356 = vlaneseq
    %v2357 = vshrl.u32 %v2356, 7
    %v2358 = vsub.s32 0, %v2357
    %v2359 = vrot.slane %v2274, %v2358
    %v2360 = vlaneseq
    %v2361 = vshrl.u32 %v2360, 7
    %v2362 = vsub.s32 0, %v2361
    %v2363 = vrot.slane %v2288, %v2362
    %v2364 = vlaneseq
    %v2365 = vshrl.u32 %v2364, 7
    %v2366 = vsub.s32 0, %v2365
    %v2367 = vrot.slane %v2296, %v2366
    %v2368 = vlaneseq
    %v2369 = vshrl.u32 %v2368, 7
    %v2370 = vsub.s32 0, %v2369
    %v2371 = vrot.slane %v2298, %v2370
    %v2372 = vlaneseq
    %v2373 = vshrl.u32 %v2372, 7
    %v2374 = vsub.s32 0, %v2373
    %v2375 = vrot.slane %v2281, %v2374
    %v2376 = vlaneseq
    %v2377 = vshrl.u32 %v2376, 7
    %v2378 = vsub.s32 0, %v2377
    %v2379 = vrot.slane %v2295, %v2378
    %v2380 = vlaneseq
    %v2381 = vshrl.u32 %v2380, 7
    %v2382 = vsub.s32 0, %v2381
    %v2383 = vrot.slane %v2297, %v2382
    %v2384 = vlaneseq
    %v2385 = vshrl.u32 %v2384, 7
    %v2386 = vsub.s32 0, %v2385
    %v2387 = vrot.slane %v2299, %v2386
    %v2388 = vlaneseq
    %v2389 = vshrl.u32 %v2388, 7
    %v2390 = vsub.s32 0, %v2389
    %v2391 = vrot.slane %v2314, %v2390
    %v2392 = vlaneseq
    %v2393 = vshrl.u32 %v2392, 7
    %v2394 = vsub.s32 0, %v2393
    %v2395 = vrot.slane %v2321, %v2394
    %v2396 = vlaneseq
    %v2397 = vshrl.u32 %v2396, 7
    %v2398 = vsub.s32 0, %v2397
    %v2399 = vrot.slane %v2322, %v2398
    %v2400 = vlaneseq
    %v2401 = vshrl.u32 %v2400, 7
    %v2402 = vsub.s32 0, %v2401
    %v2403 = vrot.slane %v2323, %v2402
    %v2425 = vsel %vm344, %v2136, 0
    %v2428 = vsel %vm344, %v2156, 0
    %v2431 = vsel %vm344, %v2157, 0
    %2433 = vmatprep.subr.mxu0 0.0
    %2434 = vmatpush1.xpose.msra.mxu0 %v2428
    %2435 = vmatprep.subr.mxu0 0.0
    %2436 = vmatpush1.xpose.msra.mxu0 %v2431
    %2437 = vmatprep.subr.mxu0 0.0
    %2438 = vmatpush1.xpose.msra.mxu0 0.0
    %2439 = vmatprep.subr.mxu0 0.0
    %2440 = vmatpush1.xpose.msra.mxu0 0.0
    %2441 = vmatprep.subr.mxu0 0.0
    %2442 = vmatpush1.xpose.msra.mxu0 0.0
    %2443 = vmatprep.subr.mxu0 0.0
    %2444 = vmatpush1.xpose.msra.mxu0 0.0
    %2445 = vmatprep.subr.mxu0 0.0
    %2446 = vmatpush1.xpose.msra.mxu0 0.0
    %2447 = vmatprep.subr.mxu0 0.0
    %2448 = vmatpush1.xpose.msra.mxu0 0.0
    %2449 = vmatprep.subr.mxu0 0.0
    %2450 = vmatpush1.xpose.msra.mxu0 0.0
    %2451 = vmatprep.subr.mxu0 0.0
    %2452 = vmatpush1.xpose.msra.mxu0 0.0
    %2453 = vmatprep.subr.mxu0 0.0
    %2454 = vmatpush1.xpose.msra.mxu0 0.0
    %2455 = vmatprep.subr.mxu0 0.0
    %2456 = vmatpush1.xpose.msra.mxu0 0.0
    %2457 = vmatprep.subr.mxu0 0.0
    %2458 = vmatpush1.xpose.msra.mxu0 0.0
    %2459 = vmatprep.subr.mxu0 0.0
    %2460 = vmatpush1.xpose.msra.mxu0 0.0
    %2461 = vmatprep.subr.mxu0 0.0
    %2462 = vmatpush1.xpose.msra.mxu0 0.0
    %2463 = vmatprep.subr.mxu0 0.0
    %2464 = vmatpush1.xpose.msra.mxu0 0.0
    %2465 = vmatprep.subr.mxu0 0.0
    %2466 = vmatpush1.xpose.msra.mxu0 0.0
    %2467 = vmatprep.subr.mxu0 0.0
    %2468 = vmatpush1.xpose.msra.mxu0 0.0
    %2469 = vmatprep.subr.mxu0 0.0
    %2470 = vmatpush1.xpose.msra.mxu0 0.0
    %2471 = vmatprep.subr.mxu0 0.0
    %2472 = vmatpush1.xpose.msra.mxu0 0.0
    %2473 = vmatprep.subr.mxu0 0.0
    %2474 = vmatpush1.xpose.msra.mxu0 0.0
    %2475 = vmatprep.subr.mxu0 0.0
    %2476 = vmatpush1.xpose.msra.mxu0 0.0
    %2477 = vmatprep.subr.mxu0 0.0
    %2478 = vmatpush1.xpose.msra.mxu0 0.0
    %2479 = vmatprep.subr.mxu0 0.0
    %2480 = vmatpush1.xpose.msra.mxu0 0.0
    %2481 = vmatprep.subr.mxu0 0.0
    %2482 = vmatpush1.xpose.msra.mxu0 0.0
    %2483 = vmatprep.subr.mxu0 0.0
    %2484 = vmatpush1.xpose.msra.mxu0 0.0
    %2485 = vmatprep.subr.mxu0 0.0
    %2486 = vmatpush1.xpose.msra.mxu0 0.0
    %2487 = vmatprep.subr.mxu0 0.0
    %2488 = vmatpush1.xpose.msra.mxu0 0.0
    %2489 = vmatprep.subr.mxu0 0.0
    %2490 = vmatpush1.xpose.msra.mxu0 0.0
    %2491 = vmatprep.subr.mxu0 0.0
    %2492 = vmatpush1.xpose.msra.mxu0 0.0
    %2493 = vmatprep.subr.mxu0 0.0
    %2494 = vmatpush1.xpose.msra.mxu0 0.0
    %2495 = vmatprep.subr.mxu0 0.0
    %2496 = vmatpush1.xpose.msra.mxu0 0.0
    %2497 = vmatprep.mubr.f32.mxu0 0.0
    %2498 = vmatmul.mubr.f32.gmra.mrb[0].mxu0 %v2425
    %v2499 = vpop.f32.mrb[0].mxu0
    %v2500 = vadd.f32 %v2327, %v2499
    %v2501 = vpop.f32.mrb[0].mxu0
    %2502 = vdwg.mxu0
    %v2504 = vsel %vm344, %v2137, 0
    %v2507 = vsel %vm344, %v2158, 0
    %v2510 = vsel %vm344, %v2159, 0
    %2512 = vmatprep.subr.mxu0 0.0
    %2513 = vmatpush1.xpose.msra.mxu0 %v2507
    %2514 = vmatprep.subr.mxu0 0.0
    %2515 = vmatpush1.xpose.msra.mxu0 %v2510
    %2516 = vmatprep.subr.mxu0 0.0
    %2517 = vmatpush1.xpose.msra.mxu0 0.0
    %2518 = vmatprep.subr.mxu0 0.0
    %2519 = vmatpush1.xpose.msra.mxu0 0.0
    %2520 = vmatprep.subr.mxu0 0.0
    %2521 = vmatpush1.xpose.msra.mxu0 0.0
    %2522 = vmatprep.subr.mxu0 0.0
    %2523 = vmatpush1.xpose.msra.mxu0 0.0
    %2524 = vmatprep.subr.mxu0 0.0
    %2525 = vmatpush1.xpose.msra.mxu0 0.0
    %2526 = vmatprep.subr.mxu0 0.0
    %2527 = vmatpush1.xpose.msra.mxu0 0.0
    %2528 = vmatprep.subr.mxu0 0.0
    %2529 = vmatpush1.xpose.msra.mxu0 0.0
    %2530 = vmatprep.subr.mxu0 0.0
    %2531 = vmatpush1.xpose.msra.mxu0 0.0
    %2532 = vmatprep.subr.mxu0 0.0
    %2533 = vmatpush1.xpose.msra.mxu0 0.0
    %2534 = vmatprep.subr.mxu0 0.0
    %2535 = vmatpush1.xpose.msra.mxu0 0.0
    %2536 = vmatprep.subr.mxu0 0.0
    %2537 = vmatpush1.xpose.msra.mxu0 0.0
    %2538 = vmatprep.subr.mxu0 0.0
    %2539 = vmatpush1.xpose.msra.mxu0 0.0
    %2540 = vmatprep.subr.mxu0 0.0
    %2541 = vmatpush1.xpose.msra.mxu0 0.0
    %2542 = vmatprep.subr.mxu0 0.0
    %2543 = vmatpush1.xpose.msra.mxu0 0.0
    %2544 = vmatprep.subr.mxu0 0.0
    %2545 = vmatpush1.xpose.msra.mxu0 0.0
    %2546 = vmatprep.subr.mxu0 0.0
    %2547 = vmatpush1.xpose.msra.mxu0 0.0
    %2548 = vmatprep.subr.mxu0 0.0
    %2549 = vmatpush1.xpose.msra.mxu0 0.0
    %2550 = vmatprep.subr.mxu0 0.0
    %2551 = vmatpush1.xpose.msra.mxu0 0.0
    %2552 = vmatprep.subr.mxu0 0.0
    %2553 = vmatpush1.xpose.msra.mxu0 0.0
    %2554 = vmatprep.subr.mxu0 0.0
    %2555 = vmatpush1.xpose.msra.mxu0 0.0
    %2556 = vmatprep.subr.mxu0 0.0
    %2557 = vmatpush1.xpose.msra.mxu0 0.0
    %2558 = vmatprep.subr.mxu0 0.0
    %2559 = vmatpush1.xpose.msra.mxu0 0.0
    %2560 = vmatprep.subr.mxu0 0.0
    %2561 = vmatpush1.xpose.msra.mxu0 0.0
    %2562 = vmatprep.subr.mxu0 0.0
    %2563 = vmatpush1.xpose.msra.mxu0 0.0
    %2564 = vmatprep.subr.mxu0 0.0
    %2565 = vmatpush1.xpose.msra.mxu0 0.0
    %2566 = vmatprep.subr.mxu0 0.0
    %2567 = vmatpush1.xpose.msra.mxu0 0.0
    %2568 = vmatprep.subr.mxu0 0.0
    %2569 = vmatpush1.xpose.msra.mxu0 0.0
    %2570 = vmatprep.subr.mxu0 0.0
    %2571 = vmatpush1.xpose.msra.mxu0 0.0
    %2572 = vmatprep.subr.mxu0 0.0
    %2573 = vmatpush1.xpose.msra.mxu0 0.0
    %2574 = vmatprep.subr.mxu0 0.0
    %2575 = vmatpush1.xpose.msra.mxu0 0.0
    %2576 = vmatprep.mubr.f32.mxu0 0.0
    %2577 = vmatmul.mubr.f32.gmra.mrb[0].mxu0 %v2504
    %v2578 = vpop.f32.mrb[0].mxu0
    %v2579 = vadd.f32 %v2331, %v2578
    %v2580 = vpop.f32.mrb[0].mxu0
    %2581 = vdwg.mxu0
    %v2583 = vsel %vm344, %v2138, 0
    %v2586 = vsel %vm344, %v2160, 0
    %v2589 = vsel %vm344, %v2161, 0
    %2591 = vmatprep.subr.mxu0 0.0
    %2592 = vmatpush1.xpose.msra.mxu0 %v2586
    %2593 = vmatprep.subr.mxu0 0.0
    %2594 = vmatpush1.xpose.msra.mxu0 %v2589
    %2595 = vmatprep.subr.mxu0 0.0
    %2596 = vmatpush1.xpose.msra.mxu0 0.0
    %2597 = vmatprep.subr.mxu0 0.0
    %2598 = vmatpush1.xpose.msra.mxu0 0.0
    %2599 = vmatprep.subr.mxu0 0.0
    %2600 = vmatpush1.xpose.msra.mxu0 0.0
    %2601 = vmatprep.subr.mxu0 0.0
    %2602 = vmatpush1.xpose.msra.mxu0 0.0
    %2603 = vmatprep.subr.mxu0 0.0
    %2604 = vmatpush1.xpose.msra.mxu0 0.0
    %2605 = vmatprep.subr.mxu0 0.0
    %2606 = vmatpush1.xpose.msra.mxu0 0.0
    %2607 = vmatprep.subr.mxu0 0.0
    %2608 = vmatpush1.xpose.msra.mxu0 0.0
    %2609 = vmatprep.subr.mxu0 0.0
    %2610 = vmatpush1.xpose.msra.mxu0 0.0
    %2611 = vmatprep.subr.mxu0 0.0
    %2612 = vmatpush1.xpose.msra.mxu0 0.0
    %2613 = vmatprep.subr.mxu0 0.0
    %2614 = vmatpush1.xpose.msra.mxu0 0.0
    %2615 = vmatprep.subr.mxu0 0.0
    %2616 = vmatpush1.xpose.msra.mxu0 0.0
    %2617 = vmatprep.subr.mxu0 0.0
    %2618 = vmatpush1.xpose.msra.mxu0 0.0
    %2619 = vmatprep.subr.mxu0 0.0
    %2620 = vmatpush1.xpose.msra.mxu0 0.0
    %2621 = vmatprep.subr.mxu0 0.0
    %2622 = vmatpush1.xpose.msra.mxu0 0.0
    %2623 = vmatprep.subr.mxu0 0.0
    %2624 = vmatpush1.xpose.msra.mxu0 0.0
    %2625 = vmatprep.subr.mxu0 0.0
    %2626 = vmatpush1.xpose.msra.mxu0 0.0
    %2627 = vmatprep.subr.mxu0 0.0
    %2628 = vmatpush1.xpose.msra.mxu0 0.0
    %2629 = vmatprep.subr.mxu0 0.0
    %2630 = vmatpush1.xpose.msra.mxu0 0.0
    %2631 = vmatprep.subr.mxu0 0.0
    %2632 = vmatpush1.xpose.msra.mxu0 0.0
    %2633 = vmatprep.subr.mxu0 0.0
    %2634 = vmatpush1.xpose.msra.mxu0 0.0
    %2635 = vmatprep.subr.mxu0 0.0
    %2636 = vmatpush1.xpose.msra.mxu0 0.0
    %2637 = vmatprep.subr.mxu0 0.0
    %2638 = vmatpush1.xpose.msra.mxu0 0.0
    %2639 = vmatprep.subr.mxu0 0.0
    %2640 = vmatpush1.xpose.msra.mxu0 0.0
    %2641 = vmatprep.subr.mxu0 0.0
    %2642 = vmatpush1.xpose.msra.mxu0 0.0
    %2643 = vmatprep.subr.mxu0 0.0
    %2644 = vmatpush1.xpose.msra.mxu0 0.0
    %2645 = vmatprep.subr.mxu0 0.0
    %2646 = vmatpush1.xpose.msra.mxu0 0.0
    %2647 = vmatprep.subr.mxu0 0.0
    %2648 = vmatpush1.xpose.msra.mxu0 0.0
    %2649 = vmatprep.subr.mxu0 0.0
    %2650 = vmatpush1.xpose.msra.mxu0 0.0
    %2651 = vmatprep.subr.mxu0 0.0
    %2652 = vmatpush1.xpose.msra.mxu0 0.0
    %2653 = vmatprep.subr.mxu0 0.0
    %2654 = vmatpush1.xpose.msra.mxu0 0.0
    %2655 = vmatprep.mubr.f32.mxu0 0.0
    %2656 = vmatmul.mubr.f32.gmra.mrb[0].mxu0 %v2583
    %v2657 = vpop.f32.mrb[0].mxu0
    %v2658 = vadd.f32 %v2335, %v2657
    %v2659 = vpop.f32.mrb[0].mxu0
    %2660 = vdwg.mxu0
    %v2662 = vsel %vm344, %v2139, 0
    %v2665 = vsel %vm344, %v2162, 0
    %v2668 = vsel %vm344, %v2163, 0
    %2670 = vmatprep.subr.mxu0 0.0
    %2671 = vmatpush1.xpose.msra.mxu0 %v2665
    %2672 = vmatprep.subr.mxu0 0.0
    %2673 = vmatpush1.xpose.msra.mxu0 %v2668
    %2674 = vmatprep.subr.mxu0 0.0
    %2675 = vmatpush1.xpose.msra.mxu0 0.0
    %2676 = vmatprep.subr.mxu0 0.0
    %2677 = vmatpush1.xpose.msra.mxu0 0.0
    %2678 = vmatprep.subr.mxu0 0.0
    %2679 = vmatpush1.xpose.msra.mxu0 0.0
    %2680 = vmatprep.subr.mxu0 0.0
    %2681 = vmatpush1.xpose.msra.mxu0 0.0
    %2682 = vmatprep.subr.mxu0 0.0
    %2683 = vmatpush1.xpose.msra.mxu0 0.0
    %2684 = vmatprep.subr.mxu0 0.0
    %2685 = vmatpush1.xpose.msra.mxu0 0.0
    %2686 = vmatprep.subr.mxu0 0.0
    %2687 = vmatpush1.xpose.msra.mxu0 0.0
    %2688 = vmatprep.subr.mxu0 0.0
    %2689 = vmatpush1.xpose.msra.mxu0 0.0
    %2690 = vmatprep.subr.mxu0 0.0
    %2691 = vmatpush1.xpose.msra.mxu0 0.0
    %2692 = vmatprep.subr.mxu0 0.0
    %2693 = vmatpush1.xpose.msra.mxu0 0.0
    %2694 = vmatprep.subr.mxu0 0.0
    %2695 = vmatpush1.xpose.msra.mxu0 0.0
    %2696 = vmatprep.subr.mxu0 0.0
    %2697 = vmatpush1.xpose.msra.mxu0 0.0
    %2698 = vmatprep.subr.mxu0 0.0
    %2699 = vmatpush1.xpose.msra.mxu0 0.0
    %2700 = vmatprep.subr.mxu0 0.0
    %2701 = vmatpush1.xpose.msra.mxu0 0.0
    %2702 = vmatprep.subr.mxu0 0.0
    %2703 = vmatpush1.xpose.msra.mxu0 0.0
    %2704 = vmatprep.subr.mxu0 0.0
    %2705 = vmatpush1.xpose.msra.mxu0 0.0
    %2706 = vmatprep.subr.mxu0 0.0
    %2707 = vmatpush1.xpose.msra.mxu0 0.0
    %2708 = vmatprep.subr.mxu0 0.0
    %2709 = vmatpush1.xpose.msra.mxu0 0.0
    %2710 = vmatprep.subr.mxu0 0.0
    %2711 = vmatpush1.xpose.msra.mxu0 0.0
    %2712 = vmatprep.subr.mxu0 0.0
    %2713 = vmatpush1.xpose.msra.mxu0 0.0
    %2714 = vmatprep.subr.mxu0 0.0
    %2715 = vmatpush1.xpose.msra.mxu0 0.0
    %2716 = vmatprep.subr.mxu0 0.0
    %2717 = vmatpush1.xpose.msra.mxu0 0.0
    %2718 = vmatprep.subr.mxu0 0.0
    %2719 = vmatpush1.xpose.msra.mxu0 0.0
    %2720 = vmatprep.subr.mxu0 0.0
    %2721 = vmatpush1.xpose.msra.mxu0 0.0
    %2722 = vmatprep.subr.mxu0 0.0
    %2723 = vmatpush1.xpose.msra.mxu0 0.0
    %2724 = vmatprep.subr.mxu0 0.0
    %2725 = vmatpush1.xpose.msra.mxu0 0.0
    %2726 = vmatprep.subr.mxu0 0.0
    %2727 = vmatpush1.xpose.msra.mxu0 0.0
    %2728 = vmatprep.subr.mxu0 0.0
    %2729 = vmatpush1.xpose.msra.mxu0 0.0
    %2730 = vmatprep.subr.mxu0 0.0
    %2731 = vmatpush1.xpose.msra.mxu0 0.0
    %2732 = vmatprep.subr.mxu0 0.0
    %2733 = vmatpush1.xpose.msra.mxu0 0.0
    %2734 = vmatprep.mubr.f32.mxu0 0.0
    %2735 = vmatmul.mubr.f32.gmra.mrb[0].mxu0 %v2662
    %v2736 = vpop.f32.mrb[0].mxu0
    %v2737 = vadd.f32 %v2339, %v2736
    %v2738 = vpop.f32.mrb[0].mxu0
    %2739 = vdwg.mxu0
    %v2741 = vsel %vm344, %v2140, 0
    %v2744 = vsel %vm344, %v2164, 0
    %v2747 = vsel %vm344, %v2165, 0
    %2749 = vmatprep.subr.mxu0 0.0
    %2750 = vmatpush1.xpose.msra.mxu0 %v2744
    %2751 = vmatprep.subr.mxu0 0.0
    %2752 = vmatpush1.xpose.msra.mxu0 %v2747
    %2753 = vmatprep.subr.mxu0 0.0
    %2754 = vmatpush1.xpose.msra.mxu0 0.0
    %2755 = vmatprep.subr.mxu0 0.0
    %2756 = vmatpush1.xpose.msra.mxu0 0.0
    %2757 = vmatprep.subr.mxu0 0.0
    %2758 = vmatpush1.xpose.msra.mxu0 0.0
    %2759 = vmatprep.subr.mxu0 0.0
    %2760 = vmatpush1.xpose.msra.mxu0 0.0
    %2761 = vmatprep.subr.mxu0 0.0
    %2762 = vmatpush1.xpose.msra.mxu0 0.0
    %2763 = vmatprep.subr.mxu0 0.0
    %2764 = vmatpush1.xpose.msra.mxu0 0.0
    %2765 = vmatprep.subr.mxu0 0.0
    %2766 = vmatpush1.xpose.msra.mxu0 0.0
    %2767 = vmatprep.subr.mxu0 0.0
    %2768 = vmatpush1.xpose.msra.mxu0 0.0
    %2769 = vmatprep.subr.mxu0 0.0
    %2770 = vmatpush1.xpose.msra.mxu0 0.0
    %2771 = vmatprep.subr.mxu0 0.0
    %2772 = vmatpush1.xpose.msra.mxu0 0.0
    %2773 = vmatprep.subr.mxu0 0.0
    %2774 = vmatpush1.xpose.msra.mxu0 0.0
    %2775 = vmatprep.subr.mxu0 0.0
    %2776 = vmatpush1.xpose.msra.mxu0 0.0
    %2777 = vmatprep.subr.mxu0 0.0
    %2778 = vmatpush1.xpose.msra.mxu0 0.0
    %2779 = vmatprep.subr.mxu0 0.0
    %2780 = vmatpush1.xpose.msra.mxu0 0.0
    %2781 = vmatprep.subr.mxu0 0.0
    %2782 = vmatpush1.xpose.msra.mxu0 0.0
    %2783 = vmatprep.subr.mxu0 0.0
    %2784 = vmatpush1.xpose.msra.mxu0 0.0
    %2785 = vmatprep.subr.mxu0 0.0
    %2786 = vmatpush1.xpose.msra.mxu0 0.0
    %2787 = vmatprep.subr.mxu0 0.0
    %2788 = vmatpush1.xpose.msra.mxu0 0.0
    %2789 = vmatprep.subr.mxu0 0.0
    %2790 = vmatpush1.xpose.msra.mxu0 0.0
    %2791 = vmatprep.subr.mxu0 0.0
    %2792 = vmatpush1.xpose.msra.mxu0 0.0
    %2793 = vmatprep.subr.mxu0 0.0
    %2794 = vmatpush1.xpose.msra.mxu0 0.0
    %2795 = vmatprep.subr.mxu0 0.0
    %2796 = vmatpush1.xpose.msra.mxu0 0.0
    %2797 = vmatprep.subr.mxu0 0.0
    %2798 = vmatpush1.xpose.msra.mxu0 0.0
    %2799 = vmatprep.subr.mxu0 0.0
    %2800 = vmatpush1.xpose.msra.mxu0 0.0
    %2801 = vmatprep.subr.mxu0 0.0
    %2802 = vmatpush1.xpose.msra.mxu0 0.0
    %2803 = vmatprep.subr.mxu0 0.0
    %2804 = vmatpush1.xpose.msra.mxu0 0.0
    %2805 = vmatprep.subr.mxu0 0.0
    %2806 = vmatpush1.xpose.msra.mxu0 0.0
    %2807 = vmatprep.subr.mxu0 0.0
    %2808 = vmatpush1.xpose.msra.mxu0 0.0
    %2809 = vmatprep.subr.mxu0 0.0
    %2810 = vmatpush1.xpose.msra.mxu0 0.0
    %2811 = vmatprep.subr.mxu0 0.0
    %2812 = vmatpush1.xpose.msra.mxu0 0.0
    %2813 = vmatprep.mubr.f32.mxu0 0.0
    %2814 = vmatmul.mubr.f32.gmra.mrb[0].mxu0 %v2741
    %v2815 = vpop.f32.mrb[0].mxu0
    %v2816 = vadd.f32 %v2343, %v2815
    %v2817 = vpop.f32.mrb[0].mxu0
    %2818 = vdwg.mxu0
    %v2820 = vsel %vm344, %v2141, 0
    %v2823 = vsel %vm344, %v2166, 0
    %v2826 = vsel %vm344, %v2167, 0
    %2828 = vmatprep.subr.mxu0 0.0
    %2829 = vmatpush1.xpose.msra.mxu0 %v2823
    %2830 = vmatprep.subr.mxu0 0.0
    %2831 = vmatpush1.xpose.msra.mxu0 %v2826
    %2832 = vmatprep.subr.mxu0 0.0
    %2833 = vmatpush1.xpose.msra.mxu0 0.0
    %2834 = vmatprep.subr.mxu0 0.0
    %2835 = vmatpush1.xpose.msra.mxu0 0.0
    %2836 = vmatprep.subr.mxu0 0.0
    %2837 = vmatpush1.xpose.msra.mxu0 0.0
    %2838 = vmatprep.subr.mxu0 0.0
    %2839 = vmatpush1.xpose.msra.mxu0 0.0
    %2840 = vmatprep.subr.mxu0 0.0
    %2841 = vmatpush1.xpose.msra.mxu0 0.0
    %2842 = vmatprep.subr.mxu0 0.0
    %2843 = vmatpush1.xpose.msra.mxu0 0.0
    %2844 = vmatprep.subr.mxu0 0.0
    %2845 = vmatpush1.xpose.msra.mxu0 0.0
    %2846 = vmatprep.subr.mxu0 0.0
    %2847 = vmatpush1.xpose.msra.mxu0 0.0
    %2848 = vmatprep.subr.mxu0 0.0
    %2849 = vmatpush1.xpose.msra.mxu0 0.0
    %2850 = vmatprep.subr.mxu0 0.0
    %2851 = vmatpush1.xpose.msra.mxu0 0.0
    %2852 = vmatprep.subr.mxu0 0.0
    %2853 = vmatpush1.xpose.msra.mxu0 0.0
    %2854 = vmatprep.subr.mxu0 0.0
    %2855 = vmatpush1.xpose.msra.mxu0 0.0
    %2856 = vmatprep.subr.mxu0 0.0
    %2857 = vmatpush1.xpose.msra.mxu0 0.0
    %2858 = vmatprep.subr.mxu0 0.0
    %2859 = vmatpush1.xpose.msra.mxu0 0.0
    %2860 = vmatprep.subr.mxu0 0.0
    %2861 = vmatpush1.xpose.msra.mxu0 0.0
    %2862 = vmatprep.subr.mxu0 0.0
    %2863 = vmatpush1.xpose.msra.mxu0 0.0
    %2864 = vmatprep.subr.mxu0 0.0
    %2865 = vmatpush1.xpose.msra.mxu0 0.0
    %2866 = vmatprep.subr.mxu0 0.0
    %2867 = vmatpush1.xpose.msra.mxu0 0.0
    %2868 = vmatprep.subr.mxu0 0.0
    %2869 = vmatpush1.xpose.msra.mxu0 0.0
    %2870 = vmatprep.subr.mxu0 0.0
    %2871 = vmatpush1.xpose.msra.mxu0 0.0
    %2872 = vmatprep.subr.mxu0 0.0
    %2873 = vmatpush1.xpose.msra.mxu0 0.0
    %2874 = vmatprep.subr.mxu0 0.0
    %2875 = vmatpush1.xpose.msra.mxu0 0.0
    %2876 = vmatprep.subr.mxu0 0.0
    %2877 = vmatpush1.xpose.msra.mxu0 0.0
    %2878 = vmatprep.subr.mxu0 0.0
    %2879 = vmatpush1.xpose.msra.mxu0 0.0
    %2880 = vmatprep.subr.mxu0 0.0
    %2881 = vmatpush1.xpose.msra.mxu0 0.0
    %2882 = vmatprep.subr.mxu0 0.0
    %2883 = vmatpush1.xpose.msra.mxu0 0.0
    %2884 = vmatprep.subr.mxu0 0.0
    %2885 = vmatpush1.xpose.msra.mxu0 0.0
    %2886 = vmatprep.subr.mxu0 0.0
    %2887 = vmatpush1.xpose.msra.mxu0 0.0
    %2888 = vmatprep.subr.mxu0 0.0
    %2889 = vmatpush1.xpose.msra.mxu0 0.0
    %2890 = vmatprep.subr.mxu0 0.0
    %2891 = vmatpush1.xpose.msra.mxu0 0.0
    %2892 = vmatprep.mubr.f32.mxu0 0.0
    %2893 = vmatmul.mubr.f32.gmra.mrb[0].mxu0 %v2820
    %v2894 = vpop.f32.mrb[0].mxu0
    %v2895 = vadd.f32 %v2347, %v2894
    %v2896 = vpop.f32.mrb[0].mxu0
    %2897 = vdwg.mxu0
    %v2899 = vsel %vm344, %v2142, 0
    %v2902 = vsel %vm344, %v2168, 0
    %v2905 = vsel %vm344, %v2169, 0
    %2907 = vmatprep.subr.mxu0 0.0
    %2908 = vmatpush1.xpose.msra.mxu0 %v2902
    %2909 = vmatprep.subr.mxu0 0.0
    %2910 = vmatpush1.xpose.msra.mxu0 %v2905
    %2911 = vmatprep.subr.mxu0 0.0
    %2912 = vmatpush1.xpose.msra.mxu0 0.0
    %2913 = vmatprep.subr.mxu0 0.0
    %2914 = vmatpush1.xpose.msra.mxu0 0.0
    %2915 = vmatprep.subr.mxu0 0.0
    %2916 = vmatpush1.xpose.msra.mxu0 0.0
    %2917 = vmatprep.subr.mxu0 0.0
    %2918 = vmatpush1.xpose.msra.mxu0 0.0
    %2919 = vmatprep.subr.mxu0 0.0
    %2920 = vmatpush1.xpose.msra.mxu0 0.0
    %2921 = vmatprep.subr.mxu0 0.0
    %2922 = vmatpush1.xpose.msra.mxu0 0.0
    %2923 = vmatprep.subr.mxu0 0.0
    %2924 = vmatpush1.xpose.msra.mxu0 0.0
    %2925 = vmatprep.subr.mxu0 0.0
    %2926 = vmatpush1.xpose.msra.mxu0 0.0
    %2927 = vmatprep.subr.mxu0 0.0
    %2928 = vmatpush1.xpose.msra.mxu0 0.0
    %2929 = vmatprep.subr.mxu0 0.0
    %2930 = vmatpush1.xpose.msra.mxu0 0.0
    %2931 = vmatprep.subr.mxu0 0.0
    %2932 = vmatpush1.xpose.msra.mxu0 0.0
    %2933 = vmatprep.subr.mxu0 0.0
    %2934 = vmatpush1.xpose.msra.mxu0 0.0
    %2935 = vmatprep.subr.mxu0 0.0
    %2936 = vmatpush1.xpose.msra.mxu0 0.0
    %2937 = vmatprep.subr.mxu0 0.0
    %2938 = vmatpush1.xpose.msra.mxu0 0.0
    %2939 = vmatprep.subr.mxu0 0.0
    %2940 = vmatpush1.xpose.msra.mxu0 0.0
    %2941 = vmatprep.subr.mxu0 0.0
    %2942 = vmatpush1.xpose.msra.mxu0 0.0
    %2943 = vmatprep.subr.mxu0 0.0
    %2944 = vmatpush1.xpose.msra.mxu0 0.0
    %2945 = vmatprep.subr.mxu0 0.0
    %2946 = vmatpush1.xpose.msra.mxu0 0.0
    %2947 = vmatprep.subr.mxu0 0.0
    %2948 = vmatpush1.xpose.msra.mxu0 0.0
    %2949 = vmatprep.subr.mxu0 0.0
    %2950 = vmatpush1.xpose.msra.mxu0 0.0
    %2951 = vmatprep.subr.mxu0 0.0
    %2952 = vmatpush1.xpose.msra.mxu0 0.0
    %2953 = vmatprep.subr.mxu0 0.0
    %2954 = vmatpush1.xpose.msra.mxu0 0.0
    %2955 = vmatprep.subr.mxu0 0.0
    %2956 = vmatpush1.xpose.msra.mxu0 0.0
    %2957 = vmatprep.subr.mxu0 0.0
    %2958 = vmatpush1.xpose.msra.mxu0 0.0
    %2959 = vmatprep.subr.mxu0 0.0
    %2960 = vmatpush1.xpose.msra.mxu0 0.0
    %2961 = vmatprep.subr.mxu0 0.0
    %2962 = vmatpush1.xpose.msra.mxu0 0.0
    %2963 = vmatprep.subr.mxu0 0.0
    %2964 = vmatpush1.xpose.msra.mxu0 0.0
    %2965 = vmatprep.subr.mxu0 0.0
    %2966 = vmatpush1.xpose.msra.mxu0 0.0
    %2967 = vmatprep.subr.mxu0 0.0
    %2968 = vmatpush1.xpose.msra.mxu0 0.0
    %2969 = vmatprep.subr.mxu0 0.0
    %2970 = vmatpush1.xpose.msra.mxu0 0.0
    %2971 = vmatprep.mubr.f32.mxu0 0.0
    %2972 = vmatmul.mubr.f32.gmra.mrb[0].mxu0 %v2899
    %v2973 = vpop.f32.mrb[0].mxu0
    %v2974 = vadd.f32 %v2351, %v2973
    %v2975 = vpop.f32.mrb[0].mxu0
    %2976 = vdwg.mxu0
    %v2978 = vsel %vm344, %v2143, 0
    %v2981 = vsel %vm344, %v2170, 0
    %v2984 = vsel %vm344, %v2171, 0
    %2986 = vmatprep.subr.mxu0 0.0
    %2987 = vmatpush1.xpose.msra.mxu0 %v2981
    %2988 = vmatprep.subr.mxu0 0.0
    %2989 = vmatpush1.xpose.msra.mxu0 %v2984
    %2990 = vmatprep.subr.mxu0 0.0
    %2991 = vmatpush1.xpose.msra.mxu0 0.0
    %2992 = vmatprep.subr.mxu0 0.0
    %2993 = vmatpush1.xpose.msra.mxu0 0.0
    %2994 = vmatprep.subr.mxu0 0.0
    %2995 = vmatpush1.xpose.msra.mxu0 0.0
    %2996 = vmatprep.subr.mxu0 0.0
    %2997 = vmatpush1.xpose.msra.mxu0 0.0
    %2998 = vmatprep.subr.mxu0 0.0
    %2999 = vmatpush1.xpose.msra.mxu0 0.0
    %3000 = vmatprep.subr.mxu0 0.0
    %3001 = vmatpush1.xpose.msra.mxu0 0.0
    %3002 = vmatprep.subr.mxu0 0.0
    %3003 = vmatpush1.xpose.msra.mxu0 0.0
    %3004 = vmatprep.subr.mxu0 0.0
    %3005 = vmatpush1.xpose.msra.mxu0 0.0
    %3006 = vmatprep.subr.mxu0 0.0
    %3007 = vmatpush1.xpose.msra.mxu0 0.0
    %3008 = vmatprep.subr.mxu0 0.0
    %3009 = vmatpush1.xpose.msra.mxu0 0.0
    %3010 = vmatprep.subr.mxu0 0.0
    %3011 = vmatpush1.xpose.msra.mxu0 0.0
    %3012 = vmatprep.subr.mxu0 0.0
    %3013 = vmatpush1.xpose.msra.mxu0 0.0
    %3014 = vmatprep.subr.mxu0 0.0
    %3015 = vmatpush1.xpose.msra.mxu0 0.0
    %3016 = vmatprep.subr.mxu0 0.0
    %3017 = vmatpush1.xpose.msra.mxu0 0.0
    %3018 = vmatprep.subr.mxu0 0.0
    %3019 = vmatpush1.xpose.msra.mxu0 0.0
    %3020 = vmatprep.subr.mxu0 0.0
    %3021 = vmatpush1.xpose.msra.mxu0 0.0
    %3022 = vmatprep.subr.mxu0 0.0
    %3023 = vmatpush1.xpose.msra.mxu0 0.0
    %3024 = vmatprep.subr.mxu0 0.0
    %3025 = vmatpush1.xpose.msra.mxu0 0.0
    %3026 = vmatprep.subr.mxu0 0.0
    %3027 = vmatpush1.xpose.msra.mxu0 0.0
    %3028 = vmatprep.subr.mxu0 0.0
    %3029 = vmatpush1.xpose.msra.mxu0 0.0
    %3030 = vmatprep.subr.mxu0 0.0
    %3031 = vmatpush1.xpose.msra.mxu0 0.0
    %3032 = vmatprep.subr.mxu0 0.0
    %3033 = vmatpush1.xpose.msra.mxu0 0.0
    %3034 = vmatprep.subr.mxu0 0.0
    %3035 = vmatpush1.xpose.msra.mxu0 0.0
    %3036 = vmatprep.subr.mxu0 0.0
    %3037 = vmatpush1.xpose.msra.mxu0 0.0
    %3038 = vmatprep.subr.mxu0 0.0
    %3039 = vmatpush1.xpose.msra.mxu0 0.0
    %3040 = vmatprep.subr.mxu0 0.0
    %3041 = vmatpush1.xpose.msra.mxu0 0.0
    %3042 = vmatprep.subr.mxu0 0.0
    %3043 = vmatpush1.xpose.msra.mxu0 0.0
    %3044 = vmatprep.subr.mxu0 0.0
    %3045 = vmatpush1.xpose.msra.mxu0 0.0
    %3046 = vmatprep.subr.mxu0 0.0
    %3047 = vmatpush1.xpose.msra.mxu0 0.0
    %3048 = vmatprep.subr.mxu0 0.0
    %3049 = vmatpush1.xpose.msra.mxu0 0.0
    %3050 = vmatprep.mubr.f32.mxu0 0.0
    %3051 = vmatmul.mubr.f32.gmra.mrb[0].mxu0 %v2978
    %v3052 = vpop.f32.mrb[0].mxu0
    %v3053 = vadd.f32 %v2355, %v3052
    %v3054 = vpop.f32.mrb[0].mxu0
    %3055 = vdwg.mxu0
    %v3057 = vsel %vm344, %v2144, 0
    %v3060 = vsel %vm344, %v2172, 0
    %v3063 = vsel %vm344, %v2173, 0
    %3065 = vmatprep.subr.mxu0 0.0
    %3066 = vmatpush1.xpose.msra.mxu0 %v3060
    %3067 = vmatprep.subr.mxu0 0.0
    %3068 = vmatpush1.xpose.msra.mxu0 %v3063
    %3069 = vmatprep.subr.mxu0 0.0
    %3070 = vmatpush1.xpose.msra.mxu0 0.0
    %3071 = vmatprep.subr.mxu0 0.0
    %3072 = vmatpush1.xpose.msra.mxu0 0.0
    %3073 = vmatprep.subr.mxu0 0.0
    %3074 = vmatpush1.xpose.msra.mxu0 0.0
    %3075 = vmatprep.subr.mxu0 0.0
    %3076 = vmatpush1.xpose.msra.mxu0 0.0
    %3077 = vmatprep.subr.mxu0 0.0
    %3078 = vmatpush1.xpose.msra.mxu0 0.0
    %3079 = vmatprep.subr.mxu0 0.0
    %3080 = vmatpush1.xpose.msra.mxu0 0.0
    %3081 = vmatprep.subr.mxu0 0.0
    %3082 = vmatpush1.xpose.msra.mxu0 0.0
    %3083 = vmatprep.subr.mxu0 0.0
    %3084 = vmatpush1.xpose.msra.mxu0 0.0
    %3085 = vmatprep.subr.mxu0 0.0
    %3086 = vmatpush1.xpose.msra.mxu0 0.0
    %3087 = vmatprep.subr.mxu0 0.0
    %3088 = vmatpush1.xpose.msra.mxu0 0.0
    %3089 = vmatprep.subr.mxu0 0.0
    %3090 = vmatpush1.xpose.msra.mxu0 0.0
    %3091 = vmatprep.subr.mxu0 0.0
    %3092 = vmatpush1.xpose.msra.mxu0 0.0
    %3093 = vmatprep.subr.mxu0 0.0
    %3094 = vmatpush1.xpose.msra.mxu0 0.0
    %3095 = vmatprep.subr.mxu0 0.0
    %3096 = vmatpush1.xpose.msra.mxu0 0.0
    %3097 = vmatprep.subr.mxu0 0.0
    %3098 = vmatpush1.xpose.msra.mxu0 0.0
    %3099 = vmatprep.subr.mxu0 0.0
    %3100 = vmatpush1.xpose.msra.mxu0 0.0
    %3101 = vmatprep.subr.mxu0 0.0
    %3102 = vmatpush1.xpose.msra.mxu0 0.0
    %3103 = vmatprep.subr.mxu0 0.0
    %3104 = vmatpush1.xpose.msra.mxu0 0.0
    %3105 = vmatprep.subr.mxu0 0.0
    %3106 = vmatpush1.xpose.msra.mxu0 0.0
    %3107 = vmatprep.subr.mxu0 0.0
    %3108 = vmatpush1.xpose.msra.mxu0 0.0
    %3109 = vmatprep.subr.mxu0 0.0
    %3110 = vmatpush1.xpose.msra.mxu0 0.0
    %3111 = vmatprep.subr.mxu0 0.0
    %3112 = vmatpush1.xpose.msra.mxu0 0.0
    %3113 = vmatprep.subr.mxu0 0.0
    %3114 = vmatpush1.xpose.msra.mxu0 0.0
    %3115 = vmatprep.subr.mxu0 0.0
    %3116 = vmatpush1.xpose.msra.mxu0 0.0
    %3117 = vmatprep.subr.mxu0 0.0
    %3118 = vmatpush1.xpose.msra.mxu0 0.0
    %3119 = vmatprep.subr.mxu0 0.0
    %3120 = vmatpush1.xpose.msra.mxu0 0.0
    %3121 = vmatprep.subr.mxu0 0.0
    %3122 = vmatpush1.xpose.msra.mxu0 0.0
    %3123 = vmatprep.subr.mxu0 0.0
    %3124 = vmatpush1.xpose.msra.mxu0 0.0
    %3125 = vmatprep.subr.mxu0 0.0
    %3126 = vmatpush1.xpose.msra.mxu0 0.0
    %3127 = vmatprep.subr.mxu0 0.0
    %3128 = vmatpush1.xpose.msra.mxu0 0.0
    %3129 = vmatprep.mubr.f32.mxu0 0.0
    %3130 = vmatmul.mubr.f32.gmra.mrb[0].mxu0 %v3057
    %v3131 = vpop.f32.mrb[0].mxu0
    %v3132 = vadd.f32 %v2359, %v3131
    %v3133 = vpop.f32.mrb[0].mxu0
    %3134 = vdwg.mxu0
    %v3136 = vsel %vm344, %v2145, 0
    %v3139 = vsel %vm344, %v2174, 0
    %v3142 = vsel %vm344, %v2175, 0
    %3144 = vmatprep.subr.mxu0 0.0
    %3145 = vmatpush1.xpose.msra.mxu0 %v3139
    %3146 = vmatprep.subr.mxu0 0.0
    %3147 = vmatpush1.xpose.msra.mxu0 %v3142
    %3148 = vmatprep.subr.mxu0 0.0
    %3149 = vmatpush1.xpose.msra.mxu0 0.0
    %3150 = vmatprep.subr.mxu0 0.0
    %3151 = vmatpush1.xpose.msra.mxu0 0.0
    %3152 = vmatprep.subr.mxu0 0.0
    %3153 = vmatpush1.xpose.msra.mxu0 0.0
    %3154 = vmatprep.subr.mxu0 0.0
    %3155 = vmatpush1.xpose.msra.mxu0 0.0
    %3156 = vmatprep.subr.mxu0 0.0
    %3157 = vmatpush1.xpose.msra.mxu0 0.0
    %3158 = vmatprep.subr.mxu0 0.0
    %3159 = vmatpush1.xpose.msra.mxu0 0.0
    %3160 = vmatprep.subr.mxu0 0.0
    %3161 = vmatpush1.xpose.msra.mxu0 0.0
    %3162 = vmatprep.subr.mxu0 0.0
    %3163 = vmatpush1.xpose.msra.mxu0 0.0
    %3164 = vmatprep.subr.mxu0 0.0
    %3165 = vmatpush1.xpose.msra.mxu0 0.0
    %3166 = vmatprep.subr.mxu0 0.0
    %3167 = vmatpush1.xpose.msra.mxu0 0.0
    %3168 = vmatprep.subr.mxu0 0.0
    %3169 = vmatpush1.xpose.msra.mxu0 0.0
    %3170 = vmatprep.subr.mxu0 0.0
    %3171 = vmatpush1.xpose.msra.mxu0 0.0
    %3172 = vmatprep.subr.mxu0 0.0
    %3173 = vmatpush1.xpose.msra.mxu0 0.0
    %3174 = vmatprep.subr.mxu0 0.0
    %3175 = vmatpush1.xpose.msra.mxu0 0.0
    %3176 = vmatprep.subr.mxu0 0.0
    %3177 = vmatpush1.xpose.msra.mxu0 0.0
    %3178 = vmatprep.subr.mxu0 0.0
    %3179 = vmatpush1.xpose.msra.mxu0 0.0
    %3180 = vmatprep.subr.mxu0 0.0
    %3181 = vmatpush1.xpose.msra.mxu0 0.0
    %3182 = vmatprep.subr.mxu0 0.0
    %3183 = vmatpush1.xpose.msra.mxu0 0.0
    %3184 = vmatprep.subr.mxu0 0.0
    %3185 = vmatpush1.xpose.msra.mxu0 0.0
    %3186 = vmatprep.subr.mxu0 0.0
    %3187 = vmatpush1.xpose.msra.mxu0 0.0
    %3188 = vmatprep.subr.mxu0 0.0
    %3189 = vmatpush1.xpose.msra.mxu0 0.0
    %3190 = vmatprep.subr.mxu0 0.0
    %3191 = vmatpush1.xpose.msra.mxu0 0.0
    %3192 = vmatprep.subr.mxu0 0.0
    %3193 = vmatpush1.xpose.msra.mxu0 0.0
    %3194 = vmatprep.subr.mxu0 0.0
    %3195 = vmatpush1.xpose.msra.mxu0 0.0
    %3196 = vmatprep.subr.mxu0 0.0
    %3197 = vmatpush1.xpose.msra.mxu0 0.0
    %3198 = vmatprep.subr.mxu0 0.0
    %3199 = vmatpush1.xpose.msra.mxu0 0.0
    %3200 = vmatprep.subr.mxu0 0.0
    %3201 = vmatpush1.xpose.msra.mxu0 0.0
    %3202 = vmatprep.subr.mxu0 0.0
    %3203 = vmatpush1.xpose.msra.mxu0 0.0
    %3204 = vmatprep.subr.mxu0 0.0
    %3205 = vmatpush1.xpose.msra.mxu0 0.0
    %3206 = vmatprep.subr.mxu0 0.0
    %3207 = vmatpush1.xpose.msra.mxu0 0.0
    %3208 = vmatprep.mubr.f32.mxu0 0.0
    %3209 = vmatmul.mubr.f32.gmra.mrb[0].mxu0 %v3136
    %v3210 = vpop.f32.mrb[0].mxu0
    %v3211 = vadd.f32 %v2363, %v3210
    %v3212 = vpop.f32.mrb[0].mxu0
    %3213 = vdwg.mxu0
    %v3215 = vsel %vm344, %v2146, 0
    %v3218 = vsel %vm344, %v2176, 0
    %v3221 = vsel %vm344, %v2177, 0
    %3223 = vmatprep.subr.mxu0 0.0
    %3224 = vmatpush1.xpose.msra.mxu0 %v3218
    %3225 = vmatprep.subr.mxu0 0.0
    %3226 = vmatpush1.xpose.msra.mxu0 %v3221
    %3227 = vmatprep.subr.mxu0 0.0
    %3228 = vmatpush1.xpose.msra.mxu0 0.0
    %3229 = vmatprep.subr.mxu0 0.0
    %3230 = vmatpush1.xpose.msra.mxu0 0.0
    %3231 = vmatprep.subr.mxu0 0.0
    %3232 = vmatpush1.xpose.msra.mxu0 0.0
    %3233 = vmatprep.subr.mxu0 0.0
    %3234 = vmatpush1.xpose.msra.mxu0 0.0
    %3235 = vmatprep.subr.mxu0 0.0
    %3236 = vmatpush1.xpose.msra.mxu0 0.0
    %3237 = vmatprep.subr.mxu0 0.0
    %3238 = vmatpush1.xpose.msra.mxu0 0.0
    %3239 = vmatprep.subr.mxu0 0.0
    %3240 = vmatpush1.xpose.msra.mxu0 0.0
    %3241 = vmatprep.subr.mxu0 0.0
    %3242 = vmatpush1.xpose.msra.mxu0 0.0
    %3243 = vmatprep.subr.mxu0 0.0
    %3244 = vmatpush1.xpose.msra.mxu0 0.0
    %3245 = vmatprep.subr.mxu0 0.0
    %3246 = vmatpush1.xpose.msra.mxu0 0.0
    %3247 = vmatprep.subr.mxu0 0.0
    %3248 = vmatpush1.xpose.msra.mxu0 0.0
    %3249 = vmatprep.subr.mxu0 0.0
    %3250 = vmatpush1.xpose.msra.mxu0 0.0
    %3251 = vmatprep.subr.mxu0 0.0
    %3252 = vmatpush1.xpose.msra.mxu0 0.0
    %3253 = vmatprep.subr.mxu0 0.0
    %3254 = vmatpush1.xpose.msra.mxu0 0.0
    %3255 = vmatprep.subr.mxu0 0.0
    %3256 = vmatpush1.xpose.msra.mxu0 0.0
    %3257 = vmatprep.subr.mxu0 0.0
    %3258 = vmatpush1.xpose.msra.mxu0 0.0
    %3259 = vmatprep.subr.mxu0 0.0
    %3260 = vmatpush1.xpose.msra.mxu0 0.0
    %3261 = vmatprep.subr.mxu0 0.0
    %3262 = vmatpush1.xpose.msra.mxu0 0.0
    %3263 = vmatprep.subr.mxu0 0.0
    %3264 = vmatpush1.xpose.msra.mxu0 0.0
    %3265 = vmatprep.subr.mxu0 0.0
    %3266 = vmatpush1.xpose.msra.mxu0 0.0
    %3267 = vmatprep.subr.mxu0 0.0
    %3268 = vmatpush1.xpose.msra.mxu0 0.0
    %3269 = vmatprep.subr.mxu0 0.0
    %3270 = vmatpush1.xpose.msra.mxu0 0.0
    %3271 = vmatprep.subr.mxu0 0.0
    %3272 = vmatpush1.xpose.msra.mxu0 0.0
    %3273 = vmatprep.subr.mxu0 0.0
    %3274 = vmatpush1.xpose.msra.mxu0 0.0
    %3275 = vmatprep.subr.mxu0 0.0
    %3276 = vmatpush1.xpose.msra.mxu0 0.0
    %3277 = vmatprep.subr.mxu0 0.0
    %3278 = vmatpush1.xpose.msra.mxu0 0.0
    %3279 = vmatprep.subr.mxu0 0.0
    %3280 = vmatpush1.xpose.msra.mxu0 0.0
    %3281 = vmatprep.subr.mxu0 0.0
    %3282 = vmatpush1.xpose.msra.mxu0 0.0
    %3283 = vmatprep.subr.mxu0 0.0
    %3284 = vmatpush1.xpose.msra.mxu0 0.0
    %3285 = vmatprep.subr.mxu0 0.0
    %3286 = vmatpush1.xpose.msra.mxu0 0.0
    %3287 = vmatprep.mubr.f32.mxu0 0.0
    %3288 = vmatmul.mubr.f32.gmra.mrb[0].mxu0 %v3215
    %v3289 = vpop.f32.mrb[0].mxu0
    %v3290 = vadd.f32 %v2367, %v3289
    %v3291 = vpop.f32.mrb[0].mxu0
    %3292 = vdwg.mxu0
    %v3294 = vsel %vm344, %v2147, 0
    %v3297 = vsel %vm344, %v2178, 0
    %v3300 = vsel %vm344, %v2179, 0
    %3302 = vmatprep.subr.mxu0 0.0
    %3303 = vmatpush1.xpose.msra.mxu0 %v3297
    %3304 = vmatprep.subr.mxu0 0.0
    %3305 = vmatpush1.xpose.msra.mxu0 %v3300
    %3306 = vmatprep.subr.mxu0 0.0
    %3307 = vmatpush1.xpose.msra.mxu0 0.0
    %3308 = vmatprep.subr.mxu0 0.0
    %3309 = vmatpush1.xpose.msra.mxu0 0.0
    %3310 = vmatprep.subr.mxu0 0.0
    %3311 = vmatpush1.xpose.msra.mxu0 0.0
    %3312 = vmatprep.subr.mxu0 0.0
    %3313 = vmatpush1.xpose.msra.mxu0 0.0
    %3314 = vmatprep.subr.mxu0 0.0
    %3315 = vmatpush1.xpose.msra.mxu0 0.0
    %3316 = vmatprep.subr.mxu0 0.0
    %3317 = vmatpush1.xpose.msra.mxu0 0.0
    %3318 = vmatprep.subr.mxu0 0.0
    %3319 = vmatpush1.xpose.msra.mxu0 0.0
    %3320 = vmatprep.subr.mxu0 0.0
    %3321 = vmatpush1.xpose.msra.mxu0 0.0
    %3322 = vmatprep.subr.mxu0 0.0
    %3323 = vmatpush1.xpose.msra.mxu0 0.0
    %3324 = vmatprep.subr.mxu0 0.0
    %3325 = vmatpush1.xpose.msra.mxu0 0.0
    %3326 = vmatprep.subr.mxu0 0.0
    %3327 = vmatpush1.xpose.msra.mxu0 0.0
    %3328 = vmatprep.subr.mxu0 0.0
    %3329 = vmatpush1.xpose.msra.mxu0 0.0
    %3330 = vmatprep.subr.mxu0 0.0
    %3331 = vmatpush1.xpose.msra.mxu0 0.0
    %3332 = vmatprep.subr.mxu0 0.0
    %3333 = vmatpush1.xpose.msra.mxu0 0.0
    %3334 = vmatprep.subr.mxu0 0.0
    %3335 = vmatpush1.xpose.msra.mxu0 0.0
    %3336 = vmatprep.subr.mxu0 0.0
    %3337 = vmatpush1.xpose.msra.mxu0 0.0
    %3338 = vmatprep.subr.mxu0 0.0
    %3339 = vmatpush1.xpose.msra.mxu0 0.0
    %3340 = vmatprep.subr.mxu0 0.0
    %3341 = vmatpush1.xpose.msra.mxu0 0.0
    %3342 = vmatprep.subr.mxu0 0.0
    %3343 = vmatpush1.xpose.msra.mxu0 0.0
    %3344 = vmatprep.subr.mxu0 0.0
    %3345 = vmatpush1.xpose.msra.mxu0 0.0
    %3346 = vmatprep.subr.mxu0 0.0
    %3347 = vmatpush1.xpose.msra.mxu0 0.0
    %3348 = vmatprep.subr.mxu0 0.0
    %3349 = vmatpush1.xpose.msra.mxu0 0.0
    %3350 = vmatprep.subr.mxu0 0.0
    %3351 = vmatpush1.xpose.msra.mxu0 0.0
    %3352 = vmatprep.subr.mxu0 0.0
    %3353 = vmatpush1.xpose.msra.mxu0 0.0
    %3354 = vmatprep.subr.mxu0 0.0
    %3355 = vmatpush1.xpose.msra.mxu0 0.0
    %3356 = vmatprep.subr.mxu0 0.0
    %3357 = vmatpush1.xpose.msra.mxu0 0.0
    %3358 = vmatprep.subr.mxu0 0.0
    %3359 = vmatpush1.xpose.msra.mxu0 0.0
    %3360 = vmatprep.subr.mxu0 0.0
    %3361 = vmatpush1.xpose.msra.mxu0 0.0
    %3362 = vmatprep.subr.mxu0 0.0
    %3363 = vmatpush1.xpose.msra.mxu0 0.0
    %3364 = vmatprep.subr.mxu0 0.0
    %3365 = vmatpush1.xpose.msra.mxu0 0.0
    %3366 = vmatprep.mubr.f32.mxu0 0.0
    %3367 = vmatmul.mubr.f32.gmra.mrb[0].mxu0 %v3294
    %v3368 = vpop.f32.mrb[0].mxu0
    %v3369 = vadd.f32 %v2371, %v3368
    %v3370 = vpop.f32.mrb[0].mxu0
    %3371 = vdwg.mxu0
    %v3373 = vsel %vm344, %v2148, 0
    %v3376 = vsel %vm344, %v2180, 0
    %v3379 = vsel %vm344, %v2181, 0
    %3381 = vmatprep.subr.mxu0 0.0
    %3382 = vmatpush1.xpose.msra.mxu0 %v3376
    %3383 = vmatprep.subr.mxu0 0.0
    %3384 = vmatpush1.xpose.msra.mxu0 %v3379
    %3385 = vmatprep.subr.mxu0 0.0
    %3386 = vmatpush1.xpose.msra.mxu0 0.0
    %3387 = vmatprep.subr.mxu0 0.0
    %3388 = vmatpush1.xpose.msra.mxu0 0.0
    %3389 = vmatprep.subr.mxu0 0.0
    %3390 = vmatpush1.xpose.msra.mxu0 0.0
    %3391 = vmatprep.subr.mxu0 0.0
    %3392 = vmatpush1.xpose.msra.mxu0 0.0
    %3393 = vmatprep.subr.mxu0 0.0
    %3394 = vmatpush1.xpose.msra.mxu0 0.0
    %3395 = vmatprep.subr.mxu0 0.0
    %3396 = vmatpush1.xpose.msra.mxu0 0.0
    %3397 = vmatprep.subr.mxu0 0.0
    %3398 = vmatpush1.xpose.msra.mxu0 0.0
    %3399 = vmatprep.subr.mxu0 0.0
    %3400 = vmatpush1.xpose.msra.mxu0 0.0
    %3401 = vmatprep.subr.mxu0 0.0
    %3402 = vmatpush1.xpose.msra.mxu0 0.0
    %3403 = vmatprep.subr.mxu0 0.0
    %3404 = vmatpush1.xpose.msra.mxu0 0.0
    %3405 = vmatprep.subr.mxu0 0.0
    %3406 = vmatpush1.xpose.msra.mxu0 0.0
    %3407 = vmatprep.subr.mxu0 0.0
    %3408 = vmatpush1.xpose.msra.mxu0 0.0
    %3409 = vmatprep.subr.mxu0 0.0
    %3410 = vmatpush1.xpose.msra.mxu0 0.0
    %3411 = vmatprep.subr.mxu0 0.0
    %3412 = vmatpush1.xpose.msra.mxu0 0.0
    %3413 = vmatprep.subr.mxu0 0.0
    %3414 = vmatpush1.xpose.msra.mxu0 0.0
    %3415 = vmatprep.subr.mxu0 0.0
    %3416 = vmatpush1.xpose.msra.mxu0 0.0
    %3417 = vmatprep.subr.mxu0 0.0
    %3418 = vmatpush1.xpose.msra.mxu0 0.0
    %3419 = vmatprep.subr.mxu0 0.0
    %3420 = vmatpush1.xpose.msra.mxu0 0.0
    %3421 = vmatprep.subr.mxu0 0.0
    %3422 = vmatpush1.xpose.msra.mxu0 0.0
    %3423 = vmatprep.subr.mxu0 0.0
    %3424 = vmatpush1.xpose.msra.mxu0 0.0
    %3425 = vmatprep.subr.mxu0 0.0
    %3426 = vmatpush1.xpose.msra.mxu0 0.0
    %3427 = vmatprep.subr.mxu0 0.0
    %3428 = vmatpush1.xpose.msra.mxu0 0.0
    %3429 = vmatprep.subr.mxu0 0.0
    %3430 = vmatpush1.xpose.msra.mxu0 0.0
    %3431 = vmatprep.subr.mxu0 0.0
    %3432 = vmatpush1.xpose.msra.mxu0 0.0
    %3433 = vmatprep.subr.mxu0 0.0
    %3434 = vmatpush1.xpose.msra.mxu0 0.0
    %3435 = vmatprep.subr.mxu0 0.0
    %3436 = vmatpush1.xpose.msra.mxu0 0.0
    %3437 = vmatprep.subr.mxu0 0.0
    %3438 = vmatpush1.xpose.msra.mxu0 0.0
    %3439 = vmatprep.subr.mxu0 0.0
    %3440 = vmatpush1.xpose.msra.mxu0 0.0
    %3441 = vmatprep.subr.mxu0 0.0
    %3442 = vmatpush1.xpose.msra.mxu0 0.0
    %3443 = vmatprep.subr.mxu0 0.0
    %3444 = vmatpush1.xpose.msra.mxu0 0.0
    %3445 = vmatprep.mubr.f32.mxu0 0.0
    %3446 = vmatmul.mubr.f32.gmra.mrb[0].mxu0 %v3373
    %v3447 = vpop.f32.mrb[0].mxu0
    %v3448 = vadd.f32 %v2375, %v3447
    %v3449 = vpop.f32.mrb[0].mxu0
    %3450 = vdwg.mxu0
    %v3452 = vsel %vm344, %v2149, 0
    %v3455 = vsel %vm344, %v2182, 0
    %v3458 = vsel %vm344, %v2183, 0
    %3460 = vmatprep.subr.mxu0 0.0
    %3461 = vmatpush1.xpose.msra.mxu0 %v3455
    %3462 = vmatprep.subr.mxu0 0.0
    %3463 = vmatpush1.xpose.msra.mxu0 %v3458
    %3464 = vmatprep.subr.mxu0 0.0
    %3465 = vmatpush1.xpose.msra.mxu0 0.0
    %3466 = vmatprep.subr.mxu0 0.0
    %3467 = vmatpush1.xpose.msra.mxu0 0.0
    %3468 = vmatprep.subr.mxu0 0.0
    %3469 = vmatpush1.xpose.msra.mxu0 0.0
    %3470 = vmatprep.subr.mxu0 0.0
    %3471 = vmatpush1.xpose.msra.mxu0 0.0
    %3472 = vmatprep.subr.mxu0 0.0
    %3473 = vmatpush1.xpose.msra.mxu0 0.0
    %3474 = vmatprep.subr.mxu0 0.0
    %3475 = vmatpush1.xpose.msra.mxu0 0.0
    %3476 = vmatprep.subr.mxu0 0.0
    %3477 = vmatpush1.xpose.msra.mxu0 0.0
    %3478 = vmatprep.subr.mxu0 0.0
    %3479 = vmatpush1.xpose.msra.mxu0 0.0
    %3480 = vmatprep.subr.mxu0 0.0
    %3481 = vmatpush1.xpose.msra.mxu0 0.0
    %3482 = vmatprep.subr.mxu0 0.0
    %3483 = vmatpush1.xpose.msra.mxu0 0.0
    %3484 = vmatprep.subr.mxu0 0.0
    %3485 = vmatpush1.xpose.msra.mxu0 0.0
    %3486 = vmatprep.subr.mxu0 0.0
    %3487 = vmatpush1.xpose.msra.mxu0 0.0
    %3488 = vmatprep.subr.mxu0 0.0
    %3489 = vmatpush1.xpose.msra.mxu0 0.0
    %3490 = vmatprep.subr.mxu0 0.0
    %3491 = vmatpush1.xpose.msra.mxu0 0.0
    %3492 = vmatprep.subr.mxu0 0.0
    %3493 = vmatpush1.xpose.msra.mxu0 0.0
    %3494 = vmatprep.subr.mxu0 0.0
    %3495 = vmatpush1.xpose.msra.mxu0 0.0
    %3496 = vmatprep.subr.mxu0 0.0
    %3497 = vmatpush1.xpose.msra.mxu0 0.0
    %3498 = vmatprep.subr.mxu0 0.0
    %3499 = vmatpush1.xpose.msra.mxu0 0.0
    %3500 = vmatprep.subr.mxu0 0.0
    %3501 = vmatpush1.xpose.msra.mxu0 0.0
    %3502 = vmatprep.subr.mxu0 0.0
    %3503 = vmatpush1.xpose.msra.mxu0 0.0
    %3504 = vmatprep.subr.mxu0 0.0
    %3505 = vmatpush1.xpose.msra.mxu0 0.0
    %3506 = vmatprep.subr.mxu0 0.0
    %3507 = vmatpush1.xpose.msra.mxu0 0.0
    %3508 = vmatprep.subr.mxu0 0.0
    %3509 = vmatpush1.xpose.msra.mxu0 0.0
    %3510 = vmatprep.subr.mxu0 0.0
    %3511 = vmatpush1.xpose.msra.mxu0 0.0
    %3512 = vmatprep.subr.mxu0 0.0
    %3513 = vmatpush1.xpose.msra.mxu0 0.0
    %3514 = vmatprep.subr.mxu0 0.0
    %3515 = vmatpush1.xpose.msra.mxu0 0.0
    %3516 = vmatprep.subr.mxu0 0.0
    %3517 = vmatpush1.xpose.msra.mxu0 0.0
    %3518 = vmatprep.subr.mxu0 0.0
    %3519 = vmatpush1.xpose.msra.mxu0 0.0
    %3520 = vmatprep.subr.mxu0 0.0
    %3521 = vmatpush1.xpose.msra.mxu0 0.0
    %3522 = vmatprep.subr.mxu0 0.0
    %3523 = vmatpush1.xpose.msra.mxu0 0.0
    %3524 = vmatprep.mubr.f32.mxu0 0.0
    %3525 = vmatmul.mubr.f32.gmra.mrb[0].mxu0 %v3452
    %v3526 = vpop.f32.mrb[0].mxu0
    %v3527 = vadd.f32 %v2379, %v3526
    %v3528 = vpop.f32.mrb[0].mxu0
    %3529 = vdwg.mxu0
    %v3531 = vsel %vm344, %v2150, 0
    %v3534 = vsel %vm344, %v2184, 0
    %v3537 = vsel %vm344, %v2185, 0
    %3539 = vmatprep.subr.mxu0 0.0
    %3540 = vmatpush1.xpose.msra.mxu0 %v3534
    %3541 = vmatprep.subr.mxu0 0.0
    %3542 = vmatpush1.xpose.msra.mxu0 %v3537
    %3543 = vmatprep.subr.mxu0 0.0
    %3544 = vmatpush1.xpose.msra.mxu0 0.0
    %3545 = vmatprep.subr.mxu0 0.0
    %3546 = vmatpush1.xpose.msra.mxu0 0.0
    %3547 = vmatprep.subr.mxu0 0.0
    %3548 = vmatpush1.xpose.msra.mxu0 0.0
    %3549 = vmatprep.subr.mxu0 0.0
    %3550 = vmatpush1.xpose.msra.mxu0 0.0
    %3551 = vmatprep.subr.mxu0 0.0
    %3552 = vmatpush1.xpose.msra.mxu0 0.0
    %3553 = vmatprep.subr.mxu0 0.0
    %3554 = vmatpush1.xpose.msra.mxu0 0.0
    %3555 = vmatprep.subr.mxu0 0.0
    %3556 = vmatpush1.xpose.msra.mxu0 0.0
    %3557 = vmatprep.subr.mxu0 0.0
    %3558 = vmatpush1.xpose.msra.mxu0 0.0
    %3559 = vmatprep.subr.mxu0 0.0
    %3560 = vmatpush1.xpose.msra.mxu0 0.0
    %3561 = vmatprep.subr.mxu0 0.0
    %3562 = vmatpush1.xpose.msra.mxu0 0.0
    %3563 = vmatprep.subr.mxu0 0.0
    %3564 = vmatpush1.xpose.msra.mxu0 0.0
    %3565 = vmatprep.subr.mxu0 0.0
    %3566 = vmatpush1.xpose.msra.mxu0 0.0
    %3567 = vmatprep.subr.mxu0 0.0
    %3568 = vmatpush1.xpose.msra.mxu0 0.0
    %3569 = vmatprep.subr.mxu0 0.0
    %3570 = vmatpush1.xpose.msra.mxu0 0.0
    %3571 = vmatprep.subr.mxu0 0.0
    %3572 = vmatpush1.xpose.msra.mxu0 0.0
    %3573 = vmatprep.subr.mxu0 0.0
    %3574 = vmatpush1.xpose.msra.mxu0 0.0
    %3575 = vmatprep.subr.mxu0 0.0
    %3576 = vmatpush1.xpose.msra.mxu0 0.0
    %3577 = vmatprep.subr.mxu0 0.0
    %3578 = vmatpush1.xpose.msra.mxu0 0.0
    %3579 = vmatprep.subr.mxu0 0.0
    %3580 = vmatpush1.xpose.msra.mxu0 0.0
    %3581 = vmatprep.subr.mxu0 0.0
    %3582 = vmatpush1.xpose.msra.mxu0 0.0
    %3583 = vmatprep.subr.mxu0 0.0
    %3584 = vmatpush1.xpose.msra.mxu0 0.0
    %3585 = vmatprep.subr.mxu0 0.0
    %3586 = vmatpush1.xpose.msra.mxu0 0.0
    %3587 = vmatprep.subr.mxu0 0.0
    %3588 = vmatpush1.xpose.msra.mxu0 0.0
    %3589 = vmatprep.subr.mxu0 0.0
    %3590 = vmatpush1.xpose.msra.mxu0 0.0
    %3591 = vmatprep.subr.mxu0 0.0
    %3592 = vmatpush1.xpose.msra.mxu0 0.0
    %3593 = vmatprep.subr.mxu0 0.0
    %3594 = vmatpush1.xpose.msra.mxu0 0.0
    %3595 = vmatprep.subr.mxu0 0.0
    %3596 = vmatpush1.xpose.msra.mxu0 0.0
    %3597 = vmatprep.subr.mxu0 0.0
    %3598 = vmatpush1.xpose.msra.mxu0 0.0
    %3599 = vmatprep.subr.mxu0 0.0
    %3600 = vmatpush1.xpose.msra.mxu0 0.0
    %3601 = vmatprep.subr.mxu0 0.0
    %3602 = vmatpush1.xpose.msra.mxu0 0.0
    %3603 = vmatprep.mubr.f32.mxu0 0.0
    %3604 = vmatmul.mubr.f32.gmra.mrb[0].mxu0 %v3531
    %v3605 = vpop.f32.mrb[0].mxu0
    %v3606 = vadd.f32 %v2383, %v3605
    %v3607 = vpop.f32.mrb[0].mxu0
    %3608 = vdwg.mxu0
    %v3610 = vsel %vm344, %v2151, 0
    %v3613 = vsel %vm344, %v2186, 0
    %v3616 = vsel %vm344, %v2187, 0
    %3618 = vmatprep.subr.mxu0 0.0
    %3619 = vmatpush1.xpose.msra.mxu0 %v3613
    %3620 = vmatprep.subr.mxu0 0.0
    %3621 = vmatpush1.xpose.msra.mxu0 %v3616
    %3622 = vmatprep.subr.mxu0 0.0
    %3623 = vmatpush1.xpose.msra.mxu0 0.0
    %3624 = vmatprep.subr.mxu0 0.0
    %3625 = vmatpush1.xpose.msra.mxu0 0.0
    %3626 = vmatprep.subr.mxu0 0.0
    %3627 = vmatpush1.xpose.msra.mxu0 0.0
    %3628 = vmatprep.subr.mxu0 0.0
    %3629 = vmatpush1.xpose.msra.mxu0 0.0
    %3630 = vmatprep.subr.mxu0 0.0
    %3631 = vmatpush1.xpose.msra.mxu0 0.0
    %3632 = vmatprep.subr.mxu0 0.0
    %3633 = vmatpush1.xpose.msra.mxu0 0.0
    %3634 = vmatprep.subr.mxu0 0.0
    %3635 = vmatpush1.xpose.msra.mxu0 0.0
    %3636 = vmatprep.subr.mxu0 0.0
    %3637 = vmatpush1.xpose.msra.mxu0 0.0
    %3638 = vmatprep.subr.mxu0 0.0
    %3639 = vmatpush1.xpose.msra.mxu0 0.0
    %3640 = vmatprep.subr.mxu0 0.0
    %3641 = vmatpush1.xpose.msra.mxu0 0.0
    %3642 = vmatprep.subr.mxu0 0.0
    %3643 = vmatpush1.xpose.msra.mxu0 0.0
    %3644 = vmatprep.subr.mxu0 0.0
    %3645 = vmatpush1.xpose.msra.mxu0 0.0
    %3646 = vmatprep.subr.mxu0 0.0
    %3647 = vmatpush1.xpose.msra.mxu0 0.0
    %3648 = vmatprep.subr.mxu0 0.0
    %3649 = vmatpush1.xpose.msra.mxu0 0.0
    %3650 = vmatprep.subr.mxu0 0.0
    %3651 = vmatpush1.xpose.msra.mxu0 0.0
    %3652 = vmatprep.subr.mxu0 0.0
    %3653 = vmatpush1.xpose.msra.mxu0 0.0
    %3654 = vmatprep.subr.mxu0 0.0
    %3655 = vmatpush1.xpose.msra.mxu0 0.0
    %3656 = vmatprep.subr.mxu0 0.0
    %3657 = vmatpush1.xpose.msra.mxu0 0.0
    %3658 = vmatprep.subr.mxu0 0.0
    %3659 = vmatpush1.xpose.msra.mxu0 0.0
    %3660 = vmatprep.subr.mxu0 0.0
    %3661 = vmatpush1.xpose.msra.mxu0 0.0
    %3662 = vmatprep.subr.mxu0 0.0
    %3663 = vmatpush1.xpose.msra.mxu0 0.0
    %3664 = vmatprep.subr.mxu0 0.0
    %3665 = vmatpush1.xpose.msra.mxu0 0.0
    %3666 = vmatprep.subr.mxu0 0.0
    %3667 = vmatpush1.xpose.msra.mxu0 0.0
    %3668 = vmatprep.subr.mxu0 0.0
    %3669 = vmatpush1.xpose.msra.mxu0 0.0
    %3670 = vmatprep.subr.mxu0 0.0
    %3671 = vmatpush1.xpose.msra.mxu0 0.0
    %3672 = vmatprep.subr.mxu0 0.0
    %3673 = vmatpush1.xpose.msra.mxu0 0.0
    %3674 = vmatprep.subr.mxu0 0.0
    %3675 = vmatpush1.xpose.msra.mxu0 0.0
    %3676 = vmatprep.subr.mxu0 0.0
    %3677 = vmatpush1.xpose.msra.mxu0 0.0
    %3678 = vmatprep.subr.mxu0 0.0
    %3679 = vmatpush1.xpose.msra.mxu0 0.0
    %3680 = vmatprep.subr.mxu0 0.0
    %3681 = vmatpush1.xpose.msra.mxu0 0.0
    %3682 = vmatprep.mubr.f32.mxu0 0.0
    %3683 = vmatmul.mubr.f32.gmra.mrb[0].mxu0 %v3610
    %v3684 = vpop.f32.mrb[0].mxu0
    %v3685 = vadd.f32 %v2387, %v3684
    %v3686 = vpop.f32.mrb[0].mxu0
    %3687 = vdwg.mxu0
    %v3689 = vsel %vm344, %v2152, 0
    %v3692 = vsel %vm344, %v2188, 0
    %v3695 = vsel %vm344, %v2189, 0
    %3697 = vmatprep.subr.mxu0 0.0
    %3698 = vmatpush1.xpose.msra.mxu0 %v3692
    %3699 = vmatprep.subr.mxu0 0.0
    %3700 = vmatpush1.xpose.msra.mxu0 %v3695
    %3701 = vmatprep.subr.mxu0 0.0
    %3702 = vmatpush1.xpose.msra.mxu0 0.0
    %3703 = vmatprep.subr.mxu0 0.0
    %3704 = vmatpush1.xpose.msra.mxu0 0.0
    %3705 = vmatprep.subr.mxu0 0.0
    %3706 = vmatpush1.xpose.msra.mxu0 0.0
    %3707 = vmatprep.subr.mxu0 0.0
    %3708 = vmatpush1.xpose.msra.mxu0 0.0
    %3709 = vmatprep.subr.mxu0 0.0
    %3710 = vmatpush1.xpose.msra.mxu0 0.0
    %3711 = vmatprep.subr.mxu0 0.0
    %3712 = vmatpush1.xpose.msra.mxu0 0.0
    %3713 = vmatprep.subr.mxu0 0.0
    %3714 = vmatpush1.xpose.msra.mxu0 0.0
    %3715 = vmatprep.subr.mxu0 0.0
    %3716 = vmatpush1.xpose.msra.mxu0 0.0
    %3717 = vmatprep.subr.mxu0 0.0
    %3718 = vmatpush1.xpose.msra.mxu0 0.0
    %3719 = vmatprep.subr.mxu0 0.0
    %3720 = vmatpush1.xpose.msra.mxu0 0.0
    %3721 = vmatprep.subr.mxu0 0.0
    %3722 = vmatpush1.xpose.msra.mxu0 0.0
    %3723 = vmatprep.subr.mxu0 0.0
    %3724 = vmatpush1.xpose.msra.mxu0 0.0
    %3725 = vmatprep.subr.mxu0 0.0
    %3726 = vmatpush1.xpose.msra.mxu0 0.0
    %3727 = vmatprep.subr.mxu0 0.0
    %3728 = vmatpush1.xpose.msra.mxu0 0.0
    %3729 = vmatprep.subr.mxu0 0.0
    %3730 = vmatpush1.xpose.msra.mxu0 0.0
    %3731 = vmatprep.subr.mxu0 0.0
    %3732 = vmatpush1.xpose.msra.mxu0 0.0
    %3733 = vmatprep.subr.mxu0 0.0
    %3734 = vmatpush1.xpose.msra.mxu0 0.0
    %3735 = vmatprep.subr.mxu0 0.0
    %3736 = vmatpush1.xpose.msra.mxu0 0.0
    %3737 = vmatprep.subr.mxu0 0.0
    %3738 = vmatpush1.xpose.msra.mxu0 0.0
    %3739 = vmatprep.subr.mxu0 0.0
    %3740 = vmatpush1.xpose.msra.mxu0 0.0
    %3741 = vmatprep.subr.mxu0 0.0
    %3742 = vmatpush1.xpose.msra.mxu0 0.0
    %3743 = vmatprep.subr.mxu0 0.0
    %3744 = vmatpush1.xpose.msra.mxu0 0.0
    %3745 = vmatprep.subr.mxu0 0.0
    %3746 = vmatpush1.xpose.msra.mxu0 0.0
    %3747 = vmatprep.subr.mxu0 0.0
    %3748 = vmatpush1.xpose.msra.mxu0 0.0
    %3749 = vmatprep.subr.mxu0 0.0
    %3750 = vmatpush1.xpose.msra.mxu0 0.0
    %3751 = vmatprep.subr.mxu0 0.0
    %3752 = vmatpush1.xpose.msra.mxu0 0.0
    %3753 = vmatprep.subr.mxu0 0.0
    %3754 = vmatpush1.xpose.msra.mxu0 0.0
    %3755 = vmatprep.subr.mxu0 0.0
    %3756 = vmatpush1.xpose.msra.mxu0 0.0
    %3757 = vmatprep.subr.mxu0 0.0
    %3758 = vmatpush1.xpose.msra.mxu0 0.0
    %3759 = vmatprep.subr.mxu0 0.0
    %3760 = vmatpush1.xpose.msra.mxu0 0.0
    %3761 = vmatprep.mubr.f32.mxu0 0.0
    %3762 = vmatmul.mubr.f32.gmra.mrb[0].mxu0 %v3689
    %v3763 = vpop.f32.mrb[0].mxu0
    %v3764 = vadd.f32 %v2391, %v3763
    %v3765 = vpop.f32.mrb[0].mxu0
    %3766 = vdwg.mxu0
    %v3768 = vsel %vm344, %v2153, 0
    %v3771 = vsel %vm344, %v2190, 0
    %v3774 = vsel %vm344, %v2191, 0
    %3776 = vmatprep.subr.mxu0 0.0
    %3777 = vmatpush1.xpose.msra.mxu0 %v3771
    %3778 = vmatprep.subr.mxu0 0.0
    %3779 = vmatpush1.xpose.msra.mxu0 %v3774
    %3780 = vmatprep.subr.mxu0 0.0
    %3781 = vmatpush1.xpose.msra.mxu0 0.0
    %3782 = vmatprep.subr.mxu0 0.0
    %3783 = vmatpush1.xpose.msra.mxu0 0.0
    %3784 = vmatprep.subr.mxu0 0.0
    %3785 = vmatpush1.xpose.msra.mxu0 0.0
    %3786 = vmatprep.subr.mxu0 0.0
    %3787 = vmatpush1.xpose.msra.mxu0 0.0
    %3788 = vmatprep.subr.mxu0 0.0
    %3789 = vmatpush1.xpose.msra.mxu0 0.0
    %3790 = vmatprep.subr.mxu0 0.0
    %3791 = vmatpush1.xpose.msra.mxu0 0.0
    %3792 = vmatprep.subr.mxu0 0.0
    %3793 = vmatpush1.xpose.msra.mxu0 0.0
    %3794 = vmatprep.subr.mxu0 0.0
    %3795 = vmatpush1.xpose.msra.mxu0 0.0
    %3796 = vmatprep.subr.mxu0 0.0
    %3797 = vmatpush1.xpose.msra.mxu0 0.0
    %3798 = vmatprep.subr.mxu0 0.0
    %3799 = vmatpush1.xpose.msra.mxu0 0.0
    %3800 = vmatprep.subr.mxu0 0.0
    %3801 = vmatpush1.xpose.msra.mxu0 0.0
    %3802 = vmatprep.subr.mxu0 0.0
    %3803 = vmatpush1.xpose.msra.mxu0 0.0
    %3804 = vmatprep.subr.mxu0 0.0
    %3805 = vmatpush1.xpose.msra.mxu0 0.0
    %3806 = vmatprep.subr.mxu0 0.0
    %3807 = vmatpush1.xpose.msra.mxu0 0.0
    %3808 = vmatprep.subr.mxu0 0.0
    %3809 = vmatpush1.xpose.msra.mxu0 0.0
    %3810 = vmatprep.subr.mxu0 0.0
    %3811 = vmatpush1.xpose.msra.mxu0 0.0
    %3812 = vmatprep.subr.mxu0 0.0
    %3813 = vmatpush1.xpose.msra.mxu0 0.0
    %3814 = vmatprep.subr.mxu0 0.0
    %3815 = vmatpush1.xpose.msra.mxu0 0.0
    %3816 = vmatprep.subr.mxu0 0.0
    %3817 = vmatpush1.xpose.msra.mxu0 0.0
    %3818 = vmatprep.subr.mxu0 0.0
    %3819 = vmatpush1.xpose.msra.mxu0 0.0
    %3820 = vmatprep.subr.mxu0 0.0
    %3821 = vmatpush1.xpose.msra.mxu0 0.0
    %3822 = vmatprep.subr.mxu0 0.0
    %3823 = vmatpush1.xpose.msra.mxu0 0.0
    %3824 = vmatprep.subr.mxu0 0.0
    %3825 = vmatpush1.xpose.msra.mxu0 0.0
    %3826 = vmatprep.subr.mxu0 0.0
    %3827 = vmatpush1.xpose.msra.mxu0 0.0
    %3828 = vmatprep.subr.mxu0 0.0
    %3829 = vmatpush1.xpose.msra.mxu0 0.0
    %3830 = vmatprep.subr.mxu0 0.0
    %3831 = vmatpush1.xpose.msra.mxu0 0.0
    %3832 = vmatprep.subr.mxu0 0.0
    %3833 = vmatpush1.xpose.msra.mxu0 0.0
    %3834 = vmatprep.subr.mxu0 0.0
    %3835 = vmatpush1.xpose.msra.mxu0 0.0
    %3836 = vmatprep.subr.mxu0 0.0
    %3837 = vmatpush1.xpose.msra.mxu0 0.0
    %3838 = vmatprep.subr.mxu0 0.0
    %3839 = vmatpush1.xpose.msra.mxu0 0.0
    %3840 = vmatprep.mubr.f32.mxu0 0.0
    %3841 = vmatmul.mubr.f32.gmra.mrb[0].mxu0 %v3768
    %v3842 = vpop.f32.mrb[0].mxu0
    %v3843 = vadd.f32 %v2395, %v3842
    %v3844 = vpop.f32.mrb[0].mxu0
    %3845 = vdwg.mxu0
    %v3847 = vsel %vm344, %v2154, 0
    %v3850 = vsel %vm344, %v2192, 0
    %v3853 = vsel %vm344, %v2193, 0
    %3855 = vmatprep.subr.mxu0 0.0
    %3856 = vmatpush1.xpose.msra.mxu0 %v3850
    %3857 = vmatprep.subr.mxu0 0.0
    %3858 = vmatpush1.xpose.msra.mxu0 %v3853
    %3859 = vmatprep.subr.mxu0 0.0
    %3860 = vmatpush1.xpose.msra.mxu0 0.0
    %3861 = vmatprep.subr.mxu0 0.0
    %3862 = vmatpush1.xpose.msra.mxu0 0.0
    %3863 = vmatprep.subr.mxu0 0.0
    %3864 = vmatpush1.xpose.msra.mxu0 0.0
    %3865 = vmatprep.subr.mxu0 0.0
    %3866 = vmatpush1.xpose.msra.mxu0 0.0
    %3867 = vmatprep.subr.mxu0 0.0
    %3868 = vmatpush1.xpose.msra.mxu0 0.0
    %3869 = vmatprep.subr.mxu0 0.0
    %3870 = vmatpush1.xpose.msra.mxu0 0.0
    %3871 = vmatprep.subr.mxu0 0.0
    %3872 = vmatpush1.xpose.msra.mxu0 0.0
    %3873 = vmatprep.subr.mxu0 0.0
    %3874 = vmatpush1.xpose.msra.mxu0 0.0
    %3875 = vmatprep.subr.mxu0 0.0
    %3876 = vmatpush1.xpose.msra.mxu0 0.0
    %3877 = vmatprep.subr.mxu0 0.0
    %3878 = vmatpush1.xpose.msra.mxu0 0.0
    %3879 = vmatprep.subr.mxu0 0.0
    %3880 = vmatpush1.xpose.msra.mxu0 0.0
    %3881 = vmatprep.subr.mxu0 0.0
    %3882 = vmatpush1.xpose.msra.mxu0 0.0
    %3883 = vmatprep.subr.mxu0 0.0
    %3884 = vmatpush1.xpose.msra.mxu0 0.0
    %3885 = vmatprep.subr.mxu0 0.0
    %3886 = vmatpush1.xpose.msra.mxu0 0.0
    %3887 = vmatprep.subr.mxu0 0.0
    %3888 = vmatpush1.xpose.msra.mxu0 0.0
    %3889 = vmatprep.subr.mxu0 0.0
    %3890 = vmatpush1.xpose.msra.mxu0 0.0
    %3891 = vmatprep.subr.mxu0 0.0
    %3892 = vmatpush1.xpose.msra.mxu0 0.0
    %3893 = vmatprep.subr.mxu0 0.0
    %3894 = vmatpush1.xpose.msra.mxu0 0.0
    %3895 = vmatprep.subr.mxu0 0.0
    %3896 = vmatpush1.xpose.msra.mxu0 0.0
    %3897 = vmatprep.subr.mxu0 0.0
    %3898 = vmatpush1.xpose.msra.mxu0 0.0
    %3899 = vmatprep.subr.mxu0 0.0
    %3900 = vmatpush1.xpose.msra.mxu0 0.0
    %3901 = vmatprep.subr.mxu0 0.0
    %3902 = vmatpush1.xpose.msra.mxu0 0.0
    %3903 = vmatprep.subr.mxu0 0.0
    %3904 = vmatpush1.xpose.msra.mxu0 0.0
    %3905 = vmatprep.subr.mxu0 0.0
    %3906 = vmatpush1.xpose.msra.mxu0 0.0
    %3907 = vmatprep.subr.mxu0 0.0
    %3908 = vmatpush1.xpose.msra.mxu0 0.0
    %3909 = vmatprep.subr.mxu0 0.0
    %3910 = vmatpush1.xpose.msra.mxu0 0.0
    %3911 = vmatprep.subr.mxu0 0.0
    %3912 = vmatpush1.xpose.msra.mxu0 0.0
    %3913 = vmatprep.subr.mxu0 0.0
    %3914 = vmatpush1.xpose.msra.mxu0 0.0
    %3915 = vmatprep.subr.mxu0 0.0
    %3916 = vmatpush1.xpose.msra.mxu0 0.0
    %3917 = vmatprep.subr.mxu0 0.0
    %3918 = vmatpush1.xpose.msra.mxu0 0.0
    %3919 = vmatprep.mubr.f32.mxu0 0.0
    %3920 = vmatmul.mubr.f32.gmra.mrb[0].mxu0 %v3847
    %v3921 = vpop.f32.mrb[0].mxu0
    %v3922 = vadd.f32 %v2399, %v3921
    %v3923 = vpop.f32.mrb[0].mxu0
    %3924 = vdwg.mxu0
    %v3926 = vsel %vm344, %v2155, 0
    %v3929 = vsel %vm344, %v2194, 0
    %v3932 = vsel %vm344, %v2195, 0
    %3934 = vmatprep.subr.mxu0 0.0
    %3935 = vmatpush1.xpose.msra.mxu0 %v3929
    %3936 = vmatprep.subr.mxu0 0.0
    %3937 = vmatpush1.xpose.msra.mxu0 %v3932
    %3938 = vmatprep.subr.mxu0 0.0
    %3939 = vmatpush1.xpose.msra.mxu0 0.0
    %3940 = vmatprep.subr.mxu0 0.0
    %3941 = vmatpush1.xpose.msra.mxu0 0.0
    %3942 = vmatprep.subr.mxu0 0.0
    %3943 = vmatpush1.xpose.msra.mxu0 0.0
    %3944 = vmatprep.subr.mxu0 0.0
    %3945 = vmatpush1.xpose.msra.mxu0 0.0
    %3946 = vmatprep.subr.mxu0 0.0
    %3947 = vmatpush1.xpose.msra.mxu0 0.0
    %3948 = vmatprep.subr.mxu0 0.0
    %3949 = vmatpush1.xpose.msra.mxu0 0.0
    %3950 = vmatprep.subr.mxu0 0.0
    %3951 = vmatpush1.xpose.msra.mxu0 0.0
    %3952 = vmatprep.subr.mxu0 0.0
    %3953 = vmatpush1.xpose.msra.mxu0 0.0
    %3954 = vmatprep.subr.mxu0 0.0
    %3955 = vmatpush1.xpose.msra.mxu0 0.0
    %3956 = vmatprep.subr.mxu0 0.0
    %3957 = vmatpush1.xpose.msra.mxu0 0.0
    %3958 = vmatprep.subr.mxu0 0.0
    %3959 = vmatpush1.xpose.msra.mxu0 0.0
    %3960 = vmatprep.subr.mxu0 0.0
    %3961 = vmatpush1.xpose.msra.mxu0 0.0
    %3962 = vmatprep.subr.mxu0 0.0
    %3963 = vmatpush1.xpose.msra.mxu0 0.0
    %3964 = vmatprep.subr.mxu0 0.0
    %3965 = vmatpush1.xpose.msra.mxu0 0.0
    %3966 = vmatprep.subr.mxu0 0.0
    %3967 = vmatpush1.xpose.msra.mxu0 0.0
    %3968 = vmatprep.subr.mxu0 0.0
    %3969 = vmatpush1.xpose.msra.mxu0 0.0
    %3970 = vmatprep.subr.mxu0 0.0
    %3971 = vmatpush1.xpose.msra.mxu0 0.0
    %3972 = vmatprep.subr.mxu0 0.0
    %3973 = vmatpush1.xpose.msra.mxu0 0.0
    %3974 = vmatprep.subr.mxu0 0.0
    %3975 = vmatpush1.xpose.msra.mxu0 0.0
    %3976 = vmatprep.subr.mxu0 0.0
    %3977 = vmatpush1.xpose.msra.mxu0 0.0
    %3978 = vmatprep.subr.mxu0 0.0
    %3979 = vmatpush1.xpose.msra.mxu0 0.0
    %3980 = vmatprep.subr.mxu0 0.0
    %3981 = vmatpush1.xpose.msra.mxu0 0.0
    %3982 = vmatprep.subr.mxu0 0.0
    %3983 = vmatpush1.xpose.msra.mxu0 0.0
    %3984 = vmatprep.subr.mxu0 0.0
    %3985 = vmatpush1.xpose.msra.mxu0 0.0
    %3986 = vmatprep.subr.mxu0 0.0
    %3987 = vmatpush1.xpose.msra.mxu0 0.0
    %3988 = vmatprep.subr.mxu0 0.0
    %3989 = vmatpush1.xpose.msra.mxu0 0.0
    %3990 = vmatprep.subr.mxu0 0.0
    %3991 = vmatpush1.xpose.msra.mxu0 0.0
    %3992 = vmatprep.subr.mxu0 0.0
    %3993 = vmatpush1.xpose.msra.mxu0 0.0
    %3994 = vmatprep.subr.mxu0 0.0
    %3995 = vmatpush1.xpose.msra.mxu0 0.0
    %3996 = vmatprep.subr.mxu0 0.0
    %3997 = vmatpush1.xpose.msra.mxu0 0.0
    %3998 = vmatprep.mubr.f32.mxu0 0.0
    %3999 = vmatmul.mubr.f32.gmra.mrb[0].mxu0 %v3926
    %v4000 = vpop.f32.mrb[0].mxu0
    %v4001 = vadd.f32 %v2403, %v4000
    %v4002 = vpop.f32.mrb[0].mxu0
    %4003 = vdwg.mxu0
    %vm4004 = vcmp.ge.f32.partialorder %v2500, 0.0
    %vm4005 = vcmp.ge.f32.partialorder %v2579, 0.0
    %vm4006 = vcmp.ge.f32.partialorder %v2658, 0.0
    %vm4007 = vcmp.ge.f32.partialorder %v2737, 0.0
    %vm4008 = vcmp.ge.f32.partialorder %v2816, 0.0
    %vm4009 = vcmp.ge.f32.partialorder %v2895, 0.0
    %vm4010 = vcmp.ge.f32.partialorder %v2974, 0.0
    %vm4011 = vcmp.ge.f32.partialorder %v3053, 0.0
    %vm4012 = vcmp.ge.f32.partialorder %v3132, 0.0
    %vm4013 = vcmp.ge.f32.partialorder %v3211, 0.0
    %vm4014 = vcmp.ge.f32.partialorder %v3290, 0.0
    %vm4015 = vcmp.ge.f32.partialorder %v3369, 0.0
    %vm4016 = vcmp.ge.f32.partialorder %v3448, 0.0
    %vm4017 = vcmp.ge.f32.partialorder %v3527, 0.0
    %vm4018 = vcmp.ge.f32.partialorder %v3606, 0.0
    %vm4019 = vcmp.ge.f32.partialorder %v3685, 0.0
    %vm4020 = vcmp.ge.f32.partialorder %v3764, 0.0
    %vm4021 = vcmp.ge.f32.partialorder %v3843, 0.0
    %vm4022 = vcmp.ge.f32.partialorder %v3922, 0.0
    %vm4023 = vcmp.ge.f32.partialorder %v4001, 0.0
    %v4024 = vld [vmem:[%s6] sm:$0xff]
    %v4025 = vld [vmem:[%s6 + $0x8] sm:$0xff]
    %v4026 = vld [vmem:[%s6 + $0x10] sm:$0xf]
    %v4030 = vcombine.high %v4024, %v4024
    %v4032 = vunpack.c.l.s4 1966171168
    %v4033 = vunpack.c.0.s8 %v4032
    %v4034 = vlaneseq
    %v4035 = vshrl.u32 %v4034, 7
    %v4036 = vsub.s32 %v4033, %v4035
    %v4037 = vrot.slane %v4024, %v4036
    %v4039 = vunpack.c.l.s4 1966171168
    %v4040 = vunpack.c.0.s8 %v4039
    %v4041 = vlaneseq
    %v4042 = vshrl.u32 %v4041, 7
    %v4043 = vsub.s32 %v4040, %v4042
    %v4044 = vrot.slane %v4030, %v4043
    %v4045 = vcombine.high %v4037, %v4037
    %v4046 = vcombine.high %v4044, %v4044
    %v4048 = vunpack.c.l.s4 1966171168
    %v4049 = vunpack.c.0.s8 %v4048
    %v4050 = vlaneseq
    %v4051 = vshrl.u32 %v4050, 7
    %v4052 = vsub.s32 %v4049, %v4051
    %v4053 = vrot.slane %v4037, %v4052
    %v4055 = vunpack.c.l.s4 1966171168
    %v4056 = vunpack.c.0.s8 %v4055
    %v4057 = vlaneseq
    %v4058 = vshrl.u32 %v4057, 7
    %v4059 = vsub.s32 %v4056, %v4058
    %v4060 = vrot.slane %v4044, %v4059
    %v4062 = vunpack.c.l.s4 1966171168
    %v4063 = vunpack.c.0.s8 %v4062
    %v4064 = vlaneseq
    %v4065 = vshrl.u32 %v4064, 7
    %v4066 = vsub.s32 %v4063, %v4065
    %v4067 = vrot.slane %v4045, %v4066
    %v4069 = vunpack.c.l.s4 1966171168
    %v4070 = vunpack.c.0.s8 %v4069
    %v4071 = vlaneseq
    %v4072 = vshrl.u32 %v4071, 7
    %v4073 = vsub.s32 %v4070, %v4072
    %v4074 = vrot.slane %v4046, %v4073
    %v4075 = vcombine.high %v4053, %v4053
    %v4076 = vcombine.high %v4060, %v4060
    %v4077 = vcombine.high %v4067, %v4067
    %v4078 = vcombine.high %v4074, %v4074
    %v4079 = vcombine.high %v4025, %v4025
    %v4081 = vunpack.c.l.s4 1966171168
    %v4082 = vunpack.c.0.s8 %v4081
    %v4083 = vlaneseq
    %v4084 = vshrl.u32 %v4083, 7
    %v4085 = vsub.s32 %v4082, %v4084
    %v4086 = vrot.slane %v4025, %v4085
    %v4088 = vunpack.c.l.s4 1966171168
    %v4089 = vunpack.c.0.s8 %v4088
    %v4090 = vlaneseq
    %v4091 = vshrl.u32 %v4090, 7
    %v4092 = vsub.s32 %v4089, %v4091
    %v4093 = vrot.slane %v4079, %v4092
    %v4094 = vcombine.high %v4086, %v4086
    %v4095 = vcombine.high %v4093, %v4093
    %v4097 = vunpack.c.l.s4 1966171168
    %v4098 = vunpack.c.0.s8 %v4097
    %v4099 = vlaneseq
    %v4100 = vshrl.u32 %v4099, 7
    %v4101 = vsub.s32 %v4098, %v4100
    %v4102 = vrot.slane %v4086, %v4101
    %v4104 = vunpack.c.l.s4 1966171168
    %v4105 = vunpack.c.0.s8 %v4104
    %v4106 = vlaneseq
    %v4107 = vshrl.u32 %v4106, 7
    %v4108 = vsub.s32 %v4105, %v4107
    %v4109 = vrot.slane %v4093, %v4108
    %v4111 = vunpack.c.l.s4 1966171168
    %v4112 = vunpack.c.0.s8 %v4111
    %v4113 = vlaneseq
    %v4114 = vshrl.u32 %v4113, 7
    %v4115 = vsub.s32 %v4112, %v4114
    %v4116 = vrot.slane %v4094, %v4115
    %v4118 = vunpack.c.l.s4 1966171168
    %v4119 = vunpack.c.0.s8 %v4118
    %v4120 = vlaneseq
    %v4121 = vshrl.u32 %v4120, 7
    %v4122 = vsub.s32 %v4119, %v4121
    %v4123 = vrot.slane %v4095, %v4122
    %v4124 = vcombine.high %v4102, %v4102
    %v4125 = vcombine.high %v4109, %v4109
    %v4126 = vcombine.high %v4116, %v4116
    %v4127 = vcombine.high %v4123, %v4123
    %v4129 = vunpack.c.l.s4 1966171168
    %v4130 = vunpack.c.0.s8 %v4129
    %v4131 = vlaneseq
    %v4132 = vshrl.u32 %v4131, 7
    %v4133 = vsub.s32 %v4130, %v4132
    %v4134 = vrot.slane %v4026, %v4133
    %v4135 = vcombine.high %v4134, %v4134
    %v4137 = vunpack.c.l.s4 1966171168
    %v4138 = vunpack.c.0.s8 %v4137
    %v4139 = vlaneseq
    %v4140 = vshrl.u32 %v4139, 7
    %v4141 = vsub.s32 %v4138, %v4140
    %v4142 = vrot.slane %v4134, %v4141
    %v4144 = vunpack.c.l.s4 1966171168
    %v4145 = vunpack.c.0.s8 %v4144
    %v4146 = vlaneseq
    %v4147 = vshrl.u32 %v4146, 7
    %v4148 = vsub.s32 %v4145, %v4147
    %v4149 = vrot.slane %v4135, %v4148
    %v4150 = vcombine.high %v4142, %v4142
    %v4151 = vcombine.high %v4149, %v4149
    %v4152 = vlaneseq
    %v4153 = vshrl.u32 %v4152, 7
    %v4154 = vsub.s32 0, %v4153
    %v4155 = vrot.slane %v4053, %v4154
    %v4156 = vlaneseq
    %v4157 = vshrl.u32 %v4156, 7
    %v4158 = vsub.s32 0, %v4157
    %v4159 = vrot.slane %v4067, %v4158
    %v4160 = vlaneseq
    %v4161 = vshrl.u32 %v4160, 7
    %v4162 = vsub.s32 0, %v4161
    %v4163 = vrot.slane %v4075, %v4162
    %v4164 = vlaneseq
    %v4165 = vshrl.u32 %v4164, 7
    %v4166 = vsub.s32 0, %v4165
    %v4167 = vrot.slane %v4077, %v4166
    %v4168 = vlaneseq
    %v4169 = vshrl.u32 %v4168, 7
    %v4170 = vsub.s32 0, %v4169
    %v4171 = vrot.slane %v4060, %v4170
    %v4172 = vlaneseq
    %v4173 = vshrl.u32 %v4172, 7
    %v4174 = vsub.s32 0, %v4173
    %v4175 = vrot.slane %v4074, %v4174
    %v4176 = vlaneseq
    %v4177 = vshrl.u32 %v4176, 7
    %v4178 = vsub.s32 0, %v4177
    %v4179 = vrot.slane %v4076, %v4178
    %v4180 = vlaneseq
    %v4181 = vshrl.u32 %v4180, 7
    %v4182 = vsub.s32 0, %v4181
    %v4183 = vrot.slane %v4078, %v4182
    %v4184 = vlaneseq
    %v4185 = vshrl.u32 %v4184, 7
    %v4186 = vsub.s32 0, %v4185
    %v4187 = vrot.slane %v4102, %v4186
    %v4188 = vlaneseq
    %v4189 = vshrl.u32 %v4188, 7
    %v4190 = vsub.s32 0, %v4189
    %v4191 = vrot.slane %v4116, %v4190
    %v4192 = vlaneseq
    %v4193 = vshrl.u32 %v4192, 7
    %v4194 = vsub.s32 0, %v4193
    %v4195 = vrot.slane %v4124, %v4194
    %v4196 = vlaneseq
    %v4197 = vshrl.u32 %v4196, 7
    %v4198 = vsub.s32 0, %v4197
    %v4199 = vrot.slane %v4126, %v4198
    %v4200 = vlaneseq
    %v4201 = vshrl.u32 %v4200, 7
    %v4202 = vsub.s32 0, %v4201
    %v4203 = vrot.slane %v4109, %v4202
    %v4204 = vlaneseq
    %v4205 = vshrl.u32 %v4204, 7
    %v4206 = vsub.s32 0, %v4205
    %v4207 = vrot.slane %v4123, %v4206
    %v4208 = vlaneseq
    %v4209 = vshrl.u32 %v4208, 7
    %v4210 = vsub.s32 0, %v4209
    %v4211 = vrot.slane %v4125, %v4210
    %v4212 = vlaneseq
    %v4213 = vshrl.u32 %v4212, 7
    %v4214 = vsub.s32 0, %v4213
    %v4215 = vrot.slane %v4127, %v4214
    %v4216 = vlaneseq
    %v4217 = vshrl.u32 %v4216, 7
    %v4218 = vsub.s32 0, %v4217
    %v4219 = vrot.slane %v4142, %v4218
    %v4220 = vlaneseq
    %v4221 = vshrl.u32 %v4220, 7
    %v4222 = vsub.s32 0, %v4221
    %v4223 = vrot.slane %v4149, %v4222
    %v4224 = vlaneseq
    %v4225 = vshrl.u32 %v4224, 7
    %v4226 = vsub.s32 0, %v4225
    %v4227 = vrot.slane %v4150, %v4226
    %v4228 = vlaneseq
    %v4229 = vshrl.u32 %v4228, 7
    %v4230 = vsub.s32 0, %v4229
    %v4231 = vrot.slane %v4151, %v4230
    %v4252 = vmul.f32 %v4155, %v2500
    %v4253 = vmul.f32 %v4159, %v2579
    %v4254 = vmul.f32 %v4163, %v2658
    %v4255 = vmul.f32 %v4167, %v2737
    %v4256 = vmul.f32 %v4171, %v2816
    %v4257 = vmul.f32 %v4175, %v2895
    %v4258 = vmul.f32 %v4179, %v2974
    %v4259 = vmul.f32 %v4183, %v3053
    %v4260 = vmul.f32 %v4187, %v3132
    %v4261 = vmul.f32 %v4191, %v3211
    %v4262 = vmul.f32 %v4195, %v3290
    %v4263 = vmul.f32 %v4199, %v3369
    %v4264 = vmul.f32 %v4203, %v3448
    %v4265 = vmul.f32 %v4207, %v3527
    %v4266 = vmul.f32 %v4211, %v3606
    %v4267 = vmul.f32 %v4215, %v3685
    %v4268 = vmul.f32 %v4219, %v3764
    %v4269 = vmul.f32 %v4223, %v3843
    %v4270 = vmul.f32 %v4227, %v3922
    %v4271 = vmul.f32 %v4231, %v4001
    %v4272 = vsel %vm4004, %v2500, %v4252
    %v4273 = vsel %vm4005, %v2579, %v4253
    %v4274 = vsel %vm4006, %v2658, %v4254
    %v4275 = vsel %vm4007, %v2737, %v4255
    %v4276 = vsel %vm4008, %v2816, %v4256
    %v4277 = vsel %vm4009, %v2895, %v4257
    %v4278 = vsel %vm4010, %v2974, %v4258
    %v4279 = vsel %vm4011, %v3053, %v4259
    %v4280 = vsel %vm4012, %v3132, %v4260
    %v4281 = vsel %vm4013, %v3211, %v4261
    %v4282 = vsel %vm4014, %v3290, %v4262
    %v4283 = vsel %vm4015, %v3369, %v4263
    %v4284 = vsel %vm4016, %v3448, %v4264
    %v4285 = vsel %vm4017, %v3527, %v4265
    %v4286 = vsel %vm4018, %v3606, %v4266
    %v4287 = vsel %vm4019, %v3685, %v4267
    %v4288 = vsel %vm4020, %v3764, %v4268
    %v4289 = vsel %vm4021, %v3843, %v4269
    %v4290 = vsel %vm4022, %v3922, %v4270
    %v4291 = vsel %vm4023, %v4001, %v4271
    %v4292 = vld [vmem:[#allocation4] sm:$0xff]
    %v4293 = vld [vmem:[#allocation4 + $0x8] sm:$0xff]
    %v4294 = vld [vmem:[#allocation4 + $0x10] sm:$0xff]
    %v4295 = vld [vmem:[#allocation4 + $0x18] sm:$0xff]
    %v4296 = vld [vmem:[#allocation4 + $0x20] sm:$0xff]
    %v4297 = vld [vmem:[#allocation4 + $0x28] sm:$0xff]
    %v4298 = vld [vmem:[#allocation4 + $0x30] sm:$0xff]
    %v4299 = vld [vmem:[#allocation4 + $0x38] sm:$0xff]
    %v4300 = vld [vmem:[#allocation4 + $0x40] sm:$0xff]
    %v4301 = vld [vmem:[#allocation4 + $0x48] sm:$0xff]
    %v4302 = vld [vmem:[#allocation4 + $0x50] sm:$0xff]
    %v4303 = vld [vmem:[#allocation4 + $0x58] sm:$0xff]
    %v4304 = vld [vmem:[#allocation4 + $0x60] sm:$0xff]
    %v4305 = vld [vmem:[#allocation4 + $0x68] sm:$0xff]
    %v4306 = vld [vmem:[#allocation4 + $0x70] sm:$0xff]
    %v4307 = vld [vmem:[#allocation4 + $0x78] sm:$0xff]
    %v4308 = vld [vmem:[#allocation4 + $0x80] sm:$0xff]
    %v4309 = vld [vmem:[#allocation4 + $0x88] sm:$0xff]
    %v4310 = vld [vmem:[#allocation4 + $0x90] sm:$0xff]
    %v4311 = vld [vmem:[#allocation4 + $0x98] sm:$0xff]
    %v4312 = vld [vmem:[#allocation4 + $0xa0] sm:$0xff]
    %v4313 = vld [vmem:[#allocation4 + $0xa8] sm:$0xff]
    %v4314 = vld [vmem:[#allocation4 + $0xb0] sm:$0xff]
    %v4315 = vld [vmem:[#allocation4 + $0xb8] sm:$0xff]
    %v4316 = vld [vmem:[#allocation4 + $0xc0] sm:$0xff]
    %v4317 = vld [vmem:[#allocation4 + $0xc8] sm:$0xff]
    %v4318 = vld [vmem:[#allocation4 + $0xd0] sm:$0xff]
    %v4319 = vld [vmem:[#allocation4 + $0xd8] sm:$0xff]
    %v4320 = vld [vmem:[#allocation4 + $0xe0] sm:$0xff]
    %v4321 = vld [vmem:[#allocation4 + $0xe8] sm:$0xff]
    %v4322 = vld [vmem:[#allocation4 + $0xf0] sm:$0xff]
    %v4323 = vld [vmem:[#allocation4 + $0xf8] sm:$0xff]
    %v4324 = vld [vmem:[#allocation4 + $0x100] sm:$0xff]
    %v4325 = vld [vmem:[#allocation4 + $0x108] sm:$0xff]
    %v4326 = vld [vmem:[#allocation4 + $0x110] sm:$0xff]
    %v4327 = vld [vmem:[#allocation4 + $0x118] sm:$0xff]
    %v4328 = vld [vmem:[#allocation4 + $0x120] sm:$0xff]
    %v4329 = vld [vmem:[#allocation4 + $0x128] sm:$0xff]
    %v4330 = vld [vmem:[#allocation4 + $0x130] sm:$0xff]
    %v4331 = vld [vmem:[#allocation4 + $0x138] sm:$0xff]
    %v4332 = vld [vmem:[%s8] sm:$0xff]
    %v4333 = vld [vmem:[%s8 + $0x8] sm:$0xff]
    %v4334 = vld [vmem:[%s8 + $0x10] sm:$0xf]
    %v4338 = vcombine.high %v4332, %v4332
    %v4340 = vunpack.c.l.s4 1966171168
    %v4341 = vunpack.c.0.s8 %v4340
    %v4342 = vlaneseq
    %v4343 = vshrl.u32 %v4342, 7
    %v4344 = vsub.s32 %v4341, %v4343
    %v4345 = vrot.slane %v4332, %v4344
    %v4347 = vunpack.c.l.s4 1966171168
    %v4348 = vunpack.c.0.s8 %v4347
    %v4349 = vlaneseq
    %v4350 = vshrl.u32 %v4349, 7
    %v4351 = vsub.s32 %v4348, %v4350
    %v4352 = vrot.slane %v4338, %v4351
    %v4353 = vcombine.high %v4345, %v4345
    %v4354 = vcombine.high %v4352, %v4352
    %v4356 = vunpack.c.l.s4 1966171168
    %v4357 = vunpack.c.0.s8 %v4356
    %v4358 = vlaneseq
    %v4359 = vshrl.u32 %v4358, 7
    %v4360 = vsub.s32 %v4357, %v4359
    %v4361 = vrot.slane %v4345, %v4360
    %v4363 = vunpack.c.l.s4 1966171168
    %v4364 = vunpack.c.0.s8 %v4363
    %v4365 = vlaneseq
    %v4366 = vshrl.u32 %v4365, 7
    %v4367 = vsub.s32 %v4364, %v4366
    %v4368 = vrot.slane %v4352, %v4367
    %v4370 = vunpack.c.l.s4 1966171168
    %v4371 = vunpack.c.0.s8 %v4370
    %v4372 = vlaneseq
    %v4373 = vshrl.u32 %v4372, 7
    %v4374 = vsub.s32 %v4371, %v4373
    %v4375 = vrot.slane %v4353, %v4374
    %v4377 = vunpack.c.l.s4 1966171168
    %v4378 = vunpack.c.0.s8 %v4377
    %v4379 = vlaneseq
    %v4380 = vshrl.u32 %v4379, 7
    %v4381 = vsub.s32 %v4378, %v4380
    %v4382 = vrot.slane %v4354, %v4381
    %v4383 = vcombine.high %v4361, %v4361
    %v4384 = vcombine.high %v4368, %v4368
    %v4385 = vcombine.high %v4375, %v4375
    %v4386 = vcombine.high %v4382, %v4382
    %v4387 = vcombine.high %v4333, %v4333
    %v4389 = vunpack.c.l.s4 1966171168
    %v4390 = vunpack.c.0.s8 %v4389
    %v4391 = vlaneseq
    %v4392 = vshrl.u32 %v4391, 7
    %v4393 = vsub.s32 %v4390, %v4392
    %v4394 = vrot.slane %v4333, %v4393
    %v4396 = vunpack.c.l.s4 1966171168
    %v4397 = vunpack.c.0.s8 %v4396
    %v4398 = vlaneseq
    %v4399 = vshrl.u32 %v4398, 7
    %v4400 = vsub.s32 %v4397, %v4399
    %v4401 = vrot.slane %v4387, %v4400
    %v4402 = vcombine.high %v4394, %v4394
    %v4403 = vcombine.high %v4401, %v4401
    %v4405 = vunpack.c.l.s4 1966171168
    %v4406 = vunpack.c.0.s8 %v4405
    %v4407 = vlaneseq
    %v4408 = vshrl.u32 %v4407, 7
    %v4409 = vsub.s32 %v4406, %v4408
    %v4410 = vrot.slane %v4394, %v4409
    %v4412 = vunpack.c.l.s4 1966171168
    %v4413 = vunpack.c.0.s8 %v4412
    %v4414 = vlaneseq
    %v4415 = vshrl.u32 %v4414, 7
    %v4416 = vsub.s32 %v4413, %v4415
    %v4417 = vrot.slane %v4401, %v4416
    %v4419 = vunpack.c.l.s4 1966171168
    %v4420 = vunpack.c.0.s8 %v4419
    %v4421 = vlaneseq
    %v4422 = vshrl.u32 %v4421, 7
    %v4423 = vsub.s32 %v4420, %v4422
    %v4424 = vrot.slane %v4402, %v4423
    %v4426 = vunpack.c.l.s4 1966171168
    %v4427 = vunpack.c.0.s8 %v4426
    %v4428 = vlaneseq
    %v4429 = vshrl.u32 %v4428, 7
    %v4430 = vsub.s32 %v4427, %v4429
    %v4431 = vrot.slane %v4403, %v4430
    %v4432 = vcombine.high %v4410, %v4410
    %v4433 = vcombine.high %v4417, %v4417
    %v4434 = vcombine.high %v4424, %v4424
    %v4435 = vcombine.high %v4431, %v4431
    %v4437 = vunpack.c.l.s4 1966171168
    %v4438 = vunpack.c.0.s8 %v4437
    %v4439 = vlaneseq
    %v4440 = vshrl.u32 %v4439, 7
    %v4441 = vsub.s32 %v4438, %v4440
    %v4442 = vrot.slane %v4334, %v4441
    %v4443 = vcombine.high %v4442, %v4442
    %v4445 = vunpack.c.l.s4 1966171168
    %v4446 = vunpack.c.0.s8 %v4445
    %v4447 = vlaneseq
    %v4448 = vshrl.u32 %v4447, 7
    %v4449 = vsub.s32 %v4446, %v4448
    %v4450 = vrot.slane %v4442, %v4449
    %v4452 = vunpack.c.l.s4 1966171168
    %v4453 = vunpack.c.0.s8 %v4452
    %v4454 = vlaneseq
    %v4455 = vshrl.u32 %v4454, 7
    %v4456 = vsub.s32 %v4453, %v4455
    %v4457 = vrot.slane %v4443, %v4456
    %v4458 = vcombine.high %v4450, %v4450
    %v4459 = vcombine.high %v4457, %v4457
    %v4460 = vlaneseq
    %v4461 = vshrl.u32 %v4460, 7
    %v4462 = vsub.s32 0, %v4461
    %v4463 = vrot.slane %v4361, %v4462
    %v4464 = vlaneseq
    %v4465 = vshrl.u32 %v4464, 7
    %v4466 = vsub.s32 0, %v4465
    %v4467 = vrot.slane %v4375, %v4466
    %v4468 = vlaneseq
    %v4469 = vshrl.u32 %v4468, 7
    %v4470 = vsub.s32 0, %v4469
    %v4471 = vrot.slane %v4383, %v4470
    %v4472 = vlaneseq
    %v4473 = vshrl.u32 %v4472, 7
    %v4474 = vsub.s32 0, %v4473
    %v4475 = vrot.slane %v4385, %v4474
    %v4476 = vlaneseq
    %v4477 = vshrl.u32 %v4476, 7
    %v4478 = vsub.s32 0, %v4477
    %v4479 = vrot.slane %v4368, %v4478
    %v4480 = vlaneseq
    %v4481 = vshrl.u32 %v4480, 7
    %v4482 = vsub.s32 0, %v4481
    %v4483 = vrot.slane %v4382, %v4482
    %v4484 = vlaneseq
    %v4485 = vshrl.u32 %v4484, 7
    %v4486 = vsub.s32 0, %v4485
    %v4487 = vrot.slane %v4384, %v4486
    %v4488 = vlaneseq
    %v4489 = vshrl.u32 %v4488, 7
    %v4490 = vsub.s32 0, %v4489
    %v4491 = vrot.slane %v4386, %v4490
    %v4492 = vlaneseq
    %v4493 = vshrl.u32 %v4492, 7
    %v4494 = vsub.s32 0, %v4493
    %v4495 = vrot.slane %v4410, %v4494
    %v4496 = vlaneseq
    %v4497 = vshrl.u32 %v4496, 7
    %v4498 = vsub.s32 0, %v4497
    %v4499 = vrot.slane %v4424, %v4498
    %v4500 = vlaneseq
    %v4501 = vshrl.u32 %v4500, 7
    %v4502 = vsub.s32 0, %v4501
    %v4503 = vrot.slane %v4432, %v4502
    %v4504 = vlaneseq
    %v4505 = vshrl.u32 %v4504, 7
    %v4506 = vsub.s32 0, %v4505
    %v4507 = vrot.slane %v4434, %v4506
    %v4508 = vlaneseq
    %v4509 = vshrl.u32 %v4508, 7
    %v4510 = vsub.s32 0, %v4509
    %v4511 = vrot.slane %v4417, %v4510
    %v4512 = vlaneseq
    %v4513 = vshrl.u32 %v4512, 7
    %v4514 = vsub.s32 0, %v4513
    %v4515 = vrot.slane %v4431, %v4514
    %v4516 = vlaneseq
    %v4517 = vshrl.u32 %v4516, 7
    %v4518 = vsub.s32 0, %v4517
    %v4519 = vrot.slane %v4433, %v4518
    %v4520 = vlaneseq
    %v4521 = vshrl.u32 %v4520, 7
    %v4522 = vsub.s32 0, %v4521
    %v4523 = vrot.slane %v4435, %v4522
    %v4524 = vlaneseq
    %v4525 = vshrl.u32 %v4524, 7
    %v4526 = vsub.s32 0, %v4525
    %v4527 = vrot.slane %v4450, %v4526
    %v4528 = vlaneseq
    %v4529 = vshrl.u32 %v4528, 7
    %v4530 = vsub.s32 0, %v4529
    %v4531 = vrot.slane %v4457, %v4530
    %v4532 = vlaneseq
    %v4533 = vshrl.u32 %v4532, 7
    %v4534 = vsub.s32 0, %v4533
    %v4535 = vrot.slane %v4458, %v4534
    %v4536 = vlaneseq
    %v4537 = vshrl.u32 %v4536, 7
    %v4538 = vsub.s32 0, %v4537
    %v4539 = vrot.slane %v4459, %v4538
    %v4561 = vsel %vm344, %v4272, 0
    %v4564 = vsel %vm344, %v4292, 0
    %v4567 = vsel %vm344, %v4293, 0
    %4569 = vmatprep.subr.mxu0 0.0
    %4570 = vmatpush1.xpose.msra.mxu0 %v4564
    %4571 = vmatprep.subr.mxu0 0.0
    %4572 = vmatpush1.xpose.msra.mxu0 %v4567
    %4573 = vmatprep.subr.mxu0 0.0
    %4574 = vmatpush1.xpose.msra.mxu0 0.0
    %4575 = vmatprep.subr.mxu0 0.0
    %4576 = vmatpush1.xpose.msra.mxu0 0.0
    %4577 = vmatprep.subr.mxu0 0.0
    %4578 = vmatpush1.xpose.msra.mxu0 0.0
    %4579 = vmatprep.subr.mxu0 0.0
    %4580 = vmatpush1.xpose.msra.mxu0 0.0
    %4581 = vmatprep.subr.mxu0 0.0
    %4582 = vmatpush1.xpose.msra.mxu0 0.0
    %4583 = vmatprep.subr.mxu0 0.0
    %4584 = vmatpush1.xpose.msra.mxu0 0.0
    %4585 = vmatprep.subr.mxu0 0.0
    %4586 = vmatpush1.xpose.msra.mxu0 0.0
    %4587 = vmatprep.subr.mxu0 0.0
    %4588 = vmatpush1.xpose.msra.mxu0 0.0
    %4589 = vmatprep.subr.mxu0 0.0
    %4590 = vmatpush1.xpose.msra.mxu0 0.0
    %4591 = vmatprep.subr.mxu0 0.0
    %4592 = vmatpush1.xpose.msra.mxu0 0.0
    %4593 = vmatprep.subr.mxu0 0.0
    %4594 = vmatpush1.xpose.msra.mxu0 0.0
    %4595 = vmatprep.subr.mxu0 0.0
    %4596 = vmatpush1.xpose.msra.mxu0 0.0
    %4597 = vmatprep.subr.mxu0 0.0
    %4598 = vmatpush1.xpose.msra.mxu0 0.0
    %4599 = vmatprep.subr.mxu0 0.0
    %4600 = vmatpush1.xpose.msra.mxu0 0.0
    %4601 = vmatprep.subr.mxu0 0.0
    %4602 = vmatpush1.xpose.msra.mxu0 0.0
    %4603 = vmatprep.subr.mxu0 0.0
    %4604 = vmatpush1.xpose.msra.mxu0 0.0
    %4605 = vmatprep.subr.mxu0 0.0
    %4606 = vmatpush1.xpose.msra.mxu0 0.0
    %4607 = vmatprep.subr.mxu0 0.0
    %4608 = vmatpush1.xpose.msra.mxu0 0.0
    %4609 = vmatprep.subr.mxu0 0.0
    %4610 = vmatpush1.xpose.msra.mxu0 0.0
    %4611 = vmatprep.subr.mxu0 0.0
    %4612 = vmatpush1.xpose.msra.mxu0 0.0
    %4613 = vmatprep.subr.mxu0 0.0
    %4614 = vmatpush1.xpose.msra.mxu0 0.0
    %4615 = vmatprep.subr.mxu0 0.0
    %4616 = vmatpush1.xpose.msra.mxu0 0.0
    %4617 = vmatprep.subr.mxu0 0.0
    %4618 = vmatpush1.xpose.msra.mxu0 0.0
    %4619 = vmatprep.subr.mxu0 0.0
    %4620 = vmatpush1.xpose.msra.mxu0 0.0
    %4621 = vmatprep.subr.mxu0 0.0
    %4622 = vmatpush1.xpose.msra.mxu0 0.0
    %4623 = vmatprep.subr.mxu0 0.0
    %4624 = vmatpush1.xpose.msra.mxu0 0.0
    %4625 = vmatprep.subr.mxu0 0.0
    %4626 = vmatpush1.xpose.msra.mxu0 0.0
    %4627 = vmatprep.subr.mxu0 0.0
    %4628 = vmatpush1.xpose.msra.mxu0 0.0
    %4629 = vmatprep.subr.mxu0 0.0
    %4630 = vmatpush1.xpose.msra.mxu0 0.0
    %4631 = vmatprep.subr.mxu0 0.0
    %4632 = vmatpush1.xpose.msra.mxu0 0.0
    %4633 = vmatprep.mubr.f32.mxu0 0.0
    %4634 = vmatmul.mubr.f32.gmra.mrb[0].mxu0 %v4561
    %v4635 = vpop.f32.mrb[0].mxu0
    %v4636 = vadd.f32 %v4463, %v4635
    %v4637 = vpop.f32.mrb[0].mxu0
    %4638 = vdwg.mxu0
    %v4640 = vsel %vm344, %v4273, 0
    %v4643 = vsel %vm344, %v4294, 0
    %v4646 = vsel %vm344, %v4295, 0
    %4648 = vmatprep.subr.mxu0 0.0
    %4649 = vmatpush1.xpose.msra.mxu0 %v4643
    %4650 = vmatprep.subr.mxu0 0.0
    %4651 = vmatpush1.xpose.msra.mxu0 %v4646
    %4652 = vmatprep.subr.mxu0 0.0
    %4653 = vmatpush1.xpose.msra.mxu0 0.0
    %4654 = vmatprep.subr.mxu0 0.0
    %4655 = vmatpush1.xpose.msra.mxu0 0.0
    %4656 = vmatprep.subr.mxu0 0.0
    %4657 = vmatpush1.xpose.msra.mxu0 0.0
    %4658 = vmatprep.subr.mxu0 0.0
    %4659 = vmatpush1.xpose.msra.mxu0 0.0
    %4660 = vmatprep.subr.mxu0 0.0
    %4661 = vmatpush1.xpose.msra.mxu0 0.0
    %4662 = vmatprep.subr.mxu0 0.0
    %4663 = vmatpush1.xpose.msra.mxu0 0.0
    %4664 = vmatprep.subr.mxu0 0.0
    %4665 = vmatpush1.xpose.msra.mxu0 0.0
    %4666 = vmatprep.subr.mxu0 0.0
    %4667 = vmatpush1.xpose.msra.mxu0 0.0
    %4668 = vmatprep.subr.mxu0 0.0
    %4669 = vmatpush1.xpose.msra.mxu0 0.0
    %4670 = vmatprep.subr.mxu0 0.0
    %4671 = vmatpush1.xpose.msra.mxu0 0.0
    %4672 = vmatprep.subr.mxu0 0.0
    %4673 = vmatpush1.xpose.msra.mxu0 0.0
    %4674 = vmatprep.subr.mxu0 0.0
    %4675 = vmatpush1.xpose.msra.mxu0 0.0
    %4676 = vmatprep.subr.mxu0 0.0
    %4677 = vmatpush1.xpose.msra.mxu0 0.0
    %4678 = vmatprep.subr.mxu0 0.0
    %4679 = vmatpush1.xpose.msra.mxu0 0.0
    %4680 = vmatprep.subr.mxu0 0.0
    %4681 = vmatpush1.xpose.msra.mxu0 0.0
    %4682 = vmatprep.subr.mxu0 0.0
    %4683 = vmatpush1.xpose.msra.mxu0 0.0
    %4684 = vmatprep.subr.mxu0 0.0
    %4685 = vmatpush1.xpose.msra.mxu0 0.0
    %4686 = vmatprep.subr.mxu0 0.0
    %4687 = vmatpush1.xpose.msra.mxu0 0.0
    %4688 = vmatprep.subr.mxu0 0.0
    %4689 = vmatpush1.xpose.msra.mxu0 0.0
    %4690 = vmatprep.subr.mxu0 0.0
    %4691 = vmatpush1.xpose.msra.mxu0 0.0
    %4692 = vmatprep.subr.mxu0 0.0
    %4693 = vmatpush1.xpose.msra.mxu0 0.0
    %4694 = vmatprep.subr.mxu0 0.0
    %4695 = vmatpush1.xpose.msra.mxu0 0.0
    %4696 = vmatprep.subr.mxu0 0.0
    %4697 = vmatpush1.xpose.msra.mxu0 0.0
    %4698 = vmatprep.subr.mxu0 0.0
    %4699 = vmatpush1.xpose.msra.mxu0 0.0
    %4700 = vmatprep.subr.mxu0 0.0
    %4701 = vmatpush1.xpose.msra.mxu0 0.0
    %4702 = vmatprep.subr.mxu0 0.0
    %4703 = vmatpush1.xpose.msra.mxu0 0.0
    %4704 = vmatprep.subr.mxu0 0.0
    %4705 = vmatpush1.xpose.msra.mxu0 0.0
    %4706 = vmatprep.subr.mxu0 0.0
    %4707 = vmatpush1.xpose.msra.mxu0 0.0
    %4708 = vmatprep.subr.mxu0 0.0
    %4709 = vmatpush1.xpose.msra.mxu0 0.0
    %4710 = vmatprep.subr.mxu0 0.0
    %4711 = vmatpush1.xpose.msra.mxu0 0.0
    %4712 = vmatprep.mubr.f32.mxu0 0.0
    %4713 = vmatmul.mubr.f32.gmra.mrb[0].mxu0 %v4640
    %v4714 = vpop.f32.mrb[0].mxu0
    %v4715 = vadd.f32 %v4467, %v4714
    %v4716 = vpop.f32.mrb[0].mxu0
    %4717 = vdwg.mxu0
    %v4719 = vsel %vm344, %v4274, 0
    %v4722 = vsel %vm344, %v4296, 0
    %v4725 = vsel %vm344, %v4297, 0
    %4727 = vmatprep.subr.mxu0 0.0
    %4728 = vmatpush1.xpose.msra.mxu0 %v4722
    %4729 = vmatprep.subr.mxu0 0.0
    %4730 = vmatpush1.xpose.msra.mxu0 %v4725
    %4731 = vmatprep.subr.mxu0 0.0
    %4732 = vmatpush1.xpose.msra.mxu0 0.0
    %4733 = vmatprep.subr.mxu0 0.0
    %4734 = vmatpush1.xpose.msra.mxu0 0.0
    %4735 = vmatprep.subr.mxu0 0.0
    %4736 = vmatpush1.xpose.msra.mxu0 0.0
    %4737 = vmatprep.subr.mxu0 0.0
    %4738 = vmatpush1.xpose.msra.mxu0 0.0
    %4739 = vmatprep.subr.mxu0 0.0
    %4740 = vmatpush1.xpose.msra.mxu0 0.0
    %4741 = vmatprep.subr.mxu0 0.0
    %4742 = vmatpush1.xpose.msra.mxu0 0.0
    %4743 = vmatprep.subr.mxu0 0.0
    %4744 = vmatpush1.xpose.msra.mxu0 0.0
    %4745 = vmatprep.subr.mxu0 0.0
    %4746 = vmatpush1.xpose.msra.mxu0 0.0
    %4747 = vmatprep.subr.mxu0 0.0
    %4748 = vmatpush1.xpose.msra.mxu0 0.0
    %4749 = vmatprep.subr.mxu0 0.0
    %4750 = vmatpush1.xpose.msra.mxu0 0.0
    %4751 = vmatprep.subr.mxu0 0.0
    %4752 = vmatpush1.xpose.msra.mxu0 0.0
    %4753 = vmatprep.subr.mxu0 0.0
    %4754 = vmatpush1.xpose.msra.mxu0 0.0
    %4755 = vmatprep.subr.mxu0 0.0
    %4756 = vmatpush1.xpose.msra.mxu0 0.0
    %4757 = vmatprep.subr.mxu0 0.0
    %4758 = vmatpush1.xpose.msra.mxu0 0.0
    %4759 = vmatprep.subr.mxu0 0.0
    %4760 = vmatpush1.xpose.msra.mxu0 0.0
    %4761 = vmatprep.subr.mxu0 0.0
    %4762 = vmatpush1.xpose.msra.mxu0 0.0
    %4763 = vmatprep.subr.mxu0 0.0
    %4764 = vmatpush1.xpose.msra.mxu0 0.0
    %4765 = vmatprep.subr.mxu0 0.0
    %4766 = vmatpush1.xpose.msra.mxu0 0.0
    %4767 = vmatprep.subr.mxu0 0.0
    %4768 = vmatpush1.xpose.msra.mxu0 0.0
    %4769 = vmatprep.subr.mxu0 0.0
    %4770 = vmatpush1.xpose.msra.mxu0 0.0
    %4771 = vmatprep.subr.mxu0 0.0
    %4772 = vmatpush1.xpose.msra.mxu0 0.0
    %4773 = vmatprep.subr.mxu0 0.0
    %4774 = vmatpush1.xpose.msra.mxu0 0.0
    %4775 = vmatprep.subr.mxu0 0.0
    %4776 = vmatpush1.xpose.msra.mxu0 0.0
    %4777 = vmatprep.subr.mxu0 0.0
    %4778 = vmatpush1.xpose.msra.mxu0 0.0
    %4779 = vmatprep.subr.mxu0 0.0
    %4780 = vmatpush1.xpose.msra.mxu0 0.0
    %4781 = vmatprep.subr.mxu0 0.0
    %4782 = vmatpush1.xpose.msra.mxu0 0.0
    %4783 = vmatprep.subr.mxu0 0.0
    %4784 = vmatpush1.xpose.msra.mxu0 0.0
    %4785 = vmatprep.subr.mxu0 0.0
    %4786 = vmatpush1.xpose.msra.mxu0 0.0
    %4787 = vmatprep.subr.mxu0 0.0
    %4788 = vmatpush1.xpose.msra.mxu0 0.0
    %4789 = vmatprep.subr.mxu0 0.0
    %4790 = vmatpush1.xpose.msra.mxu0 0.0
    %4791 = vmatprep.mubr.f32.mxu0 0.0
    %4792 = vmatmul.mubr.f32.gmra.mrb[0].mxu0 %v4719
    %v4793 = vpop.f32.mrb[0].mxu0
    %v4794 = vadd.f32 %v4471, %v4793
    %v4795 = vpop.f32.mrb[0].mxu0
    %4796 = vdwg.mxu0
    %v4798 = vsel %vm344, %v4275, 0
    %v4801 = vsel %vm344, %v4298, 0
    %v4804 = vsel %vm344, %v4299, 0
    %4806 = vmatprep.subr.mxu0 0.0
    %4807 = vmatpush1.xpose.msra.mxu0 %v4801
    %4808 = vmatprep.subr.mxu0 0.0
    %4809 = vmatpush1.xpose.msra.mxu0 %v4804
    %4810 = vmatprep.subr.mxu0 0.0
    %4811 = vmatpush1.xpose.msra.mxu0 0.0
    %4812 = vmatprep.subr.mxu0 0.0
    %4813 = vmatpush1.xpose.msra.mxu0 0.0
    %4814 = vmatprep.subr.mxu0 0.0
    %4815 = vmatpush1.xpose.msra.mxu0 0.0
    %4816 = vmatprep.subr.mxu0 0.0
    %4817 = vmatpush1.xpose.msra.mxu0 0.0
    %4818 = vmatprep.subr.mxu0 0.0
    %4819 = vmatpush1.xpose.msra.mxu0 0.0
    %4820 = vmatprep.subr.mxu0 0.0
    %4821 = vmatpush1.xpose.msra.mxu0 0.0
    %4822 = vmatprep.subr.mxu0 0.0
    %4823 = vmatpush1.xpose.msra.mxu0 0.0
    %4824 = vmatprep.subr.mxu0 0.0
    %4825 = vmatpush1.xpose.msra.mxu0 0.0
    %4826 = vmatprep.subr.mxu0 0.0
    %4827 = vmatpush1.xpose.msra.mxu0 0.0
    %4828 = vmatprep.subr.mxu0 0.0
    %4829 = vmatpush1.xpose.msra.mxu0 0.0
    %4830 = vmatprep.subr.mxu0 0.0
    %4831 = vmatpush1.xpose.msra.mxu0 0.0
    %4832 = vmatprep.subr.mxu0 0.0
    %4833 = vmatpush1.xpose.msra.mxu0 0.0
    %4834 = vmatprep.subr.mxu0 0.0
    %4835 = vmatpush1.xpose.msra.mxu0 0.0
    %4836 = vmatprep.subr.mxu0 0.0
    %4837 = vmatpush1.xpose.msra.mxu0 0.0
    %4838 = vmatprep.subr.mxu0 0.0
    %4839 = vmatpush1.xpose.msra.mxu0 0.0
    %4840 = vmatprep.subr.mxu0 0.0
    %4841 = vmatpush1.xpose.msra.mxu0 0.0
    %4842 = vmatprep.subr.mxu0 0.0
    %4843 = vmatpush1.xpose.msra.mxu0 0.0
    %4844 = vmatprep.subr.mxu0 0.0
    %4845 = vmatpush1.xpose.msra.mxu0 0.0
    %4846 = vmatprep.subr.mxu0 0.0
    %4847 = vmatpush1.xpose.msra.mxu0 0.0
    %4848 = vmatprep.subr.mxu0 0.0
    %4849 = vmatpush1.xpose.msra.mxu0 0.0
    %4850 = vmatprep.subr.mxu0 0.0
    %4851 = vmatpush1.xpose.msra.mxu0 0.0
    %4852 = vmatprep.subr.mxu0 0.0
    %4853 = vmatpush1.xpose.msra.mxu0 0.0
    %4854 = vmatprep.subr.mxu0 0.0
    %4855 = vmatpush1.xpose.msra.mxu0 0.0
    %4856 = vmatprep.subr.mxu0 0.0
    %4857 = vmatpush1.xpose.msra.mxu0 0.0
    %4858 = vmatprep.subr.mxu0 0.0
    %4859 = vmatpush1.xpose.msra.mxu0 0.0
    %4860 = vmatprep.subr.mxu0 0.0
    %4861 = vmatpush1.xpose.msra.mxu0 0.0
    %4862 = vmatprep.subr.mxu0 0.0
    %4863 = vmatpush1.xpose.msra.mxu0 0.0
    %4864 = vmatprep.subr.mxu0 0.0
    %4865 = vmatpush1.xpose.msra.mxu0 0.0
    %4866 = vmatprep.subr.mxu0 0.0
    %4867 = vmatpush1.xpose.msra.mxu0 0.0
    %4868 = vmatprep.subr.mxu0 0.0
    %4869 = vmatpush1.xpose.msra.mxu0 0.0
    %4870 = vmatprep.mubr.f32.mxu0 0.0
    %4871 = vmatmul.mubr.f32.gmra.mrb[0].mxu0 %v4798
    %v4872 = vpop.f32.mrb[0].mxu0
    %v4873 = vadd.f32 %v4475, %v4872
    %v4874 = vpop.f32.mrb[0].mxu0
    %4875 = vdwg.mxu0
    %v4877 = vsel %vm344, %v4276, 0
    %v4880 = vsel %vm344, %v4300, 0
    %v4883 = vsel %vm344, %v4301, 0
    %4885 = vmatprep.subr.mxu0 0.0
    %4886 = vmatpush1.xpose.msra.mxu0 %v4880
    %4887 = vmatprep.subr.mxu0 0.0
    %4888 = vmatpush1.xpose.msra.mxu0 %v4883
    %4889 = vmatprep.subr.mxu0 0.0
    %4890 = vmatpush1.xpose.msra.mxu0 0.0
    %4891 = vmatprep.subr.mxu0 0.0
    %4892 = vmatpush1.xpose.msra.mxu0 0.0
    %4893 = vmatprep.subr.mxu0 0.0
    %4894 = vmatpush1.xpose.msra.mxu0 0.0
    %4895 = vmatprep.subr.mxu0 0.0
    %4896 = vmatpush1.xpose.msra.mxu0 0.0
    %4897 = vmatprep.subr.mxu0 0.0
    %4898 = vmatpush1.xpose.msra.mxu0 0.0
    %4899 = vmatprep.subr.mxu0 0.0
    %4900 = vmatpush1.xpose.msra.mxu0 0.0
    %4901 = vmatprep.subr.mxu0 0.0
    %4902 = vmatpush1.xpose.msra.mxu0 0.0
    %4903 = vmatprep.subr.mxu0 0.0
    %4904 = vmatpush1.xpose.msra.mxu0 0.0
    %4905 = vmatprep.subr.mxu0 0.0
    %4906 = vmatpush1.xpose.msra.mxu0 0.0
    %4907 = vmatprep.subr.mxu0 0.0
    %4908 = vmatpush1.xpose.msra.mxu0 0.0
    %4909 = vmatprep.subr.mxu0 0.0
    %4910 = vmatpush1.xpose.msra.mxu0 0.0
    %4911 = vmatprep.subr.mxu0 0.0
    %4912 = vmatpush1.xpose.msra.mxu0 0.0
    %4913 = vmatprep.subr.mxu0 0.0
    %4914 = vmatpush1.xpose.msra.mxu0 0.0
    %4915 = vmatprep.subr.mxu0 0.0
    %4916 = vmatpush1.xpose.msra.mxu0 0.0
    %4917 = vmatprep.subr.mxu0 0.0
    %4918 = vmatpush1.xpose.msra.mxu0 0.0
    %4919 = vmatprep.subr.mxu0 0.0
    %4920 = vmatpush1.xpose.msra.mxu0 0.0
    %4921 = vmatprep.subr.mxu0 0.0
    %4922 = vmatpush1.xpose.msra.mxu0 0.0
    %4923 = vmatprep.subr.mxu0 0.0
    %4924 = vmatpush1.xpose.msra.mxu0 0.0
    %4925 = vmatprep.subr.mxu0 0.0
    %4926 = vmatpush1.xpose.msra.mxu0 0.0
    %4927 = vmatprep.subr.mxu0 0.0
    %4928 = vmatpush1.xpose.msra.mxu0 0.0
    %4929 = vmatprep.subr.mxu0 0.0
    %4930 = vmatpush1.xpose.msra.mxu0 0.0
    %4931 = vmatprep.subr.mxu0 0.0
    %4932 = vmatpush1.xpose.msra.mxu0 0.0
    %4933 = vmatprep.subr.mxu0 0.0
    %4934 = vmatpush1.xpose.msra.mxu0 0.0
    %4935 = vmatprep.subr.mxu0 0.0
    %4936 = vmatpush1.xpose.msra.mxu0 0.0
    %4937 = vmatprep.subr.mxu0 0.0
    %4938 = vmatpush1.xpose.msra.mxu0 0.0
    %4939 = vmatprep.subr.mxu0 0.0
    %4940 = vmatpush1.xpose.msra.mxu0 0.0
    %4941 = vmatprep.subr.mxu0 0.0
    %4942 = vmatpush1.xpose.msra.mxu0 0.0
    %4943 = vmatprep.subr.mxu0 0.0
    %4944 = vmatpush1.xpose.msra.mxu0 0.0
    %4945 = vmatprep.subr.mxu0 0.0
    %4946 = vmatpush1.xpose.msra.mxu0 0.0
    %4947 = vmatprep.subr.mxu0 0.0
    %4948 = vmatpush1.xpose.msra.mxu0 0.0
    %4949 = vmatprep.mubr.f32.mxu0 0.0
    %4950 = vmatmul.mubr.f32.gmra.mrb[0].mxu0 %v4877
    %v4951 = vpop.f32.mrb[0].mxu0
    %v4952 = vadd.f32 %v4479, %v4951
    %v4953 = vpop.f32.mrb[0].mxu0
    %4954 = vdwg.mxu0
    %v4956 = vsel %vm344, %v4277, 0
    %v4959 = vsel %vm344, %v4302, 0
    %v4962 = vsel %vm344, %v4303, 0
    %4964 = vmatprep.subr.mxu0 0.0
    %4965 = vmatpush1.xpose.msra.mxu0 %v4959
    %4966 = vmatprep.subr.mxu0 0.0
    %4967 = vmatpush1.xpose.msra.mxu0 %v4962
    %4968 = vmatprep.subr.mxu0 0.0
    %4969 = vmatpush1.xpose.msra.mxu0 0.0
    %4970 = vmatprep.subr.mxu0 0.0
    %4971 = vmatpush1.xpose.msra.mxu0 0.0
    %4972 = vmatprep.subr.mxu0 0.0
    %4973 = vmatpush1.xpose.msra.mxu0 0.0
    %4974 = vmatprep.subr.mxu0 0.0
    %4975 = vmatpush1.xpose.msra.mxu0 0.0
    %4976 = vmatprep.subr.mxu0 0.0
    %4977 = vmatpush1.xpose.msra.mxu0 0.0
    %4978 = vmatprep.subr.mxu0 0.0
    %4979 = vmatpush1.xpose.msra.mxu0 0.0
    %4980 = vmatprep.subr.mxu0 0.0
    %4981 = vmatpush1.xpose.msra.mxu0 0.0
    %4982 = vmatprep.subr.mxu0 0.0
    %4983 = vmatpush1.xpose.msra.mxu0 0.0
    %4984 = vmatprep.subr.mxu0 0.0
    %4985 = vmatpush1.xpose.msra.mxu0 0.0
    %4986 = vmatprep.subr.mxu0 0.0
    %4987 = vmatpush1.xpose.msra.mxu0 0.0
    %4988 = vmatprep.subr.mxu0 0.0
    %4989 = vmatpush1.xpose.msra.mxu0 0.0
    %4990 = vmatprep.subr.mxu0 0.0
    %4991 = vmatpush1.xpose.msra.mxu0 0.0
    %4992 = vmatprep.subr.mxu0 0.0
    %4993 = vmatpush1.xpose.msra.mxu0 0.0
    %4994 = vmatprep.subr.mxu0 0.0
    %4995 = vmatpush1.xpose.msra.mxu0 0.0
    %4996 = vmatprep.subr.mxu0 0.0
    %4997 = vmatpush1.xpose.msra.mxu0 0.0
    %4998 = vmatprep.subr.mxu0 0.0
    %4999 = vmatpush1.xpose.msra.mxu0 0.0
    %5000 = vmatprep.subr.mxu0 0.0
    %5001 = vmatpush1.xpose.msra.mxu0 0.0
    %5002 = vmatprep.subr.mxu0 0.0
    %5003 = vmatpush1.xpose.msra.mxu0 0.0
    %5004 = vmatprep.subr.mxu0 0.0
    %5005 = vmatpush1.xpose.msra.mxu0 0.0
    %5006 = vmatprep.subr.mxu0 0.0
    %5007 = vmatpush1.xpose.msra.mxu0 0.0
    %5008 = vmatprep.subr.mxu0 0.0
    %5009 = vmatpush1.xpose.msra.mxu0 0.0
    %5010 = vmatprep.subr.mxu0 0.0
    %5011 = vmatpush1.xpose.msra.mxu0 0.0
    %5012 = vmatprep.subr.mxu0 0.0
    %5013 = vmatpush1.xpose.msra.mxu0 0.0
    %5014 = vmatprep.subr.mxu0 0.0
    %5015 = vmatpush1.xpose.msra.mxu0 0.0
    %5016 = vmatprep.subr.mxu0 0.0
    %5017 = vmatpush1.xpose.msra.mxu0 0.0
    %5018 = vmatprep.subr.mxu0 0.0
    %5019 = vmatpush1.xpose.msra.mxu0 0.0
    %5020 = vmatprep.subr.mxu0 0.0
    %5021 = vmatpush1.xpose.msra.mxu0 0.0
    %5022 = vmatprep.subr.mxu0 0.0
    %5023 = vmatpush1.xpose.msra.mxu0 0.0
    %5024 = vmatprep.subr.mxu0 0.0
    %5025 = vmatpush1.xpose.msra.mxu0 0.0
    %5026 = vmatprep.subr.mxu0 0.0
    %5027 = vmatpush1.xpose.msra.mxu0 0.0
    %5028 = vmatprep.mubr.f32.mxu0 0.0
    %5029 = vmatmul.mubr.f32.gmra.mrb[0].mxu0 %v4956
    %v5030 = vpop.f32.mrb[0].mxu0
    %v5031 = vadd.f32 %v4483, %v5030
    %v5032 = vpop.f32.mrb[0].mxu0
    %5033 = vdwg.mxu0
    %v5035 = vsel %vm344, %v4278, 0
    %v5038 = vsel %vm344, %v4304, 0
    %v5041 = vsel %vm344, %v4305, 0
    %5043 = vmatprep.subr.mxu0 0.0
    %5044 = vmatpush1.xpose.msra.mxu0 %v5038
    %5045 = vmatprep.subr.mxu0 0.0
    %5046 = vmatpush1.xpose.msra.mxu0 %v5041
    %5047 = vmatprep.subr.mxu0 0.0
    %5048 = vmatpush1.xpose.msra.mxu0 0.0
    %5049 = vmatprep.subr.mxu0 0.0
    %5050 = vmatpush1.xpose.msra.mxu0 0.0
    %5051 = vmatprep.subr.mxu0 0.0
    %5052 = vmatpush1.xpose.msra.mxu0 0.0
    %5053 = vmatprep.subr.mxu0 0.0
    %5054 = vmatpush1.xpose.msra.mxu0 0.0
    %5055 = vmatprep.subr.mxu0 0.0
    %5056 = vmatpush1.xpose.msra.mxu0 0.0
    %5057 = vmatprep.subr.mxu0 0.0
    %5058 = vmatpush1.xpose.msra.mxu0 0.0
    %5059 = vmatprep.subr.mxu0 0.0
    %5060 = vmatpush1.xpose.msra.mxu0 0.0
    %5061 = vmatprep.subr.mxu0 0.0
    %5062 = vmatpush1.xpose.msra.mxu0 0.0
    %5063 = vmatprep.subr.mxu0 0.0
    %5064 = vmatpush1.xpose.msra.mxu0 0.0
    %5065 = vmatprep.subr.mxu0 0.0
    %5066 = vmatpush1.xpose.msra.mxu0 0.0
    %5067 = vmatprep.subr.mxu0 0.0
    %5068 = vmatpush1.xpose.msra.mxu0 0.0
    %5069 = vmatprep.subr.mxu0 0.0
    %5070 = vmatpush1.xpose.msra.mxu0 0.0
    %5071 = vmatprep.subr.mxu0 0.0
    %5072 = vmatpush1.xpose.msra.mxu0 0.0
    %5073 = vmatprep.subr.mxu0 0.0
    %5074 = vmatpush1.xpose.msra.mxu0 0.0
    %5075 = vmatprep.subr.mxu0 0.0
    %5076 = vmatpush1.xpose.msra.mxu0 0.0
    %5077 = vmatprep.subr.mxu0 0.0
    %5078 = vmatpush1.xpose.msra.mxu0 0.0
    %5079 = vmatprep.subr.mxu0 0.0
    %5080 = vmatpush1.xpose.msra.mxu0 0.0
    %5081 = vmatprep.subr.mxu0 0.0
    %5082 = vmatpush1.xpose.msra.mxu0 0.0
    %5083 = vmatprep.subr.mxu0 0.0
    %5084 = vmatpush1.xpose.msra.mxu0 0.0
    %5085 = vmatprep.subr.mxu0 0.0
    %5086 = vmatpush1.xpose.msra.mxu0 0.0
    %5087 = vmatprep.subr.mxu0 0.0
    %5088 = vmatpush1.xpose.msra.mxu0 0.0
    %5089 = vmatprep.subr.mxu0 0.0
    %5090 = vmatpush1.xpose.msra.mxu0 0.0
    %5091 = vmatprep.subr.mxu0 0.0
    %5092 = vmatpush1.xpose.msra.mxu0 0.0
    %5093 = vmatprep.subr.mxu0 0.0
    %5094 = vmatpush1.xpose.msra.mxu0 0.0
    %5095 = vmatprep.subr.mxu0 0.0
    %5096 = vmatpush1.xpose.msra.mxu0 0.0
    %5097 = vmatprep.subr.mxu0 0.0
    %5098 = vmatpush1.xpose.msra.mxu0 0.0
    %5099 = vmatprep.subr.mxu0 0.0
    %5100 = vmatpush1.xpose.msra.mxu0 0.0
    %5101 = vmatprep.subr.mxu0 0.0
    %5102 = vmatpush1.xpose.msra.mxu0 0.0
    %5103 = vmatprep.subr.mxu0 0.0
    %5104 = vmatpush1.xpose.msra.mxu0 0.0
    %5105 = vmatprep.subr.mxu0 0.0
    %5106 = vmatpush1.xpose.msra.mxu0 0.0
    %5107 = vmatprep.mubr.f32.mxu0 0.0
    %5108 = vmatmul.mubr.f32.gmra.mrb[0].mxu0 %v5035
    %v5109 = vpop.f32.mrb[0].mxu0
    %v5110 = vadd.f32 %v4487, %v5109
    %v5111 = vpop.f32.mrb[0].mxu0
    %5112 = vdwg.mxu0
    %v5114 = vsel %vm344, %v4279, 0
    %v5117 = vsel %vm344, %v4306, 0
    %v5120 = vsel %vm344, %v4307, 0
    %5122 = vmatprep.subr.mxu0 0.0
    %5123 = vmatpush1.xpose.msra.mxu0 %v5117
    %5124 = vmatprep.subr.mxu0 0.0
    %5125 = vmatpush1.xpose.msra.mxu0 %v5120
    %5126 = vmatprep.subr.mxu0 0.0
    %5127 = vmatpush1.xpose.msra.mxu0 0.0
    %5128 = vmatprep.subr.mxu0 0.0
    %5129 = vmatpush1.xpose.msra.mxu0 0.0
    %5130 = vmatprep.subr.mxu0 0.0
    %5131 = vmatpush1.xpose.msra.mxu0 0.0
    %5132 = vmatprep.subr.mxu0 0.0
    %5133 = vmatpush1.xpose.msra.mxu0 0.0
    %5134 = vmatprep.subr.mxu0 0.0
    %5135 = vmatpush1.xpose.msra.mxu0 0.0
    %5136 = vmatprep.subr.mxu0 0.0
    %5137 = vmatpush1.xpose.msra.mxu0 0.0
    %5138 = vmatprep.subr.mxu0 0.0
    %5139 = vmatpush1.xpose.msra.mxu0 0.0
    %5140 = vmatprep.subr.mxu0 0.0
    %5141 = vmatpush1.xpose.msra.mxu0 0.0
    %5142 = vmatprep.subr.mxu0 0.0
    %5143 = vmatpush1.xpose.msra.mxu0 0.0
    %5144 = vmatprep.subr.mxu0 0.0
    %5145 = vmatpush1.xpose.msra.mxu0 0.0
    %5146 = vmatprep.subr.mxu0 0.0
    %5147 = vmatpush1.xpose.msra.mxu0 0.0
    %5148 = vmatprep.subr.mxu0 0.0
    %5149 = vmatpush1.xpose.msra.mxu0 0.0
    %5150 = vmatprep.subr.mxu0 0.0
    %5151 = vmatpush1.xpose.msra.mxu0 0.0
    %5152 = vmatprep.subr.mxu0 0.0
    %5153 = vmatpush1.xpose.msra.mxu0 0.0
    %5154 = vmatprep.subr.mxu0 0.0
    %5155 = vmatpush1.xpose.msra.mxu0 0.0
    %5156 = vmatprep.subr.mxu0 0.0
    %5157 = vmatpush1.xpose.msra.mxu0 0.0
    %5158 = vmatprep.subr.mxu0 0.0
    %5159 = vmatpush1.xpose.msra.mxu0 0.0
    %5160 = vmatprep.subr.mxu0 0.0
    %5161 = vmatpush1.xpose.msra.mxu0 0.0
    %5162 = vmatprep.subr.mxu0 0.0
    %5163 = vmatpush1.xpose.msra.mxu0 0.0
    %5164 = vmatprep.subr.mxu0 0.0
    %5165 = vmatpush1.xpose.msra.mxu0 0.0
    %5166 = vmatprep.subr.mxu0 0.0
    %5167 = vmatpush1.xpose.msra.mxu0 0.0
    %5168 = vmatprep.subr.mxu0 0.0
    %5169 = vmatpush1.xpose.msra.mxu0 0.0
    %5170 = vmatprep.subr.mxu0 0.0
    %5171 = vmatpush1.xpose.msra.mxu0 0.0
    %5172 = vmatprep.subr.mxu0 0.0
    %5173 = vmatpush1.xpose.msra.mxu0 0.0
    %5174 = vmatprep.subr.mxu0 0.0
    %5175 = vmatpush1.xpose.msra.mxu0 0.0
    %5176 = vmatprep.subr.mxu0 0.0
    %5177 = vmatpush1.xpose.msra.mxu0 0.0
    %5178 = vmatprep.subr.mxu0 0.0
    %5179 = vmatpush1.xpose.msra.mxu0 0.0
    %5180 = vmatprep.subr.mxu0 0.0
    %5181 = vmatpush1.xpose.msra.mxu0 0.0
    %5182 = vmatprep.subr.mxu0 0.0
    %5183 = vmatpush1.xpose.msra.mxu0 0.0
    %5184 = vmatprep.subr.mxu0 0.0
    %5185 = vmatpush1.xpose.msra.mxu0 0.0
    %5186 = vmatprep.mubr.f32.mxu0 0.0
    %5187 = vmatmul.mubr.f32.gmra.mrb[0].mxu0 %v5114
    %v5188 = vpop.f32.mrb[0].mxu0
    %v5189 = vadd.f32 %v4491, %v5188
    %v5190 = vpop.f32.mrb[0].mxu0
    %5191 = vdwg.mxu0
    %v5193 = vsel %vm344, %v4280, 0
    %v5196 = vsel %vm344, %v4308, 0
    %v5199 = vsel %vm344, %v4309, 0
    %5201 = vmatprep.subr.mxu0 0.0
    %5202 = vmatpush1.xpose.msra.mxu0 %v5196
    %5203 = vmatprep.subr.mxu0 0.0
    %5204 = vmatpush1.xpose.msra.mxu0 %v5199
    %5205 = vmatprep.subr.mxu0 0.0
    %5206 = vmatpush1.xpose.msra.mxu0 0.0
    %5207 = vmatprep.subr.mxu0 0.0
    %5208 = vmatpush1.xpose.msra.mxu0 0.0
    %5209 = vmatprep.subr.mxu0 0.0
    %5210 = vmatpush1.xpose.msra.mxu0 0.0
    %5211 = vmatprep.subr.mxu0 0.0
    %5212 = vmatpush1.xpose.msra.mxu0 0.0
    %5213 = vmatprep.subr.mxu0 0.0
    %5214 = vmatpush1.xpose.msra.mxu0 0.0
    %5215 = vmatprep.subr.mxu0 0.0
    %5216 = vmatpush1.xpose.msra.mxu0 0.0
    %5217 = vmatprep.subr.mxu0 0.0
    %5218 = vmatpush1.xpose.msra.mxu0 0.0
    %5219 = vmatprep.subr.mxu0 0.0
    %5220 = vmatpush1.xpose.msra.mxu0 0.0
    %5221 = vmatprep.subr.mxu0 0.0
    %5222 = vmatpush1.xpose.msra.mxu0 0.0
    %5223 = vmatprep.subr.mxu0 0.0
    %5224 = vmatpush1.xpose.msra.mxu0 0.0
    %5225 = vmatprep.subr.mxu0 0.0
    %5226 = vmatpush1.xpose.msra.mxu0 0.0
    %5227 = vmatprep.subr.mxu0 0.0
    %5228 = vmatpush1.xpose.msra.mxu0 0.0
    %5229 = vmatprep.subr.mxu0 0.0
    %5230 = vmatpush1.xpose.msra.mxu0 0.0
    %5231 = vmatprep.subr.mxu0 0.0
    %5232 = vmatpush1.xpose.msra.mxu0 0.0
    %5233 = vmatprep.subr.mxu0 0.0
    %5234 = vmatpush1.xpose.msra.mxu0 0.0
    %5235 = vmatprep.subr.mxu0 0.0
    %5236 = vmatpush1.xpose.msra.mxu0 0.0
    %5237 = vmatprep.subr.mxu0 0.0
    %5238 = vmatpush1.xpose.msra.mxu0 0.0
    %5239 = vmatprep.subr.mxu0 0.0
    %5240 = vmatpush1.xpose.msra.mxu0 0.0
    %5241 = vmatprep.subr.mxu0 0.0
    %5242 = vmatpush1.xpose.msra.mxu0 0.0
    %5243 = vmatprep.subr.mxu0 0.0
    %5244 = vmatpush1.xpose.msra.mxu0 0.0
    %5245 = vmatprep.subr.mxu0 0.0
    %5246 = vmatpush1.xpose.msra.mxu0 0.0
    %5247 = vmatprep.subr.mxu0 0.0
    %5248 = vmatpush1.xpose.msra.mxu0 0.0
    %5249 = vmatprep.subr.mxu0 0.0
    %5250 = vmatpush1.xpose.msra.mxu0 0.0
    %5251 = vmatprep.subr.mxu0 0.0
    %5252 = vmatpush1.xpose.msra.mxu0 0.0
    %5253 = vmatprep.subr.mxu0 0.0
    %5254 = vmatpush1.xpose.msra.mxu0 0.0
    %5255 = vmatprep.subr.mxu0 0.0
    %5256 = vmatpush1.xpose.msra.mxu0 0.0
    %5257 = vmatprep.subr.mxu0 0.0
    %5258 = vmatpush1.xpose.msra.mxu0 0.0
    %5259 = vmatprep.subr.mxu0 0.0
    %5260 = vmatpush1.xpose.msra.mxu0 0.0
    %5261 = vmatprep.subr.mxu0 0.0
    %5262 = vmatpush1.xpose.msra.mxu0 0.0
    %5263 = vmatprep.subr.mxu0 0.0
    %5264 = vmatpush1.xpose.msra.mxu0 0.0
    %5265 = vmatprep.mubr.f32.mxu0 0.0
    %5266 = vmatmul.mubr.f32.gmra.mrb[0].mxu0 %v5193
    %v5267 = vpop.f32.mrb[0].mxu0
    %v5268 = vadd.f32 %v4495, %v5267
    %v5269 = vpop.f32.mrb[0].mxu0
    %5270 = vdwg.mxu0
    %v5272 = vsel %vm344, %v4281, 0
    %v5275 = vsel %vm344, %v4310, 0
    %v5278 = vsel %vm344, %v4311, 0
    %5280 = vmatprep.subr.mxu0 0.0
    %5281 = vmatpush1.xpose.msra.mxu0 %v5275
    %5282 = vmatprep.subr.mxu0 0.0
    %5283 = vmatpush1.xpose.msra.mxu0 %v5278
    %5284 = vmatprep.subr.mxu0 0.0
    %5285 = vmatpush1.xpose.msra.mxu0 0.0
    %5286 = vmatprep.subr.mxu0 0.0
    %5287 = vmatpush1.xpose.msra.mxu0 0.0
    %5288 = vmatprep.subr.mxu0 0.0
    %5289 = vmatpush1.xpose.msra.mxu0 0.0
    %5290 = vmatprep.subr.mxu0 0.0
    %5291 = vmatpush1.xpose.msra.mxu0 0.0
    %5292 = vmatprep.subr.mxu0 0.0
    %5293 = vmatpush1.xpose.msra.mxu0 0.0
    %5294 = vmatprep.subr.mxu0 0.0
    %5295 = vmatpush1.xpose.msra.mxu0 0.0
    %5296 = vmatprep.subr.mxu0 0.0
    %5297 = vmatpush1.xpose.msra.mxu0 0.0
    %5298 = vmatprep.subr.mxu0 0.0
    %5299 = vmatpush1.xpose.msra.mxu0 0.0
    %5300 = vmatprep.subr.mxu0 0.0
    %5301 = vmatpush1.xpose.msra.mxu0 0.0
    %5302 = vmatprep.subr.mxu0 0.0
    %5303 = vmatpush1.xpose.msra.mxu0 0.0
    %5304 = vmatprep.subr.mxu0 0.0
    %5305 = vmatpush1.xpose.msra.mxu0 0.0
    %5306 = vmatprep.subr.mxu0 0.0
    %5307 = vmatpush1.xpose.msra.mxu0 0.0
    %5308 = vmatprep.subr.mxu0 0.0
    %5309 = vmatpush1.xpose.msra.mxu0 0.0
    %5310 = vmatprep.subr.mxu0 0.0
    %5311 = vmatpush1.xpose.msra.mxu0 0.0
    %5312 = vmatprep.subr.mxu0 0.0
    %5313 = vmatpush1.xpose.msra.mxu0 0.0
    %5314 = vmatprep.subr.mxu0 0.0
    %5315 = vmatpush1.xpose.msra.mxu0 0.0
    %5316 = vmatprep.subr.mxu0 0.0
    %5317 = vmatpush1.xpose.msra.mxu0 0.0
    %5318 = vmatprep.subr.mxu0 0.0
    %5319 = vmatpush1.xpose.msra.mxu0 0.0
    %5320 = vmatprep.subr.mxu0 0.0
    %5321 = vmatpush1.xpose.msra.mxu0 0.0
    %5322 = vmatprep.subr.mxu0 0.0
    %5323 = vmatpush1.xpose.msra.mxu0 0.0
    %5324 = vmatprep.subr.mxu0 0.0
    %5325 = vmatpush1.xpose.msra.mxu0 0.0
    %5326 = vmatprep.subr.mxu0 0.0
    %5327 = vmatpush1.xpose.msra.mxu0 0.0
    %5328 = vmatprep.subr.mxu0 0.0
    %5329 = vmatpush1.xpose.msra.mxu0 0.0
    %5330 = vmatprep.subr.mxu0 0.0
    %5331 = vmatpush1.xpose.msra.mxu0 0.0
    %5332 = vmatprep.subr.mxu0 0.0
    %5333 = vmatpush1.xpose.msra.mxu0 0.0
    %5334 = vmatprep.subr.mxu0 0.0
    %5335 = vmatpush1.xpose.msra.mxu0 0.0
    %5336 = vmatprep.subr.mxu0 0.0
    %5337 = vmatpush1.xpose.msra.mxu0 0.0
    %5338 = vmatprep.subr.mxu0 0.0
    %5339 = vmatpush1.xpose.msra.mxu0 0.0
    %5340 = vmatprep.subr.mxu0 0.0
    %5341 = vmatpush1.xpose.msra.mxu0 0.0
    %5342 = vmatprep.subr.mxu0 0.0
    %5343 = vmatpush1.xpose.msra.mxu0 0.0
    %5344 = vmatprep.mubr.f32.mxu0 0.0
    %5345 = vmatmul.mubr.f32.gmra.mrb[0].mxu0 %v5272
    %v5346 = vpop.f32.mrb[0].mxu0
    %v5347 = vadd.f32 %v4499, %v5346
    %v5348 = vpop.f32.mrb[0].mxu0
    %5349 = vdwg.mxu0
    %v5351 = vsel %vm344, %v4282, 0
    %v5354 = vsel %vm344, %v4312, 0
    %v5357 = vsel %vm344, %v4313, 0
    %5359 = vmatprep.subr.mxu0 0.0
    %5360 = vmatpush1.xpose.msra.mxu0 %v5354
    %5361 = vmatprep.subr.mxu0 0.0
    %5362 = vmatpush1.xpose.msra.mxu0 %v5357
    %5363 = vmatprep.subr.mxu0 0.0
    %5364 = vmatpush1.xpose.msra.mxu0 0.0
    %5365 = vmatprep.subr.mxu0 0.0
    %5366 = vmatpush1.xpose.msra.mxu0 0.0
    %5367 = vmatprep.subr.mxu0 0.0
    %5368 = vmatpush1.xpose.msra.mxu0 0.0
    %5369 = vmatprep.subr.mxu0 0.0
    %5370 = vmatpush1.xpose.msra.mxu0 0.0
    %5371 = vmatprep.subr.mxu0 0.0
    %5372 = vmatpush1.xpose.msra.mxu0 0.0
    %5373 = vmatprep.subr.mxu0 0.0
    %5374 = vmatpush1.xpose.msra.mxu0 0.0
    %5375 = vmatprep.subr.mxu0 0.0
    %5376 = vmatpush1.xpose.msra.mxu0 0.0
    %5377 = vmatprep.subr.mxu0 0.0
    %5378 = vmatpush1.xpose.msra.mxu0 0.0
    %5379 = vmatprep.subr.mxu0 0.0
    %5380 = vmatpush1.xpose.msra.mxu0 0.0
    %5381 = vmatprep.subr.mxu0 0.0
    %5382 = vmatpush1.xpose.msra.mxu0 0.0
    %5383 = vmatprep.subr.mxu0 0.0
    %5384 = vmatpush1.xpose.msra.mxu0 0.0
    %5385 = vmatprep.subr.mxu0 0.0
    %5386 = vmatpush1.xpose.msra.mxu0 0.0
    %5387 = vmatprep.subr.mxu0 0.0
    %5388 = vmatpush1.xpose.msra.mxu0 0.0
    %5389 = vmatprep.subr.mxu0 0.0
    %5390 = vmatpush1.xpose.msra.mxu0 0.0
    %5391 = vmatprep.subr.mxu0 0.0
    %5392 = vmatpush1.xpose.msra.mxu0 0.0
    %5393 = vmatprep.subr.mxu0 0.0
    %5394 = vmatpush1.xpose.msra.mxu0 0.0
    %5395 = vmatprep.subr.mxu0 0.0
    %5396 = vmatpush1.xpose.msra.mxu0 0.0
    %5397 = vmatprep.subr.mxu0 0.0
    %5398 = vmatpush1.xpose.msra.mxu0 0.0
    %5399 = vmatprep.subr.mxu0 0.0
    %5400 = vmatpush1.xpose.msra.mxu0 0.0
    %5401 = vmatprep.subr.mxu0 0.0
    %5402 = vmatpush1.xpose.msra.mxu0 0.0
    %5403 = vmatprep.subr.mxu0 0.0
    %5404 = vmatpush1.xpose.msra.mxu0 0.0
    %5405 = vmatprep.subr.mxu0 0.0
    %5406 = vmatpush1.xpose.msra.mxu0 0.0
    %5407 = vmatprep.subr.mxu0 0.0
    %5408 = vmatpush1.xpose.msra.mxu0 0.0
    %5409 = vmatprep.subr.mxu0 0.0
    %5410 = vmatpush1.xpose.msra.mxu0 0.0
    %5411 = vmatprep.subr.mxu0 0.0
    %5412 = vmatpush1.xpose.msra.mxu0 0.0
    %5413 = vmatprep.subr.mxu0 0.0
    %5414 = vmatpush1.xpose.msra.mxu0 0.0
    %5415 = vmatprep.subr.mxu0 0.0
    %5416 = vmatpush1.xpose.msra.mxu0 0.0
    %5417 = vmatprep.subr.mxu0 0.0
    %5418 = vmatpush1.xpose.msra.mxu0 0.0
    %5419 = vmatprep.subr.mxu0 0.0
    %5420 = vmatpush1.xpose.msra.mxu0 0.0
    %5421 = vmatprep.subr.mxu0 0.0
    %5422 = vmatpush1.xpose.msra.mxu0 0.0
    %5423 = vmatprep.mubr.f32.mxu0 0.0
    %5424 = vmatmul.mubr.f32.gmra.mrb[0].mxu0 %v5351
    %v5425 = vpop.f32.mrb[0].mxu0
    %v5426 = vadd.f32 %v4503, %v5425
    %v5427 = vpop.f32.mrb[0].mxu0
    %5428 = vdwg.mxu0
    %v5430 = vsel %vm344, %v4283, 0
    %v5433 = vsel %vm344, %v4314, 0
    %v5436 = vsel %vm344, %v4315, 0
    %5438 = vmatprep.subr.mxu0 0.0
    %5439 = vmatpush1.xpose.msra.mxu0 %v5433
    %5440 = vmatprep.subr.mxu0 0.0
    %5441 = vmatpush1.xpose.msra.mxu0 %v5436
    %5442 = vmatprep.subr.mxu0 0.0
    %5443 = vmatpush1.xpose.msra.mxu0 0.0
    %5444 = vmatprep.subr.mxu0 0.0
    %5445 = vmatpush1.xpose.msra.mxu0 0.0
    %5446 = vmatprep.subr.mxu0 0.0
    %5447 = vmatpush1.xpose.msra.mxu0 0.0
    %5448 = vmatprep.subr.mxu0 0.0
    %5449 = vmatpush1.xpose.msra.mxu0 0.0
    %5450 = vmatprep.subr.mxu0 0.0
    %5451 = vmatpush1.xpose.msra.mxu0 0.0
    %5452 = vmatprep.subr.mxu0 0.0
    %5453 = vmatpush1.xpose.msra.mxu0 0.0
    %5454 = vmatprep.subr.mxu0 0.0
    %5455 = vmatpush1.xpose.msra.mxu0 0.0
    %5456 = vmatprep.subr.mxu0 0.0
    %5457 = vmatpush1.xpose.msra.mxu0 0.0
    %5458 = vmatprep.subr.mxu0 0.0
    %5459 = vmatpush1.xpose.msra.mxu0 0.0
    %5460 = vmatprep.subr.mxu0 0.0
    %5461 = vmatpush1.xpose.msra.mxu0 0.0
    %5462 = vmatprep.subr.mxu0 0.0
    %5463 = vmatpush1.xpose.msra.mxu0 0.0
    %5464 = vmatprep.subr.mxu0 0.0
    %5465 = vmatpush1.xpose.msra.mxu0 0.0
    %5466 = vmatprep.subr.mxu0 0.0
    %5467 = vmatpush1.xpose.msra.mxu0 0.0
    %5468 = vmatprep.subr.mxu0 0.0
    %5469 = vmatpush1.xpose.msra.mxu0 0.0
    %5470 = vmatprep.subr.mxu0 0.0
    %5471 = vmatpush1.xpose.msra.mxu0 0.0
    %5472 = vmatprep.subr.mxu0 0.0
    %5473 = vmatpush1.xpose.msra.mxu0 0.0
    %5474 = vmatprep.subr.mxu0 0.0
    %5475 = vmatpush1.xpose.msra.mxu0 0.0
    %5476 = vmatprep.subr.mxu0 0.0
    %5477 = vmatpush1.xpose.msra.mxu0 0.0
    %5478 = vmatprep.subr.mxu0 0.0
    %5479 = vmatpush1.xpose.msra.mxu0 0.0
    %5480 = vmatprep.subr.mxu0 0.0
    %5481 = vmatpush1.xpose.msra.mxu0 0.0
    %5482 = vmatprep.subr.mxu0 0.0
    %5483 = vmatpush1.xpose.msra.mxu0 0.0
    %5484 = vmatprep.subr.mxu0 0.0
    %5485 = vmatpush1.xpose.msra.mxu0 0.0
    %5486 = vmatprep.subr.mxu0 0.0
    %5487 = vmatpush1.xpose.msra.mxu0 0.0
    %5488 = vmatprep.subr.mxu0 0.0
    %5489 = vmatpush1.xpose.msra.mxu0 0.0
    %5490 = vmatprep.subr.mxu0 0.0
    %5491 = vmatpush1.xpose.msra.mxu0 0.0
    %5492 = vmatprep.subr.mxu0 0.0
    %5493 = vmatpush1.xpose.msra.mxu0 0.0
    %5494 = vmatprep.subr.mxu0 0.0
    %5495 = vmatpush1.xpose.msra.mxu0 0.0
    %5496 = vmatprep.subr.mxu0 0.0
    %5497 = vmatpush1.xpose.msra.mxu0 0.0
    %5498 = vmatprep.subr.mxu0 0.0
    %5499 = vmatpush1.xpose.msra.mxu0 0.0
    %5500 = vmatprep.subr.mxu0 0.0
    %5501 = vmatpush1.xpose.msra.mxu0 0.0
    %5502 = vmatprep.mubr.f32.mxu0 0.0
    %5503 = vmatmul.mubr.f32.gmra.mrb[0].mxu0 %v5430
    %v5504 = vpop.f32.mrb[0].mxu0
    %v5505 = vadd.f32 %v4507, %v5504
    %v5506 = vpop.f32.mrb[0].mxu0
    %5507 = vdwg.mxu0
    %v5509 = vsel %vm344, %v4284, 0
    %v5512 = vsel %vm344, %v4316, 0
    %v5515 = vsel %vm344, %v4317, 0
    %5517 = vmatprep.subr.mxu0 0.0
    %5518 = vmatpush1.xpose.msra.mxu0 %v5512
    %5519 = vmatprep.subr.mxu0 0.0
    %5520 = vmatpush1.xpose.msra.mxu0 %v5515
    %5521 = vmatprep.subr.mxu0 0.0
    %5522 = vmatpush1.xpose.msra.mxu0 0.0
    %5523 = vmatprep.subr.mxu0 0.0
    %5524 = vmatpush1.xpose.msra.mxu0 0.0
    %5525 = vmatprep.subr.mxu0 0.0
    %5526 = vmatpush1.xpose.msra.mxu0 0.0
    %5527 = vmatprep.subr.mxu0 0.0
    %5528 = vmatpush1.xpose.msra.mxu0 0.0
    %5529 = vmatprep.subr.mxu0 0.0
    %5530 = vmatpush1.xpose.msra.mxu0 0.0
    %5531 = vmatprep.subr.mxu0 0.0
    %5532 = vmatpush1.xpose.msra.mxu0 0.0
    %5533 = vmatprep.subr.mxu0 0.0
    %5534 = vmatpush1.xpose.msra.mxu0 0.0
    %5535 = vmatprep.subr.mxu0 0.0
    %5536 = vmatpush1.xpose.msra.mxu0 0.0
    %5537 = vmatprep.subr.mxu0 0.0
    %5538 = vmatpush1.xpose.msra.mxu0 0.0
    %5539 = vmatprep.subr.mxu0 0.0
    %5540 = vmatpush1.xpose.msra.mxu0 0.0
    %5541 = vmatprep.subr.mxu0 0.0
    %5542 = vmatpush1.xpose.msra.mxu0 0.0
    %5543 = vmatprep.subr.mxu0 0.0
    %5544 = vmatpush1.xpose.msra.mxu0 0.0
    %5545 = vmatprep.subr.mxu0 0.0
    %5546 = vmatpush1.xpose.msra.mxu0 0.0
    %5547 = vmatprep.subr.mxu0 0.0
    %5548 = vmatpush1.xpose.msra.mxu0 0.0
    %5549 = vmatprep.subr.mxu0 0.0
    %5550 = vmatpush1.xpose.msra.mxu0 0.0
    %5551 = vmatprep.subr.mxu0 0.0
    %5552 = vmatpush1.xpose.msra.mxu0 0.0
    %5553 = vmatprep.subr.mxu0 0.0
    %5554 = vmatpush1.xpose.msra.mxu0 0.0
    %5555 = vmatprep.subr.mxu0 0.0
    %5556 = vmatpush1.xpose.msra.mxu0 0.0
    %5557 = vmatprep.subr.mxu0 0.0
    %5558 = vmatpush1.xpose.msra.mxu0 0.0
    %5559 = vmatprep.subr.mxu0 0.0
    %5560 = vmatpush1.xpose.msra.mxu0 0.0
    %5561 = vmatprep.subr.mxu0 0.0
    %5562 = vmatpush1.xpose.msra.mxu0 0.0
    %5563 = vmatprep.subr.mxu0 0.0
    %5564 = vmatpush1.xpose.msra.mxu0 0.0
    %5565 = vmatprep.subr.mxu0 0.0
    %5566 = vmatpush1.xpose.msra.mxu0 0.0
    %5567 = vmatprep.subr.mxu0 0.0
    %5568 = vmatpush1.xpose.msra.mxu0 0.0
    %5569 = vmatprep.subr.mxu0 0.0
    %5570 = vmatpush1.xpose.msra.mxu0 0.0
    %5571 = vmatprep.subr.mxu0 0.0
    %5572 = vmatpush1.xpose.msra.mxu0 0.0
    %5573 = vmatprep.subr.mxu0 0.0
    %5574 = vmatpush1.xpose.msra.mxu0 0.0
    %5575 = vmatprep.subr.mxu0 0.0
    %5576 = vmatpush1.xpose.msra.mxu0 0.0
    %5577 = vmatprep.subr.mxu0 0.0
    %5578 = vmatpush1.xpose.msra.mxu0 0.0
    %5579 = vmatprep.subr.mxu0 0.0
    %5580 = vmatpush1.xpose.msra.mxu0 0.0
    %5581 = vmatprep.mubr.f32.mxu0 0.0
    %5582 = vmatmul.mubr.f32.gmra.mrb[0].mxu0 %v5509
    %v5583 = vpop.f32.mrb[0].mxu0
    %v5584 = vadd.f32 %v4511, %v5583
    %v5585 = vpop.f32.mrb[0].mxu0
    %5586 = vdwg.mxu0
    %v5588 = vsel %vm344, %v4285, 0
    %v5591 = vsel %vm344, %v4318, 0
    %v5594 = vsel %vm344, %v4319, 0
    %5596 = vmatprep.subr.mxu0 0.0
    %5597 = vmatpush1.xpose.msra.mxu0 %v5591
    %5598 = vmatprep.subr.mxu0 0.0
    %5599 = vmatpush1.xpose.msra.mxu0 %v5594
    %5600 = vmatprep.subr.mxu0 0.0
    %5601 = vmatpush1.xpose.msra.mxu0 0.0
    %5602 = vmatprep.subr.mxu0 0.0
    %5603 = vmatpush1.xpose.msra.mxu0 0.0
    %5604 = vmatprep.subr.mxu0 0.0
    %5605 = vmatpush1.xpose.msra.mxu0 0.0
    %5606 = vmatprep.subr.mxu0 0.0
    %5607 = vmatpush1.xpose.msra.mxu0 0.0
    %5608 = vmatprep.subr.mxu0 0.0
    %5609 = vmatpush1.xpose.msra.mxu0 0.0
    %5610 = vmatprep.subr.mxu0 0.0
    %5611 = vmatpush1.xpose.msra.mxu0 0.0
    %5612 = vmatprep.subr.mxu0 0.0
    %5613 = vmatpush1.xpose.msra.mxu0 0.0
    %5614 = vmatprep.subr.mxu0 0.0
    %5615 = vmatpush1.xpose.msra.mxu0 0.0
    %5616 = vmatprep.subr.mxu0 0.0
    %5617 = vmatpush1.xpose.msra.mxu0 0.0
    %5618 = vmatprep.subr.mxu0 0.0
    %5619 = vmatpush1.xpose.msra.mxu0 0.0
    %5620 = vmatprep.subr.mxu0 0.0
    %5621 = vmatpush1.xpose.msra.mxu0 0.0
    %5622 = vmatprep.subr.mxu0 0.0
    %5623 = vmatpush1.xpose.msra.mxu0 0.0
    %5624 = vmatprep.subr.mxu0 0.0
    %5625 = vmatpush1.xpose.msra.mxu0 0.0
    %5626 = vmatprep.subr.mxu0 0.0
    %5627 = vmatpush1.xpose.msra.mxu0 0.0
    %5628 = vmatprep.subr.mxu0 0.0
    %5629 = vmatpush1.xpose.msra.mxu0 0.0
    %5630 = vmatprep.subr.mxu0 0.0
    %5631 = vmatpush1.xpose.msra.mxu0 0.0
    %5632 = vmatprep.subr.mxu0 0.0
    %5633 = vmatpush1.xpose.msra.mxu0 0.0
    %5634 = vmatprep.subr.mxu0 0.0
    %5635 = vmatpush1.xpose.msra.mxu0 0.0
    %5636 = vmatprep.subr.mxu0 0.0
    %5637 = vmatpush1.xpose.msra.mxu0 0.0
    %5638 = vmatprep.subr.mxu0 0.0
    %5639 = vmatpush1.xpose.msra.mxu0 0.0
    %5640 = vmatprep.subr.mxu0 0.0
    %5641 = vmatpush1.xpose.msra.mxu0 0.0
    %5642 = vmatprep.subr.mxu0 0.0
    %5643 = vmatpush1.xpose.msra.mxu0 0.0
    %5644 = vmatprep.subr.mxu0 0.0
    %5645 = vmatpush1.xpose.msra.mxu0 0.0
    %5646 = vmatprep.subr.mxu0 0.0
    %5647 = vmatpush1.xpose.msra.mxu0 0.0
    %5648 = vmatprep.subr.mxu0 0.0
    %5649 = vmatpush1.xpose.msra.mxu0 0.0
    %5650 = vmatprep.subr.mxu0 0.0
    %5651 = vmatpush1.xpose.msra.mxu0 0.0
    %5652 = vmatprep.subr.mxu0 0.0
    %5653 = vmatpush1.xpose.msra.mxu0 0.0
    %5654 = vmatprep.subr.mxu0 0.0
    %5655 = vmatpush1.xpose.msra.mxu0 0.0
    %5656 = vmatprep.subr.mxu0 0.0
    %5657 = vmatpush1.xpose.msra.mxu0 0.0
    %5658 = vmatprep.subr.mxu0 0.0
    %5659 = vmatpush1.xpose.msra.mxu0 0.0
    %5660 = vmatprep.mubr.f32.mxu0 0.0
    %5661 = vmatmul.mubr.f32.gmra.mrb[0].mxu0 %v5588
    %v5662 = vpop.f32.mrb[0].mxu0
    %v5663 = vadd.f32 %v4515, %v5662
    %v5664 = vpop.f32.mrb[0].mxu0
    %5665 = vdwg.mxu0
    %v5667 = vsel %vm344, %v4286, 0
    %v5670 = vsel %vm344, %v4320, 0
    %v5673 = vsel %vm344, %v4321, 0
    %5675 = vmatprep.subr.mxu0 0.0
    %5676 = vmatpush1.xpose.msra.mxu0 %v5670
    %5677 = vmatprep.subr.mxu0 0.0
    %5678 = vmatpush1.xpose.msra.mxu0 %v5673
    %5679 = vmatprep.subr.mxu0 0.0
    %5680 = vmatpush1.xpose.msra.mxu0 0.0
    %5681 = vmatprep.subr.mxu0 0.0
    %5682 = vmatpush1.xpose.msra.mxu0 0.0
    %5683 = vmatprep.subr.mxu0 0.0
    %5684 = vmatpush1.xpose.msra.mxu0 0.0
    %5685 = vmatprep.subr.mxu0 0.0
    %5686 = vmatpush1.xpose.msra.mxu0 0.0
    %5687 = vmatprep.subr.mxu0 0.0
    %5688 = vmatpush1.xpose.msra.mxu0 0.0
    %5689 = vmatprep.subr.mxu0 0.0
    %5690 = vmatpush1.xpose.msra.mxu0 0.0
    %5691 = vmatprep.subr.mxu0 0.0
    %5692 = vmatpush1.xpose.msra.mxu0 0.0
    %5693 = vmatprep.subr.mxu0 0.0
    %5694 = vmatpush1.xpose.msra.mxu0 0.0
    %5695 = vmatprep.subr.mxu0 0.0
    %5696 = vmatpush1.xpose.msra.mxu0 0.0
    %5697 = vmatprep.subr.mxu0 0.0
    %5698 = vmatpush1.xpose.msra.mxu0 0.0
    %5699 = vmatprep.subr.mxu0 0.0
    %5700 = vmatpush1.xpose.msra.mxu0 0.0
    %5701 = vmatprep.subr.mxu0 0.0
    %5702 = vmatpush1.xpose.msra.mxu0 0.0
    %5703 = vmatprep.subr.mxu0 0.0
    %5704 = vmatpush1.xpose.msra.mxu0 0.0
    %5705 = vmatprep.subr.mxu0 0.0
    %5706 = vmatpush1.xpose.msra.mxu0 0.0
    %5707 = vmatprep.subr.mxu0 0.0
    %5708 = vmatpush1.xpose.msra.mxu0 0.0
    %5709 = vmatprep.subr.mxu0 0.0
    %5710 = vmatpush1.xpose.msra.mxu0 0.0
    %5711 = vmatprep.subr.mxu0 0.0
    %5712 = vmatpush1.xpose.msra.mxu0 0.0
    %5713 = vmatprep.subr.mxu0 0.0
    %5714 = vmatpush1.xpose.msra.mxu0 0.0
    %5715 = vmatprep.subr.mxu0 0.0
    %5716 = vmatpush1.xpose.msra.mxu0 0.0
    %5717 = vmatprep.subr.mxu0 0.0
    %5718 = vmatpush1.xpose.msra.mxu0 0.0
    %5719 = vmatprep.subr.mxu0 0.0
    %5720 = vmatpush1.xpose.msra.mxu0 0.0
    %5721 = vmatprep.subr.mxu0 0.0
    %5722 = vmatpush1.xpose.msra.mxu0 0.0
    %5723 = vmatprep.subr.mxu0 0.0
    %5724 = vmatpush1.xpose.msra.mxu0 0.0
    %5725 = vmatprep.subr.mxu0 0.0
    %5726 = vmatpush1.xpose.msra.mxu0 0.0
    %5727 = vmatprep.subr.mxu0 0.0
    %5728 = vmatpush1.xpose.msra.mxu0 0.0
    %5729 = vmatprep.subr.mxu0 0.0
    %5730 = vmatpush1.xpose.msra.mxu0 0.0
    %5731 = vmatprep.subr.mxu0 0.0
    %5732 = vmatpush1.xpose.msra.mxu0 0.0
    %5733 = vmatprep.subr.mxu0 0.0
    %5734 = vmatpush1.xpose.msra.mxu0 0.0
    %5735 = vmatprep.subr.mxu0 0.0
    %5736 = vmatpush1.xpose.msra.mxu0 0.0
    %5737 = vmatprep.subr.mxu0 0.0
    %5738 = vmatpush1.xpose.msra.mxu0 0.0
    %5739 = vmatprep.mubr.f32.mxu0 0.0
    %5740 = vmatmul.mubr.f32.gmra.mrb[0].mxu0 %v5667
    %v5741 = vpop.f32.mrb[0].mxu0
    %v5742 = vadd.f32 %v4519, %v5741
    %v5743 = vpop.f32.mrb[0].mxu0
    %5744 = vdwg.mxu0
    %v5746 = vsel %vm344, %v4287, 0
    %v5749 = vsel %vm344, %v4322, 0
    %v5752 = vsel %vm344, %v4323, 0
    %5754 = vmatprep.subr.mxu0 0.0
    %5755 = vmatpush1.xpose.msra.mxu0 %v5749
    %5756 = vmatprep.subr.mxu0 0.0
    %5757 = vmatpush1.xpose.msra.mxu0 %v5752
    %5758 = vmatprep.subr.mxu0 0.0
    %5759 = vmatpush1.xpose.msra.mxu0 0.0
    %5760 = vmatprep.subr.mxu0 0.0
    %5761 = vmatpush1.xpose.msra.mxu0 0.0
    %5762 = vmatprep.subr.mxu0 0.0
    %5763 = vmatpush1.xpose.msra.mxu0 0.0
    %5764 = vmatprep.subr.mxu0 0.0
    %5765 = vmatpush1.xpose.msra.mxu0 0.0
    %5766 = vmatprep.subr.mxu0 0.0
    %5767 = vmatpush1.xpose.msra.mxu0 0.0
    %5768 = vmatprep.subr.mxu0 0.0
    %5769 = vmatpush1.xpose.msra.mxu0 0.0
    %5770 = vmatprep.subr.mxu0 0.0
    %5771 = vmatpush1.xpose.msra.mxu0 0.0
    %5772 = vmatprep.subr.mxu0 0.0
    %5773 = vmatpush1.xpose.msra.mxu0 0.0
    %5774 = vmatprep.subr.mxu0 0.0
    %5775 = vmatpush1.xpose.msra.mxu0 0.0
    %5776 = vmatprep.subr.mxu0 0.0
    %5777 = vmatpush1.xpose.msra.mxu0 0.0
    %5778 = vmatprep.subr.mxu0 0.0
    %5779 = vmatpush1.xpose.msra.mxu0 0.0
    %5780 = vmatprep.subr.mxu0 0.0
    %5781 = vmatpush1.xpose.msra.mxu0 0.0
    %5782 = vmatprep.subr.mxu0 0.0
    %5783 = vmatpush1.xpose.msra.mxu0 0.0
    %5784 = vmatprep.subr.mxu0 0.0
    %5785 = vmatpush1.xpose.msra.mxu0 0.0
    %5786 = vmatprep.subr.mxu0 0.0
    %5787 = vmatpush1.xpose.msra.mxu0 0.0
    %5788 = vmatprep.subr.mxu0 0.0
    %5789 = vmatpush1.xpose.msra.mxu0 0.0
    %5790 = vmatprep.subr.mxu0 0.0
    %5791 = vmatpush1.xpose.msra.mxu0 0.0
    %5792 = vmatprep.subr.mxu0 0.0
    %5793 = vmatpush1.xpose.msra.mxu0 0.0
    %5794 = vmatprep.subr.mxu0 0.0
    %5795 = vmatpush1.xpose.msra.mxu0 0.0
    %5796 = vmatprep.subr.mxu0 0.0
    %5797 = vmatpush1.xpose.msra.mxu0 0.0
    %5798 = vmatprep.subr.mxu0 0.0
    %5799 = vmatpush1.xpose.msra.mxu0 0.0
    %5800 = vmatprep.subr.mxu0 0.0
    %5801 = vmatpush1.xpose.msra.mxu0 0.0
    %5802 = vmatprep.subr.mxu0 0.0
    %5803 = vmatpush1.xpose.msra.mxu0 0.0
    %5804 = vmatprep.subr.mxu0 0.0
    %5805 = vmatpush1.xpose.msra.mxu0 0.0
    %5806 = vmatprep.subr.mxu0 0.0
    %5807 = vmatpush1.xpose.msra.mxu0 0.0
    %5808 = vmatprep.subr.mxu0 0.0
    %5809 = vmatpush1.xpose.msra.mxu0 0.0
    %5810 = vmatprep.subr.mxu0 0.0
    %5811 = vmatpush1.xpose.msra.mxu0 0.0
    %5812 = vmatprep.subr.mxu0 0.0
    %5813 = vmatpush1.xpose.msra.mxu0 0.0
    %5814 = vmatprep.subr.mxu0 0.0
    %5815 = vmatpush1.xpose.msra.mxu0 0.0
    %5816 = vmatprep.subr.mxu0 0.0
    %5817 = vmatpush1.xpose.msra.mxu0 0.0
    %5818 = vmatprep.mubr.f32.mxu0 0.0
    %5819 = vmatmul.mubr.f32.gmra.mrb[0].mxu0 %v5746
    %v5820 = vpop.f32.mrb[0].mxu0
    %v5821 = vadd.f32 %v4523, %v5820
    %v5822 = vpop.f32.mrb[0].mxu0
    %5823 = vdwg.mxu0
    %v5825 = vsel %vm344, %v4288, 0
    %v5828 = vsel %vm344, %v4324, 0
    %v5831 = vsel %vm344, %v4325, 0
    %5833 = vmatprep.subr.mxu0 0.0
    %5834 = vmatpush1.xpose.msra.mxu0 %v5828
    %5835 = vmatprep.subr.mxu0 0.0
    %5836 = vmatpush1.xpose.msra.mxu0 %v5831
    %5837 = vmatprep.subr.mxu0 0.0
    %5838 = vmatpush1.xpose.msra.mxu0 0.0
    %5839 = vmatprep.subr.mxu0 0.0
    %5840 = vmatpush1.xpose.msra.mxu0 0.0
    %5841 = vmatprep.subr.mxu0 0.0
    %5842 = vmatpush1.xpose.msra.mxu0 0.0
    %5843 = vmatprep.subr.mxu0 0.0
    %5844 = vmatpush1.xpose.msra.mxu0 0.0
    %5845 = vmatprep.subr.mxu0 0.0
    %5846 = vmatpush1.xpose.msra.mxu0 0.0
    %5847 = vmatprep.subr.mxu0 0.0
    %5848 = vmatpush1.xpose.msra.mxu0 0.0
    %5849 = vmatprep.subr.mxu0 0.0
    %5850 = vmatpush1.xpose.msra.mxu0 0.0
    %5851 = vmatprep.subr.mxu0 0.0
    %5852 = vmatpush1.xpose.msra.mxu0 0.0
    %5853 = vmatprep.subr.mxu0 0.0
    %5854 = vmatpush1.xpose.msra.mxu0 0.0
    %5855 = vmatprep.subr.mxu0 0.0
    %5856 = vmatpush1.xpose.msra.mxu0 0.0
    %5857 = vmatprep.subr.mxu0 0.0
    %5858 = vmatpush1.xpose.msra.mxu0 0.0
    %5859 = vmatprep.subr.mxu0 0.0
    %5860 = vmatpush1.xpose.msra.mxu0 0.0
    %5861 = vmatprep.subr.mxu0 0.0
    %5862 = vmatpush1.xpose.msra.mxu0 0.0
    %5863 = vmatprep.subr.mxu0 0.0
    %5864 = vmatpush1.xpose.msra.mxu0 0.0
    %5865 = vmatprep.subr.mxu0 0.0
    %5866 = vmatpush1.xpose.msra.mxu0 0.0
    %5867 = vmatprep.subr.mxu0 0.0
    %5868 = vmatpush1.xpose.msra.mxu0 0.0
    %5869 = vmatprep.subr.mxu0 0.0
    %5870 = vmatpush1.xpose.msra.mxu0 0.0
    %5871 = vmatprep.subr.mxu0 0.0
    %5872 = vmatpush1.xpose.msra.mxu0 0.0
    %5873 = vmatprep.subr.mxu0 0.0
    %5874 = vmatpush1.xpose.msra.mxu0 0.0
    %5875 = vmatprep.subr.mxu0 0.0
    %5876 = vmatpush1.xpose.msra.mxu0 0.0
    %5877 = vmatprep.subr.mxu0 0.0
    %5878 = vmatpush1.xpose.msra.mxu0 0.0
    %5879 = vmatprep.subr.mxu0 0.0
    %5880 = vmatpush1.xpose.msra.mxu0 0.0
    %5881 = vmatprep.subr.mxu0 0.0
    %5882 = vmatpush1.xpose.msra.mxu0 0.0
    %5883 = vmatprep.subr.mxu0 0.0
    %5884 = vmatpush1.xpose.msra.mxu0 0.0
    %5885 = vmatprep.subr.mxu0 0.0
    %5886 = vmatpush1.xpose.msra.mxu0 0.0
    %5887 = vmatprep.subr.mxu0 0.0
    %5888 = vmatpush1.xpose.msra.mxu0 0.0
    %5889 = vmatprep.subr.mxu0 0.0
    %5890 = vmatpush1.xpose.msra.mxu0 0.0
    %5891 = vmatprep.subr.mxu0 0.0
    %5892 = vmatpush1.xpose.msra.mxu0 0.0
    %5893 = vmatprep.subr.mxu0 0.0
    %5894 = vmatpush1.xpose.msra.mxu0 0.0
    %5895 = vmatprep.subr.mxu0 0.0
    %5896 = vmatpush1.xpose.msra.mxu0 0.0
    %5897 = vmatprep.mubr.f32.mxu0 0.0
    %5898 = vmatmul.mubr.f32.gmra.mrb[0].mxu0 %v5825
    %v5899 = vpop.f32.mrb[0].mxu0
    %v5900 = vadd.f32 %v4527, %v5899
    %v5901 = vpop.f32.mrb[0].mxu0
    %5902 = vdwg.mxu0
    %v5904 = vsel %vm344, %v4289, 0
    %v5907 = vsel %vm344, %v4326, 0
    %v5910 = vsel %vm344, %v4327, 0
    %5912 = vmatprep.subr.mxu0 0.0
    %5913 = vmatpush1.xpose.msra.mxu0 %v5907
    %5914 = vmatprep.subr.mxu0 0.0
    %5915 = vmatpush1.xpose.msra.mxu0 %v5910
    %5916 = vmatprep.subr.mxu0 0.0
    %5917 = vmatpush1.xpose.msra.mxu0 0.0
    %5918 = vmatprep.subr.mxu0 0.0
    %5919 = vmatpush1.xpose.msra.mxu0 0.0
    %5920 = vmatprep.subr.mxu0 0.0
    %5921 = vmatpush1.xpose.msra.mxu0 0.0
    %5922 = vmatprep.subr.mxu0 0.0
    %5923 = vmatpush1.xpose.msra.mxu0 0.0
    %5924 = vmatprep.subr.mxu0 0.0
    %5925 = vmatpush1.xpose.msra.mxu0 0.0
    %5926 = vmatprep.subr.mxu0 0.0
    %5927 = vmatpush1.xpose.msra.mxu0 0.0
    %5928 = vmatprep.subr.mxu0 0.0
    %5929 = vmatpush1.xpose.msra.mxu0 0.0
    %5930 = vmatprep.subr.mxu0 0.0
    %5931 = vmatpush1.xpose.msra.mxu0 0.0
    %5932 = vmatprep.subr.mxu0 0.0
    %5933 = vmatpush1.xpose.msra.mxu0 0.0
    %5934 = vmatprep.subr.mxu0 0.0
    %5935 = vmatpush1.xpose.msra.mxu0 0.0
    %5936 = vmatprep.subr.mxu0 0.0
    %5937 = vmatpush1.xpose.msra.mxu0 0.0
    %5938 = vmatprep.subr.mxu0 0.0
    %5939 = vmatpush1.xpose.msra.mxu0 0.0
    %5940 = vmatprep.subr.mxu0 0.0
    %5941 = vmatpush1.xpose.msra.mxu0 0.0
    %5942 = vmatprep.subr.mxu0 0.0
    %5943 = vmatpush1.xpose.msra.mxu0 0.0
    %5944 = vmatprep.subr.mxu0 0.0
    %5945 = vmatpush1.xpose.msra.mxu0 0.0
    %5946 = vmatprep.subr.mxu0 0.0
    %5947 = vmatpush1.xpose.msra.mxu0 0.0
    %5948 = vmatprep.subr.mxu0 0.0
    %5949 = vmatpush1.xpose.msra.mxu0 0.0
    %5950 = vmatprep.subr.mxu0 0.0
    %5951 = vmatpush1.xpose.msra.mxu0 0.0
    %5952 = vmatprep.subr.mxu0 0.0
    %5953 = vmatpush1.xpose.msra.mxu0 0.0
    %5954 = vmatprep.subr.mxu0 0.0
    %5955 = vmatpush1.xpose.msra.mxu0 0.0
    %5956 = vmatprep.subr.mxu0 0.0
    %5957 = vmatpush1.xpose.msra.mxu0 0.0
    %5958 = vmatprep.subr.mxu0 0.0
    %5959 = vmatpush1.xpose.msra.mxu0 0.0
    %5960 = vmatprep.subr.mxu0 0.0
    %5961 = vmatpush1.xpose.msra.mxu0 0.0
    %5962 = vmatprep.subr.mxu0 0.0
    %5963 = vmatpush1.xpose.msra.mxu0 0.0
    %5964 = vmatprep.subr.mxu0 0.0
    %5965 = vmatpush1.xpose.msra.mxu0 0.0
    %5966 = vmatprep.subr.mxu0 0.0
    %5967 = vmatpush1.xpose.msra.mxu0 0.0
    %5968 = vmatprep.subr.mxu0 0.0
    %5969 = vmatpush1.xpose.msra.mxu0 0.0
    %5970 = vmatprep.subr.mxu0 0.0
    %5971 = vmatpush1.xpose.msra.mxu0 0.0
    %5972 = vmatprep.subr.mxu0 0.0
    %5973 = vmatpush1.xpose.msra.mxu0 0.0
    %5974 = vmatprep.subr.mxu0 0.0
    %5975 = vmatpush1.xpose.msra.mxu0 0.0
    %5976 = vmatprep.mubr.f32.mxu0 0.0
    %5977 = vmatmul.mubr.f32.gmra.mrb[0].mxu0 %v5904
    %v5978 = vpop.f32.mrb[0].mxu0
    %v5979 = vadd.f32 %v4531, %v5978
    %v5980 = vpop.f32.mrb[0].mxu0
    %5981 = vdwg.mxu0
    %v5983 = vsel %vm344, %v4290, 0
    %v5986 = vsel %vm344, %v4328, 0
    %v5989 = vsel %vm344, %v4329, 0
    %5991 = vmatprep.subr.mxu0 0.0
    %5992 = vmatpush1.xpose.msra.mxu0 %v5986
    %5993 = vmatprep.subr.mxu0 0.0
    %5994 = vmatpush1.xpose.msra.mxu0 %v5989
    %5995 = vmatprep.subr.mxu0 0.0
    %5996 = vmatpush1.xpose.msra.mxu0 0.0
    %5997 = vmatprep.subr.mxu0 0.0
    %5998 = vmatpush1.xpose.msra.mxu0 0.0
    %5999 = vmatprep.subr.mxu0 0.0
    %6000 = vmatpush1.xpose.msra.mxu0 0.0
    %6001 = vmatprep.subr.mxu0 0.0
    %6002 = vmatpush1.xpose.msra.mxu0 0.0
    %6003 = vmatprep.subr.mxu0 0.0
    %6004 = vmatpush1.xpose.msra.mxu0 0.0
    %6005 = vmatprep.subr.mxu0 0.0
    %6006 = vmatpush1.xpose.msra.mxu0 0.0
    %6007 = vmatprep.subr.mxu0 0.0
    %6008 = vmatpush1.xpose.msra.mxu0 0.0
    %6009 = vmatprep.subr.mxu0 0.0
    %6010 = vmatpush1.xpose.msra.mxu0 0.0
    %6011 = vmatprep.subr.mxu0 0.0
    %6012 = vmatpush1.xpose.msra.mxu0 0.0
    %6013 = vmatprep.subr.mxu0 0.0
    %6014 = vmatpush1.xpose.msra.mxu0 0.0
    %6015 = vmatprep.subr.mxu0 0.0
    %6016 = vmatpush1.xpose.msra.mxu0 0.0
    %6017 = vmatprep.subr.mxu0 0.0
    %6018 = vmatpush1.xpose.msra.mxu0 0.0
    %6019 = vmatprep.subr.mxu0 0.0
    %6020 = vmatpush1.xpose.msra.mxu0 0.0
    %6021 = vmatprep.subr.mxu0 0.0
    %6022 = vmatpush1.xpose.msra.mxu0 0.0
    %6023 = vmatprep.subr.mxu0 0.0
    %6024 = vmatpush1.xpose.msra.mxu0 0.0
    %6025 = vmatprep.subr.mxu0 0.0
    %6026 = vmatpush1.xpose.msra.mxu0 0.0
    %6027 = vmatprep.subr.mxu0 0.0
    %6028 = vmatpush1.xpose.msra.mxu0 0.0
    %6029 = vmatprep.subr.mxu0 0.0
    %6030 = vmatpush1.xpose.msra.mxu0 0.0
    %6031 = vmatprep.subr.mxu0 0.0
    %6032 = vmatpush1.xpose.msra.mxu0 0.0
    %6033 = vmatprep.subr.mxu0 0.0
    %6034 = vmatpush1.xpose.msra.mxu0 0.0
    %6035 = vmatprep.subr.mxu0 0.0
    %6036 = vmatpush1.xpose.msra.mxu0 0.0
    %6037 = vmatprep.subr.mxu0 0.0
    %6038 = vmatpush1.xpose.msra.mxu0 0.0
    %6039 = vmatprep.subr.mxu0 0.0
    %6040 = vmatpush1.xpose.msra.mxu0 0.0
    %6041 = vmatprep.subr.mxu0 0.0
    %6042 = vmatpush1.xpose.msra.mxu0 0.0
    %6043 = vmatprep.subr.mxu0 0.0
    %6044 = vmatpush1.xpose.msra.mxu0 0.0
    %6045 = vmatprep.subr.mxu0 0.0
    %6046 = vmatpush1.xpose.msra.mxu0 0.0
    %6047 = vmatprep.subr.mxu0 0.0
    %6048 = vmatpush1.xpose.msra.mxu0 0.0
    %6049 = vmatprep.subr.mxu0 0.0
    %6050 = vmatpush1.xpose.msra.mxu0 0.0
    %6051 = vmatprep.subr.mxu0 0.0
    %6052 = vmatpush1.xpose.msra.mxu0 0.0
    %6053 = vmatprep.subr.mxu0 0.0
    %6054 = vmatpush1.xpose.msra.mxu0 0.0
    %6055 = vmatprep.mubr.f32.mxu0 0.0
    %6056 = vmatmul.mubr.f32.gmra.mrb[0].mxu0 %v5983
    %v6057 = vpop.f32.mrb[0].mxu0
    %v6058 = vadd.f32 %v4535, %v6057
    %v6059 = vpop.f32.mrb[0].mxu0
    %6060 = vdwg.mxu0
    %v6062 = vsel %vm344, %v4291, 0
    %v6065 = vsel %vm344, %v4330, 0
    %v6068 = vsel %vm344, %v4331, 0
    %6070 = vmatprep.subr.mxu0 0.0
    %6071 = vmatpush1.xpose.msra.mxu0 %v6065
    %6072 = vmatprep.subr.mxu0 0.0
    %6073 = vmatpush1.xpose.msra.mxu0 %v6068
    %6074 = vmatprep.subr.mxu0 0.0
    %6075 = vmatpush1.xpose.msra.mxu0 0.0
    %6076 = vmatprep.subr.mxu0 0.0
    %6077 = vmatpush1.xpose.msra.mxu0 0.0
    %6078 = vmatprep.subr.mxu0 0.0
    %6079 = vmatpush1.xpose.msra.mxu0 0.0
    %6080 = vmatprep.subr.mxu0 0.0
    %6081 = vmatpush1.xpose.msra.mxu0 0.0
    %6082 = vmatprep.subr.mxu0 0.0
    %6083 = vmatpush1.xpose.msra.mxu0 0.0
    %6084 = vmatprep.subr.mxu0 0.0
    %6085 = vmatpush1.xpose.msra.mxu0 0.0
    %6086 = vmatprep.subr.mxu0 0.0
    %6087 = vmatpush1.xpose.msra.mxu0 0.0
    %6088 = vmatprep.subr.mxu0 0.0
    %6089 = vmatpush1.xpose.msra.mxu0 0.0
    %6090 = vmatprep.subr.mxu0 0.0
    %6091 = vmatpush1.xpose.msra.mxu0 0.0
    %6092 = vmatprep.subr.mxu0 0.0
    %6093 = vmatpush1.xpose.msra.mxu0 0.0
    %6094 = vmatprep.subr.mxu0 0.0
    %6095 = vmatpush1.xpose.msra.mxu0 0.0
    %6096 = vmatprep.subr.mxu0 0.0
    %6097 = vmatpush1.xpose.msra.mxu0 0.0
    %6098 = vmatprep.subr.mxu0 0.0
    %6099 = vmatpush1.xpose.msra.mxu0 0.0
    %6100 = vmatprep.subr.mxu0 0.0
    %6101 = vmatpush1.xpose.msra.mxu0 0.0
    %6102 = vmatprep.subr.mxu0 0.0
    %6103 = vmatpush1.xpose.msra.mxu0 0.0
    %6104 = vmatprep.subr.mxu0 0.0
    %6105 = vmatpush1.xpose.msra.mxu0 0.0
    %6106 = vmatprep.subr.mxu0 0.0
    %6107 = vmatpush1.xpose.msra.mxu0 0.0
    %6108 = vmatprep.subr.mxu0 0.0
    %6109 = vmatpush1.xpose.msra.mxu0 0.0
    %6110 = vmatprep.subr.mxu0 0.0
    %6111 = vmatpush1.xpose.msra.mxu0 0.0
    %6112 = vmatprep.subr.mxu0 0.0
    %6113 = vmatpush1.xpose.msra.mxu0 0.0
    %6114 = vmatprep.subr.mxu0 0.0
    %6115 = vmatpush1.xpose.msra.mxu0 0.0
    %6116 = vmatprep.subr.mxu0 0.0
    %6117 = vmatpush1.xpose.msra.mxu0 0.0
    %6118 = vmatprep.subr.mxu0 0.0
    %6119 = vmatpush1.xpose.msra.mxu0 0.0
    %6120 = vmatprep.subr.mxu0 0.0
    %6121 = vmatpush1.xpose.msra.mxu0 0.0
    %6122 = vmatprep.subr.mxu0 0.0
    %6123 = vmatpush1.xpose.msra.mxu0 0.0
    %6124 = vmatprep.subr.mxu0 0.0
    %6125 = vmatpush1.xpose.msra.mxu0 0.0
    %6126 = vmatprep.subr.mxu0 0.0
    %6127 = vmatpush1.xpose.msra.mxu0 0.0
    %6128 = vmatprep.subr.mxu0 0.0
    %6129 = vmatpush1.xpose.msra.mxu0 0.0
    %6130 = vmatprep.subr.mxu0 0.0
    %6131 = vmatpush1.xpose.msra.mxu0 0.0
    %6132 = vmatprep.subr.mxu0 0.0
    %6133 = vmatpush1.xpose.msra.mxu0 0.0
    %6134 = vmatprep.mubr.f32.mxu0 0.0
    %6135 = vmatmul.mubr.f32.gmra.mrb[0].mxu0 %v6062
    %v6136 = vpop.f32.mrb[0].mxu0
    %v6137 = vadd.f32 %v4539, %v6136
    %v6138 = vpop.f32.mrb[0].mxu0
    %6139 = vdwg.mxu0
    %6140 = vst.msk [vmem:[%s9] sm:$0x3] %vm62, %v4636
    %6141 = vst.msk [vmem:[%s9 + $0x2] sm:$0x3] %vm62, %v4715
    %6142 = vst.msk [vmem:[%s9 + $0x4] sm:$0x3] %vm62, %v4794
    %6143 = vst.msk [vmem:[%s9 + $0x6] sm:$0x3] %vm62, %v4873
    %6144 = vst.msk [vmem:[%s9 + $0x8] sm:$0x3] %vm62, %v4952
    %6145 = vst.msk [vmem:[%s9 + $0xa] sm:$0x3] %vm62, %v5031
    %6146 = vst.msk [vmem:[%s9 + $0xc] sm:$0x3] %vm62, %v5110
    %6147 = vst.msk [vmem:[%s9 + $0xe] sm:$0x3] %vm62, %v5189
    %6148 = vst.msk [vmem:[%s9 + $0x10] sm:$0x3] %vm62, %v5268
    %6149 = vst.msk [vmem:[%s9 + $0x12] sm:$0x3] %vm62, %v5347
    %6150 = vst.msk [vmem:[%s9 + $0x14] sm:$0x3] %vm62, %v5426
    %6151 = vst.msk [vmem:[%s9 + $0x16] sm:$0x3] %vm62, %v5505
    %6152 = vst.msk [vmem:[%s9 + $0x18] sm:$0x3] %vm62, %v5584
    %6153 = vst.msk [vmem:[%s9 + $0x1a] sm:$0x3] %vm62, %v5663
    %6154 = vst.msk [vmem:[%s9 + $0x1c] sm:$0x3] %vm62, %v5742
    %6155 = vst.msk [vmem:[%s9 + $0x1e] sm:$0x3] %vm62, %v5821
    %6156 = vst.msk [vmem:[%s9 + $0x20] sm:$0x3] %vm62, %v5900
    %6157 = vst.msk [vmem:[%s9 + $0x22] sm:$0x3] %vm62, %v5979
    %6158 = vst.msk [vmem:[%s9 + $0x24] sm:$0x3] %vm62, %v6058
    %6159 = vst.msk [vmem:[%s9 + $0x26] sm:$0x3] %vm62, %v6137
    // Predicated region
    $region46: #{_lambda_.21} parent=1 // pred_check
      _
    $region47: #{_lambda_.21} parent=1 // pred_check_branch
      %6161 = sbr.rel (0) target = $region49
    $region48: #{_lambda_.21} parent=1 // pred_region
      _
    $region49: #{_lambda_.21} parent=1 // pred_fallthru
      _
    // Predicated region
    $region50: #{_lambda_.21} parent=1 // pred_check
      _
    $region51: #{_lambda_.21} parent=1 // pred_check_branch
      %6163 = sbr.rel (0) target = $region53
    $region52: #{_lambda_.21} parent=1 // pred_region
      _
    $region53: #{_lambda_.21} parent=1 // pred_fallthru
      _
    %6164 = vsyncpa [#allocation3], 1
    %6165 = vsyncpa [#allocation5], 1

// kernel: _lambda_.35
$region0: #{_lambda_.35}
  #allocation0 [shape = 'u32[]', space=smem, size = 0x4, offset = 0x4, fixed_abs, tag = 'smem constant byte address 0x4 - core index']
  #allocation1 [shape = 'u32[144,128]{1,0:T(1,128)}', space=vmem, size = 0x12000, scoped, tag = 'internal scratch']
  %s0 = inlined_call_operand.vmem [shape: f32[2,8], index: 0, kind: input, shape index: {}]
  %s1 = inlined_call_operand.vmem [shape: f32[8,8], index: 1, kind: input, shape index: {}]
  %s2 = inlined_call_operand.vmem [shape: f32[2,8], index: 2, kind: input, shape index: {}]
  %s3 = inlined_call_operand.vmem [shape: f32[8,8], index: 3, kind: input, shape index: {}]
  %s4 = inlined_call_operand.vmem [shape: f32[2,1], index: 4, kind: input, shape index: {}]
  %s5 = inlined_call_operand.vmem [shape: f32[1,8], index: 5, kind: input, shape index: {}]
  %s6 = inlined_call_operand.vmem [shape: f32[1,8], index: 6, kind: input, shape index: {}]
  %s7 = inlined_call_operand.vmem [shape: f32[2,8], index: 7, kind: output, shape index: {}]
  %s8 = sld [smem:[#allocation0]]
  $region38: #{_lambda_.35} parent=0
    _
  %s10 = ssub.s32 1, %s8
  %s11 = scalar_select 0, %s10, %s8
  // Predicated region
  $region2: #{_lambda_.35} parent=0 // pred_check
    _
  $region3: #{_lambda_.35} parent=0 // pred_check_branch
    %13 = sbr.rel (0) target = $region5
  $region4: #{_lambda_.35} parent=0 // pred_region
    _
  $region5: #{_lambda_.35} parent=0 // pred_fallthru
    _
  // Predicated region
  $region6: #{_lambda_.35} parent=0 // pred_check
    _
  $region7: #{_lambda_.35} parent=0 // pred_check_branch
    %15 = sbr.rel (0) target = $region9
  $region8: #{_lambda_.35} parent=0 // pred_region
    _
  $region9: #{_lambda_.35} parent=0 // pred_fallthru
    _
  // Predicated region
  $region10: #{_lambda_.35} parent=0 // pred_check
    _
  $region11: #{_lambda_.35} parent=0 // pred_check_branch
    %17 = sbr.rel (0) target = $region13
  $region12: #{_lambda_.35} parent=0 // pred_region
    _
  $region13: #{_lambda_.35} parent=0 // pred_fallthru
    _
  // Predicated region
  $region14: #{_lambda_.35} parent=0 // pred_check
    _
  $region15: #{_lambda_.35} parent=0 // pred_check_branch
    %19 = sbr.rel (0) target = $region17
  $region16: #{_lambda_.35} parent=0 // pred_region
    _
  $region17: #{_lambda_.35} parent=0 // pred_fallthru
    _
  // Predicated region
  $region18: #{_lambda_.35} parent=0 // pred_check
    _
  $region19: #{_lambda_.35} parent=0 // pred_check_branch
    %21 = sbr.rel (0) target = $region21
  $region20: #{_lambda_.35} parent=0 // pred_region
    _
  $region21: #{_lambda_.35} parent=0 // pred_fallthru
    _
  // Predicated region
  $region22: #{_lambda_.35} parent=0 // pred_check
    _
  $region23: #{_lambda_.35} parent=0 // pred_check_branch
    %23 = sbr.rel (0) target = $region25
  $region24: #{_lambda_.35} parent=0 // pred_region
    _
  $region25: #{_lambda_.35} parent=0 // pred_fallthru
    _
  // Predicated region
  $region26: #{_lambda_.35} parent=0 // pred_check
    _
  $region27: #{_lambda_.35} parent=0 // pred_check_branch
    %25 = sbr.rel (0) target = $region29
  $region28: #{_lambda_.35} parent=0 // pred_region
    _
  $region29: #{_lambda_.35} parent=0 // pred_fallthru
    _
  %v26 = vld [vmem:[%s0] sm:$0x3]
  %v27 = vld [vmem:[%s1] sm:$0xff]
  %vm28 = vcmask 64512
  %v30 = vsel %vm28, %v26, 0
  %32 = vmatprep.subr.mxu0 0.0
  %33 = vmatpush1.msra.mxu0 %v27
  %34 = vmatprep.subr.mxu0 0.0
  %35 = vmatpush1.msra.mxu0 0.0
  %36 = vmatprep.subr.mxu0 0.0
  %37 = vmatpush1.msra.mxu0 0.0
  %38 = vmatprep.subr.mxu0 0.0
  %39 = vmatpush1.msra.mxu0 0.0
  %40 = vmatprep.subr.mxu0 0.0
  %41 = vmatpush1.msra.mxu0 0.0
  %42 = vmatprep.subr.mxu0 0.0
  %43 = vmatpush1.msra.mxu0 0.0
  %44 = vmatprep.subr.mxu0 0.0
  %45 = vmatpush1.msra.mxu0 0.0
  %46 = vmatprep.subr.mxu0 0.0
  %47 = vmatpush1.msra.mxu0 0.0
  %48 = vmatprep.subr.mxu0 0.0
  %49 = vmatpush1.msra.mxu0 0.0
  %50 = vmatprep.subr.mxu0 0.0
  %51 = vmatpush1.msra.mxu0 0.0
  %52 = vmatprep.subr.mxu0 0.0
  %53 = vmatpush1.msra.mxu0 0.0
  %54 = vmatprep.subr.mxu0 0.0
  %55 = vmatpush1.msra.mxu0 0.0
  %56 = vmatprep.subr.mxu0 0.0
  %57 = vmatpush1.msra.mxu0 0.0
  %58 = vmatprep.subr.mxu0 0.0
  %59 = vmatpush1.msra.mxu0 0.0
  %60 = vmatprep.subr.mxu0 0.0
  %61 = vmatpush1.msra.mxu0 0.0
  %62 = vmatprep.subr.mxu0 0.0
  %63 = vmatpush1.msra.mxu0 0.0
  %64 = vmatprep.subr.mxu0 0.0
  %65 = vmatpush1.msra.mxu0 0.0
  %66 = vmatprep.subr.mxu0 0.0
  %67 = vmatpush1.msra.mxu0 0.0
  %68 = vmatprep.subr.mxu0 0.0
  %69 = vmatpush1.msra.mxu0 0.0
  %70 = vmatprep.subr.mxu0 0.0
  %71 = vmatpush1.msra.mxu0 0.0
  %72 = vmatprep.subr.mxu0 0.0
  %73 = vmatpush1.msra.mxu0 0.0
  %74 = vmatprep.subr.mxu0 0.0
  %75 = vmatpush1.msra.mxu0 0.0
  %76 = vmatprep.subr.mxu0 0.0
  %77 = vmatpush1.msra.mxu0 0.0
  %78 = vmatprep.subr.mxu0 0.0
  %79 = vmatpush1.msra.mxu0 0.0
  %80 = vmatprep.subr.mxu0 0.0
  %81 = vmatpush1.msra.mxu0 0.0
  %82 = vmatprep.subr.mxu0 0.0
  %83 = vmatpush1.msra.mxu0 0.0
  %84 = vmatprep.subr.mxu0 0.0
  %85 = vmatpush1.msra.mxu0 0.0
  %86 = vmatprep.subr.mxu0 0.0
  %87 = vmatpush1.msra.mxu0 0.0
  %88 = vmatprep.subr.mxu0 0.0
  %89 = vmatpush1.msra.mxu0 0.0
  %90 = vmatprep.subr.mxu0 0.0
  %91 = vmatpush1.msra.mxu0 0.0
  %92 = vmatprep.subr.mxu0 0.0
  %93 = vmatpush1.msra.mxu0 0.0
  %94 = vmatprep.subr.mxu0 0.0
  %95 = vmatpush1.msra.mxu0 0.0
  %96 = vmatprep.mubr.f32.mxu0 0.0
  %97 = vmatmul.mubr.f32.gmra.mrb[0].mxu0 %v30
  %v98 = vpop.f32.mrb[0].mxu0
  %v99 = vadd.f32 0.0, %v98
  %v100 = vpop.f32.mrb[0].mxu0
  %101 = vdwg.mxu0
  %v102 = vld [vmem:[%s2] sm:$0x3]
  %v103 = vmul.f32 %v102, %v102
  %v104 = vld [vmem:[%s3] sm:$0xff]
  %v106 = vsel %vm28, %v103, 0
  %108 = vmatprep.subr.mxu0 0.0
  %109 = vmatpush1.msra.mxu0 %v104
  %110 = vmatprep.subr.mxu0 0.0
  %111 = vmatpush1.msra.mxu0 0.0
  %112 = vmatprep.subr.mxu0 0.0
  %113 = vmatpush1.msra.mxu0 0.0
  %114 = vmatprep.subr.mxu0 0.0
  %115 = vmatpush1.msra.mxu0 0.0
  %116 = vmatprep.subr.mxu0 0.0
  %117 = vmatpush1.msra.mxu0 0.0
  %118 = vmatprep.subr.mxu0 0.0
  %119 = vmatpush1.msra.mxu0 0.0
  %120 = vmatprep.subr.mxu0 0.0
  %121 = vmatpush1.msra.mxu0 0.0
  %122 = vmatprep.subr.mxu0 0.0
  %123 = vmatpush1.msra.mxu0 0.0
  %124 = vmatprep.subr.mxu0 0.0
  %125 = vmatpush1.msra.mxu0 0.0
  %126 = vmatprep.subr.mxu0 0.0
  %127 = vmatpush1.msra.mxu0 0.0
  %128 = vmatprep.subr.mxu0 0.0
  %129 = vmatpush1.msra.mxu0 0.0
  %130 = vmatprep.subr.mxu0 0.0
  %131 = vmatpush1.msra.mxu0 0.0
  %132 = vmatprep.subr.mxu0 0.0
  %133 = vmatpush1.msra.mxu0 0.0
  %134 = vmatprep.subr.mxu0 0.0
  %135 = vmatpush1.msra.mxu0 0.0
  %136 = vmatprep.subr.mxu0 0.0
  %137 = vmatpush1.msra.mxu0 0.0
  %138 = vmatprep.subr.mxu0 0.0
  %139 = vmatpush1.msra.mxu0 0.0
  %140 = vmatprep.subr.mxu0 0.0
  %141 = vmatpush1.msra.mxu0 0.0
  %142 = vmatprep.subr.mxu0 0.0
  %143 = vmatpush1.msra.mxu0 0.0
  %144 = vmatprep.subr.mxu0 0.0
  %145 = vmatpush1.msra.mxu0 0.0
  %146 = vmatprep.subr.mxu0 0.0
  %147 = vmatpush1.msra.mxu0 0.0
  %148 = vmatprep.subr.mxu0 0.0
  %149 = vmatpush1.msra.mxu0 0.0
  %150 = vmatprep.subr.mxu0 0.0
  %151 = vmatpush1.msra.mxu0 0.0
  %152 = vmatprep.subr.mxu0 0.0
  %153 = vmatpush1.msra.mxu0 0.0
  %154 = vmatprep.subr.mxu0 0.0
  %155 = vmatpush1.msra.mxu0 0.0
  %156 = vmatprep.subr.mxu0 0.0
  %157 = vmatpush1.msra.mxu0 0.0
  %158 = vmatprep.subr.mxu0 0.0
  %159 = vmatpush1.msra.mxu0 0.0
  %160 = vmatprep.subr.mxu0 0.0
  %161 = vmatpush1.msra.mxu0 0.0
  %162 = vmatprep.subr.mxu0 0.0
  %163 = vmatpush1.msra.mxu0 0.0
  %164 = vmatprep.subr.mxu0 0.0
  %165 = vmatpush1.msra.mxu0 0.0
  %166 = vmatprep.subr.mxu0 0.0
  %167 = vmatpush1.msra.mxu0 0.0
  %168 = vmatprep.subr.mxu0 0.0
  %169 = vmatpush1.msra.mxu0 0.0
  %170 = vmatprep.subr.mxu0 0.0
  %171 = vmatpush1.msra.mxu0 0.0
  %172 = vmatprep.mubr.f32.mxu0 0.0
  %173 = vmatmul.mubr.f32.gmra.mrb[0].mxu0 %v106
  %v174 = vpop.f32.mrb[0].mxu0
  %v175 = vadd.f32 1e-08, %v174
  %v176 = vpop.f32.mrb[0].mxu0
  %177 = vdwg.mxu0
  %v178 = vrsqrt.pop %v175
  %v179 = vmul.f32 %v99, %v178
  %v180 = vld [vmem:[%s4] sm:$0x3]
  %182 = vset.pattern.permute.xlu0 0
  %183 = vperm.xlu0 %182, %v180
  %v184 = vpop.permute.xlu0 %183
  %v186 = vadd.f32 %v179, %v184
  %v187 = vld [vmem:[%s5] sm:$0x1]
  %v189 = vlaneseq
  %v190 = vshrl.u32 %v189, 7
  %v191 = vsub.s32 0, %v190
  %v192 = vrot.slane %v187, %v191
  %v194 = vadd.f32 %v186, %v192
  %vm195 = vcmp.ge.f32.partialorder %v194, 0.0
  %v196 = vld [vmem:[%s6] sm:$0x1]
  %v198 = vlaneseq
  %v199 = vshrl.u32 %v198, 7
  %v200 = vsub.s32 0, %v199
  %v201 = vrot.slane %v196, %v200
  %v203 = vmul.f32 %v201, %v194
  %v204 = vsel %vm195, %v194, %v203
  %vm205 = vcmask 58368
  %206 = vst.msk [vmem:[%s7] sm:$0x3] %vm205, %v204
  // Predicated region
  $region30: #{_lambda_.35} parent=0 // pred_check
    _
  $region31: #{_lambda_.35} parent=0 // pred_check_branch
    %208 = sbr.rel (0) target = $region33
  $region32: #{_lambda_.35} parent=0 // pred_region
    _
  $region33: #{_lambda_.35} parent=0 // pred_fallthru
    _
  // Predicated region
  $region34: #{_lambda_.35} parent=0 // pred_check
    _
  $region35: #{_lambda_.35} parent=0 // pred_check_branch
    %210 = sbr.rel (0) target = $region37
  $region36: #{_lambda_.35} parent=0 // pred_region
    _
  $region37: #{_lambda_.35} parent=0 // pred_fallthru
    _

// kernel: _lambda_.36
$region0: #{_lambda_.36}
  #allocation0 [shape = 'u32[]', space=smem, size = 0x4, offset = 0x4, fixed_abs, tag = 'smem constant byte address 0x4 - core index']
  #allocation1 [shape = 'u32[144,128]{1,0:T(1,128)}', space=vmem, size = 0x12000, scoped, tag = 'internal scratch']
  %s0 = inlined_call_operand.vmem [shape: f32[2,8], index: 0, kind: input, shape index: {}]
  %s1 = inlined_call_operand.vmem [shape: f32[8,8], index: 1, kind: input, shape index: {}]
  %s2 = inlined_call_operand.vmem [shape: f32[2,8], index: 2, kind: input, shape index: {}]
  %s3 = inlined_call_operand.vmem [shape: f32[8,8], index: 3, kind: input, shape index: {}]
  %s4 = inlined_call_operand.vmem [shape: f32[2,1], index: 4, kind: input, shape index: {}]
  %s5 = inlined_call_operand.vmem [shape: f32[1,8], index: 5, kind: input, shape index: {}]
  %s6 = inlined_call_operand.vmem [shape: f32[2,8], index: 6, kind: output, shape index: {}]
  %s7 = sld [smem:[#allocation0]]
  $region34: #{_lambda_.36} parent=0
    _
  %s9 = ssub.s32 1, %s7
  %s10 = scalar_select 0, %s9, %s7
  // Predicated region
  $region2: #{_lambda_.36} parent=0 // pred_check
    _
  $region3: #{_lambda_.36} parent=0 // pred_check_branch
    %12 = sbr.rel (0) target = $region5
  $region4: #{_lambda_.36} parent=0 // pred_region
    _
  $region5: #{_lambda_.36} parent=0 // pred_fallthru
    _
  // Predicated region
  $region6: #{_lambda_.36} parent=0 // pred_check
    _
  $region7: #{_lambda_.36} parent=0 // pred_check_branch
    %14 = sbr.rel (0) target = $region9
  $region8: #{_lambda_.36} parent=0 // pred_region
    _
  $region9: #{_lambda_.36} parent=0 // pred_fallthru
    _
  // Predicated region
  $region10: #{_lambda_.36} parent=0 // pred_check
    _
  $region11: #{_lambda_.36} parent=0 // pred_check_branch
    %16 = sbr.rel (0) target = $region13
  $region12: #{_lambda_.36} parent=0 // pred_region
    _
  $region13: #{_lambda_.36} parent=0 // pred_fallthru
    _
  // Predicated region
  $region14: #{_lambda_.36} parent=0 // pred_check
    _
  $region15: #{_lambda_.36} parent=0 // pred_check_branch
    %18 = sbr.rel (0) target = $region17
  $region16: #{_lambda_.36} parent=0 // pred_region
    _
  $region17: #{_lambda_.36} parent=0 // pred_fallthru
    _
  // Predicated region
  $region18: #{_lambda_.36} parent=0 // pred_check
    _
  $region19: #{_lambda_.36} parent=0 // pred_check_branch
    %20 = sbr.rel (0) target = $region21
  $region20: #{_lambda_.36} parent=0 // pred_region
    _
  $region21: #{_lambda_.36} parent=0 // pred_fallthru
    _
  // Predicated region
  $region22: #{_lambda_.36} parent=0 // pred_check
    _
  $region23: #{_lambda_.36} parent=0 // pred_check_branch
    %22 = sbr.rel (0) target = $region25
  $region24: #{_lambda_.36} parent=0 // pred_region
    _
  $region25: #{_lambda_.36} parent=0 // pred_fallthru
    _
  %v23 = vld [vmem:[%s0] sm:$0x3]
  %v24 = vld [vmem:[%s1] sm:$0xff]
  %vm25 = vcmask 64512
  %v27 = vsel %vm25, %v23, 0
  %29 = vmatprep.subr.mxu0 0.0
  %30 = vmatpush1.msra.mxu0 %v24
  %31 = vmatprep.subr.mxu0 0.0
  %32 = vmatpush1.msra.mxu0 0.0
  %33 = vmatprep.subr.mxu0 0.0
  %34 = vmatpush1.msra.mxu0 0.0
  %35 = vmatprep.subr.mxu0 0.0
  %36 = vmatpush1.msra.mxu0 0.0
  %37 = vmatprep.subr.mxu0 0.0
  %38 = vmatpush1.msra.mxu0 0.0
  %39 = vmatprep.subr.mxu0 0.0
  %40 = vmatpush1.msra.mxu0 0.0
  %41 = vmatprep.subr.mxu0 0.0
  %42 = vmatpush1.msra.mxu0 0.0
  %43 = vmatprep.subr.mxu0 0.0
  %44 = vmatpush1.msra.mxu0 0.0
  %45 = vmatprep.subr.mxu0 0.0
  %46 = vmatpush1.msra.mxu0 0.0
  %47 = vmatprep.subr.mxu0 0.0
  %48 = vmatpush1.msra.mxu0 0.0
  %49 = vmatprep.subr.mxu0 0.0
  %50 = vmatpush1.msra.mxu0 0.0
  %51 = vmatprep.subr.mxu0 0.0
  %52 = vmatpush1.msra.mxu0 0.0
  %53 = vmatprep.subr.mxu0 0.0
  %54 = vmatpush1.msra.mxu0 0.0
  %55 = vmatprep.subr.mxu0 0.0
  %56 = vmatpush1.msra.mxu0 0.0
  %57 = vmatprep.subr.mxu0 0.0
  %58 = vmatpush1.msra.mxu0 0.0
  %59 = vmatprep.subr.mxu0 0.0
  %60 = vmatpush1.msra.mxu0 0.0
  %61 = vmatprep.subr.mxu0 0.0
  %62 = vmatpush1.msra.mxu0 0.0
  %63 = vmatprep.subr.mxu0 0.0
  %64 = vmatpush1.msra.mxu0 0.0
  %65 = vmatprep.subr.mxu0 0.0
  %66 = vmatpush1.msra.mxu0 0.0
  %67 = vmatprep.subr.mxu0 0.0
  %68 = vmatpush1.msra.mxu0 0.0
  %69 = vmatprep.subr.mxu0 0.0
  %70 = vmatpush1.msra.mxu0 0.0
  %71 = vmatprep.subr.mxu0 0.0
  %72 = vmatpush1.msra.mxu0 0.0
  %73 = vmatprep.subr.mxu0 0.0
  %74 = vmatpush1.msra.mxu0 0.0
  %75 = vmatprep.subr.mxu0 0.0
  %76 = vmatpush1.msra.mxu0 0.0
  %77 = vmatprep.subr.mxu0 0.0
  %78 = vmatpush1.msra.mxu0 0.0
  %79 = vmatprep.subr.mxu0 0.0
  %80 = vmatpush1.msra.mxu0 0.0
  %81 = vmatprep.subr.mxu0 0.0
  %82 = vmatpush1.msra.mxu0 0.0
  %83 = vmatprep.subr.mxu0 0.0
  %84 = vmatpush1.msra.mxu0 0.0
  %85 = vmatprep.subr.mxu0 0.0
  %86 = vmatpush1.msra.mxu0 0.0
  %87 = vmatprep.subr.mxu0 0.0
  %88 = vmatpush1.msra.mxu0 0.0
  %89 = vmatprep.subr.mxu0 0.0
  %90 = vmatpush1.msra.mxu0 0.0
  %91 = vmatprep.subr.mxu0 0.0
  %92 = vmatpush1.msra.mxu0 0.0
  %93 = vmatprep.mubr.f32.mxu0 0.0
  %94 = vmatmul.mubr.f32.gmra.mrb[0].mxu0 %v27
  %v95 = vpop.f32.mrb[0].mxu0
  %v96 = vadd.f32 0.0, %v95
  %v97 = vpop.f32.mrb[0].mxu0
  %98 = vdwg.mxu0
  %v99 = vld [vmem:[%s2] sm:$0x3]
  %v100 = vmul.f32 %v99, %v99
  %v101 = vld [vmem:[%s3] sm:$0xff]
  %v103 = vsel %vm25, %v100, 0
  %105 = vmatprep.subr.mxu0 0.0
  %106 = vmatpush1.msra.mxu0 %v101
  %107 = vmatprep.subr.mxu0 0.0
  %108 = vmatpush1.msra.mxu0 0.0
  %109 = vmatprep.subr.mxu0 0.0
  %110 = vmatpush1.msra.mxu0 0.0
  %111 = vmatprep.subr.mxu0 0.0
  %112 = vmatpush1.msra.mxu0 0.0
  %113 = vmatprep.subr.mxu0 0.0
  %114 = vmatpush1.msra.mxu0 0.0
  %115 = vmatprep.subr.mxu0 0.0
  %116 = vmatpush1.msra.mxu0 0.0
  %117 = vmatprep.subr.mxu0 0.0
  %118 = vmatpush1.msra.mxu0 0.0
  %119 = vmatprep.subr.mxu0 0.0
  %120 = vmatpush1.msra.mxu0 0.0
  %121 = vmatprep.subr.mxu0 0.0
  %122 = vmatpush1.msra.mxu0 0.0
  %123 = vmatprep.subr.mxu0 0.0
  %124 = vmatpush1.msra.mxu0 0.0
  %125 = vmatprep.subr.mxu0 0.0
  %126 = vmatpush1.msra.mxu0 0.0
  %127 = vmatprep.subr.mxu0 0.0
  %128 = vmatpush1.msra.mxu0 0.0
  %129 = vmatprep.subr.mxu0 0.0
  %130 = vmatpush1.msra.mxu0 0.0
  %131 = vmatprep.subr.mxu0 0.0
  %132 = vmatpush1.msra.mxu0 0.0
  %133 = vmatprep.subr.mxu0 0.0
  %134 = vmatpush1.msra.mxu0 0.0
  %135 = vmatprep.subr.mxu0 0.0
  %136 = vmatpush1.msra.mxu0 0.0
  %137 = vmatprep.subr.mxu0 0.0
  %138 = vmatpush1.msra.mxu0 0.0
  %139 = vmatprep.subr.mxu0 0.0
  %140 = vmatpush1.msra.mxu0 0.0
  %141 = vmatprep.subr.mxu0 0.0
  %142 = vmatpush1.msra.mxu0 0.0
  %143 = vmatprep.subr.mxu0 0.0
  %144 = vmatpush1.msra.mxu0 0.0
  %145 = vmatprep.subr.mxu0 0.0
  %146 = vmatpush1.msra.mxu0 0.0
  %147 = vmatprep.subr.mxu0 0.0
  %148 = vmatpush1.msra.mxu0 0.0
  %149 = vmatprep.subr.mxu0 0.0
  %150 = vmatpush1.msra.mxu0 0.0
  %151 = vmatprep.subr.mxu0 0.0
  %152 = vmatpush1.msra.mxu0 0.0
  %153 = vmatprep.subr.mxu0 0.0
  %154 = vmatpush1.msra.mxu0 0.0
  %155 = vmatprep.subr.mxu0 0.0
  %156 = vmatpush1.msra.mxu0 0.0
  %157 = vmatprep.subr.mxu0 0.0
  %158 = vmatpush1.msra.mxu0 0.0
  %159 = vmatprep.subr.mxu0 0.0
  %160 = vmatpush1.msra.mxu0 0.0
  %161 = vmatprep.subr.mxu0 0.0
  %162 = vmatpush1.msra.mxu0 0.0
  %163 = vmatprep.subr.mxu0 0.0
  %164 = vmatpush1.msra.mxu0 0.0
  %165 = vmatprep.subr.mxu0 0.0
  %166 = vmatpush1.msra.mxu0 0.0
  %167 = vmatprep.subr.mxu0 0.0
  %168 = vmatpush1.msra.mxu0 0.0
  %169 = vmatprep.mubr.f32.mxu0 0.0
  %170 = vmatmul.mubr.f32.gmra.mrb[0].mxu0 %v103
  %v171 = vpop.f32.mrb[0].mxu0
  %v172 = vadd.f32 1e-08, %v171
  %v173 = vpop.f32.mrb[0].mxu0
  %174 = vdwg.mxu0
  %v175 = vrsqrt.pop %v172
  %v176 = vmul.f32 %v96, %v175
  %v177 = vld [vmem:[%s4] sm:$0x3]
  %179 = vset.pattern.permute.xlu0 0
  %180 = vperm.xlu0 %179, %v177
  %v181 = vpop.permute.xlu0 %180
  %v183 = vadd.f32 %v176, %v181
  %v184 = vld [vmem:[%s5] sm:$0x1]
  %v186 = vlaneseq
  %v187 = vshrl.u32 %v186, 7
  %v188 = vsub.s32 0, %v187
  %v189 = vrot.slane %v184, %v188
  %v191 = vadd.f32 %v183, %v189
  %v192 = vxor.u32 %v191, 2147483648
  %v193 = vmul.f32 %v192, 1.442695
  %v194 = vpow.pop %v193
  %v195 = vadd.f32 %v194, 1.0
  %v196 = vrcp.pop %v195
  %v197 = vmul.f32 1.0, %v196
  %vm198 = vcmask 58368
  %199 = vst.msk [vmem:[%s6] sm:$0x3] %vm198, %v197
  // Predicated region
  $region26: #{_lambda_.36} parent=0 // pred_check
    _
  $region27: #{_lambda_.36} parent=0 // pred_check_branch
    %201 = sbr.rel (0) target = $region29
  $region28: #{_lambda_.36} parent=0 // pred_region
    _
  $region29: #{_lambda_.36} parent=0 // pred_fallthru
    _
  // Predicated region
  $region30: #{_lambda_.36} parent=0 // pred_check
    _
  $region31: #{_lambda_.36} parent=0 // pred_check_branch
    %203 = sbr.rel (0) target = $region33
  $region32: #{_lambda_.36} parent=0 // pred_region
    _
  $region33: #{_lambda_.36} parent=0 // pred_fallthru
    _

// kernel: _lambda_.26
$region0: #{_lambda_.26}
  #allocation0 [shape = 'u32[]', space=smem, size = 0x4, offset = 0x4, fixed_abs, tag = 'smem constant byte address 0x4 - core index']
  #allocation1 [shape = 'u32[144,128]{1,0:T(1,128)}', space=vmem, size = 0x12000, scoped, tag = 'internal scratch']
  %s0 = inlined_call_operand.vmem [shape: f32[2,8], index: 0, kind: input, shape index: {}]
  %s1 = inlined_call_operand.vmem [shape: f32[8,16], index: 1, kind: input, shape index: {}]
  %s2 = inlined_call_operand.vmem [shape: f32[2,8], index: 2, kind: input, shape index: {}]
  %s3 = inlined_call_operand.vmem [shape: f32[8,16], index: 3, kind: input, shape index: {}]
  %s4 = inlined_call_operand.vmem [shape: f32[2,1], index: 4, kind: input, shape index: {}]
  %s5 = inlined_call_operand.vmem [shape: f32[1,16], index: 5, kind: input, shape index: {}]
  %s6 = inlined_call_operand.vmem [shape: f32[2,16], index: 6, kind: output, shape index: {}]
  %s7 = sld [smem:[#allocation0]]
  $region34: #{_lambda_.26} parent=0
    _
  %s9 = ssub.s32 1, %s7
  %s10 = scalar_select 0, %s9, %s7
  // Predicated region
  $region2: #{_lambda_.26} parent=0 // pred_check
    _
  $region3: #{_lambda_.26} parent=0 // pred_check_branch
    %12 = sbr.rel (0) target = $region5
  $region4: #{_lambda_.26} parent=0 // pred_region
    _
  $region5: #{_lambda_.26} parent=0 // pred_fallthru
    _
  // Predicated region
  $region6: #{_lambda_.26} parent=0 // pred_check
    _
  $region7: #{_lambda_.26} parent=0 // pred_check_branch
    %14 = sbr.rel (0) target = $region9
  $region8: #{_lambda_.26} parent=0 // pred_region
    _
  $region9: #{_lambda_.26} parent=0 // pred_fallthru
    _
  // Predicated region
  $region10: #{_lambda_.26} parent=0 // pred_check
    _
  $region11: #{_lambda_.26} parent=0 // pred_check_branch
    %16 = sbr.rel (0) target = $region13
  $region12: #{_lambda_.26} parent=0 // pred_region
    _
  $region13: #{_lambda_.26} parent=0 // pred_fallthru
    _
  // Predicated region
  $region14: #{_lambda_.26} parent=0 // pred_check
    _
  $region15: #{_lambda_.26} parent=0 // pred_check_branch
    %18 = sbr.rel (0) target = $region17
  $region16: #{_lambda_.26} parent=0 // pred_region
    _
  $region17: #{_lambda_.26} parent=0 // pred_fallthru
    _
  // Predicated region
  $region18: #{_lambda_.26} parent=0 // pred_check
    _
  $region19: #{_lambda_.26} parent=0 // pred_check_branch
    %20 = sbr.rel (0) target = $region21
  $region20: #{_lambda_.26} parent=0 // pred_region
    _
  $region21: #{_lambda_.26} parent=0 // pred_fallthru
    _
  // Predicated region
  $region22: #{_lambda_.26} parent=0 // pred_check
    _
  $region23: #{_lambda_.26} parent=0 // pred_check_branch
    %22 = sbr.rel (0) target = $region25
  $region24: #{_lambda_.26} parent=0 // pred_region
    _
  $region25: #{_lambda_.26} parent=0 // pred_fallthru
    _
  %v23 = vld [vmem:[%s0] sm:$0x3]
  %v24 = vld [vmem:[%s1] sm:$0xff]
  %vm25 = vcmask 64512
  %v27 = vsel %vm25, %v23, 0
  %29 = vmatprep.subr.mxu0 0.0
  %30 = vmatpush1.msra.mxu0 %v24
  %31 = vmatprep.subr.mxu0 0.0
  %32 = vmatpush1.msra.mxu0 0.0
  %33 = vmatprep.subr.mxu0 0.0
  %34 = vmatpush1.msra.mxu0 0.0
  %35 = vmatprep.subr.mxu0 0.0
  %36 = vmatpush1.msra.mxu0 0.0
  %37 = vmatprep.subr.mxu0 0.0
  %38 = vmatpush1.msra.mxu0 0.0
  %39 = vmatprep.subr.mxu0 0.0
  %40 = vmatpush1.msra.mxu0 0.0
  %41 = vmatprep.subr.mxu0 0.0
  %42 = vmatpush1.msra.mxu0 0.0
  %43 = vmatprep.subr.mxu0 0.0
  %44 = vmatpush1.msra.mxu0 0.0
  %45 = vmatprep.subr.mxu0 0.0
  %46 = vmatpush1.msra.mxu0 0.0
  %47 = vmatprep.subr.mxu0 0.0
  %48 = vmatpush1.msra.mxu0 0.0
  %49 = vmatprep.subr.mxu0 0.0
  %50 = vmatpush1.msra.mxu0 0.0
  %51 = vmatprep.subr.mxu0 0.0
  %52 = vmatpush1.msra.mxu0 0.0
  %53 = vmatprep.subr.mxu0 0.0
  %54 = vmatpush1.msra.mxu0 0.0
  %55 = vmatprep.subr.mxu0 0.0
  %56 = vmatpush1.msra.mxu0 0.0
  %57 = vmatprep.subr.mxu0 0.0
  %58 = vmatpush1.msra.mxu0 0.0
  %59 = vmatprep.subr.mxu0 0.0
  %60 = vmatpush1.msra.mxu0 0.0
  %61 = vmatprep.subr.mxu0 0.0
  %62 = vmatpush1.msra.mxu0 0.0
  %63 = vmatprep.subr.mxu0 0.0
  %64 = vmatpush1.msra.mxu0 0.0
  %65 = vmatprep.subr.mxu0 0.0
  %66 = vmatpush1.msra.mxu0 0.0
  %67 = vmatprep.subr.mxu0 0.0
  %68 = vmatpush1.msra.mxu0 0.0
  %69 = vmatprep.subr.mxu0 0.0
  %70 = vmatpush1.msra.mxu0 0.0
  %71 = vmatprep.subr.mxu0 0.0
  %72 = vmatpush1.msra.mxu0 0.0
  %73 = vmatprep.subr.mxu0 0.0
  %74 = vmatpush1.msra.mxu0 0.0
  %75 = vmatprep.subr.mxu0 0.0
  %76 = vmatpush1.msra.mxu0 0.0
  %77 = vmatprep.subr.mxu0 0.0
  %78 = vmatpush1.msra.mxu0 0.0
  %79 = vmatprep.subr.mxu0 0.0
  %80 = vmatpush1.msra.mxu0 0.0
  %81 = vmatprep.subr.mxu0 0.0
  %82 = vmatpush1.msra.mxu0 0.0
  %83 = vmatprep.subr.mxu0 0.0
  %84 = vmatpush1.msra.mxu0 0.0
  %85 = vmatprep.subr.mxu0 0.0
  %86 = vmatpush1.msra.mxu0 0.0
  %87 = vmatprep.subr.mxu0 0.0
  %88 = vmatpush1.msra.mxu0 0.0
  %89 = vmatprep.subr.mxu0 0.0
  %90 = vmatpush1.msra.mxu0 0.0
  %91 = vmatprep.subr.mxu0 0.0
  %92 = vmatpush1.msra.mxu0 0.0
  %93 = vmatprep.mubr.f32.mxu0 0.0
  %94 = vmatmul.mubr.f32.gmra.mrb[0].mxu0 %v27
  %v95 = vpop.f32.mrb[0].mxu0
  %v96 = vadd.f32 0.0, %v95
  %v97 = vpop.f32.mrb[0].mxu0
  %98 = vdwg.mxu0
  %v99 = vld [vmem:[%s2] sm:$0x3]
  %v100 = vmul.f32 %v99, %v99
  %v101 = vld [vmem:[%s3] sm:$0xff]
  %v103 = vsel %vm25, %v100, 0
  %105 = vmatprep.subr.mxu0 0.0
  %106 = vmatpush1.msra.mxu0 %v101
  %107 = vmatprep.subr.mxu0 0.0
  %108 = vmatpush1.msra.mxu0 0.0
  %109 = vmatprep.subr.mxu0 0.0
  %110 = vmatpush1.msra.mxu0 0.0
  %111 = vmatprep.subr.mxu0 0.0
  %112 = vmatpush1.msra.mxu0 0.0
  %113 = vmatprep.subr.mxu0 0.0
  %114 = vmatpush1.msra.mxu0 0.0
  %115 = vmatprep.subr.mxu0 0.0
  %116 = vmatpush1.msra.mxu0 0.0
  %117 = vmatprep.subr.mxu0 0.0
  %118 = vmatpush1.msra.mxu0 0.0
  %119 = vmatprep.subr.mxu0 0.0
  %120 = vmatpush1.msra.mxu0 0.0
  %121 = vmatprep.subr.mxu0 0.0
  %122 = vmatpush1.msra.mxu0 0.0
  %123 = vmatprep.subr.mxu0 0.0
  %124 = vmatpush1.msra.mxu0 0.0
  %125 = vmatprep.subr.mxu0 0.0
  %126 = vmatpush1.msra.mxu0 0.0
  %127 = vmatprep.subr.mxu0 0.0
  %128 = vmatpush1.msra.mxu0 0.0
  %129 = vmatprep.subr.mxu0 0.0
  %130 = vmatpush1.msra.mxu0 0.0
  %131 = vmatprep.subr.mxu0 0.0
  %132 = vmatpush1.msra.mxu0 0.0
  %133 = vmatprep.subr.mxu0 0.0
  %134 = vmatpush1.msra.mxu0 0.0
  %135 = vmatprep.subr.mxu0 0.0
  %136 = vmatpush1.msra.mxu0 0.0
  %137 = vmatprep.subr.mxu0 0.0
  %138 = vmatpush1.msra.mxu0 0.0
  %139 = vmatprep.subr.mxu0 0.0
  %140 = vmatpush1.msra.mxu0 0.0
  %141 = vmatprep.subr.mxu0 0.0
  %142 = vmatpush1.msra.mxu0 0.0
  %143 = vmatprep.subr.mxu0 0.0
  %144 = vmatpush1.msra.mxu0 0.0
  %145 = vmatprep.subr.mxu0 0.0
  %146 = vmatpush1.msra.mxu0 0.0
  %147 = vmatprep.subr.mxu0 0.0
  %148 = vmatpush1.msra.mxu0 0.0
  %149 = vmatprep.subr.mxu0 0.0
  %150 = vmatpush1.msra.mxu0 0.0
  %151 = vmatprep.subr.mxu0 0.0
  %152 = vmatpush1.msra.mxu0 0.0
  %153 = vmatprep.subr.mxu0 0.0
  %154 = vmatpush1.msra.mxu0 0.0
  %155 = vmatprep.subr.mxu0 0.0
  %156 = vmatpush1.msra.mxu0 0.0
  %157 = vmatprep.subr.mxu0 0.0
  %158 = vmatpush1.msra.mxu0 0.0
  %159 = vmatprep.subr.mxu0 0.0
  %160 = vmatpush1.msra.mxu0 0.0
  %161 = vmatprep.subr.mxu0 0.0
  %162 = vmatpush1.msra.mxu0 0.0
  %163 = vmatprep.subr.mxu0 0.0
  %164 = vmatpush1.msra.mxu0 0.0
  %165 = vmatprep.subr.mxu0 0.0
  %166 = vmatpush1.msra.mxu0 0.0
  %167 = vmatprep.subr.mxu0 0.0
  %168 = vmatpush1.msra.mxu0 0.0
  %169 = vmatprep.mubr.f32.mxu0 0.0
  %170 = vmatmul.mubr.f32.gmra.mrb[0].mxu0 %v103
  %v171 = vpop.f32.mrb[0].mxu0
  %v172 = vadd.f32 1e-08, %v171
  %v173 = vpop.f32.mrb[0].mxu0
  %174 = vdwg.mxu0
  %v175 = vrsqrt.pop %v172
  %v176 = vmul.f32 %v96, %v175
  %v177 = vld [vmem:[%s4] sm:$0x3]
  %179 = vset.pattern.permute.xlu0 0
  %180 = vperm.xlu0 %179, %v177
  %v181 = vpop.permute.xlu0 %180
  %v183 = vadd.f32 %v176, %v181
  %v184 = vld [vmem:[%s5] sm:$0x1]
  %v186 = vlaneseq
  %v187 = vshrl.u32 %v186, 7
  %v188 = vsub.s32 0, %v187
  %v189 = vrot.slane %v184, %v188
  %v191 = vadd.f32 %v183, %v189
  %v192 = vxor.u32 %v191, 2147483648
  %v193 = vmul.f32 %v192, 1.442695
  %v194 = vpow.pop %v193
  %v195 = vadd.f32 %v194, 1.0
  %v196 = vrcp.pop %v195
  %v197 = vmul.f32 1.0, %v196
  %vm198 = vcmask 123904
  %199 = vst.msk [vmem:[%s6] sm:$0x3] %vm198, %v197
  // Predicated region
  $region26: #{_lambda_.26} parent=0 // pred_check
    _
  $region27: #{_lambda_.26} parent=0 // pred_check_branch
    %201 = sbr.rel (0) target = $region29
  $region28: #{_lambda_.26} parent=0 // pred_region
    _
  $region29: #{_lambda_.26} parent=0 // pred_fallthru
    _
  // Predicated region
  $region30: #{_lambda_.26} parent=0 // pred_check
    _
  $region31: #{_lambda_.26} parent=0 // pred_check_branch
    %203 = sbr.rel (0) target = $region33
  $region32: #{_lambda_.26} parent=0 // pred_region
    _
  $region33: #{_lambda_.26} parent=0 // pred_fallthru
    _

// kernel: _lambda_.24
$region0: #{_lambda_.24}
  #allocation0 [shape = 'u32[]', space=smem, size = 0x4, offset = 0x4, fixed_abs, tag = 'smem constant byte address 0x4 - core index']
  #allocation1 [shape = 'u32[144,128]{1,0:T(1,128)}', space=vmem, size = 0x12000, scoped, tag = 'internal scratch']
  %s0 = inlined_call_operand.vmem [shape: f32[128,72], index: 0, kind: input, shape index: {}]
  %s1 = inlined_call_operand.vmem [shape: f32[72,16], index: 1, kind: input, shape index: {}]
  %s2 = inlined_call_operand.vmem [shape: f32[128,8], index: 2, kind: input, shape index: {}]
  %s3 = inlined_call_operand.vmem [shape: f32[8,16], index: 3, kind: input, shape index: {}]
  %s4 = inlined_call_operand.vmem [shape: f32[128,1], index: 4, kind: input, shape index: {}]
  %s5 = inlined_call_operand.vmem [shape: f32[1,16], index: 5, kind: input, shape index: {}]
  %s6 = inlined_call_operand.vmem [shape: f32[1,16], index: 6, kind: input, shape index: {}]
  %s7 = inlined_call_operand.vmem [shape: f32[128,16], index: 7, kind: output, shape index: {}]
  %s8 = sld [smem:[#allocation0]]
  $region38: #{_lambda_.24} parent=0
    _
  %s10 = ssub.s32 1, %s8
  %s11 = scalar_select 0, %s10, %s8
  // Predicated region
  $region2: #{_lambda_.24} parent=0 // pred_check
    _
  $region3: #{_lambda_.24} parent=0 // pred_check_branch
    %13 = sbr.rel (0) target = $region5
  $region4: #{_lambda_.24} parent=0 // pred_region
    _
  $region5: #{_lambda_.24} parent=0 // pred_fallthru
    _
  // Predicated region
  $region6: #{_lambda_.24} parent=0 // pred_check
    _
  $region7: #{_lambda_.24} parent=0 // pred_check_branch
    %15 = sbr.rel (0) target = $region9
  $region8: #{_lambda_.24} parent=0 // pred_region
    _
  $region9: #{_lambda_.24} parent=0 // pred_fallthru
    _
  // Predicated region
  $region10: #{_lambda_.24} parent=0 // pred_check
    _
  $region11: #{_lambda_.24} parent=0 // pred_check_branch
    %17 = sbr.rel (0) target = $region13
  $region12: #{_lambda_.24} parent=0 // pred_region
    _
  $region13: #{_lambda_.24} parent=0 // pred_fallthru
    _
  // Predicated region
  $region14: #{_lambda_.24} parent=0 // pred_check
    _
  $region15: #{_lambda_.24} parent=0 // pred_check_branch
    %19 = sbr.rel (0) target = $region17
  $region16: #{_lambda_.24} parent=0 // pred_region
    _
  $region17: #{_lambda_.24} parent=0 // pred_fallthru
    _
  // Predicated region
  $region18: #{_lambda_.24} parent=0 // pred_check
    _
  $region19: #{_lambda_.24} parent=0 // pred_check_branch
    %21 = sbr.rel (0) target = $region21
  $region20: #{_lambda_.24} parent=0 // pred_region
    _
  $region21: #{_lambda_.24} parent=0 // pred_fallthru
    _
  // Predicated region
  $region22: #{_lambda_.24} parent=0 // pred_check
    _
  $region23: #{_lambda_.24} parent=0 // pred_check_branch
    %23 = sbr.rel (0) target = $region25
  $region24: #{_lambda_.24} parent=0 // pred_region
    _
  $region25: #{_lambda_.24} parent=0 // pred_fallthru
    _
  // Predicated region
  $region26: #{_lambda_.24} parent=0 // pred_check
    _
  $region27: #{_lambda_.24} parent=0 // pred_check_branch
    %25 = sbr.rel (0) target = $region29
  $region28: #{_lambda_.24} parent=0 // pred_region
    _
  $region29: #{_lambda_.24} parent=0 // pred_fallthru
    _
  %v26 = vld [vmem:[%s0] sm:$0xff]
  %v27 = vld [vmem:[%s0 + $0x8] sm:$0xff]
  %v28 = vld [vmem:[%s0 + $0x10] sm:$0xff]
  %v29 = vld [vmem:[%s0 + $0x18] sm:$0xff]
  %v30 = vld [vmem:[%s0 + $0x20] sm:$0xff]
  %v31 = vld [vmem:[%s0 + $0x28] sm:$0xff]
  %v32 = vld [vmem:[%s0 + $0x30] sm:$0xff]
  %v33 = vld [vmem:[%s0 + $0x38] sm:$0xff]
  %v34 = vld [vmem:[%s0 + $0x40] sm:$0xff]
  %v35 = vld [vmem:[%s0 + $0x48] sm:$0xff]
  %v36 = vld [vmem:[%s0 + $0x50] sm:$0xff]
  %v37 = vld [vmem:[%s0 + $0x58] sm:$0xff]
  %v38 = vld [vmem:[%s0 + $0x60] sm:$0xff]
  %v39 = vld [vmem:[%s0 + $0x68] sm:$0xff]
  %v40 = vld [vmem:[%s0 + $0x70] sm:$0xff]
  %v41 = vld [vmem:[%s0 + $0x78] sm:$0xff]
  %v42 = vld [vmem:[%s1] sm:$0xff]
  %v43 = vld [vmem:[%s1 + $0x8] sm:$0xff]
  %v44 = vld [vmem:[%s1 + $0x10] sm:$0xff]
  %v45 = vld [vmem:[%s1 + $0x18] sm:$0xff]
  %v46 = vld [vmem:[%s1 + $0x20] sm:$0xff]
  %v47 = vld [vmem:[%s1 + $0x28] sm:$0xff]
  %v48 = vld [vmem:[%s1 + $0x30] sm:$0xff]
  %v49 = vld [vmem:[%s1 + $0x38] sm:$0xff]
  %v50 = vld [vmem:[%s1 + $0x40] sm:$0xff]
  %vm51 = vcmask 588800
  %v53 = vsel %vm51, %v26, 0
  %v56 = vsel %vm51, %v27, 0
  %v59 = vsel %vm51, %v28, 0
  %v62 = vsel %vm51, %v29, 0
  %v65 = vsel %vm51, %v30, 0
  %v68 = vsel %vm51, %v31, 0
  %v71 = vsel %vm51, %v32, 0
  %v74 = vsel %vm51, %v33, 0
  %v77 = vsel %vm51, %v34, 0
  %v80 = vsel %vm51, %v35, 0
  %v83 = vsel %vm51, %v36, 0
  %v86 = vsel %vm51, %v37, 0
  %v89 = vsel %vm51, %v38, 0
  %v92 = vsel %vm51, %v39, 0
  %v95 = vsel %vm51, %v40, 0
  %v98 = vsel %vm51, %v41, 0
  %100 = vmatprep.subr.mxu0 0.0
  %101 = vmatpush1.msra.mxu0 %v42
  %102 = vmatprep.subr.mxu0 0.0
  %103 = vmatpush1.msra.mxu0 %v43
  %104 = vmatprep.subr.mxu0 0.0
  %105 = vmatpush1.msra.mxu0 %v44
  %106 = vmatprep.subr.mxu0 0.0
  %107 = vmatpush1.msra.mxu0 %v45
  %108 = vmatprep.subr.mxu0 0.0
  %109 = vmatpush1.msra.mxu0 %v46
  %110 = vmatprep.subr.mxu0 0.0
  %111 = vmatpush1.msra.mxu0 %v47
  %112 = vmatprep.subr.mxu0 0.0
  %113 = vmatpush1.msra.mxu0 %v48
  %114 = vmatprep.subr.mxu0 0.0
  %115 = vmatpush1.msra.mxu0 %v49
  %116 = vmatprep.subr.mxu0 0.0
  %117 = vmatpush1.msra.mxu0 %v50
  %118 = vmatprep.subr.mxu0 0.0
  %119 = vmatpush1.msra.mxu0 0.0
  %120 = vmatprep.subr.mxu0 0.0
  %121 = vmatpush1.msra.mxu0 0.0
  %122 = vmatprep.subr.mxu0 0.0
  %123 = vmatpush1.msra.mxu0 0.0
  %124 = vmatprep.subr.mxu0 0.0
  %125 = vmatpush1.msra.mxu0 0.0
  %126 = vmatprep.subr.mxu0 0.0
  %127 = vmatpush1.msra.mxu0 0.0
  %128 = vmatprep.subr.mxu0 0.0
  %129 = vmatpush1.msra.mxu0 0.0
  %130 = vmatprep.subr.mxu0 0.0
  %131 = vmatpush1.msra.mxu0 0.0
  %132 = vmatprep.subr.mxu0 0.0
  %133 = vmatpush1.msra.mxu0 0.0
  %134 = vmatprep.subr.mxu0 0.0
  %135 = vmatpush1.msra.mxu0 0.0
  %136 = vmatprep.subr.mxu0 0.0
  %137 = vmatpush1.msra.mxu0 0.0
  %138 = vmatprep.subr.mxu0 0.0
  %139 = vmatpush1.msra.mxu0 0.0
  %140 = vmatprep.subr.mxu0 0.0
  %141 = vmatpush1.msra.mxu0 0.0
  %142 = vmatprep.subr.mxu0 0.0
  %143 = vmatpush1.msra.mxu0 0.0
  %144 = vmatprep.subr.mxu0 0.0
  %145 = vmatpush1.msra.mxu0 0.0
  %146 = vmatprep.subr.mxu0 0.0
  %147 = vmatpush1.msra.mxu0 0.0
  %148 = vmatprep.subr.mxu0 0.0
  %149 = vmatpush1.msra.mxu0 0.0
  %150 = vmatprep.subr.mxu0 0.0
  %151 = vmatpush1.msra.mxu0 0.0
  %152 = vmatprep.subr.mxu0 0.0
  %153 = vmatpush1.msra.mxu0 0.0
  %154 = vmatprep.subr.mxu0 0.0
  %155 = vmatpush1.msra.mxu0 0.0
  %156 = vmatprep.subr.mxu0 0.0
  %157 = vmatpush1.msra.mxu0 0.0
  %158 = vmatprep.subr.mxu0 0.0
  %159 = vmatpush1.msra.mxu0 0.0
  %160 = vmatprep.subr.mxu0 0.0
  %161 = vmatpush1.msra.mxu0 0.0
  %162 = vmatprep.subr.mxu0 0.0
  %163 = vmatpush1.msra.mxu0 0.0
  %164 = vmatprep.mubr.f32.mxu0 0.0
  %165 = vmatmul.mubr.f32.gmra.mrb[0].mxu0 %v53
  %v166 = vpop.f32.mrb[0].mxu0
  %v167 = vadd.f32 0.0, %v166
  %v168 = vpop.f32.mrb[0].mxu0
  %169 = vmatprep.mubr.f32.mxu0 0.0
  %170 = vmatmul.mubr.f32.gmra.mrb[0].mxu0 %v56
  %v171 = vpop.f32.mrb[0].mxu0
  %v172 = vadd.f32 0.0, %v171
  %v173 = vpop.f32.mrb[0].mxu0
  %174 = vmatprep.mubr.f32.mxu0 0.0
  %175 = vmatmul.mubr.f32.gmra.mrb[0].mxu0 %v59
  %v176 = vpop.f32.mrb[0].mxu0
  %v177 = vadd.f32 0.0, %v176
  %v178 = vpop.f32.mrb[0].mxu0
  %179 = vmatprep.mubr.f32.mxu0 0.0
  %180 = vmatmul.mubr.f32.gmra.mrb[0].mxu0 %v62
  %v181 = vpop.f32.mrb[0].mxu0
  %v182 = vadd.f32 0.0, %v181
  %v183 = vpop.f32.mrb[0].mxu0
  %184 = vmatprep.mubr.f32.mxu0 0.0
  %185 = vmatmul.mubr.f32.gmra.mrb[0].mxu0 %v65
  %v186 = vpop.f32.mrb[0].mxu0
  %v187 = vadd.f32 0.0, %v186
  %v188 = vpop.f32.mrb[0].mxu0
  %189 = vmatprep.mubr.f32.mxu0 0.0
  %190 = vmatmul.mubr.f32.gmra.mrb[0].mxu0 %v68
  %v191 = vpop.f32.mrb[0].mxu0
  %v192 = vadd.f32 0.0, %v191
  %v193 = vpop.f32.mrb[0].mxu0
  %194 = vmatprep.mubr.f32.mxu0 0.0
  %195 = vmatmul.mubr.f32.gmra.mrb[0].mxu0 %v71
  %v196 = vpop.f32.mrb[0].mxu0
  %v197 = vadd.f32 0.0, %v196
  %v198 = vpop.f32.mrb[0].mxu0
  %199 = vmatprep.mubr.f32.mxu0 0.0
  %200 = vmatmul.mubr.f32.gmra.mrb[0].mxu0 %v74
  %v201 = vpop.f32.mrb[0].mxu0
  %v202 = vadd.f32 0.0, %v201
  %v203 = vpop.f32.mrb[0].mxu0
  %204 = vmatprep.mubr.f32.mxu0 0.0
  %205 = vmatmul.mubr.f32.gmra.mrb[0].mxu0 %v77
  %v206 = vpop.f32.mrb[0].mxu0
  %v207 = vadd.f32 0.0, %v206
  %v208 = vpop.f32.mrb[0].mxu0
  %209 = vmatprep.mubr.f32.mxu0 0.0
  %210 = vmatmul.mubr.f32.gmra.mrb[0].mxu0 %v80
  %v211 = vpop.f32.mrb[0].mxu0
  %v212 = vadd.f32 0.0, %v211
  %v213 = vpop.f32.mrb[0].mxu0
  %214 = vmatprep.mubr.f32.mxu0 0.0
  %215 = vmatmul.mubr.f32.gmra.mrb[0].mxu0 %v83
  %v216 = vpop.f32.mrb[0].mxu0
  %v217 = vadd.f32 0.0, %v216
  %v218 = vpop.f32.mrb[0].mxu0
  %219 = vmatprep.mubr.f32.mxu0 0.0
  %220 = vmatmul.mubr.f32.gmra.mrb[0].mxu0 %v86
  %v221 = vpop.f32.mrb[0].mxu0
  %v222 = vadd.f32 0.0, %v221
  %v223 = vpop.f32.mrb[0].mxu0
  %224 = vmatprep.mubr.f32.mxu0 0.0
  %225 = vmatmul.mubr.f32.gmra.mrb[0].mxu0 %v89
  %v226 = vpop.f32.mrb[0].mxu0
  %v227 = vadd.f32 0.0, %v226
  %v228 = vpop.f32.mrb[0].mxu0
  %229 = vmatprep.mubr.f32.mxu0 0.0
  %230 = vmatmul.mubr.f32.gmra.mrb[0].mxu0 %v92
  %v231 = vpop.f32.mrb[0].mxu0
  %v232 = vadd.f32 0.0, %v231
  %v233 = vpop.f32.mrb[0].mxu0
  %234 = vmatprep.mubr.f32.mxu0 0.0
  %235 = vmatmul.mubr.f32.gmra.mrb[0].mxu0 %v95
  %v236 = vpop.f32.mrb[0].mxu0
  %v237 = vadd.f32 0.0, %v236
  %v238 = vpop.f32.mrb[0].mxu0
  %239 = vmatprep.mubr.f32.mxu0 0.0
  %240 = vmatmul.mubr.f32.gmra.mrb[0].mxu0 %v98
  %v241 = vpop.f32.mrb[0].mxu0
  %v242 = vadd.f32 0.0, %v241
  %v243 = vpop.f32.mrb[0].mxu0
  %244 = vdwg.mxu0
  %v245 = vld [vmem:[%s2] sm:$0xff]
  %v246 = vld [vmem:[%s2 + $0x8] sm:$0xff]
  %v247 = vld [vmem:[%s2 + $0x10] sm:$0xff]
  %v248 = vld [vmem:[%s2 + $0x18] sm:$0xff]
  %v249 = vld [vmem:[%s2 + $0x20] sm:$0xff]
  %v250 = vld [vmem:[%s2 + $0x28] sm:$0xff]
  %v251 = vld [vmem:[%s2 + $0x30] sm:$0xff]
  %v252 = vld [vmem:[%s2 + $0x38] sm:$0xff]
  %v253 = vld [vmem:[%s2 + $0x40] sm:$0xff]
  %v254 = vld [vmem:[%s2 + $0x48] sm:$0xff]
  %v255 = vld [vmem:[%s2 + $0x50] sm:$0xff]
  %v256 = vld [vmem:[%s2 + $0x58] sm:$0xff]
  %v257 = vld [vmem:[%s2 + $0x60] sm:$0xff]
  %v258 = vld [vmem:[%s2 + $0x68] sm:$0xff]
  %v259 = vld [vmem:[%s2 + $0x70] sm:$0xff]
  %v260 = vld [vmem:[%s2 + $0x78] sm:$0xff]
  %v261 = vmul.f32 %v245, %v245
  %v262 = vmul.f32 %v246, %v246
  %v263 = vmul.f32 %v247, %v247
  %v264 = vmul.f32 %v248, %v248
  %v265 = vmul.f32 %v249, %v249
  %v266 = vmul.f32 %v250, %v250
  %v267 = vmul.f32 %v251, %v251
  %v268 = vmul.f32 %v252, %v252
  %v269 = vmul.f32 %v253, %v253
  %v270 = vmul.f32 %v254, %v254
  %v271 = vmul.f32 %v255, %v255
  %v272 = vmul.f32 %v256, %v256
  %v273 = vmul.f32 %v257, %v257
  %v274 = vmul.f32 %v258, %v258
  %v275 = vmul.f32 %v259, %v259
  %v276 = vmul.f32 %v260, %v260
  %v277 = vld [vmem:[%s3] sm:$0xff]
  %vm278 = vcmask 64512
  %v280 = vsel %vm278, %v261, 0
  %v283 = vsel %vm278, %v262, 0
  %v286 = vsel %vm278, %v263, 0
  %v289 = vsel %vm278, %v264, 0
  %v292 = vsel %vm278, %v265, 0
  %v295 = vsel %vm278, %v266, 0
  %v298 = vsel %vm278, %v267, 0
  %v301 = vsel %vm278, %v268, 0
  %v304 = vsel %vm278, %v269, 0
  %v307 = vsel %vm278, %v270, 0
  %v310 = vsel %vm278, %v271, 0
  %v313 = vsel %vm278, %v272, 0
  %v316 = vsel %vm278, %v273, 0
  %v319 = vsel %vm278, %v274, 0
  %v322 = vsel %vm278, %v275, 0
  %v325 = vsel %vm278, %v276, 0
  %327 = vmatprep.subr.mxu0 0.0
  %328 = vmatpush1.msra.mxu0 %v277
  %329 = vmatprep.subr.mxu0 0.0
  %330 = vmatpush1.msra.mxu0 0.0
  %331 = vmatprep.subr.mxu0 0.0
  %332 = vmatpush1.msra.mxu0 0.0
  %333 = vmatprep.subr.mxu0 0.0
  %334 = vmatpush1.msra.mxu0 0.0
  %335 = vmatprep.subr.mxu0 0.0
  %336 = vmatpush1.msra.mxu0 0.0
  %337 = vmatprep.subr.mxu0 0.0
  %338 = vmatpush1.msra.mxu0 0.0
  %339 = vmatprep.subr.mxu0 0.0
  %340 = vmatpush1.msra.mxu0 0.0
  %341 = vmatprep.subr.mxu0 0.0
  %342 = vmatpush1.msra.mxu0 0.0
  %343 = vmatprep.subr.mxu0 0.0
  %344 = vmatpush1.msra.mxu0 0.0
  %345 = vmatprep.subr.mxu0 0.0
  %346 = vmatpush1.msra.mxu0 0.0
  %347 = vmatprep.subr.mxu0 0.0
  %348 = vmatpush1.msra.mxu0 0.0
  %349 = vmatprep.subr.mxu0 0.0
  %350 = vmatpush1.msra.mxu0 0.0
  %351 = vmatprep.subr.mxu0 0.0
  %352 = vmatpush1.msra.mxu0 0.0
  %353 = vmatprep.subr.mxu0 0.0
  %354 = vmatpush1.msra.mxu0 0.0
  %355 = vmatprep.subr.mxu0 0.0
  %356 = vmatpush1.msra.mxu0 0.0
  %357 = vmatprep.subr.mxu0 0.0
  %358 = vmatpush1.msra.mxu0 0.0
  %359 = vmatprep.subr.mxu0 0.0
  %360 = vmatpush1.msra.mxu0 0.0
  %361 = vmatprep.subr.mxu0 0.0
  %362 = vmatpush1.msra.mxu0 0.0
  %363 = vmatprep.subr.mxu0 0.0
  %364 = vmatpush1.msra.mxu0 0.0
  %365 = vmatprep.subr.mxu0 0.0
  %366 = vmatpush1.msra.mxu0 0.0
  %367 = vmatprep.subr.mxu0 0.0
  %368 = vmatpush1.msra.mxu0 0.0
  %369 = vmatprep.subr.mxu0 0.0
  %370 = vmatpush1.msra.mxu0 0.0
  %371 = vmatprep.subr.mxu0 0.0
  %372 = vmatpush1.msra.mxu0 0.0
  %373 = vmatprep.subr.mxu0 0.0
  %374 = vmatpush1.msra.mxu0 0.0
  %375 = vmatprep.subr.mxu0 0.0
  %376 = vmatpush1.msra.mxu0 0.0
  %377 = vmatprep.subr.mxu0 0.0
  %378 = vmatpush1.msra.mxu0 0.0
  %379 = vmatprep.subr.mxu0 0.0
  %380 = vmatpush1.msra.mxu0 0.0
  %381 = vmatprep.subr.mxu0 0.0
  %382 = vmatpush1.msra.mxu0 0.0
  %383 = vmatprep.subr.mxu0 0.0
  %384 = vmatpush1.msra.mxu0 0.0
  %385 = vmatprep.subr.mxu0 0.0
  %386 = vmatpush1.msra.mxu0 0.0
  %387 = vmatprep.subr.mxu0 0.0
  %388 = vmatpush1.msra.mxu0 0.0
  %389 = vmatprep.subr.mxu0 0.0
  %390 = vmatpush1.msra.mxu0 0.0
  %391 = vmatprep.mubr.f32.mxu0 0.0
  %392 = vmatmul.mubr.f32.gmra.mrb[0].mxu0 %v280
  %v393 = vpop.f32.mrb[0].mxu0
  %v394 = vadd.f32 1e-08, %v393
  %v395 = vpop.f32.mrb[0].mxu0
  %396 = vmatprep.mubr.f32.mxu0 0.0
  %397 = vmatmul.mubr.f32.gmra.mrb[0].mxu0 %v283
  %v398 = vpop.f32.mrb[0].mxu0
  %v399 = vadd.f32 1e-08, %v398
  %v400 = vpop.f32.mrb[0].mxu0
  %401 = vmatprep.mubr.f32.mxu0 0.0
  %402 = vmatmul.mubr.f32.gmra.mrb[0].mxu0 %v286
  %v403 = vpop.f32.mrb[0].mxu0
  %v404 = vadd.f32 1e-08, %v403
  %v405 = vpop.f32.mrb[0].mxu0
  %406 = vmatprep.mubr.f32.mxu0 0.0
  %407 = vmatmul.mubr.f32.gmra.mrb[0].mxu0 %v289
  %v408 = vpop.f32.mrb[0].mxu0
  %v409 = vadd.f32 1e-08, %v408
  %v410 = vpop.f32.mrb[0].mxu0
  %411 = vmatprep.mubr.f32.mxu0 0.0
  %412 = vmatmul.mubr.f32.gmra.mrb[0].mxu0 %v292
  %v413 = vpop.f32.mrb[0].mxu0
  %v414 = vadd.f32 1e-08, %v413
  %v415 = vpop.f32.mrb[0].mxu0
  %416 = vmatprep.mubr.f32.mxu0 0.0
  %417 = vmatmul.mubr.f32.gmra.mrb[0].mxu0 %v295
  %v418 = vpop.f32.mrb[0].mxu0
  %v419 = vadd.f32 1e-08, %v418
  %v420 = vpop.f32.mrb[0].mxu0
  %421 = vmatprep.mubr.f32.mxu0 0.0
  %422 = vmatmul.mubr.f32.gmra.mrb[0].mxu0 %v298
  %v423 = vpop.f32.mrb[0].mxu0
  %v424 = vadd.f32 1e-08, %v423
  %v425 = vpop.f32.mrb[0].mxu0
  %426 = vmatprep.mubr.f32.mxu0 0.0
  %427 = vmatmul.mubr.f32.gmra.mrb[0].mxu0 %v301
  %v428 = vpop.f32.mrb[0].mxu0
  %v429 = vadd.f32 1e-08, %v428
  %v430 = vpop.f32.mrb[0].mxu0
  %431 = vmatprep.mubr.f32.mxu0 0.0
  %432 = vmatmul.mubr.f32.gmra.mrb[0].mxu0 %v304
  %v433 = vpop.f32.mrb[0].mxu0
  %v434 = vadd.f32 1e-08, %v433
  %v435 = vpop.f32.mrb[0].mxu0
  %436 = vmatprep.mubr.f32.mxu0 0.0
  %437 = vmatmul.mubr.f32.gmra.mrb[0].mxu0 %v307
  %v438 = vpop.f32.mrb[0].mxu0
  %v439 = vadd.f32 1e-08, %v438
  %v440 = vpop.f32.mrb[0].mxu0
  %441 = vmatprep.mubr.f32.mxu0 0.0
  %442 = vmatmul.mubr.f32.gmra.mrb[0].mxu0 %v310
  %v443 = vpop.f32.mrb[0].mxu0
  %v444 = vadd.f32 1e-08, %v443
  %v445 = vpop.f32.mrb[0].mxu0
  %446 = vmatprep.mubr.f32.mxu0 0.0
  %447 = vmatmul.mubr.f32.gmra.mrb[0].mxu0 %v313
  %v448 = vpop.f32.mrb[0].mxu0
  %v449 = vadd.f32 1e-08, %v448
  %v450 = vpop.f32.mrb[0].mxu0
  %451 = vmatprep.mubr.f32.mxu0 0.0
  %452 = vmatmul.mubr.f32.gmra.mrb[0].mxu0 %v316
  %v453 = vpop.f32.mrb[0].mxu0
  %v454 = vadd.f32 1e-08, %v453
  %v455 = vpop.f32.mrb[0].mxu0
  %456 = vmatprep.mubr.f32.mxu0 0.0
  %457 = vmatmul.mubr.f32.gmra.mrb[0].mxu0 %v319
  %v458 = vpop.f32.mrb[0].mxu0
  %v459 = vadd.f32 1e-08, %v458
  %v460 = vpop.f32.mrb[0].mxu0
  %461 = vmatprep.mubr.f32.mxu0 0.0
  %462 = vmatmul.mubr.f32.gmra.mrb[0].mxu0 %v322
  %v463 = vpop.f32.mrb[0].mxu0
  %v464 = vadd.f32 1e-08, %v463
  %v465 = vpop.f32.mrb[0].mxu0
  %466 = vmatprep.mubr.f32.mxu0 0.0
  %467 = vmatmul.mubr.f32.gmra.mrb[0].mxu0 %v325
  %v468 = vpop.f32.mrb[0].mxu0
  %v469 = vadd.f32 1e-08, %v468
  %v470 = vpop.f32.mrb[0].mxu0
  %471 = vdwg.mxu0
  %v472 = vrsqrt.pop %v394
  %v473 = vrsqrt.pop %v399
  %v474 = vrsqrt.pop %v404
  %v475 = vrsqrt.pop %v409
  %v476 = vrsqrt.pop %v414
  %v477 = vrsqrt.pop %v419
  %v478 = vrsqrt.pop %v424
  %v479 = vrsqrt.pop %v429
  %v480 = vrsqrt.pop %v434
  %v481 = vrsqrt.pop %v439
  %v482 = vrsqrt.pop %v444
  %v483 = vrsqrt.pop %v449
  %v484 = vrsqrt.pop %v454
  %v485 = vrsqrt.pop %v459
  %v486 = vrsqrt.pop %v464
  %v487 = vrsqrt.pop %v469
  %v488 = vmul.f32 %v167, %v472
  %v489 = vmul.f32 %v172, %v473
  %v490 = vmul.f32 %v177, %v474
  %v491 = vmul.f32 %v182, %v475
  %v492 = vmul.f32 %v187, %v476
  %v493 = vmul.f32 %v192, %v477
  %v494 = vmul.f32 %v197, %v478
  %v495 = vmul.f32 %v202, %v479
  %v496 = vmul.f32 %v207, %v480
  %v497 = vmul.f32 %v212, %v481
  %v498 = vmul.f32 %v217, %v482
  %v499 = vmul.f32 %v222, %v483
  %v500 = vmul.f32 %v227, %v484
  %v501 = vmul.f32 %v232, %v485
  %v502 = vmul.f32 %v237, %v486
  %v503 = vmul.f32 %v242, %v487
  %v504 = vld [vmem:[%s4] sm:$0xff]
  %v505 = vld [vmem:[%s4 + $0x8] sm:$0xff]
  %v506 = vld [vmem:[%s4 + $0x10] sm:$0xff]
  %v507 = vld [vmem:[%s4 + $0x18] sm:$0xff]
  %v508 = vld [vmem:[%s4 + $0x20] sm:$0xff]
  %v509 = vld [vmem:[%s4 + $0x28] sm:$0xff]
  %v510 = vld [vmem:[%s4 + $0x30] sm:$0xff]
  %v511 = vld [vmem:[%s4 + $0x38] sm:$0xff]
  %v512 = vld [vmem:[%s4 + $0x40] sm:$0xff]
  %v513 = vld [vmem:[%s4 + $0x48] sm:$0xff]
  %v514 = vld [vmem:[%s4 + $0x50] sm:$0xff]
  %v515 = vld [vmem:[%s4 + $0x58] sm:$0xff]
  %v516 = vld [vmem:[%s4 + $0x60] sm:$0xff]
  %v517 = vld [vmem:[%s4 + $0x68] sm:$0xff]
  %v518 = vld [vmem:[%s4 + $0x70] sm:$0xff]
  %v519 = vld [vmem:[%s4 + $0x78] sm:$0xff]
  %521 = vset.pattern.permute.xlu0 0
  %522 = vperm.xlu0 %521, %v504
  %v523 = vpop.permute.xlu0 %522
  %526 = vset.pattern.permute.xlu0 0
  %527 = vperm.xlu0 %526, %v505
  %v528 = vpop.permute.xlu0 %527
  %531 = vset.pattern.permute.xlu0 0
  %532 = vperm.xlu0 %531, %v506
  %v533 = vpop.permute.xlu0 %532
  %536 = vset.pattern.permute.xlu0 0
  %537 = vperm.xlu0 %536, %v507
  %v538 = vpop.permute.xlu0 %537
  %541 = vset.pattern.permute.xlu0 0
  %542 = vperm.xlu0 %541, %v508
  %v543 = vpop.permute.xlu0 %542
  %546 = vset.pattern.permute.xlu0 0
  %547 = vperm.xlu0 %546, %v509
  %v548 = vpop.permute.xlu0 %547
  %551 = vset.pattern.permute.xlu0 0
  %552 = vperm.xlu0 %551, %v510
  %v553 = vpop.permute.xlu0 %552
  %556 = vset.pattern.permute.xlu0 0
  %557 = vperm.xlu0 %556, %v511
  %v558 = vpop.permute.xlu0 %557
  %561 = vset.pattern.permute.xlu0 0
  %562 = vperm.xlu0 %561, %v512
  %v563 = vpop.permute.xlu0 %562
  %566 = vset.pattern.permute.xlu0 0
  %567 = vperm.xlu0 %566, %v513
  %v568 = vpop.permute.xlu0 %567
  %571 = vset.pattern.permute.xlu0 0
  %572 = vperm.xlu0 %571, %v514
  %v573 = vpop.permute.xlu0 %572
  %576 = vset.pattern.permute.xlu0 0
  %577 = vperm.xlu0 %576, %v515
  %v578 = vpop.permute.xlu0 %577
  %581 = vset.pattern.permute.xlu0 0
  %582 = vperm.xlu0 %581, %v516
  %v583 = vpop.permute.xlu0 %582
  %586 = vset.pattern.permute.xlu0 0
  %587 = vperm.xlu0 %586, %v517
  %v588 = vpop.permute.xlu0 %587
  %591 = vset.pattern.permute.xlu0 0
  %592 = vperm.xlu0 %591, %v518
  %v593 = vpop.permute.xlu0 %592
  %596 = vset.pattern.permute.xlu0 0
  %597 = vperm.xlu0 %596, %v519
  %v598 = vpop.permute.xlu0 %597
  %v600 = vadd.f32 %v488, %v523
  %v601 = vadd.f32 %v489, %v528
  %v602 = vadd.f32 %v490, %v533
  %v603 = vadd.f32 %v491, %v538
  %v604 = vadd.f32 %v492, %v543
  %v605 = vadd.f32 %v493, %v548
  %v606 = vadd.f32 %v494, %v553
  %v607 = vadd.f32 %v495, %v558
  %v608 = vadd.f32 %v496, %v563
  %v609 = vadd.f32 %v497, %v568
  %v610 = vadd.f32 %v498, %v573
  %v611 = vadd.f32 %v499, %v578
  %v612 = vadd.f32 %v500, %v583
  %v613 = vadd.f32 %v501, %v588
  %v614 = vadd.f32 %v502, %v593
  %v615 = vadd.f32 %v503, %v598
  %v616 = vld [vmem:[%s5] sm:$0x1]
  %v618 = vlaneseq
  %v619 = vshrl.u32 %v618, 7
  %v620 = vsub.s32 0, %v619
  %v621 = vrot.slane %v616, %v620
  %v623 = vadd.f32 %v600, %v621
  %v624 = vadd.f32 %v601, %v621
  %v625 = vadd.f32 %v602, %v621
  %v626 = vadd.f32 %v603, %v621
  %v627 = vadd.f32 %v604, %v621
  %v628 = vadd.f32 %v605, %v621
  %v629 = vadd.f32 %v606, %v621
  %v630 = vadd.f32 %v607, %v621
  %v631 = vadd.f32 %v608, %v621
  %v632 = vadd.f32 %v609, %v621
  %v633 = vadd.f32 %v610, %v621
  %v634 = vadd.f32 %v611, %v621
  %v635 = vadd.f32 %v612, %v621
  %v636 = vadd.f32 %v613, %v621
  %v637 = vadd.f32 %v614, %v621
  %v638 = vadd.f32 %v615, %v621
  %vm639 = vcmp.ge.f32.partialorder %v623, 0.0
  %vm640 = vcmp.ge.f32.partialorder %v624, 0.0
  %vm641 = vcmp.ge.f32.partialorder %v625, 0.0
  %vm642 = vcmp.ge.f32.partialorder %v626, 0.0
  %vm643 = vcmp.ge.f32.partialorder %v627, 0.0
  %vm644 = vcmp.ge.f32.partialorder %v628, 0.0
  %vm645 = vcmp.ge.f32.partialorder %v629, 0.0
  %vm646 = vcmp.ge.f32.partialorder %v630, 0.0
  %vm647 = vcmp.ge.f32.partialorder %v631, 0.0
  %vm648 = vcmp.ge.f32.partialorder %v632, 0.0
  %vm649 = vcmp.ge.f32.partialorder %v633, 0.0
  %vm650 = vcmp.ge.f32.partialorder %v634, 0.0
  %vm651 = vcmp.ge.f32.partialorder %v635, 0.0
  %vm652 = vcmp.ge.f32.partialorder %v636, 0.0
  %vm653 = vcmp.ge.f32.partialorder %v637, 0.0
  %vm654 = vcmp.ge.f32.partialorder %v638, 0.0
  %v655 = vld [vmem:[%s6] sm:$0x1]
  %v657 = vlaneseq
  %v658 = vshrl.u32 %v657, 7
  %v659 = vsub.s32 0, %v658
  %v660 = vrot.slane %v655, %v659
  %v662 = vmul.f32 %v660, %v623
  %v663 = vmul.f32 %v660, %v624
  %v664 = vmul.f32 %v660, %v625
  %v665 = vmul.f32 %v660, %v626
  %v666 = vmul.f32 %v660, %v627
  %v667 = vmul.f32 %v660, %v628
  %v668 = vmul.f32 %v660, %v629
  %v669 = vmul.f32 %v660, %v630
  %v670 = vmul.f32 %v660, %v631
  %v671 = vmul.f32 %v660, %v632
  %v672 = vmul.f32 %v660, %v633
  %v673 = vmul.f32 %v660, %v634
  %v674 = vmul.f32 %v660, %v635
  %v675 = vmul.f32 %v660, %v636
  %v676 = vmul.f32 %v660, %v637
  %v677 = vmul.f32 %v660, %v638
  %v678 = vsel %vm639, %v623, %v662
  %v679 = vsel %vm640, %v624, %v663
  %v680 = vsel %vm641, %v625, %v664
  %v681 = vsel %vm642, %v626, %v665
  %v682 = vsel %vm643, %v627, %v666
  %v683 = vsel %vm644, %v628, %v667
  %v684 = vsel %vm645, %v629, %v668
  %v685 = vsel %vm646, %v630, %v669
  %v686 = vsel %vm647, %v631, %v670
  %v687 = vsel %vm648, %v632, %v671
  %v688 = vsel %vm649, %v633, %v672
  %v689 = vsel %vm650, %v634, %v673
  %v690 = vsel %vm651, %v635, %v674
  %v691 = vsel %vm652, %v636, %v675
  %v692 = vsel %vm653, %v637, %v676
  %v693 = vsel %vm654, %v638, %v677
  %vm694 = vcmask 130048
  %695 = vst.msk [vmem:[%s7] sm:$0xff] %vm694, %v678
  %696 = vst.msk [vmem:[%s7 + $0x8] sm:$0xff] %vm694, %v679
  %697 = vst.msk [vmem:[%s7 + $0x10] sm:$0xff] %vm694, %v680
  %698 = vst.msk [vmem:[%s7 + $0x18] sm:$0xff] %vm694, %v681
  %699 = vst.msk [vmem:[%s7 + $0x20] sm:$0xff] %vm694, %v682
  %700 = vst.msk [vmem:[%s7 + $0x28] sm:$0xff] %vm694, %v683
  %701 = vst.msk [vmem:[%s7 + $0x30] sm:$0xff] %vm694, %v684
  %702 = vst.msk [vmem:[%s7 + $0x38] sm:$0xff] %vm694, %v685
  %703 = vst.msk [vmem:[%s7 + $0x40] sm:$0xff] %vm694, %v686
  %704 = vst.msk [vmem:[%s7 + $0x48] sm:$0xff] %vm694, %v687
  %705 = vst.msk [vmem:[%s7 + $0x50] sm:$0xff] %vm694, %v688
  %706 = vst.msk [vmem:[%s7 + $0x58] sm:$0xff] %vm694, %v689
  %707 = vst.msk [vmem:[%s7 + $0x60] sm:$0xff] %vm694, %v690
  %708 = vst.msk [vmem:[%s7 + $0x68] sm:$0xff] %vm694, %v691
  %709 = vst.msk [vmem:[%s7 + $0x70] sm:$0xff] %vm694, %v692
  %710 = vst.msk [vmem:[%s7 + $0x78] sm:$0xff] %vm694, %v693
  // Predicated region
  $region30: #{_lambda_.24} parent=0 // pred_check
    _
  $region31: #{_lambda_.24} parent=0 // pred_check_branch
    %712 = sbr.rel (0) target = $region33
  $region32: #{_lambda_.24} parent=0 // pred_region
    _
  $region33: #{_lambda_.24} parent=0 // pred_fallthru
    _
  // Predicated region
  $region34: #{_lambda_.24} parent=0 // pred_check
    _
  $region35: #{_lambda_.24} parent=0 // pred_check_branch
    %714 = sbr.rel (0) target = $region37
  $region36: #{_lambda_.24} parent=0 // pred_region
    _
  $region37: #{_lambda_.24} parent=0 // pred_fallthru
    _

// kernel: _lambda_.30
$region0: #{_lambda_.30}
  #allocation0 [shape = 'u32[]', space=smem, size = 0x4, offset = 0x4, fixed_abs, tag = 'smem constant byte address 0x4 - core index']
  #allocation1 [shape = 'u32[144,128]{1,0:T(1,128)}', space=vmem, size = 0x12000, scoped, tag = 'internal scratch']
  %s0 = inlined_call_operand.vmem [shape: f32[2,16], index: 0, kind: input, shape index: {}]
  %s1 = inlined_call_operand.vmem [shape: f32[16,8], index: 1, kind: input, shape index: {}]
  %s2 = inlined_call_operand.vmem [shape: f32[2,16], index: 2, kind: input, shape index: {}]
  %s3 = inlined_call_operand.vmem [shape: f32[16,8], index: 3, kind: input, shape index: {}]
  %s4 = inlined_call_operand.vmem [shape: f32[2,1], index: 4, kind: input, shape index: {}]
  %s5 = inlined_call_operand.vmem [shape: f32[1,8], index: 5, kind: input, shape index: {}]
  %s6 = inlined_call_operand.vmem [shape: f32[1,8], index: 6, kind: input, shape index: {}]
  %s7 = inlined_call_operand.vmem [shape: f32[2,8], index: 7, kind: output, shape index: {}]
  %s8 = sld [smem:[#allocation0]]
  $region38: #{_lambda_.30} parent=0
    _
  %s10 = ssub.s32 1, %s8
  %s11 = scalar_select 0, %s10, %s8
  // Predicated region
  $region2: #{_lambda_.30} parent=0 // pred_check
    _
  $region3: #{_lambda_.30} parent=0 // pred_check_branch
    %13 = sbr.rel (0) target = $region5
  $region4: #{_lambda_.30} parent=0 // pred_region
    _
  $region5: #{_lambda_.30} parent=0 // pred_fallthru
    _
  // Predicated region
  $region6: #{_lambda_.30} parent=0 // pred_check
    _
  $region7: #{_lambda_.30} parent=0 // pred_check_branch
    %15 = sbr.rel (0) target = $region9
  $region8: #{_lambda_.30} parent=0 // pred_region
    _
  $region9: #{_lambda_.30} parent=0 // pred_fallthru
    _
  // Predicated region
  $region10: #{_lambda_.30} parent=0 // pred_check
    _
  $region11: #{_lambda_.30} parent=0 // pred_check_branch
    %17 = sbr.rel (0) target = $region13
  $region12: #{_lambda_.30} parent=0 // pred_region
    _
  $region13: #{_lambda_.30} parent=0 // pred_fallthru
    _
  // Predicated region
  $region14: #{_lambda_.30} parent=0 // pred_check
    _
  $region15: #{_lambda_.30} parent=0 // pred_check_branch
    %19 = sbr.rel (0) target = $region17
  $region16: #{_lambda_.30} parent=0 // pred_region
    _
  $region17: #{_lambda_.30} parent=0 // pred_fallthru
    _
  // Predicated region
  $region18: #{_lambda_.30} parent=0 // pred_check
    _
  $region19: #{_lambda_.30} parent=0 // pred_check_branch
    %21 = sbr.rel (0) target = $region21
  $region20: #{_lambda_.30} parent=0 // pred_region
    _
  $region21: #{_lambda_.30} parent=0 // pred_fallthru
    _
  // Predicated region
  $region22: #{_lambda_.30} parent=0 // pred_check
    _
  $region23: #{_lambda_.30} parent=0 // pred_check_branch
    %23 = sbr.rel (0) target = $region25
  $region24: #{_lambda_.30} parent=0 // pred_region
    _
  $region25: #{_lambda_.30} parent=0 // pred_fallthru
    _
  // Predicated region
  $region26: #{_lambda_.30} parent=0 // pred_check
    _
  $region27: #{_lambda_.30} parent=0 // pred_check_branch
    %25 = sbr.rel (0) target = $region29
  $region28: #{_lambda_.30} parent=0 // pred_region
    _
  $region29: #{_lambda_.30} parent=0 // pred_fallthru
    _
  %v26 = vld [vmem:[%s0] sm:$0x3]
  %v27 = vld [vmem:[%s1] sm:$0xff]
  %v28 = vld [vmem:[%s1 + $0x8] sm:$0xff]
  %vm29 = vcmask 130048
  %v31 = vsel %vm29, %v26, 0
  %33 = vmatprep.subr.mxu0 0.0
  %34 = vmatpush1.msra.mxu0 %v27
  %35 = vmatprep.subr.mxu0 0.0
  %36 = vmatpush1.msra.mxu0 %v28
  %37 = vmatprep.subr.mxu0 0.0
  %38 = vmatpush1.msra.mxu0 0.0
  %39 = vmatprep.subr.mxu0 0.0
  %40 = vmatpush1.msra.mxu0 0.0
  %41 = vmatprep.subr.mxu0 0.0
  %42 = vmatpush1.msra.mxu0 0.0
  %43 = vmatprep.subr.mxu0 0.0
  %44 = vmatpush1.msra.mxu0 0.0
  %45 = vmatprep.subr.mxu0 0.0
  %46 = vmatpush1.msra.mxu0 0.0
  %47 = vmatprep.subr.mxu0 0.0
  %48 = vmatpush1.msra.mxu0 0.0
  %49 = vmatprep.subr.mxu0 0.0
  %50 = vmatpush1.msra.mxu0 0.0
  %51 = vmatprep.subr.mxu0 0.0
  %52 = vmatpush1.msra.mxu0 0.0
  %53 = vmatprep.subr.mxu0 0.0
  %54 = vmatpush1.msra.mxu0 0.0
  %55 = vmatprep.subr.mxu0 0.0
  %56 = vmatpush1.msra.mxu0 0.0
  %57 = vmatprep.subr.mxu0 0.0
  %58 = vmatpush1.msra.mxu0 0.0
  %59 = vmatprep.subr.mxu0 0.0
  %60 = vmatpush1.msra.mxu0 0.0
  %61 = vmatprep.subr.mxu0 0.0
  %62 = vmatpush1.msra.mxu0 0.0
  %63 = vmatprep.subr.mxu0 0.0
  %64 = vmatpush1.msra.mxu0 0.0
  %65 = vmatprep.subr.mxu0 0.0
  %66 = vmatpush1.msra.mxu0 0.0
  %67 = vmatprep.subr.mxu0 0.0
  %68 = vmatpush1.msra.mxu0 0.0
  %69 = vmatprep.subr.mxu0 0.0
  %70 = vmatpush1.msra.mxu0 0.0
  %71 = vmatprep.subr.mxu0 0.0
  %72 = vmatpush1.msra.mxu0 0.0
  %73 = vmatprep.subr.mxu0 0.0
  %74 = vmatpush1.msra.mxu0 0.0
  %75 = vmatprep.subr.mxu0 0.0
  %76 = vmatpush1.msra.mxu0 0.0
  %77 = vmatprep.subr.mxu0 0.0
  %78 = vmatpush1.msra.mxu0 0.0
  %79 = vmatprep.subr.mxu0 0.0
  %80 = vmatpush1.msra.mxu0 0.0
  %81 = vmatprep.subr.mxu0 0.0
  %82 = vmatpush1.msra.mxu0 0.0
  %83 = vmatprep.subr.mxu0 0.0
  %84 = vmatpush1.msra.mxu0 0.0
  %85 = vmatprep.subr.mxu0 0.0
  %86 = vmatpush1.msra.mxu0 0.0
  %87 = vmatprep.subr.mxu0 0.0
  %88 = vmatpush1.msra.mxu0 0.0
  %89 = vmatprep.subr.mxu0 0.0
  %90 = vmatpush1.msra.mxu0 0.0
  %91 = vmatprep.subr.mxu0 0.0
  %92 = vmatpush1.msra.mxu0 0.0
  %93 = vmatprep.subr.mxu0 0.0
  %94 = vmatpush1.msra.mxu0 0.0
  %95 = vmatprep.subr.mxu0 0.0
  %96 = vmatpush1.msra.mxu0 0.0
  %97 = vmatprep.mubr.f32.mxu0 0.0
  %98 = vmatmul.mubr.f32.gmra.mrb[0].mxu0 %v31
  %v99 = vpop.f32.mrb[0].mxu0
  %v100 = vadd.f32 0.0, %v99
  %v101 = vpop.f32.mrb[0].mxu0
  %102 = vdwg.mxu0
  %v103 = vld [vmem:[%s2] sm:$0x3]
  %v104 = vmul.f32 %v103, %v103
  %v105 = vld [vmem:[%s3] sm:$0xff]
  %v106 = vld [vmem:[%s3 + $0x8] sm:$0xff]
  %v108 = vsel %vm29, %v104, 0
  %110 = vmatprep.subr.mxu0 0.0
  %111 = vmatpush1.msra.mxu0 %v105
  %112 = vmatprep.subr.mxu0 0.0
  %113 = vmatpush1.msra.mxu0 %v106
  %114 = vmatprep.subr.mxu0 0.0
  %115 = vmatpush1.msra.mxu0 0.0
  %116 = vmatprep.subr.mxu0 0.0
  %117 = vmatpush1.msra.mxu0 0.0
  %118 = vmatprep.subr.mxu0 0.0
  %119 = vmatpush1.msra.mxu0 0.0
  %120 = vmatprep.subr.mxu0 0.0
  %121 = vmatpush1.msra.mxu0 0.0
  %122 = vmatprep.subr.mxu0 0.0
  %123 = vmatpush1.msra.mxu0 0.0
  %124 = vmatprep.subr.mxu0 0.0
  %125 = vmatpush1.msra.mxu0 0.0
  %126 = vmatprep.subr.mxu0 0.0
  %127 = vmatpush1.msra.mxu0 0.0
  %128 = vmatprep.subr.mxu0 0.0
  %129 = vmatpush1.msra.mxu0 0.0
  %130 = vmatprep.subr.mxu0 0.0
  %131 = vmatpush1.msra.mxu0 0.0
  %132 = vmatprep.subr.mxu0 0.0
  %133 = vmatpush1.msra.mxu0 0.0
  %134 = vmatprep.subr.mxu0 0.0
  %135 = vmatpush1.msra.mxu0 0.0
  %136 = vmatprep.subr.mxu0 0.0
  %137 = vmatpush1.msra.mxu0 0.0
  %138 = vmatprep.subr.mxu0 0.0
  %139 = vmatpush1.msra.mxu0 0.0
  %140 = vmatprep.subr.mxu0 0.0
  %141 = vmatpush1.msra.mxu0 0.0
  %142 = vmatprep.subr.mxu0 0.0
  %143 = vmatpush1.msra.mxu0 0.0
  %144 = vmatprep.subr.mxu0 0.0
  %145 = vmatpush1.msra.mxu0 0.0
  %146 = vmatprep.subr.mxu0 0.0
  %147 = vmatpush1.msra.mxu0 0.0
  %148 = vmatprep.subr.mxu0 0.0
  %149 = vmatpush1.msra.mxu0 0.0
  %150 = vmatprep.subr.mxu0 0.0
  %151 = vmatpush1.msra.mxu0 0.0
  %152 = vmatprep.subr.mxu0 0.0
  %153 = vmatpush1.msra.mxu0 0.0
  %154 = vmatprep.subr.mxu0 0.0
  %155 = vmatpush1.msra.mxu0 0.0
  %156 = vmatprep.subr.mxu0 0.0
  %157 = vmatpush1.msra.mxu0 0.0
  %158 = vmatprep.subr.mxu0 0.0
  %159 = vmatpush1.msra.mxu0 0.0
  %160 = vmatprep.subr.mxu0 0.0
  %161 = vmatpush1.msra.mxu0 0.0
  %162 = vmatprep.subr.mxu0 0.0
  %163 = vmatpush1.msra.mxu0 0.0
  %164 = vmatprep.subr.mxu0 0.0
  %165 = vmatpush1.msra.mxu0 0.0
  %166 = vmatprep.subr.mxu0 0.0
  %167 = vmatpush1.msra.mxu0 0.0
  %168 = vmatprep.subr.mxu0 0.0
  %169 = vmatpush1.msra.mxu0 0.0
  %170 = vmatprep.subr.mxu0 0.0
  %171 = vmatpush1.msra.mxu0 0.0
  %172 = vmatprep.subr.mxu0 0.0
  %173 = vmatpush1.msra.mxu0 0.0
  %174 = vmatprep.mubr.f32.mxu0 0.0
  %175 = vmatmul.mubr.f32.gmra.mrb[0].mxu0 %v108
  %v176 = vpop.f32.mrb[0].mxu0
  %v177 = vadd.f32 1e-08, %v176
  %v178 = vpop.f32.mrb[0].mxu0
  %179 = vdwg.mxu0
  %v180 = vrsqrt.pop %v177
  %v181 = vmul.f32 %v100, %v180
  %v182 = vld [vmem:[%s4] sm:$0x3]
  %184 = vset.pattern.permute.xlu0 0
  %185 = vperm.xlu0 %184, %v182
  %v186 = vpop.permute.xlu0 %185
  %v188 = vadd.f32 %v181, %v186
  %v189 = vld [vmem:[%s5] sm:$0x1]
  %v191 = vlaneseq
  %v192 = vshrl.u32 %v191, 7
  %v193 = vsub.s32 0, %v192
  %v194 = vrot.slane %v189, %v193
  %v196 = vadd.f32 %v188, %v194
  %vm197 = vcmp.ge.f32.partialorder %v196, 0.0
  %v198 = vld [vmem:[%s6] sm:$0x1]
  %v200 = vlaneseq
  %v201 = vshrl.u32 %v200, 7
  %v202 = vsub.s32 0, %v201
  %v203 = vrot.slane %v198, %v202
  %v205 = vmul.f32 %v203, %v196
  %v206 = vsel %vm197, %v196, %v205
  %vm207 = vcmask 58368
  %208 = vst.msk [vmem:[%s7] sm:$0x3] %vm207, %v206
  // Predicated region
  $region30: #{_lambda_.30} parent=0 // pred_check
    _
  $region31: #{_lambda_.30} parent=0 // pred_check_branch
    %210 = sbr.rel (0) target = $region33
  $region32: #{_lambda_.30} parent=0 // pred_region
    _
  $region33: #{_lambda_.30} parent=0 // pred_fallthru
    _
  // Predicated region
  $region34: #{_lambda_.30} parent=0 // pred_check
    _
  $region35: #{_lambda_.30} parent=0 // pred_check_branch
    %212 = sbr.rel (0) target = $region37
  $region36: #{_lambda_.30} parent=0 // pred_region
    _
  $region37: #{_lambda_.30} parent=0 // pred_fallthru
    _

</llo_original>
